<compile_context>
chip_gen: v5e
topology: v5e:2x2
jax: 0.10.0
libtpu: 0.0.40
codegen_flags: <defaults>
</compile_context>

<pallas_src>
import functools

import numpy as np
import jax
import jax.numpy as jnp
from jax.experimental import pallas as pl
from jax.experimental.pallas import tpu as pltpu


# ----------------------------- Kernel A: fused GRU -------------------------- #

def gru_wavefront_kernel(num_layers, x_ref, *refs):
    """Fused multi-layer GRU (zero initial state), wavefront-interleaved layers.

    Ref layout (after x_ref):
      [w_ih, w_hh, b_comb, b_hn] * num_layers,     (inputs)
      seq_ref,                                      (output: last layer's h, all t)
      gi_scr                                        (VMEM scratch: hoisted layer-0 gi)

    Shapes (already padded in the wrapper):
      x_ref   : (T, Bp, Ep)      bf16
      w_ih    : (Din_p, 3*Hp)    bf16, gate blocks lane-aligned at multiples of Hp
      w_hh    : (Hp,    3*Hp)    bf16
      b_comb  : (1, 3*Hp)  f32   r/z slots hold b_ih+b_hh, n slot holds b_in only
      b_hn    : (1, Hp)    f32   hidden-side bias of the n gate (inside r*(...))
      seq_ref : (T, Bp, Hp)  f32
      gi_scr  : (T, Bp, 3*Hp) f32
    """
    layer_refs = refs[:4 * num_layers]
    seq_ref = refs[4 * num_layers]
    gi_scr = refs[4 * num_layers + 1]

    T, Bp, Ep = x_ref.shape
    Hp = seq_ref.shape[-1]

    # Layer 0: hoisted input-side matmul over ALL timesteps (one tall bf16 MXU
    # call, off the serial recurrence chain).
    w_ih0_ref, _, b_comb0_ref, _ = layer_refs[0:4]
    x_flat = x_ref[...].reshape(T * Bp, Ep)
    gi_scr[...] = (
        jnp.dot(x_flat, w_ih0_ref[...], preferred_element_type=jnp.float32)
        + b_comb0_ref[...]
    ).reshape(T, Bp, 3 * Hp)

    # Hoist the per-layer bias broadcasts out of the unrolled loop.
    b_comb_b, b_hn_b = [], []
    for l in range(num_layers):
        _, _, b_comb_ref, b_hn_ref = layer_refs[4 * l:4 * l + 4]
        b_comb_b.append(jnp.broadcast_to(b_comb_ref[...], (Bp, 3 * Hp)))
        b_hn_b.append(jnp.broadcast_to(b_hn_ref[...], (Bp, Hp)))

    def gru_cell(l, gi, h_prev_f32, h_prev_b16):
        # W_hh is read from VMEM on every step (vld is nearly free); holding it
        # as a value across the unrolled recurrence would pin ~24 vregs & spill.
        w_hh_ref = layer_refs[4 * l + 1]
        gh = jnp.dot(h_prev_b16, w_hh_ref[...], preferred_element_type=jnp.float32)
        r = jax.nn.sigmoid(gi[:, 0:Hp] + gh[:, 0:Hp])
        z = jax.nn.sigmoid(gi[:, Hp:2 * Hp] + gh[:, Hp:2 * Hp])
        n = jnp.tanh(gi[:, 2 * Hp:3 * Hp] + r * (gh[:, 2 * Hp:3 * Hp] + b_hn_b[l]))
        return n + z * (h_prev_f32 - n)              # == (1-z)*n + z*h

    # Wavefront recurrence (statically unrolled, T is small here).
    # TODO(synk): for T >~ 16, convert this to a lightly-unrolled lax.fori_loop
    #             (with prologue/epilogue waves) to bound live ranges.
    h_f32 = [jnp.zeros((Bp, Hp), jnp.float32) for _ in range(num_layers)]
    h_b16 = [jnp.zeros((Bp, Hp), jnp.bfloat16) for _ in range(num_layers)]

    for s in range(T + num_layers - 1):
        prev_f32 = list(h_f32)      # snapshot: layer l needs layer l-1 at time t,
        prev_b16 = list(h_b16)      # which is the value from the PREVIOUS wave.
        for l in range(num_layers):
            t = s - l
            if not (0 <= t < T):
                continue
            if l == 0:
                gi = gi_scr[t]
            else:
                # Incremental input-gate term for deeper layers; depends only on
                # an already-finished step of layer l-1, so it is off this
                # layer's critical path.
                w_ih_ref = layer_refs[4 * l]
                gi = (jnp.dot(prev_b16[l - 1], w_ih_ref[...],
                              preferred_element_type=jnp.float32)
                      + b_comb_b[l])
            h_new = gru_cell(l, gi, prev_f32[l], prev_b16[l])
            h_f32[l] = h_new
            h_b16[l] = h_new.astype(jnp.bfloat16)
            if l == num_layers - 1:
                seq_ref[t] = h_new


# ------------------------ Kernel B: packed output Linear -------------------- #

def output_proj_kernel(h_ref, w_ref, b_ref, o_ref):
    o_ref[...] = (
        jnp.dot(h_ref[...], w_ref[...], preferred_element_type=jnp.float32)
        + b_ref[...]
    ).astype(o_ref.dtype)


# ---------------------------- packing helpers ------------------------------- #

def _round_up(x, m):
    return ((x + m - 1) // m) * m


def _pack_gate_weight(w, H, Hp, Din_p):
    """PyTorch (3H, Din) gate-stacked weight -> transposed (Din_p, 3*Hp),
    with each gate's columns lane-aligned at multiples of Hp."""
    Din = w.shape[1]
    out = jnp.zeros((Din_p, 3 * Hp), jnp.float32)
    for g in range(3):
        out = out.at[:Din, g * Hp:g * Hp + H].set(w[g * H:(g + 1) * H, :].T)
    return out


def _pack_bias_comb(b_ih, b_hh, H, Hp):
    """(1, 3*Hp): r/z slots get b_ih+b_hh, n slot gets b_in only."""
    out = jnp.zeros((1, 3 * Hp), jnp.float32)
    out = out.at[0, 0 * Hp:0 * Hp + H].set(b_ih[0:H] + b_hh[0:H])           # r
    out = out.at[0, 1 * Hp:1 * Hp + H].set(b_ih[H:2 * H] + b_hh[H:2 * H])   # z
    out = out.at[0, 2 * Hp:2 * Hp + H].set(b_ih[2 * H:3 * H])               # n (input part)
    return out


def _pack_bhn(b_hh, H, Hp):
    out = jnp.zeros((1, Hp), jnp.float32)
    return out.at[0, :H].set(b_hh[2 * H:3 * H])


def _packed_indices(lengths, B):
    """pack_padded_sequence(batch_first=True) ordering: for each timestep t, all
    (sorted-descending) batch elements with lengths[b] > t, in batch order."""
    # Note: O(sum(lengths)) host-side index construction; cache it if this is
    # called repeatedly with the same `lengths`.
    max_len = max(lengths)
    idx_b, idx_t = [], []
    for t in range(max_len):
        for b in range(B):
            if lengths[b] > t:
                idx_b.append(b)
                idx_t.append(t)
    return idx_t, idx_b


# ------------------------------ JAX wrapper --------------------------------- #

def decoder_rnn_old_forward(params, features, captions, lengths):
    """Matches DecoderRNNOld.forward.

    features: (B, E) float32
    captions: (B, T_cap) int32
    lengths : python list of ints, sorted descending, each <= T_cap+1
    returns : (sum(lengths), vocab_size) float32 -- logits over packed timesteps
    """
    B, T_cap = captions.shape
    E = features.shape[1]
    H = params["w_hh_l0"].shape[1]
    V = params["w_out"].shape[0]
    L = params["num_layers"]
    T = T_cap + 1

    # Padded sizes: sublane-dense batch, lane-dense feature/hidden/vocab dims.
    Bp = _round_up(max(B, 8), 8)
    Ep = _round_up(E, 128)
    Hp = _round_up(H, 128)
    Vp = _round_up(V, 128)

    # Embedding lookup + prepend image features (gather glue, not the hot path).
    emb = jnp.take(params["embed"], captions, axis=0)                      # (B, T_cap, E)
    emb = jnp.concatenate([features[:, None, :], emb], axis=1)             # (B, T, E)
    x = jnp.transpose(emb, (1, 0, 2))                                      # (T, B, E)
    x = jnp.pad(x, ((0, 0), (0, Bp - B), (0, Ep - E))).astype(jnp.bfloat16)

    ops = [x]
    in_specs = [pl.BlockSpec((T, Bp, Ep), lambda: (0, 0, 0))]
    for layer in range(L):
        Din_p = Ep if layer == 0 else Hp
        ops += [
            _pack_gate_weight(params[f"w_ih_l{layer}"], H, Hp, Din_p).astype(jnp.bfloat16),
            _pack_gate_weight(params[f"w_hh_l{layer}"], H, Hp, Hp).astype(jnp.bfloat16),
            _pack_bias_comb(params[f"b_ih_l{layer}"], params[f"b_hh_l{layer}"], H, Hp),
            _pack_bhn(params[f"b_hh_l{layer}"], H, Hp),
        ]
        in_specs += [
            pl.BlockSpec((Din_p, 3 * Hp), lambda: (0, 0)),
            pl.BlockSpec((Hp, 3 * Hp), lambda: (0, 0)),
            pl.BlockSpec((1, 3 * Hp), lambda: (0, 0)),
            pl.BlockSpec((1, Hp), lambda: (0, 0)),
        ]

    # --- Kernel A: fused wavefront GRU -> last layer's hidden for all t. ---
    seq = pl.pallas_call(
        functools.partial(gru_wavefront_kernel, L),
        out_shape=jax.ShapeDtypeStruct((T, Bp, Hp), jnp.float32),
        in_specs=in_specs,
        out_specs=pl.BlockSpec((T, Bp, Hp), lambda: (0, 0, 0)),
        scratch_shapes=[pltpu.VMEM((T, Bp, 3 * Hp), jnp.float32)],
        compiler_params=pltpu.CompilerParams(vmem_limit_bytes=32 * 1024 * 1024),
    )(*ops)                                                                # (T, Bp, Hp)

    # --- Packed gather (index glue) BEFORE projection: only valid rows hit MXU. ---
    idx_t, idx_b = _packed_indices(lengths, B)
    N = len(idx_b)
    hid = seq[jnp.array(idx_t), jnp.array(idx_b), :]                       # (N, Hp)

    if N <= 512:
        Np = _round_up(max(N, 8), 8)
        tm = Np
    else:
        tm = 256
        Np = _round_up(N, tm)
    hid = jnp.pad(hid, ((0, Np - N), (0, 0))).astype(jnp.bfloat16)

    tn = 512 if Vp % 512 == 0 else 128
    w_out = (jnp.zeros((Hp, Vp), jnp.float32)
             .at[:H, :V].set(params["w_out"].T)).astype(jnp.bfloat16)
    b_out = jnp.zeros((1, Vp), jnp.float32).at[0, :V].set(params["b_out"])

    # --- Kernel B: tiled output projection over (rows, vocab). ---
    logits = pl.pallas_call(
        output_proj_kernel,
        out_shape=jax.ShapeDtypeStruct((Np, Vp), jnp.float32),
        grid=(Np // tm, Vp // tn),
        in_specs=[pl.BlockSpec((tm, Hp), lambda i, j: (i, 0)),
                  pl.BlockSpec((Hp, tn), lambda i, j: (0, j)),
                  pl.BlockSpec((1, tn), lambda i, j: (0, j))],
        out_specs=pl.BlockSpec((tm, tn), lambda i, j: (i, j)),
        compiler_params=pltpu.CompilerParams(
            dimension_semantics=("parallel", "parallel")),
    )(hid, w_out, b_out)                                                   # (Np, Vp)

    return logits[:N, :V]


# ------------------------- pure-JAX reference (check) ------------------------ #

def _gru_layer_ref(x, w_ih, w_hh, b_ih, b_hh, mm_dtype):
    T, B, _ = x.shape
    H = w_hh.shape[1]
    w_ih_t = w_ih.T.astype(mm_dtype)
    w_hh_t = w_hh.T.astype(mm_dtype)
    h0 = jnp.zeros((B, H), jnp.float32)

    def step(h, x_t):
        gi = jnp.dot(x_t.astype(mm_dtype), w_ih_t,
                     preferred_element_type=jnp.float32) + b_ih
        gh = jnp.dot(h.astype(mm_dtype), w_hh_t,
                     preferred_element_type=jnp.float32) + b_hh
        r = jax.nn.sigmoid(gi[:, :H] + gh[:, :H])
        z = jax.nn.sigmoid(gi[:, H:2 * H] + gh[:, H:2 * H])
        n = jnp.tanh(gi[:, 2 * H:] + r * gh[:, 2 * H:])
        h_new = (1.0 - z) * n + z * h
        return h_new, h_new

    _, outs = jax.lax.scan(step, h0, x)
    return outs


def decoder_rnn_old_forward_ref(params, features, captions, lengths,
                                mm_dtype=jnp.float32):
    B, _ = captions.shape
    embeddings = jnp.take(params["embed"], captions, axis=0)
    embeddings = jnp.concatenate([features[:, None, :], embeddings], axis=1)
    x = jnp.transpose(embeddings, (1, 0, 2))
    for layer in range(params["num_layers"]):
        x = _gru_layer_ref(x,
                           params[f"w_ih_l{layer}"], params[f"w_hh_l{layer}"],
                           params[f"b_ih_l{layer}"], params[f"b_hh_l{layer}"],
                           mm_dtype)
    padded_out = jnp.transpose(x, (1, 0, 2))
    idx_t, idx_b = _packed_indices(lengths, B)
    packed = padded_out[jnp.array(idx_b), jnp.array(idx_t)]
    return (jnp.dot(packed.astype(mm_dtype), params["w_out"].T.astype(mm_dtype),
                    preferred_element_type=jnp.float32) + params["b_out"])


# ----------------------------------- main ----------------------------------- #

if __name__ == "__main__":
    # Hyper-parameters (small, consistent with the module's __init__).
    embed_size, hidden_size, vocab_size, num_layers = 32, 32, 48, 2
    B, T_cap = 2, 8
    lengths = [9, 7]  # sorted descending, each <= T_cap + 1

    key = jax.random.PRNGKey(0)
    ks = jax.random.split(key, 16)
    s = 1.0 / np.sqrt(hidden_size)

    params = {"num_layers": num_layers}
    params["embed"] = jax.random.normal(ks[0], (vocab_size, embed_size), jnp.float32) * 0.1
    k_i = 1
    for layer in range(num_layers):
        in_dim = embed_size if layer == 0 else hidden_size
        params[f"w_ih_l{layer}"] = jax.random.uniform(
            ks[k_i], (3 * hidden_size, in_dim), jnp.float32, -s, s); k_i += 1
        params[f"w_hh_l{layer}"] = jax.random.uniform(
            ks[k_i], (3 * hidden_size, hidden_size), jnp.float32, -s, s); k_i += 1
        params[f"b_ih_l{layer}"] = jax.random.uniform(
            ks[k_i], (3 * hidden_size,), jnp.float32, -s, s); k_i += 1
        params[f"b_hh_l{layer}"] = jax.random.uniform(
            ks[k_i], (3 * hidden_size,), jnp.float32, -s, s); k_i += 1
    params["w_out"] = jax.random.uniform(
        ks[k_i], (vocab_size, hidden_size), jnp.float32, -s, s); k_i += 1
    params["b_out"] = jax.random.uniform(
        ks[k_i], (vocab_size,), jnp.float32, -s, s); k_i += 1

    features = jax.random.normal(ks[k_i], (B, embed_size), jnp.float32)
    captions = jax.random.randint(ks[k_i + 1], (B, T_cap), 0, vocab_size, jnp.int32)

    out = decoder_rnn_old_forward(params, features, captions, lengths)
    out = jax.block_until_ready(out)
    assert out.shape == (sum(lengths), vocab_size), out.shape

    # Strict check vs. a reference that uses the same bf16 matmul operands
    # (f32 accumulation), matching the kernel's numerics.
    ref_b16 = decoder_rnn_old_forward_ref(params, features, captions, lengths,
                                          mm_dtype=jnp.bfloat16)
    np.testing.assert_allclose(np.asarray(out), np.asarray(ref_b16),
                               atol=2e-3, rtol=2e-3)

    # Loose sanity check vs. the full-f32 reference (bounds the bf16 drift).
    ref_f32 = decoder_rnn_old_forward_ref(params, features, captions, lengths,
                                          mm_dtype=jnp.float32)
    np.testing.assert_allclose(np.asarray(out), np.asarray(ref_f32),
                               atol=1e-1, rtol=1e-1)

    print("KERNEL_OK")
</pallas_src>

<mosaic_0001>
module attributes {stable_mosaic.version = 11 : i64} {
  func.func @gru_wavefront_kernel(%arg0: memref<9x8x128xbf16, #tpu.memory_space<vmem>>, %arg1: memref<128x384xbf16, #tpu.memory_space<vmem>>, %arg2: memref<128x384xbf16, #tpu.memory_space<vmem>>, %arg3: memref<1x384xf32, #tpu.memory_space<vmem>>, %arg4: memref<1x128xf32, #tpu.memory_space<vmem>>, %arg5: memref<128x384xbf16, #tpu.memory_space<vmem>>, %arg6: memref<128x384xbf16, #tpu.memory_space<vmem>>, %arg7: memref<1x384xf32, #tpu.memory_space<vmem>>, %arg8: memref<1x128xf32, #tpu.memory_space<vmem>>, %arg9: memref<9x8x128xf32, #tpu.memory_space<vmem>>, %arg10: memref<9x8x384xf32, #tpu.memory_space<vmem>>) attributes {dimension_semantics = [], scalar_prefetch = 0 : i64, scratch_operands = 1 : i64, tpu.core_type = #tpu.core_type<tc>} {
    %c0 = arith.constant 0 : index
    %c0_0 = arith.constant 0 : index
    %c0_1 = arith.constant 0 : index
    %0 = vector.load %arg0[%c0, %c0_0, %c0_1] : memref<9x8x128xbf16, #tpu.memory_space<vmem>>, vector<9x8x128xbf16>
    %1 = vector.shape_cast %0 : vector<9x8x128xbf16> to vector<72x128xbf16>
    %c0_2 = arith.constant 0 : index
    %c0_3 = arith.constant 0 : index
    %2 = vector.load %arg1[%c0_2, %c0_3] : memref<128x384xbf16, #tpu.memory_space<vmem>>, vector<128x384xbf16>
    %cst = arith.constant dense<0.000000e+00> : vector<72x384xf32>
    %3 = tpu.matmul %1, %2, %cst {dimension_numbers = #tpu.dot_dimension_numbers<[1], [0], [0], [1], [0, 0, 1, 1], [], []>} : vector<72x128xbf16>, vector<128x384xbf16>, vector<72x384xf32> -> vector<72x384xf32>
    %c0_4 = arith.constant 0 : index
    %c0_5 = arith.constant 0 : index
    %4 = vector.load %arg3[%c0_4, %c0_5] : memref<1x384xf32, #tpu.memory_space<vmem>>, vector<1x384xf32>
    %5 = vector.broadcast %4 : vector<1x384xf32> to vector<72x384xf32>
    %6 = arith.addf %3, %5 : vector<72x384xf32>
    %7 = vector.shape_cast %6 : vector<72x384xf32> to vector<9x8x384xf32>
    %c0_6 = arith.constant 0 : index
    %c0_7 = arith.constant 0 : index
    %c0_8 = arith.constant 0 : index
    %8 = vector.load %arg10[%c0_6, %c0_7, %c0_8] : memref<9x8x384xf32, #tpu.memory_space<vmem>>, vector<9x8x384xf32>
    tpu.vector_store %arg10[%c0_6, %c0_7, %c0_8], %7 {strides = array<i32>} : memref<9x8x384xf32, #tpu.memory_space<vmem>>, vector<9x8x384xf32>,
    %c0_9 = arith.constant 0 : index
    %c0_10 = arith.constant 0 : index
    %9 = vector.load %arg4[%c0_9, %c0_10] : memref<1x128xf32, #tpu.memory_space<vmem>>, vector<1x128xf32>
    %10 = vector.shape_cast %9 : vector<1x128xf32> to vector<1x128xf32>
    %11 = vector.broadcast %10 : vector<1x128xf32> to vector<8x128xf32>
    %c0_11 = arith.constant 0 : index
    %c0_12 = arith.constant 0 : index
    %12 = vector.load %arg7[%c0_11, %c0_12] : memref<1x384xf32, #tpu.memory_space<vmem>>, vector<1x384xf32>
    %13 = vector.shape_cast %12 : vector<1x384xf32> to vector<1x384xf32>
    %14 = vector.broadcast %13 : vector<1x384xf32> to vector<8x384xf32>
    %c0_13 = arith.constant 0 : index
    %c0_14 = arith.constant 0 : index
    %15 = vector.load %arg8[%c0_13, %c0_14] : memref<1x128xf32, #tpu.memory_space<vmem>>, vector<1x128xf32>
    %16 = vector.shape_cast %15 : vector<1x128xf32> to vector<1x128xf32>
    %17 = vector.broadcast %16 : vector<1x128xf32> to vector<8x128xf32>
    %cst_15 = arith.constant 0.000000e+00 : f32
    %18 = vector.broadcast %cst_15 : f32 to vector<8x128xf32>
    %cst_16 = arith.constant 0.000000e+00 : f32
    %19 = vector.broadcast %cst_16 : f32 to vector<8x128xf32>
    %cst_17 = arith.constant 0.000000e+00 : bf16
    %20 = vector.broadcast %cst_17 : bf16 to vector<8x128xbf16>
    %cst_18 = arith.constant 0.000000e+00 : bf16
    %21 = vector.broadcast %cst_18 : bf16 to vector<8x128xbf16>
    %c0_19 = arith.constant 0 : index
    %c0_20 = arith.constant 0 : index
    %c0_21 = arith.constant 0 : index
    %22 = vector.load %arg10[%c0_19, %c0_20, %c0_21] : memref<9x8x384xf32, #tpu.memory_space<vmem>>, vector<1x8x384xf32>
    %23 = vector.shape_cast %22 : vector<1x8x384xf32> to vector<8x384xf32>
    %c0_22 = arith.constant 0 : index
    %c0_23 = arith.constant 0 : index
    %24 = vector.load %arg2[%c0_22, %c0_23] : memref<128x384xbf16, #tpu.memory_space<vmem>>, vector<128x384xbf16>
    %cst_24 = arith.constant dense<0.000000e+00> : vector<8x384xf32>
    %25 = tpu.matmul %20, %24, %cst_24 {dimension_numbers = #tpu.dot_dimension_numbers<[1], [0], [0], [1], [0, 0, 1, 1], [], []>} : vector<8x128xbf16>, vector<128x384xbf16>, vector<8x384xf32> -> vector<8x384xf32>
    %26 = vector.extract_strided_slice %23 {offsets = [0, 0], sizes = [8, 128], strides = [1, 1]} : vector<8x384xf32> to vector<8x128xf32>
    %27 = vector.extract_strided_slice %25 {offsets = [0, 0], sizes = [8, 128], strides = [1, 1]} : vector<8x384xf32> to vector<8x128xf32>
    %28 = arith.addf %26, %27 : vector<8x128xf32>
    %29 = arith.negf %28 : vector<8x128xf32>
    %30 = math.exp %29 : vector<8x128xf32>
    %cst_25 = arith.constant 1.000000e+00 : f32
    %31 = vector.broadcast %cst_25 : f32 to vector<8x128xf32>
    %32 = arith.addf %31, %30 : vector<8x128xf32>
    %33 = arith.divf %31, %32 : vector<8x128xf32>
    %34 = vector.extract_strided_slice %23 {offsets = [0, 128], sizes = [8, 128], strides = [1, 1]} : vector<8x384xf32> to vector<8x128xf32>
    %35 = vector.extract_strided_slice %25 {offsets = [0, 128], sizes = [8, 128], strides = [1, 1]} : vector<8x384xf32> to vector<8x128xf32>
    %36 = arith.addf %34, %35 : vector<8x128xf32>
    %37 = arith.negf %36 : vector<8x128xf32>
    %38 = math.exp %37 : vector<8x128xf32>
    %cst_26 = arith.constant 1.000000e+00 : f32
    %39 = vector.broadcast %cst_26 : f32 to vector<8x128xf32>
    %40 = arith.addf %39, %38 : vector<8x128xf32>
    %41 = arith.divf %39, %40 : vector<8x128xf32>
    %42 = vector.extract_strided_slice %23 {offsets = [0, 256], sizes = [8, 128], strides = [1, 1]} : vector<8x384xf32> to vector<8x128xf32>
    %43 = vector.extract_strided_slice %25 {offsets = [0, 256], sizes = [8, 128], strides = [1, 1]} : vector<8x384xf32> to vector<8x128xf32>
    %44 = arith.addf %43, %11 : vector<8x128xf32>
    %45 = arith.mulf %33, %44 : vector<8x128xf32>
    %46 = arith.addf %42, %45 : vector<8x128xf32>
    %47 = math.tanh %46 : vector<8x128xf32>
    %48 = arith.subf %18, %47 : vector<8x128xf32>
    %49 = arith.mulf %41, %48 : vector<8x128xf32>
    %50 = arith.addf %47, %49 : vector<8x128xf32>
    %51 = arith.truncf %50 : vector<8x128xf32> to vector<8x128xbf16>
    %c1 = arith.constant 1 : index
    %c0_27 = arith.constant 0 : index
    %c0_28 = arith.constant 0 : index
    %52 = vector.load %arg10[%c1, %c0_27, %c0_28] : memref<9x8x384xf32, #tpu.memory_space<vmem>>, vector<1x8x384xf32>
    %53 = vector.shape_cast %52 : vector<1x8x384xf32> to vector<8x384xf32>
    %c0_29 = arith.constant 0 : index
    %c0_30 = arith.constant 0 : index
    %54 = vector.load %arg2[%c0_29, %c0_30] : memref<128x384xbf16, #tpu.memory_space<vmem>>, vector<128x384xbf16>
    %cst_31 = arith.constant dense<0.000000e+00> : vector<8x384xf32>
    %55 = tpu.matmul %51, %54, %cst_31 {dimension_numbers = #tpu.dot_dimension_numbers<[1], [0], [0], [1], [0, 0, 1, 1], [], []>} : vector<8x128xbf16>, vector<128x384xbf16>, vector<8x384xf32> -> vector<8x384xf32>
    %56 = vector.extract_strided_slice %53 {offsets = [0, 0], sizes = [8, 128], strides = [1, 1]} : vector<8x384xf32> to vector<8x128xf32>
    %57 = vector.extract_strided_slice %55 {offsets = [0, 0], sizes = [8, 128], strides = [1, 1]} : vector<8x384xf32> to vector<8x128xf32>
    %58 = arith.addf %56, %57 : vector<8x128xf32>
    %59 = arith.negf %58 : vector<8x128xf32>
    %60 = math.exp %59 : vector<8x128xf32>
    %cst_32 = arith.constant 1.000000e+00 : f32
    %61 = vector.broadcast %cst_32 : f32 to vector<8x128xf32>
    %62 = arith.addf %61, %60 : vector<8x128xf32>
    %63 = arith.divf %61, %62 : vector<8x128xf32>
    %64 = vector.extract_strided_slice %53 {offsets = [0, 128], sizes = [8, 128], strides = [1, 1]} : vector<8x384xf32> to vector<8x128xf32>
    %65 = vector.extract_strided_slice %55 {offsets = [0, 128], sizes = [8, 128], strides = [1, 1]} : vector<8x384xf32> to vector<8x128xf32>
    %66 = arith.addf %64, %65 : vector<8x128xf32>
    %67 = arith.negf %66 : vector<8x128xf32>
    %68 = math.exp %67 : vector<8x128xf32>
    %cst_33 = arith.constant 1.000000e+00 : f32
    %69 = vector.broadcast %cst_33 : f32 to vector<8x128xf32>
    %70 = arith.addf %69, %68 : vector<8x128xf32>
    %71 = arith.divf %69, %70 : vector<8x128xf32>
    %72 = vector.extract_strided_slice %53 {offsets = [0, 256], sizes = [8, 128], strides = [1, 1]} : vector<8x384xf32> to vector<8x128xf32>
    %73 = vector.extract_strided_slice %55 {offsets = [0, 256], sizes = [8, 128], strides = [1, 1]} : vector<8x384xf32> to vector<8x128xf32>
    %74 = arith.addf %73, %11 : vector<8x128xf32>
    %75 = arith.mulf %63, %74 : vector<8x128xf32>
    %76 = arith.addf %72, %75 : vector<8x128xf32>
    %77 = math.tanh %76 : vector<8x128xf32>
    %78 = arith.subf %50, %77 : vector<8x128xf32>
    %79 = arith.mulf %71, %78 : vector<8x128xf32>
    %80 = arith.addf %77, %79 : vector<8x128xf32>
    %81 = arith.truncf %80 : vector<8x128xf32> to vector<8x128xbf16>
    %c0_34 = arith.constant 0 : index
    %c0_35 = arith.constant 0 : index
    %82 = vector.load %arg5[%c0_34, %c0_35] : memref<128x384xbf16, #tpu.memory_space<vmem>>, vector<128x384xbf16>
    %cst_36 = arith.constant dense<0.000000e+00> : vector<8x384xf32>
    %83 = tpu.matmul %51, %82, %cst_36 {dimension_numbers = #tpu.dot_dimension_numbers<[1], [0], [0], [1], [0, 0, 1, 1], [], []>} : vector<8x128xbf16>, vector<128x384xbf16>, vector<8x384xf32> -> vector<8x384xf32>
    %84 = arith.addf %83, %14 : vector<8x384xf32>
    %c0_37 = arith.constant 0 : index
    %c0_38 = arith.constant 0 : index
    %85 = vector.load %arg6[%c0_37, %c0_38] : memref<128x384xbf16, #tpu.memory_space<vmem>>, vector<128x384xbf16>
    %cst_39 = arith.constant dense<0.000000e+00> : vector<8x384xf32>
    %86 = tpu.matmul %21, %85, %cst_39 {dimension_numbers = #tpu.dot_dimension_numbers<[1], [0], [0], [1], [0, 0, 1, 1], [], []>} : vector<8x128xbf16>, vector<128x384xbf16>, vector<8x384xf32> -> vector<8x384xf32>
    %87 = vector.extract_strided_slice %84 {offsets = [0, 0], sizes = [8, 128], strides = [1, 1]} : vector<8x384xf32> to vector<8x128xf32>
    %88 = vector.extract_strided_slice %86 {offsets = [0, 0], sizes = [8, 128], strides = [1, 1]} : vector<8x384xf32> to vector<8x128xf32>
    %89 = arith.addf %87, %88 : vector<8x128xf32>
    %90 = arith.negf %89 : vector<8x128xf32>
    %91 = math.exp %90 : vector<8x128xf32>
    %cst_40 = arith.constant 1.000000e+00 : f32
    %92 = vector.broadcast %cst_40 : f32 to vector<8x128xf32>
    %93 = arith.addf %92, %91 : vector<8x128xf32>
    %94 = arith.divf %92, %93 : vector<8x128xf32>
    %95 = vector.extract_strided_slice %84 {offsets = [0, 128], sizes = [8, 128], strides = [1, 1]} : vector<8x384xf32> to vector<8x128xf32>
    %96 = vector.extract_strided_slice %86 {offsets = [0, 128], sizes = [8, 128], strides = [1, 1]} : vector<8x384xf32> to vector<8x128xf32>
    %97 = arith.addf %95, %96 : vector<8x128xf32>
    %98 = arith.negf %97 : vector<8x128xf32>
    %99 = math.exp %98 : vector<8x128xf32>
    %cst_41 = arith.constant 1.000000e+00 : f32
    %100 = vector.broadcast %cst_41 : f32 to vector<8x128xf32>
    %101 = arith.addf %100, %99 : vector<8x128xf32>
    %102 = arith.divf %100, %101 : vector<8x128xf32>
    %103 = vector.extract_strided_slice %84 {offsets = [0, 256], sizes = [8, 128], strides = [1, 1]} : vector<8x384xf32> to vector<8x128xf32>
    %104 = vector.extract_strided_slice %86 {offsets = [0, 256], sizes = [8, 128], strides = [1, 1]} : vector<8x384xf32> to vector<8x128xf32>
    %105 = arith.addf %104, %17 : vector<8x128xf32>
    %106 = arith.mulf %94, %105 : vector<8x128xf32>
    %107 = arith.addf %103, %106 : vector<8x128xf32>
    %108 = math.tanh %107 : vector<8x128xf32>
    %109 = arith.subf %19, %108 : vector<8x128xf32>
    %110 = arith.mulf %102, %109 : vector<8x128xf32>
    %111 = arith.addf %108, %110 : vector<8x128xf32>
    %112 = arith.truncf %111 : vector<8x128xf32> to vector<8x128xbf16>
    %c0_42 = arith.constant 0 : index
    %c0_43 = arith.constant 0 : index
    %c0_44 = arith.constant 0 : index
    %113 = vector.load %arg9[%c0_42, %c0_43, %c0_44] : memref<9x8x128xf32, #tpu.memory_space<vmem>>, vector<1x8x128xf32>
    %114 = vector.shape_cast %113 : vector<1x8x128xf32> to vector<8x128xf32>
    %115 = vector.shape_cast %111 : vector<8x128xf32> to vector<1x8x128xf32>
    tpu.vector_store %arg9[%c0_42, %c0_43, %c0_44], %115 {strides = array<i32>} : memref<9x8x128xf32, #tpu.memory_space<vmem>>, vector<1x8x128xf32>,
    %c2 = arith.constant 2 : index
    %c0_45 = arith.constant 0 : index
    %c0_46 = arith.constant 0 : index
    %116 = vector.load %arg10[%c2, %c0_45, %c0_46] : memref<9x8x384xf32, #tpu.memory_space<vmem>>, vector<1x8x384xf32>
    %117 = vector.shape_cast %116 : vector<1x8x384xf32> to vector<8x384xf32>
    %c0_47 = arith.constant 0 : index
    %c0_48 = arith.constant 0 : index
    %118 = vector.load %arg2[%c0_47, %c0_48] : memref<128x384xbf16, #tpu.memory_space<vmem>>, vector<128x384xbf16>
    %cst_49 = arith.constant dense<0.000000e+00> : vector<8x384xf32>
    %119 = tpu.matmul %81, %118, %cst_49 {dimension_numbers = #tpu.dot_dimension_numbers<[1], [0], [0], [1], [0, 0, 1, 1], [], []>} : vector<8x128xbf16>, vector<128x384xbf16>, vector<8x384xf32> -> vector<8x384xf32>
    %120 = vector.extract_strided_slice %117 {offsets = [0, 0], sizes = [8, 128], strides = [1, 1]} : vector<8x384xf32> to vector<8x128xf32>
    %121 = vector.extract_strided_slice %119 {offsets = [0, 0], sizes = [8, 128], strides = [1, 1]} : vector<8x384xf32> to vector<8x128xf32>
    %122 = arith.addf %120, %121 : vector<8x128xf32>
    %123 = arith.negf %122 : vector<8x128xf32>
    %124 = math.exp %123 : vector<8x128xf32>
    %cst_50 = arith.constant 1.000000e+00 : f32
    %125 = vector.broadcast %cst_50 : f32 to vector<8x128xf32>
    %126 = arith.addf %125, %124 : vector<8x128xf32>
    %127 = arith.divf %125, %126 : vector<8x128xf32>
    %128 = vector.extract_strided_slice %117 {offsets = [0, 128], sizes = [8, 128], strides = [1, 1]} : vector<8x384xf32> to vector<8x128xf32>
    %129 = vector.extract_strided_slice %119 {offsets = [0, 128], sizes = [8, 128], strides = [1, 1]} : vector<8x384xf32> to vector<8x128xf32>
    %130 = arith.addf %128, %129 : vector<8x128xf32>
    %131 = arith.negf %130 : vector<8x128xf32>
    %132 = math.exp %131 : vector<8x128xf32>
    %cst_51 = arith.constant 1.000000e+00 : f32
    %133 = vector.broadcast %cst_51 : f32 to vector<8x128xf32>
    %134 = arith.addf %133, %132 : vector<8x128xf32>
    %135 = arith.divf %133, %134 : vector<8x128xf32>
    %136 = vector.extract_strided_slice %117 {offsets = [0, 256], sizes = [8, 128], strides = [1, 1]} : vector<8x384xf32> to vector<8x128xf32>
    %137 = vector.extract_strided_slice %119 {offsets = [0, 256], sizes = [8, 128], strides = [1, 1]} : vector<8x384xf32> to vector<8x128xf32>
    %138 = arith.addf %137, %11 : vector<8x128xf32>
    %139 = arith.mulf %127, %138 : vector<8x128xf32>
    %140 = arith.addf %136, %139 : vector<8x128xf32>
    %141 = math.tanh %140 : vector<8x128xf32>
    %142 = arith.subf %80, %141 : vector<8x128xf32>
    %143 = arith.mulf %135, %142 : vector<8x128xf32>
    %144 = arith.addf %141, %143 : vector<8x128xf32>
    %145 = arith.truncf %144 : vector<8x128xf32> to vector<8x128xbf16>
    %c0_52 = arith.constant 0 : index
    %c0_53 = arith.constant 0 : index
    %146 = vector.load %arg5[%c0_52, %c0_53] : memref<128x384xbf16, #tpu.memory_space<vmem>>, vector<128x384xbf16>
    %cst_54 = arith.constant dense<0.000000e+00> : vector<8x384xf32>
    %147 = tpu.matmul %81, %146, %cst_54 {dimension_numbers = #tpu.dot_dimension_numbers<[1], [0], [0], [1], [0, 0, 1, 1], [], []>} : vector<8x128xbf16>, vector<128x384xbf16>, vector<8x384xf32> -> vector<8x384xf32>
    %148 = arith.addf %147, %14 : vector<8x384xf32>
    %c0_55 = arith.constant 0 : index
    %c0_56 = arith.constant 0 : index
    %149 = vector.load %arg6[%c0_55, %c0_56] : memref<128x384xbf16, #tpu.memory_space<vmem>>, vector<128x384xbf16>
    %cst_57 = arith.constant dense<0.000000e+00> : vector<8x384xf32>
    %150 = tpu.matmul %112, %149, %cst_57 {dimension_numbers = #tpu.dot_dimension_numbers<[1], [0], [0], [1], [0, 0, 1, 1], [], []>} : vector<8x128xbf16>, vector<128x384xbf16>, vector<8x384xf32> -> vector<8x384xf32>
    %151 = vector.extract_strided_slice %148 {offsets = [0, 0], sizes = [8, 128], strides = [1, 1]} : vector<8x384xf32> to vector<8x128xf32>
    %152 = vector.extract_strided_slice %150 {offsets = [0, 0], sizes = [8, 128], strides = [1, 1]} : vector<8x384xf32> to vector<8x128xf32>
    %153 = arith.addf %151, %152 : vector<8x128xf32>
    %154 = arith.negf %153 : vector<8x128xf32>
    %155 = math.exp %154 : vector<8x128xf32>
    %cst_58 = arith.constant 1.000000e+00 : f32
    %156 = vector.broadcast %cst_58 : f32 to vector<8x128xf32>
    %157 = arith.addf %156, %155 : vector<8x128xf32>
    %158 = arith.divf %156, %157 : vector<8x128xf32>
    %159 = vector.extract_strided_slice %148 {offsets = [0, 128], sizes = [8, 128], strides = [1, 1]} : vector<8x384xf32> to vector<8x128xf32>
    %160 = vector.extract_strided_slice %150 {offsets = [0, 128], sizes = [8, 128], strides = [1, 1]} : vector<8x384xf32> to vector<8x128xf32>
    %161 = arith.addf %159, %160 : vector<8x128xf32>
    %162 = arith.negf %161 : vector<8x128xf32>
    %163 = math.exp %162 : vector<8x128xf32>
    %cst_59 = arith.constant 1.000000e+00 : f32
    %164 = vector.broadcast %cst_59 : f32 to vector<8x128xf32>
    %165 = arith.addf %164, %163 : vector<8x128xf32>
    %166 = arith.divf %164, %165 : vector<8x128xf32>
    %167 = vector.extract_strided_slice %148 {offsets = [0, 256], sizes = [8, 128], strides = [1, 1]} : vector<8x384xf32> to vector<8x128xf32>
    %168 = vector.extract_strided_slice %150 {offsets = [0, 256], sizes = [8, 128], strides = [1, 1]} : vector<8x384xf32> to vector<8x128xf32>
    %169 = arith.addf %168, %17 : vector<8x128xf32>
    %170 = arith.mulf %158, %169 : vector<8x128xf32>
    %171 = arith.addf %167, %170 : vector<8x128xf32>
    %172 = math.tanh %171 : vector<8x128xf32>
    %173 = arith.subf %111, %172 : vector<8x128xf32>
    %174 = arith.mulf %166, %173 : vector<8x128xf32>
    %175 = arith.addf %172, %174 : vector<8x128xf32>
    %176 = arith.truncf %175 : vector<8x128xf32> to vector<8x128xbf16>
    %c1_60 = arith.constant 1 : index
    %c0_61 = arith.constant 0 : index
    %c0_62 = arith.constant 0 : index
    %177 = vector.load %arg9[%c1_60, %c0_61, %c0_62] : memref<9x8x128xf32, #tpu.memory_space<vmem>>, vector<1x8x128xf32>
    %178 = vector.shape_cast %177 : vector<1x8x128xf32> to vector<8x128xf32>
    %179 = vector.shape_cast %175 : vector<8x128xf32> to vector<1x8x128xf32>
    tpu.vector_store %arg9[%c1_60, %c0_61, %c0_62], %179 {strides = array<i32>} : memref<9x8x128xf32, #tpu.memory_space<vmem>>, vector<1x8x128xf32>,
    %c3 = arith.constant 3 : index
    %c0_63 = arith.constant 0 : index
    %c0_64 = arith.constant 0 : index
    %180 = vector.load %arg10[%c3, %c0_63, %c0_64] : memref<9x8x384xf32, #tpu.memory_space<vmem>>, vector<1x8x384xf32>
    %181 = vector.shape_cast %180 : vector<1x8x384xf32> to vector<8x384xf32>
    %c0_65 = arith.constant 0 : index
    %c0_66 = arith.constant 0 : index
    %182 = vector.load %arg2[%c0_65, %c0_66] : memref<128x384xbf16, #tpu.memory_space<vmem>>, vector<128x384xbf16>
    %cst_67 = arith.constant dense<0.000000e+00> : vector<8x384xf32>
    %183 = tpu.matmul %145, %182, %cst_67 {dimension_numbers = #tpu.dot_dimension_numbers<[1], [0], [0], [1], [0, 0, 1, 1], [], []>} : vector<8x128xbf16>, vector<128x384xbf16>, vector<8x384xf32> -> vector<8x384xf32>
    %184 = vector.extract_strided_slice %181 {offsets = [0, 0], sizes = [8, 128], strides = [1, 1]} : vector<8x384xf32> to vector<8x128xf32>
    %185 = vector.extract_strided_slice %183 {offsets = [0, 0], sizes = [8, 128], strides = [1, 1]} : vector<8x384xf32> to vector<8x128xf32>
    %186 = arith.addf %184, %185 : vector<8x128xf32>
    %187 = arith.negf %186 : vector<8x128xf32>
    %188 = math.exp %187 : vector<8x128xf32>
    %cst_68 = arith.constant 1.000000e+00 : f32
    %189 = vector.broadcast %cst_68 : f32 to vector<8x128xf32>
    %190 = arith.addf %189, %188 : vector<8x128xf32>
    %191 = arith.divf %189, %190 : vector<8x128xf32>
    %192 = vector.extract_strided_slice %181 {offsets = [0, 128], sizes = [8, 128], strides = [1, 1]} : vector<8x384xf32> to vector<8x128xf32>
    %193 = vector.extract_strided_slice %183 {offsets = [0, 128], sizes = [8, 128], strides = [1, 1]} : vector<8x384xf32> to vector<8x128xf32>
    %194 = arith.addf %192, %193 : vector<8x128xf32>
    %195 = arith.negf %194 : vector<8x128xf32>
    %196 = math.exp %195 : vector<8x128xf32>
    %cst_69 = arith.constant 1.000000e+00 : f32
    %197 = vector.broadcast %cst_69 : f32 to vector<8x128xf32>
    %198 = arith.addf %197, %196 : vector<8x128xf32>
    %199 = arith.divf %197, %198 : vector<8x128xf32>
    %200 = vector.extract_strided_slice %181 {offsets = [0, 256], sizes = [8, 128], strides = [1, 1]} : vector<8x384xf32> to vector<8x128xf32>
    %201 = vector.extract_strided_slice %183 {offsets = [0, 256], sizes = [8, 128], strides = [1, 1]} : vector<8x384xf32> to vector<8x128xf32>
    %202 = arith.addf %201, %11 : vector<8x128xf32>
    %203 = arith.mulf %191, %202 : vector<8x128xf32>
    %204 = arith.addf %200, %203 : vector<8x128xf32>
    %205 = math.tanh %204 : vector<8x128xf32>
    %206 = arith.subf %144, %205 : vector<8x128xf32>
    %207 = arith.mulf %199, %206 : vector<8x128xf32>
    %208 = arith.addf %205, %207 : vector<8x128xf32>
    %209 = arith.truncf %208 : vector<8x128xf32> to vector<8x128xbf16>
    %c0_70 = arith.constant 0 : index
    %c0_71 = arith.constant 0 : index
    %210 = vector.load %arg5[%c0_70, %c0_71] : memref<128x384xbf16, #tpu.memory_space<vmem>>, vector<128x384xbf16>
    %cst_72 = arith.constant dense<0.000000e+00> : vector<8x384xf32>
    %211 = tpu.matmul %145, %210, %cst_72 {dimension_numbers = #tpu.dot_dimension_numbers<[1], [0], [0], [1], [0, 0, 1, 1], [], []>} : vector<8x128xbf16>, vector<128x384xbf16>, vector<8x384xf32> -> vector<8x384xf32>
    %212 = arith.addf %211, %14 : vector<8x384xf32>
    %c0_73 = arith.constant 0 : index
    %c0_74 = arith.constant 0 : index
    %213 = vector.load %arg6[%c0_73, %c0_74] : memref<128x384xbf16, #tpu.memory_space<vmem>>, vector<128x384xbf16>
    %cst_75 = arith.constant dense<0.000000e+00> : vector<8x384xf32>
    %214 = tpu.matmul %176, %213, %cst_75 {dimension_numbers = #tpu.dot_dimension_numbers<[1], [0], [0], [1], [0, 0, 1, 1], [], []>} : vector<8x128xbf16>, vector<128x384xbf16>, vector<8x384xf32> -> vector<8x384xf32>
    %215 = vector.extract_strided_slice %212 {offsets = [0, 0], sizes = [8, 128], strides = [1, 1]} : vector<8x384xf32> to vector<8x128xf32>
    %216 = vector.extract_strided_slice %214 {offsets = [0, 0], sizes = [8, 128], strides = [1, 1]} : vector<8x384xf32> to vector<8x128xf32>
    %217 = arith.addf %215, %216 : vector<8x128xf32>
    %218 = arith.negf %217 : vector<8x128xf32>
    %219 = math.exp %218 : vector<8x128xf32>
    %cst_76 = arith.constant 1.000000e+00 : f32
    %220 = vector.broadcast %cst_76 : f32 to vector<8x128xf32>
    %221 = arith.addf %220, %219 : vector<8x128xf32>
    %222 = arith.divf %220, %221 : vector<8x128xf32>
    %223 = vector.extract_strided_slice %212 {offsets = [0, 128], sizes = [8, 128], strides = [1, 1]} : vector<8x384xf32> to vector<8x128xf32>
    %224 = vector.extract_strided_slice %214 {offsets = [0, 128], sizes = [8, 128], strides = [1, 1]} : vector<8x384xf32> to vector<8x128xf32>
    %225 = arith.addf %223, %224 : vector<8x128xf32>
    %226 = arith.negf %225 : vector<8x128xf32>
    %227 = math.exp %226 : vector<8x128xf32>
    %cst_77 = arith.constant 1.000000e+00 : f32
    %228 = vector.broadcast %cst_77 : f32 to vector<8x128xf32>
    %229 = arith.addf %228, %227 : vector<8x128xf32>
    %230 = arith.divf %228, %229 : vector<8x128xf32>
    %231 = vector.extract_strided_slice %212 {offsets = [0, 256], sizes = [8, 128], strides = [1, 1]} : vector<8x384xf32> to vector<8x128xf32>
    %232 = vector.extract_strided_slice %214 {offsets = [0, 256], sizes = [8, 128], strides = [1, 1]} : vector<8x384xf32> to vector<8x128xf32>
    %233 = arith.addf %232, %17 : vector<8x128xf32>
    %234 = arith.mulf %222, %233 : vector<8x128xf32>
    %235 = arith.addf %231, %234 : vector<8x128xf32>
    %236 = math.tanh %235 : vector<8x128xf32>
    %237 = arith.subf %175, %236 : vector<8x128xf32>
    %238 = arith.mulf %230, %237 : vector<8x128xf32>
    %239 = arith.addf %236, %238 : vector<8x128xf32>
    %240 = arith.truncf %239 : vector<8x128xf32> to vector<8x128xbf16>
    %c2_78 = arith.constant 2 : index
    %c0_79 = arith.constant 0 : index
    %c0_80 = arith.constant 0 : index
    %241 = vector.load %arg9[%c2_78, %c0_79, %c0_80] : memref<9x8x128xf32, #tpu.memory_space<vmem>>, vector<1x8x128xf32>
    %242 = vector.shape_cast %241 : vector<1x8x128xf32> to vector<8x128xf32>
    %243 = vector.shape_cast %239 : vector<8x128xf32> to vector<1x8x128xf32>
    tpu.vector_store %arg9[%c2_78, %c0_79, %c0_80], %243 {strides = array<i32>} : memref<9x8x128xf32, #tpu.memory_space<vmem>>, vector<1x8x128xf32>,
    %c4 = arith.constant 4 : index
    %c0_81 = arith.constant 0 : index
    %c0_82 = arith.constant 0 : index
    %244 = vector.load %arg10[%c4, %c0_81, %c0_82] : memref<9x8x384xf32, #tpu.memory_space<vmem>>, vector<1x8x384xf32>
    %245 = vector.shape_cast %244 : vector<1x8x384xf32> to vector<8x384xf32>
    %c0_83 = arith.constant 0 : index
    %c0_84 = arith.constant 0 : index
    %246 = vector.load %arg2[%c0_83, %c0_84] : memref<128x384xbf16, #tpu.memory_space<vmem>>, vector<128x384xbf16>
    %cst_85 = arith.constant dense<0.000000e+00> : vector<8x384xf32>
    %247 = tpu.matmul %209, %246, %cst_85 {dimension_numbers = #tpu.dot_dimension_numbers<[1], [0], [0], [1], [0, 0, 1, 1], [], []>} : vector<8x128xbf16>, vector<128x384xbf16>, vector<8x384xf32> -> vector<8x384xf32>
    %248 = vector.extract_strided_slice %245 {offsets = [0, 0], sizes = [8, 128], strides = [1, 1]} : vector<8x384xf32> to vector<8x128xf32>
    %249 = vector.extract_strided_slice %247 {offsets = [0, 0], sizes = [8, 128], strides = [1, 1]} : vector<8x384xf32> to vector<8x128xf32>
    %250 = arith.addf %248, %249 : vector<8x128xf32>
    %251 = arith.negf %250 : vector<8x128xf32>
    %252 = math.exp %251 : vector<8x128xf32>
    %cst_86 = arith.constant 1.000000e+00 : f32
    %253 = vector.broadcast %cst_86 : f32 to vector<8x128xf32>
    %254 = arith.addf %253, %252 : vector<8x128xf32>
    %255 = arith.divf %253, %254 : vector<8x128xf32>
    %256 = vector.extract_strided_slice %245 {offsets = [0, 128], sizes = [8, 128], strides = [1, 1]} : vector<8x384xf32> to vector<8x128xf32>
    %257 = vector.extract_strided_slice %247 {offsets = [0, 128], sizes = [8, 128], strides = [1, 1]} : vector<8x384xf32> to vector<8x128xf32>
    %258 = arith.addf %256, %257 : vector<8x128xf32>
    %259 = arith.negf %258 : vector<8x128xf32>
    %260 = math.exp %259 : vector<8x128xf32>
    %cst_87 = arith.constant 1.000000e+00 : f32
    %261 = vector.broadcast %cst_87 : f32 to vector<8x128xf32>
    %262 = arith.addf %261, %260 : vector<8x128xf32>
    %263 = arith.divf %261, %262 : vector<8x128xf32>
    %264 = vector.extract_strided_slice %245 {offsets = [0, 256], sizes = [8, 128], strides = [1, 1]} : vector<8x384xf32> to vector<8x128xf32>
    %265 = vector.extract_strided_slice %247 {offsets = [0, 256], sizes = [8, 128], strides = [1, 1]} : vector<8x384xf32> to vector<8x128xf32>
    %266 = arith.addf %265, %11 : vector<8x128xf32>
    %267 = arith.mulf %255, %266 : vector<8x128xf32>
    %268 = arith.addf %264, %267 : vector<8x128xf32>
    %269 = math.tanh %268 : vector<8x128xf32>
    %270 = arith.subf %208, %269 : vector<8x128xf32>
    %271 = arith.mulf %263, %270 : vector<8x128xf32>
    %272 = arith.addf %269, %271 : vector<8x128xf32>
    %273 = arith.truncf %272 : vector<8x128xf32> to vector<8x128xbf16>
    %c0_88 = arith.constant 0 : index
    %c0_89 = arith.constant 0 : index
    %274 = vector.load %arg5[%c0_88, %c0_89] : memref<128x384xbf16, #tpu.memory_space<vmem>>, vector<128x384xbf16>
    %cst_90 = arith.constant dense<0.000000e+00> : vector<8x384xf32>
    %275 = tpu.matmul %209, %274, %cst_90 {dimension_numbers = #tpu.dot_dimension_numbers<[1], [0], [0], [1], [0, 0, 1, 1], [], []>} : vector<8x128xbf16>, vector<128x384xbf16>, vector<8x384xf32> -> vector<8x384xf32>
    %276 = arith.addf %275, %14 : vector<8x384xf32>
    %c0_91 = arith.constant 0 : index
    %c0_92 = arith.constant 0 : index
    %277 = vector.load %arg6[%c0_91, %c0_92] : memref<128x384xbf16, #tpu.memory_space<vmem>>, vector<128x384xbf16>
    %cst_93 = arith.constant dense<0.000000e+00> : vector<8x384xf32>
    %278 = tpu.matmul %240, %277, %cst_93 {dimension_numbers = #tpu.dot_dimension_numbers<[1], [0], [0], [1], [0, 0, 1, 1], [], []>} : vector<8x128xbf16>, vector<128x384xbf16>, vector<8x384xf32> -> vector<8x384xf32>
    %279 = vector.extract_strided_slice %276 {offsets = [0, 0], sizes = [8, 128], strides = [1, 1]} : vector<8x384xf32> to vector<8x128xf32>
    %280 = vector.extract_strided_slice %278 {offsets = [0, 0], sizes = [8, 128], strides = [1, 1]} : vector<8x384xf32> to vector<8x128xf32>
    %281 = arith.addf %279, %280 : vector<8x128xf32>
    %282 = arith.negf %281 : vector<8x128xf32>
    %283 = math.exp %282 : vector<8x128xf32>
    %cst_94 = arith.constant 1.000000e+00 : f32
    %284 = vector.broadcast %cst_94 : f32 to vector<8x128xf32>
    %285 = arith.addf %284, %283 : vector<8x128xf32>
    %286 = arith.divf %284, %285 : vector<8x128xf32>
    %287 = vector.extract_strided_slice %276 {offsets = [0, 128], sizes = [8, 128], strides = [1, 1]} : vector<8x384xf32> to vector<8x128xf32>
    %288 = vector.extract_strided_slice %278 {offsets = [0, 128], sizes = [8, 128], strides = [1, 1]} : vector<8x384xf32> to vector<8x128xf32>
    %289 = arith.addf %287, %288 : vector<8x128xf32>
    %290 = arith.negf %289 : vector<8x128xf32>
    %291 = math.exp %290 : vector<8x128xf32>
    %cst_95 = arith.constant 1.000000e+00 : f32
    %292 = vector.broadcast %cst_95 : f32 to vector<8x128xf32>
    %293 = arith.addf %292, %291 : vector<8x128xf32>
    %294 = arith.divf %292, %293 : vector<8x128xf32>
    %295 = vector.extract_strided_slice %276 {offsets = [0, 256], sizes = [8, 128], strides = [1, 1]} : vector<8x384xf32> to vector<8x128xf32>
    %296 = vector.extract_strided_slice %278 {offsets = [0, 256], sizes = [8, 128], strides = [1, 1]} : vector<8x384xf32> to vector<8x128xf32>
    %297 = arith.addf %296, %17 : vector<8x128xf32>
    %298 = arith.mulf %286, %297 : vector<8x128xf32>
    %299 = arith.addf %295, %298 : vector<8x128xf32>
    %300 = math.tanh %299 : vector<8x128xf32>
    %301 = arith.subf %239, %300 : vector<8x128xf32>
    %302 = arith.mulf %294, %301 : vector<8x128xf32>
    %303 = arith.addf %300, %302 : vector<8x128xf32>
    %304 = arith.truncf %303 : vector<8x128xf32> to vector<8x128xbf16>
    %c3_96 = arith.constant 3 : index
    %c0_97 = arith.constant 0 : index
    %c0_98 = arith.constant 0 : index
    %305 = vector.load %arg9[%c3_96, %c0_97, %c0_98] : memref<9x8x128xf32, #tpu.memory_space<vmem>>, vector<1x8x128xf32>
    %306 = vector.shape_cast %305 : vector<1x8x128xf32> to vector<8x128xf32>
    %307 = vector.shape_cast %303 : vector<8x128xf32> to vector<1x8x128xf32>
    tpu.vector_store %arg9[%c3_96, %c0_97, %c0_98], %307 {strides = array<i32>} : memref<9x8x128xf32, #tpu.memory_space<vmem>>, vector<1x8x128xf32>,
    %c5 = arith.constant 5 : index
    %c0_99 = arith.constant 0 : index
    %c0_100 = arith.constant 0 : index
    %308 = vector.load %arg10[%c5, %c0_99, %c0_100] : memref<9x8x384xf32, #tpu.memory_space<vmem>>, vector<1x8x384xf32>
    %309 = vector.shape_cast %308 : vector<1x8x384xf32> to vector<8x384xf32>
    %c0_101 = arith.constant 0 : index
    %c0_102 = arith.constant 0 : index
    %310 = vector.load %arg2[%c0_101, %c0_102] : memref<128x384xbf16, #tpu.memory_space<vmem>>, vector<128x384xbf16>
    %cst_103 = arith.constant dense<0.000000e+00> : vector<8x384xf32>
    %311 = tpu.matmul %273, %310, %cst_103 {dimension_numbers = #tpu.dot_dimension_numbers<[1], [0], [0], [1], [0, 0, 1, 1], [], []>} : vector<8x128xbf16>, vector<128x384xbf16>, vector<8x384xf32> -> vector<8x384xf32>
    %312 = vector.extract_strided_slice %309 {offsets = [0, 0], sizes = [8, 128], strides = [1, 1]} : vector<8x384xf32> to vector<8x128xf32>
    %313 = vector.extract_strided_slice %311 {offsets = [0, 0], sizes = [8, 128], strides = [1, 1]} : vector<8x384xf32> to vector<8x128xf32>
    %314 = arith.addf %312, %313 : vector<8x128xf32>
    %315 = arith.negf %314 : vector<8x128xf32>
    %316 = math.exp %315 : vector<8x128xf32>
    %cst_104 = arith.constant 1.000000e+00 : f32
    %317 = vector.broadcast %cst_104 : f32 to vector<8x128xf32>
    %318 = arith.addf %317, %316 : vector<8x128xf32>
    %319 = arith.divf %317, %318 : vector<8x128xf32>
    %320 = vector.extract_strided_slice %309 {offsets = [0, 128], sizes = [8, 128], strides = [1, 1]} : vector<8x384xf32> to vector<8x128xf32>
    %321 = vector.extract_strided_slice %311 {offsets = [0, 128], sizes = [8, 128], strides = [1, 1]} : vector<8x384xf32> to vector<8x128xf32>
    %322 = arith.addf %320, %321 : vector<8x128xf32>
    %323 = arith.negf %322 : vector<8x128xf32>
    %324 = math.exp %323 : vector<8x128xf32>
    %cst_105 = arith.constant 1.000000e+00 : f32
    %325 = vector.broadcast %cst_105 : f32 to vector<8x128xf32>
    %326 = arith.addf %325, %324 : vector<8x128xf32>
    %327 = arith.divf %325, %326 : vector<8x128xf32>
    %328 = vector.extract_strided_slice %309 {offsets = [0, 256], sizes = [8, 128], strides = [1, 1]} : vector<8x384xf32> to vector<8x128xf32>
    %329 = vector.extract_strided_slice %311 {offsets = [0, 256], sizes = [8, 128], strides = [1, 1]} : vector<8x384xf32> to vector<8x128xf32>
    %330 = arith.addf %329, %11 : vector<8x128xf32>
    %331 = arith.mulf %319, %330 : vector<8x128xf32>
    %332 = arith.addf %328, %331 : vector<8x128xf32>
    %333 = math.tanh %332 : vector<8x128xf32>
    %334 = arith.subf %272, %333 : vector<8x128xf32>
    %335 = arith.mulf %327, %334 : vector<8x128xf32>
    %336 = arith.addf %333, %335 : vector<8x128xf32>
    %337 = arith.truncf %336 : vector<8x128xf32> to vector<8x128xbf16>
    %c0_106 = arith.constant 0 : index
    %c0_107 = arith.constant 0 : index
    %338 = vector.load %arg5[%c0_106, %c0_107] : memref<128x384xbf16, #tpu.memory_space<vmem>>, vector<128x384xbf16>
    %cst_108 = arith.constant dense<0.000000e+00> : vector<8x384xf32>
    %339 = tpu.matmul %273, %338, %cst_108 {dimension_numbers = #tpu.dot_dimension_numbers<[1], [0], [0], [1], [0, 0, 1, 1], [], []>} : vector<8x128xbf16>, vector<128x384xbf16>, vector<8x384xf32> -> vector<8x384xf32>
    %340 = arith.addf %339, %14 : vector<8x384xf32>
    %c0_109 = arith.constant 0 : index
    %c0_110 = arith.constant 0 : index
    %341 = vector.load %arg6[%c0_109, %c0_110] : memref<128x384xbf16, #tpu.memory_space<vmem>>, vector<128x384xbf16>
    %cst_111 = arith.constant dense<0.000000e+00> : vector<8x384xf32>
    %342 = tpu.matmul %304, %341, %cst_111 {dimension_numbers = #tpu.dot_dimension_numbers<[1], [0], [0], [1], [0, 0, 1, 1], [], []>} : vector<8x128xbf16>, vector<128x384xbf16>, vector<8x384xf32> -> vector<8x384xf32>
    %343 = vector.extract_strided_slice %340 {offsets = [0, 0], sizes = [8, 128], strides = [1, 1]} : vector<8x384xf32> to vector<8x128xf32>
    %344 = vector.extract_strided_slice %342 {offsets = [0, 0], sizes = [8, 128], strides = [1, 1]} : vector<8x384xf32> to vector<8x128xf32>
    %345 = arith.addf %343, %344 : vector<8x128xf32>
    %346 = arith.negf %345 : vector<8x128xf32>
    %347 = math.exp %346 : vector<8x128xf32>
    %cst_112 = arith.constant 1.000000e+00 : f32
    %348 = vector.broadcast %cst_112 : f32 to vector<8x128xf32>
    %349 = arith.addf %348, %347 : vector<8x128xf32>
    %350 = arith.divf %348, %349 : vector<8x128xf32>
    %351 = vector.extract_strided_slice %340 {offsets = [0, 128], sizes = [8, 128], strides = [1, 1]} : vector<8x384xf32> to vector<8x128xf32>
    %352 = vector.extract_strided_slice %342 {offsets = [0, 128], sizes = [8, 128], strides = [1, 1]} : vector<8x384xf32> to vector<8x128xf32>
    %353 = arith.addf %351, %352 : vector<8x128xf32>
    %354 = arith.negf %353 : vector<8x128xf32>
    %355 = math.exp %354 : vector<8x128xf32>
    %cst_113 = arith.constant 1.000000e+00 : f32
    %356 = vector.broadcast %cst_113 : f32 to vector<8x128xf32>
    %357 = arith.addf %356, %355 : vector<8x128xf32>
    %358 = arith.divf %356, %357 : vector<8x128xf32>
    %359 = vector.extract_strided_slice %340 {offsets = [0, 256], sizes = [8, 128], strides = [1, 1]} : vector<8x384xf32> to vector<8x128xf32>
    %360 = vector.extract_strided_slice %342 {offsets = [0, 256], sizes = [8, 128], strides = [1, 1]} : vector<8x384xf32> to vector<8x128xf32>
    %361 = arith.addf %360, %17 : vector<8x128xf32>
    %362 = arith.mulf %350, %361 : vector<8x128xf32>
    %363 = arith.addf %359, %362 : vector<8x128xf32>
    %364 = math.tanh %363 : vector<8x128xf32>
    %365 = arith.subf %303, %364 : vector<8x128xf32>
    %366 = arith.mulf %358, %365 : vector<8x128xf32>
    %367 = arith.addf %364, %366 : vector<8x128xf32>
    %368 = arith.truncf %367 : vector<8x128xf32> to vector<8x128xbf16>
    %c4_114 = arith.constant 4 : index
    %c0_115 = arith.constant 0 : index
    %c0_116 = arith.constant 0 : index
    %369 = vector.load %arg9[%c4_114, %c0_115, %c0_116] : memref<9x8x128xf32, #tpu.memory_space<vmem>>, vector<1x8x128xf32>
    %370 = vector.shape_cast %369 : vector<1x8x128xf32> to vector<8x128xf32>
    %371 = vector.shape_cast %367 : vector<8x128xf32> to vector<1x8x128xf32>
    tpu.vector_store %arg9[%c4_114, %c0_115, %c0_116], %371 {strides = array<i32>} : memref<9x8x128xf32, #tpu.memory_space<vmem>>, vector<1x8x128xf32>,
    %c6 = arith.constant 6 : index
    %c0_117 = arith.constant 0 : index
    %c0_118 = arith.constant 0 : index
    %372 = vector.load %arg10[%c6, %c0_117, %c0_118] : memref<9x8x384xf32, #tpu.memory_space<vmem>>, vector<1x8x384xf32>
    %373 = vector.shape_cast %372 : vector<1x8x384xf32> to vector<8x384xf32>
    %c0_119 = arith.constant 0 : index
    %c0_120 = arith.constant 0 : index
    %374 = vector.load %arg2[%c0_119, %c0_120] : memref<128x384xbf16, #tpu.memory_space<vmem>>, vector<128x384xbf16>
    %cst_121 = arith.constant dense<0.000000e+00> : vector<8x384xf32>
    %375 = tpu.matmul %337, %374, %cst_121 {dimension_numbers = #tpu.dot_dimension_numbers<[1], [0], [0], [1], [0, 0, 1, 1], [], []>} : vector<8x128xbf16>, vector<128x384xbf16>, vector<8x384xf32> -> vector<8x384xf32>
    %376 = vector.extract_strided_slice %373 {offsets = [0, 0], sizes = [8, 128], strides = [1, 1]} : vector<8x384xf32> to vector<8x128xf32>
    %377 = vector.extract_strided_slice %375 {offsets = [0, 0], sizes = [8, 128], strides = [1, 1]} : vector<8x384xf32> to vector<8x128xf32>
    %378 = arith.addf %376, %377 : vector<8x128xf32>
    %379 = arith.negf %378 : vector<8x128xf32>
    %380 = math.exp %379 : vector<8x128xf32>
    %cst_122 = arith.constant 1.000000e+00 : f32
    %381 = vector.broadcast %cst_122 : f32 to vector<8x128xf32>
    %382 = arith.addf %381, %380 : vector<8x128xf32>
    %383 = arith.divf %381, %382 : vector<8x128xf32>
    %384 = vector.extract_strided_slice %373 {offsets = [0, 128], sizes = [8, 128], strides = [1, 1]} : vector<8x384xf32> to vector<8x128xf32>
    %385 = vector.extract_strided_slice %375 {offsets = [0, 128], sizes = [8, 128], strides = [1, 1]} : vector<8x384xf32> to vector<8x128xf32>
    %386 = arith.addf %384, %385 : vector<8x128xf32>
    %387 = arith.negf %386 : vector<8x128xf32>
    %388 = math.exp %387 : vector<8x128xf32>
    %cst_123 = arith.constant 1.000000e+00 : f32
    %389 = vector.broadcast %cst_123 : f32 to vector<8x128xf32>
    %390 = arith.addf %389, %388 : vector<8x128xf32>
    %391 = arith.divf %389, %390 : vector<8x128xf32>
    %392 = vector.extract_strided_slice %373 {offsets = [0, 256], sizes = [8, 128], strides = [1, 1]} : vector<8x384xf32> to vector<8x128xf32>
    %393 = vector.extract_strided_slice %375 {offsets = [0, 256], sizes = [8, 128], strides = [1, 1]} : vector<8x384xf32> to vector<8x128xf32>
    %394 = arith.addf %393, %11 : vector<8x128xf32>
    %395 = arith.mulf %383, %394 : vector<8x128xf32>
    %396 = arith.addf %392, %395 : vector<8x128xf32>
    %397 = math.tanh %396 : vector<8x128xf32>
    %398 = arith.subf %336, %397 : vector<8x128xf32>
    %399 = arith.mulf %391, %398 : vector<8x128xf32>
    %400 = arith.addf %397, %399 : vector<8x128xf32>
    %401 = arith.truncf %400 : vector<8x128xf32> to vector<8x128xbf16>
    %c0_124 = arith.constant 0 : index
    %c0_125 = arith.constant 0 : index
    %402 = vector.load %arg5[%c0_124, %c0_125] : memref<128x384xbf16, #tpu.memory_space<vmem>>, vector<128x384xbf16>
    %cst_126 = arith.constant dense<0.000000e+00> : vector<8x384xf32>
    %403 = tpu.matmul %337, %402, %cst_126 {dimension_numbers = #tpu.dot_dimension_numbers<[1], [0], [0], [1], [0, 0, 1, 1], [], []>} : vector<8x128xbf16>, vector<128x384xbf16>, vector<8x384xf32> -> vector<8x384xf32>
    %404 = arith.addf %403, %14 : vector<8x384xf32>
    %c0_127 = arith.constant 0 : index
    %c0_128 = arith.constant 0 : index
    %405 = vector.load %arg6[%c0_127, %c0_128] : memref<128x384xbf16, #tpu.memory_space<vmem>>, vector<128x384xbf16>
    %cst_129 = arith.constant dense<0.000000e+00> : vector<8x384xf32>
    %406 = tpu.matmul %368, %405, %cst_129 {dimension_numbers = #tpu.dot_dimension_numbers<[1], [0], [0], [1], [0, 0, 1, 1], [], []>} : vector<8x128xbf16>, vector<128x384xbf16>, vector<8x384xf32> -> vector<8x384xf32>
    %407 = vector.extract_strided_slice %404 {offsets = [0, 0], sizes = [8, 128], strides = [1, 1]} : vector<8x384xf32> to vector<8x128xf32>
    %408 = vector.extract_strided_slice %406 {offsets = [0, 0], sizes = [8, 128], strides = [1, 1]} : vector<8x384xf32> to vector<8x128xf32>
    %409 = arith.addf %407, %408 : vector<8x128xf32>
    %410 = arith.negf %409 : vector<8x128xf32>
    %411 = math.exp %410 : vector<8x128xf32>
    %cst_130 = arith.constant 1.000000e+00 : f32
    %412 = vector.broadcast %cst_130 : f32 to vector<8x128xf32>
    %413 = arith.addf %412, %411 : vector<8x128xf32>
    %414 = arith.divf %412, %413 : vector<8x128xf32>
    %415 = vector.extract_strided_slice %404 {offsets = [0, 128], sizes = [8, 128], strides = [1, 1]} : vector<8x384xf32> to vector<8x128xf32>
    %416 = vector.extract_strided_slice %406 {offsets = [0, 128], sizes = [8, 128], strides = [1, 1]} : vector<8x384xf32> to vector<8x128xf32>
    %417 = arith.addf %415, %416 : vector<8x128xf32>
    %418 = arith.negf %417 : vector<8x128xf32>
    %419 = math.exp %418 : vector<8x128xf32>
    %cst_131 = arith.constant 1.000000e+00 : f32
    %420 = vector.broadcast %cst_131 : f32 to vector<8x128xf32>
    %421 = arith.addf %420, %419 : vector<8x128xf32>
    %422 = arith.divf %420, %421 : vector<8x128xf32>
    %423 = vector.extract_strided_slice %404 {offsets = [0, 256], sizes = [8, 128], strides = [1, 1]} : vector<8x384xf32> to vector<8x128xf32>
    %424 = vector.extract_strided_slice %406 {offsets = [0, 256], sizes = [8, 128], strides = [1, 1]} : vector<8x384xf32> to vector<8x128xf32>
    %425 = arith.addf %424, %17 : vector<8x128xf32>
    %426 = arith.mulf %414, %425 : vector<8x128xf32>
    %427 = arith.addf %423, %426 : vector<8x128xf32>
    %428 = math.tanh %427 : vector<8x128xf32>
    %429 = arith.subf %367, %428 : vector<8x128xf32>
    %430 = arith.mulf %422, %429 : vector<8x128xf32>
    %431 = arith.addf %428, %430 : vector<8x128xf32>
    %432 = arith.truncf %431 : vector<8x128xf32> to vector<8x128xbf16>
    %c5_132 = arith.constant 5 : index
    %c0_133 = arith.constant 0 : index
    %c0_134 = arith.constant 0 : index
    %433 = vector.load %arg9[%c5_132, %c0_133, %c0_134] : memref<9x8x128xf32, #tpu.memory_space<vmem>>, vector<1x8x128xf32>
    %434 = vector.shape_cast %433 : vector<1x8x128xf32> to vector<8x128xf32>
    %435 = vector.shape_cast %431 : vector<8x128xf32> to vector<1x8x128xf32>
    tpu.vector_store %arg9[%c5_132, %c0_133, %c0_134], %435 {strides = array<i32>} : memref<9x8x128xf32, #tpu.memory_space<vmem>>, vector<1x8x128xf32>,
    %c7 = arith.constant 7 : index
    %c0_135 = arith.constant 0 : index
    %c0_136 = arith.constant 0 : index
    %436 = vector.load %arg10[%c7, %c0_135, %c0_136] : memref<9x8x384xf32, #tpu.memory_space<vmem>>, vector<1x8x384xf32>
    %437 = vector.shape_cast %436 : vector<1x8x384xf32> to vector<8x384xf32>
    %c0_137 = arith.constant 0 : index
    %c0_138 = arith.constant 0 : index
    %438 = vector.load %arg2[%c0_137, %c0_138] : memref<128x384xbf16, #tpu.memory_space<vmem>>, vector<128x384xbf16>
    %cst_139 = arith.constant dense<0.000000e+00> : vector<8x384xf32>
    %439 = tpu.matmul %401, %438, %cst_139 {dimension_numbers = #tpu.dot_dimension_numbers<[1], [0], [0], [1], [0, 0, 1, 1], [], []>} : vector<8x128xbf16>, vector<128x384xbf16>, vector<8x384xf32> -> vector<8x384xf32>
    %440 = vector.extract_strided_slice %437 {offsets = [0, 0], sizes = [8, 128], strides = [1, 1]} : vector<8x384xf32> to vector<8x128xf32>
    %441 = vector.extract_strided_slice %439 {offsets = [0, 0], sizes = [8, 128], strides = [1, 1]} : vector<8x384xf32> to vector<8x128xf32>
    %442 = arith.addf %440, %441 : vector<8x128xf32>
    %443 = arith.negf %442 : vector<8x128xf32>
    %444 = math.exp %443 : vector<8x128xf32>
    %cst_140 = arith.constant 1.000000e+00 : f32
    %445 = vector.broadcast %cst_140 : f32 to vector<8x128xf32>
    %446 = arith.addf %445, %444 : vector<8x128xf32>
    %447 = arith.divf %445, %446 : vector<8x128xf32>
    %448 = vector.extract_strided_slice %437 {offsets = [0, 128], sizes = [8, 128], strides = [1, 1]} : vector<8x384xf32> to vector<8x128xf32>
    %449 = vector.extract_strided_slice %439 {offsets = [0, 128], sizes = [8, 128], strides = [1, 1]} : vector<8x384xf32> to vector<8x128xf32>
    %450 = arith.addf %448, %449 : vector<8x128xf32>
    %451 = arith.negf %450 : vector<8x128xf32>
    %452 = math.exp %451 : vector<8x128xf32>
    %cst_141 = arith.constant 1.000000e+00 : f32
    %453 = vector.broadcast %cst_141 : f32 to vector<8x128xf32>
    %454 = arith.addf %453, %452 : vector<8x128xf32>
    %455 = arith.divf %453, %454 : vector<8x128xf32>
    %456 = vector.extract_strided_slice %437 {offsets = [0, 256], sizes = [8, 128], strides = [1, 1]} : vector<8x384xf32> to vector<8x128xf32>
    %457 = vector.extract_strided_slice %439 {offsets = [0, 256], sizes = [8, 128], strides = [1, 1]} : vector<8x384xf32> to vector<8x128xf32>
    %458 = arith.addf %457, %11 : vector<8x128xf32>
    %459 = arith.mulf %447, %458 : vector<8x128xf32>
    %460 = arith.addf %456, %459 : vector<8x128xf32>
    %461 = math.tanh %460 : vector<8x128xf32>
    %462 = arith.subf %400, %461 : vector<8x128xf32>
    %463 = arith.mulf %455, %462 : vector<8x128xf32>
    %464 = arith.addf %461, %463 : vector<8x128xf32>
    %465 = arith.truncf %464 : vector<8x128xf32> to vector<8x128xbf16>
    %c0_142 = arith.constant 0 : index
    %c0_143 = arith.constant 0 : index
    %466 = vector.load %arg5[%c0_142, %c0_143] : memref<128x384xbf16, #tpu.memory_space<vmem>>, vector<128x384xbf16>
    %cst_144 = arith.constant dense<0.000000e+00> : vector<8x384xf32>
    %467 = tpu.matmul %401, %466, %cst_144 {dimension_numbers = #tpu.dot_dimension_numbers<[1], [0], [0], [1], [0, 0, 1, 1], [], []>} : vector<8x128xbf16>, vector<128x384xbf16>, vector<8x384xf32> -> vector<8x384xf32>
    %468 = arith.addf %467, %14 : vector<8x384xf32>
    %c0_145 = arith.constant 0 : index
    %c0_146 = arith.constant 0 : index
    %469 = vector.load %arg6[%c0_145, %c0_146] : memref<128x384xbf16, #tpu.memory_space<vmem>>, vector<128x384xbf16>
    %cst_147 = arith.constant dense<0.000000e+00> : vector<8x384xf32>
    %470 = tpu.matmul %432, %469, %cst_147 {dimension_numbers = #tpu.dot_dimension_numbers<[1], [0], [0], [1], [0, 0, 1, 1], [], []>} : vector<8x128xbf16>, vector<128x384xbf16>, vector<8x384xf32> -> vector<8x384xf32>
    %471 = vector.extract_strided_slice %468 {offsets = [0, 0], sizes = [8, 128], strides = [1, 1]} : vector<8x384xf32> to vector<8x128xf32>
    %472 = vector.extract_strided_slice %470 {offsets = [0, 0], sizes = [8, 128], strides = [1, 1]} : vector<8x384xf32> to vector<8x128xf32>
    %473 = arith.addf %471, %472 : vector<8x128xf32>
    %474 = arith.negf %473 : vector<8x128xf32>
    %475 = math.exp %474 : vector<8x128xf32>
    %cst_148 = arith.constant 1.000000e+00 : f32
    %476 = vector.broadcast %cst_148 : f32 to vector<8x128xf32>
    %477 = arith.addf %476, %475 : vector<8x128xf32>
    %478 = arith.divf %476, %477 : vector<8x128xf32>
    %479 = vector.extract_strided_slice %468 {offsets = [0, 128], sizes = [8, 128], strides = [1, 1]} : vector<8x384xf32> to vector<8x128xf32>
    %480 = vector.extract_strided_slice %470 {offsets = [0, 128], sizes = [8, 128], strides = [1, 1]} : vector<8x384xf32> to vector<8x128xf32>
    %481 = arith.addf %479, %480 : vector<8x128xf32>
    %482 = arith.negf %481 : vector<8x128xf32>
    %483 = math.exp %482 : vector<8x128xf32>
    %cst_149 = arith.constant 1.000000e+00 : f32
    %484 = vector.broadcast %cst_149 : f32 to vector<8x128xf32>
    %485 = arith.addf %484, %483 : vector<8x128xf32>
    %486 = arith.divf %484, %485 : vector<8x128xf32>
    %487 = vector.extract_strided_slice %468 {offsets = [0, 256], sizes = [8, 128], strides = [1, 1]} : vector<8x384xf32> to vector<8x128xf32>
    %488 = vector.extract_strided_slice %470 {offsets = [0, 256], sizes = [8, 128], strides = [1, 1]} : vector<8x384xf32> to vector<8x128xf32>
    %489 = arith.addf %488, %17 : vector<8x128xf32>
    %490 = arith.mulf %478, %489 : vector<8x128xf32>
    %491 = arith.addf %487, %490 : vector<8x128xf32>
    %492 = math.tanh %491 : vector<8x128xf32>
    %493 = arith.subf %431, %492 : vector<8x128xf32>
    %494 = arith.mulf %486, %493 : vector<8x128xf32>
    %495 = arith.addf %492, %494 : vector<8x128xf32>
    %496 = arith.truncf %495 : vector<8x128xf32> to vector<8x128xbf16>
    %c6_150 = arith.constant 6 : index
    %c0_151 = arith.constant 0 : index
    %c0_152 = arith.constant 0 : index
    %497 = vector.load %arg9[%c6_150, %c0_151, %c0_152] : memref<9x8x128xf32, #tpu.memory_space<vmem>>, vector<1x8x128xf32>
    %498 = vector.shape_cast %497 : vector<1x8x128xf32> to vector<8x128xf32>
    %499 = vector.shape_cast %495 : vector<8x128xf32> to vector<1x8x128xf32>
    tpu.vector_store %arg9[%c6_150, %c0_151, %c0_152], %499 {strides = array<i32>} : memref<9x8x128xf32, #tpu.memory_space<vmem>>, vector<1x8x128xf32>,
    %c8 = arith.constant 8 : index
    %c0_153 = arith.constant 0 : index
    %c0_154 = arith.constant 0 : index
    %500 = vector.load %arg10[%c8, %c0_153, %c0_154] : memref<9x8x384xf32, #tpu.memory_space<vmem>>, vector<1x8x384xf32>
    %501 = vector.shape_cast %500 : vector<1x8x384xf32> to vector<8x384xf32>
    %c0_155 = arith.constant 0 : index
    %c0_156 = arith.constant 0 : index
    %502 = vector.load %arg2[%c0_155, %c0_156] : memref<128x384xbf16, #tpu.memory_space<vmem>>, vector<128x384xbf16>
    %cst_157 = arith.constant dense<0.000000e+00> : vector<8x384xf32>
    %503 = tpu.matmul %465, %502, %cst_157 {dimension_numbers = #tpu.dot_dimension_numbers<[1], [0], [0], [1], [0, 0, 1, 1], [], []>} : vector<8x128xbf16>, vector<128x384xbf16>, vector<8x384xf32> -> vector<8x384xf32>
    %504 = vector.extract_strided_slice %501 {offsets = [0, 0], sizes = [8, 128], strides = [1, 1]} : vector<8x384xf32> to vector<8x128xf32>
    %505 = vector.extract_strided_slice %503 {offsets = [0, 0], sizes = [8, 128], strides = [1, 1]} : vector<8x384xf32> to vector<8x128xf32>
    %506 = arith.addf %504, %505 : vector<8x128xf32>
    %507 = arith.negf %506 : vector<8x128xf32>
    %508 = math.exp %507 : vector<8x128xf32>
    %cst_158 = arith.constant 1.000000e+00 : f32
    %509 = vector.broadcast %cst_158 : f32 to vector<8x128xf32>
    %510 = arith.addf %509, %508 : vector<8x128xf32>
    %511 = arith.divf %509, %510 : vector<8x128xf32>
    %512 = vector.extract_strided_slice %501 {offsets = [0, 128], sizes = [8, 128], strides = [1, 1]} : vector<8x384xf32> to vector<8x128xf32>
    %513 = vector.extract_strided_slice %503 {offsets = [0, 128], sizes = [8, 128], strides = [1, 1]} : vector<8x384xf32> to vector<8x128xf32>
    %514 = arith.addf %512, %513 : vector<8x128xf32>
    %515 = arith.negf %514 : vector<8x128xf32>
    %516 = math.exp %515 : vector<8x128xf32>
    %cst_159 = arith.constant 1.000000e+00 : f32
    %517 = vector.broadcast %cst_159 : f32 to vector<8x128xf32>
    %518 = arith.addf %517, %516 : vector<8x128xf32>
    %519 = arith.divf %517, %518 : vector<8x128xf32>
    %520 = vector.extract_strided_slice %501 {offsets = [0, 256], sizes = [8, 128], strides = [1, 1]} : vector<8x384xf32> to vector<8x128xf32>
    %521 = vector.extract_strided_slice %503 {offsets = [0, 256], sizes = [8, 128], strides = [1, 1]} : vector<8x384xf32> to vector<8x128xf32>
    %522 = arith.addf %521, %11 : vector<8x128xf32>
    %523 = arith.mulf %511, %522 : vector<8x128xf32>
    %524 = arith.addf %520, %523 : vector<8x128xf32>
    %525 = math.tanh %524 : vector<8x128xf32>
    %526 = arith.subf %464, %525 : vector<8x128xf32>
    %527 = arith.mulf %519, %526 : vector<8x128xf32>
    %528 = arith.addf %525, %527 : vector<8x128xf32>
    %529 = arith.truncf %528 : vector<8x128xf32> to vector<8x128xbf16>
    %c0_160 = arith.constant 0 : index
    %c0_161 = arith.constant 0 : index
    %530 = vector.load %arg5[%c0_160, %c0_161] : memref<128x384xbf16, #tpu.memory_space<vmem>>, vector<128x384xbf16>
    %cst_162 = arith.constant dense<0.000000e+00> : vector<8x384xf32>
    %531 = tpu.matmul %465, %530, %cst_162 {dimension_numbers = #tpu.dot_dimension_numbers<[1], [0], [0], [1], [0, 0, 1, 1], [], []>} : vector<8x128xbf16>, vector<128x384xbf16>, vector<8x384xf32> -> vector<8x384xf32>
    %532 = arith.addf %531, %14 : vector<8x384xf32>
    %c0_163 = arith.constant 0 : index
    %c0_164 = arith.constant 0 : index
    %533 = vector.load %arg6[%c0_163, %c0_164] : memref<128x384xbf16, #tpu.memory_space<vmem>>, vector<128x384xbf16>
    %cst_165 = arith.constant dense<0.000000e+00> : vector<8x384xf32>
    %534 = tpu.matmul %496, %533, %cst_165 {dimension_numbers = #tpu.dot_dimension_numbers<[1], [0], [0], [1], [0, 0, 1, 1], [], []>} : vector<8x128xbf16>, vector<128x384xbf16>, vector<8x384xf32> -> vector<8x384xf32>
    %535 = vector.extract_strided_slice %532 {offsets = [0, 0], sizes = [8, 128], strides = [1, 1]} : vector<8x384xf32> to vector<8x128xf32>
    %536 = vector.extract_strided_slice %534 {offsets = [0, 0], sizes = [8, 128], strides = [1, 1]} : vector<8x384xf32> to vector<8x128xf32>
    %537 = arith.addf %535, %536 : vector<8x128xf32>
    %538 = arith.negf %537 : vector<8x128xf32>
    %539 = math.exp %538 : vector<8x128xf32>
    %cst_166 = arith.constant 1.000000e+00 : f32
    %540 = vector.broadcast %cst_166 : f32 to vector<8x128xf32>
    %541 = arith.addf %540, %539 : vector<8x128xf32>
    %542 = arith.divf %540, %541 : vector<8x128xf32>
    %543 = vector.extract_strided_slice %532 {offsets = [0, 128], sizes = [8, 128], strides = [1, 1]} : vector<8x384xf32> to vector<8x128xf32>
    %544 = vector.extract_strided_slice %534 {offsets = [0, 128], sizes = [8, 128], strides = [1, 1]} : vector<8x384xf32> to vector<8x128xf32>
    %545 = arith.addf %543, %544 : vector<8x128xf32>
    %546 = arith.negf %545 : vector<8x128xf32>
    %547 = math.exp %546 : vector<8x128xf32>
    %cst_167 = arith.constant 1.000000e+00 : f32
    %548 = vector.broadcast %cst_167 : f32 to vector<8x128xf32>
    %549 = arith.addf %548, %547 : vector<8x128xf32>
    %550 = arith.divf %548, %549 : vector<8x128xf32>
    %551 = vector.extract_strided_slice %532 {offsets = [0, 256], sizes = [8, 128], strides = [1, 1]} : vector<8x384xf32> to vector<8x128xf32>
    %552 = vector.extract_strided_slice %534 {offsets = [0, 256], sizes = [8, 128], strides = [1, 1]} : vector<8x384xf32> to vector<8x128xf32>
    %553 = arith.addf %552, %17 : vector<8x128xf32>
    %554 = arith.mulf %542, %553 : vector<8x128xf32>
    %555 = arith.addf %551, %554 : vector<8x128xf32>
    %556 = math.tanh %555 : vector<8x128xf32>
    %557 = arith.subf %495, %556 : vector<8x128xf32>
    %558 = arith.mulf %550, %557 : vector<8x128xf32>
    %559 = arith.addf %556, %558 : vector<8x128xf32>
    %560 = arith.truncf %559 : vector<8x128xf32> to vector<8x128xbf16>
    %c7_168 = arith.constant 7 : index
    %c0_169 = arith.constant 0 : index
    %c0_170 = arith.constant 0 : index
    %561 = vector.load %arg9[%c7_168, %c0_169, %c0_170] : memref<9x8x128xf32, #tpu.memory_space<vmem>>, vector<1x8x128xf32>
    %562 = vector.shape_cast %561 : vector<1x8x128xf32> to vector<8x128xf32>
    %563 = vector.shape_cast %559 : vector<8x128xf32> to vector<1x8x128xf32>
    tpu.vector_store %arg9[%c7_168, %c0_169, %c0_170], %563 {strides = array<i32>} : memref<9x8x128xf32, #tpu.memory_space<vmem>>, vector<1x8x128xf32>,
    %c0_171 = arith.constant 0 : index
    %c0_172 = arith.constant 0 : index
    %564 = vector.load %arg5[%c0_171, %c0_172] : memref<128x384xbf16, #tpu.memory_space<vmem>>, vector<128x384xbf16>
    %cst_173 = arith.constant dense<0.000000e+00> : vector<8x384xf32>
    %565 = tpu.matmul %529, %564, %cst_173 {dimension_numbers = #tpu.dot_dimension_numbers<[1], [0], [0], [1], [0, 0, 1, 1], [], []>} : vector<8x128xbf16>, vector<128x384xbf16>, vector<8x384xf32> -> vector<8x384xf32>
    %566 = arith.addf %565, %14 : vector<8x384xf32>
    %c0_174 = arith.constant 0 : index
    %c0_175 = arith.constant 0 : index
    %567 = vector.load %arg6[%c0_174, %c0_175] : memref<128x384xbf16, #tpu.memory_space<vmem>>, vector<128x384xbf16>
    %cst_176 = arith.constant dense<0.000000e+00> : vector<8x384xf32>
    %568 = tpu.matmul %560, %567, %cst_176 {dimension_numbers = #tpu.dot_dimension_numbers<[1], [0], [0], [1], [0, 0, 1, 1], [], []>} : vector<8x128xbf16>, vector<128x384xbf16>, vector<8x384xf32> -> vector<8x384xf32>
    %569 = vector.extract_strided_slice %566 {offsets = [0, 0], sizes = [8, 128], strides = [1, 1]} : vector<8x384xf32> to vector<8x128xf32>
    %570 = vector.extract_strided_slice %568 {offsets = [0, 0], sizes = [8, 128], strides = [1, 1]} : vector<8x384xf32> to vector<8x128xf32>
    %571 = arith.addf %569, %570 : vector<8x128xf32>
    %572 = arith.negf %571 : vector<8x128xf32>
    %573 = math.exp %572 : vector<8x128xf32>
    %cst_177 = arith.constant 1.000000e+00 : f32
    %574 = vector.broadcast %cst_177 : f32 to vector<8x128xf32>
    %575 = arith.addf %574, %573 : vector<8x128xf32>
    %576 = arith.divf %574, %575 : vector<8x128xf32>
    %577 = vector.extract_strided_slice %566 {offsets = [0, 128], sizes = [8, 128], strides = [1, 1]} : vector<8x384xf32> to vector<8x128xf32>
    %578 = vector.extract_strided_slice %568 {offsets = [0, 128], sizes = [8, 128], strides = [1, 1]} : vector<8x384xf32> to vector<8x128xf32>
    %579 = arith.addf %577, %578 : vector<8x128xf32>
    %580 = arith.negf %579 : vector<8x128xf32>
    %581 = math.exp %580 : vector<8x128xf32>
    %cst_178 = arith.constant 1.000000e+00 : f32
    %582 = vector.broadcast %cst_178 : f32 to vector<8x128xf32>
    %583 = arith.addf %582, %581 : vector<8x128xf32>
    %584 = arith.divf %582, %583 : vector<8x128xf32>
    %585 = vector.extract_strided_slice %566 {offsets = [0, 256], sizes = [8, 128], strides = [1, 1]} : vector<8x384xf32> to vector<8x128xf32>
    %586 = vector.extract_strided_slice %568 {offsets = [0, 256], sizes = [8, 128], strides = [1, 1]} : vector<8x384xf32> to vector<8x128xf32>
    %587 = arith.addf %586, %17 : vector<8x128xf32>
    %588 = arith.mulf %576, %587 : vector<8x128xf32>
    %589 = arith.addf %585, %588 : vector<8x128xf32>
    %590 = math.tanh %589 : vector<8x128xf32>
    %591 = arith.subf %559, %590 : vector<8x128xf32>
    %592 = arith.mulf %584, %591 : vector<8x128xf32>
    %593 = arith.addf %590, %592 : vector<8x128xf32>
    %c8_179 = arith.constant 8 : index
    %c0_180 = arith.constant 0 : index
    %c0_181 = arith.constant 0 : index
    %594 = vector.load %arg9[%c8_179, %c0_180, %c0_181] : memref<9x8x128xf32, #tpu.memory_space<vmem>>, vector<1x8x128xf32>
    %595 = vector.shape_cast %594 : vector<1x8x128xf32> to vector<8x128xf32>
    %596 = vector.shape_cast %593 : vector<8x128xf32> to vector<1x8x128xf32>
    tpu.vector_store %arg9[%c8_179, %c0_180, %c0_181], %596 {strides = array<i32>} : memref<9x8x128xf32, #tpu.memory_space<vmem>>, vector<1x8x128xf32>,
    return
  }
}

</mosaic_0001>

<llo_original>
// kernel: tpu_custom_call.1
$region0: #{tpu_custom_call.1}
  #allocation0 [shape = 'u32[]', space=smem, size = 0x4, offset = 0x4, fixed_abs, tag = 'smem constant byte address 0x4 - core index']
  #allocation1 [shape = 'u32[72,128]{1,0:T(1,128)}', space=vmem, size = 0x9000, scoped, tag = 'internal scratch']
  #allocation2 [shape = 'f32[9,8,384]{2,1,0:T(8,128)}', space=vmem, size = 0x1b000, scoped, tag = 'scratch operand']
  %s0 = inlined_call_operand.hbm [shape: bf16[9,8,128], index: 0, kind: input, shape index: {}]
  %s1 = inlined_call_operand.hbm [shape: bf16[128,384], index: 1, kind: input, shape index: {}]
  %s2 = inlined_call_operand.hbm [shape: bf16[128,384], index: 2, kind: input, shape index: {}]
  %s3 = inlined_call_operand.hbm [shape: f32[1,384], index: 3, kind: input, shape index: {}]
  %s4 = inlined_call_operand.vmem [shape: f32[1,128], index: 4, kind: input, shape index: {}]
  %s5 = inlined_call_operand.hbm [shape: bf16[128,384], index: 5, kind: input, shape index: {}]
  %s6 = inlined_call_operand.hbm [shape: bf16[128,384], index: 6, kind: input, shape index: {}]
  %s7 = inlined_call_operand.vmem [shape: f32[1,384], index: 7, kind: input, shape index: {}]
  %s8 = inlined_call_operand.vmem [shape: f32[1,128], index: 8, kind: input, shape index: {}]
  %s9 = inlined_call_operand.hbm [shape: f32[9,8,128], index: 9, kind: output, shape index: {}]
  %s10 = sld [smem:[#allocation0]]
  $region70: #{tpu_custom_call.1} parent=0
    _
  %s12 = ssub.s32 1, %s10
  %s13 = scalar_select 0, %s12, %s10
  $region1: #{tpu_custom_call.1} parent=0
    #allocation3 [shape = 'u8[18432]{0}', space=vmem, size = 0x4800, scoped, tag = 'input window, operand 0, single buffered']
    #allocation4 [shape = 's32[1]{0}', space=sflag, size = 0x4, scoped, tag = 'scoped memory for tpu_custom_call.1']
    #allocation5 [shape = 's32[1]{0}', space=sflag, size = 0x4, scoped, tag = 'scoped memory for tpu_custom_call.1']
    #allocation6 [shape = 'u8[98304]{0}', space=vmem, size = 0x18000, scoped, tag = 'input window, operand 1, single buffered']
    #allocation7 [shape = 's32[1]{0}', space=sflag, size = 0x4, scoped, tag = 'scoped memory for tpu_custom_call.1']
    #allocation8 [shape = 'u8[98304]{0}', space=vmem, size = 0x18000, scoped, tag = 'input window, operand 2, single buffered']
    #allocation9 [shape = 'u8[1536]{0}', space=vmem, size = 0x800, scoped, tag = 'input window, operand 3, single buffered']
    #allocation10 [shape = 's32[1]{0}', space=sflag, size = 0x4, scoped, tag = 'scoped memory for tpu_custom_call.1']
    #allocation11 [shape = 'u8[98304]{0}', space=vmem, size = 0x18000, scoped, tag = 'input window, operand 5, single buffered']
    #allocation12 [shape = 'u8[98304]{0}', space=vmem, size = 0x18000, scoped, tag = 'input window, operand 6, single buffered']
    #allocation13 [shape = 's32[1]{0}', space=sflag, size = 0x4, scoped, tag = 'scoped memory for tpu_custom_call.1']
    #allocation14 [shape = 'u8[36864]{0}', space=vmem, size = 0x9000, scoped, tag = 'output window, operand 0, single buffered']
    %14 = vsyncpa [#allocation4], 0
    %15 = vsyncpa [#allocation7], 0
    %16 = vsyncpa [#allocation10], 0
    %17 = vsyncpa [#allocation13], 0
    %18 = vsyncpa [#allocation5], 0
    // Predicated region
    $region2: #{tpu_custom_call.1} parent=1 // pred_check
      _
    $region3: #{tpu_custom_call.1} parent=1 // pred_check_branch
      %20 = sbr.rel (0) target = $region5
    $region4: #{tpu_custom_call.1} parent=1 // pred_region
      %22 = vsyncadd [#allocation4], 0
      %s23 = sshll.u32 %s0, 4
      %s24 = int_to_ptr.hbm [resolvable:$true] %s23
      %s25 = sshll.u32 [#allocation3], 4
      %s26 = int_to_ptr.vmem [resolvable:$true] %s25
      %31 = dma.hbm_to_vmem [thread:$0]  %s24, 576, %s26, [#allocation4], 64, 64, 4
    $region5: #{tpu_custom_call.1} parent=1 // pred_fallthru
      _
    // Predicated region
    $region6: #{tpu_custom_call.1} parent=1 // pred_check
      _
    $region7: #{tpu_custom_call.1} parent=1 // pred_check_branch
      %33 = sbr.rel (0) target = $region9
    $region8: #{tpu_custom_call.1} parent=1 // pred_region
      %35 = vsyncadd [#allocation7], 0
      %s36 = sshll.u32 %s1, 4
      %s37 = int_to_ptr.hbm [resolvable:$true] %s36
      %s38 = sshll.u32 [#allocation6], 4
      %s39 = int_to_ptr.vmem [resolvable:$true] %s38
      %44 = dma.hbm_to_vmem [thread:$0]  %s37, 3072, %s39, [#allocation7], 192, 192, 12
    $region9: #{tpu_custom_call.1} parent=1 // pred_fallthru
      _
    // Predicated region
    $region10: #{tpu_custom_call.1} parent=1 // pred_check
      _
    $region11: #{tpu_custom_call.1} parent=1 // pred_check_branch
      %46 = sbr.rel (0) target = $region13
    $region12: #{tpu_custom_call.1} parent=1 // pred_region
      %48 = vsyncadd [#allocation7], 0
      %s49 = sshll.u32 %s2, 4
      %s50 = int_to_ptr.hbm [resolvable:$true] %s49
      %s51 = sshll.u32 [#allocation8], 4
      %s52 = int_to_ptr.vmem [resolvable:$true] %s51
      %57 = dma.hbm_to_vmem [thread:$0]  %s50, 3072, %s52, [#allocation7], 192, 192, 12
    $region13: #{tpu_custom_call.1} parent=1 // pred_fallthru
      _
    // Predicated region
    $region14: #{tpu_custom_call.1} parent=1 // pred_check
      _
    $region15: #{tpu_custom_call.1} parent=1 // pred_check_branch
      %59 = sbr.rel (0) target = $region17
    $region16: #{tpu_custom_call.1} parent=1 // pred_region
      %61 = vsyncadd [#allocation10], 0
      %s63 = sshll.u32 %s3, 4
      %s64 = int_to_ptr.hbm [resolvable:$true] %s63
      %s65 = sshll.u32 [#allocation9], 4
      %s66 = int_to_ptr.vmem [resolvable:$true] %s65
      %68 = dma.hbm_to_vmem [thread:$0]  %s64, 48, %s66, [#allocation10]
    $region17: #{tpu_custom_call.1} parent=1 // pred_fallthru
      _
    // Predicated region
    $region18: #{tpu_custom_call.1} parent=1 // pred_check
      _
    $region19: #{tpu_custom_call.1} parent=1 // pred_check_branch
      %70 = sbr.rel (0) target = $region21
    $region20: #{tpu_custom_call.1} parent=1 // pred_region
      _
    $region21: #{tpu_custom_call.1} parent=1 // pred_fallthru
      _
    // Predicated region
    $region22: #{tpu_custom_call.1} parent=1 // pred_check
      _
    $region23: #{tpu_custom_call.1} parent=1 // pred_check_branch
      %72 = sbr.rel (0) target = $region25
    $region24: #{tpu_custom_call.1} parent=1 // pred_region
      %74 = vsyncadd [#allocation10], 0
      %s75 = sshll.u32 %s5, 4
      %s76 = int_to_ptr.hbm [resolvable:$true] %s75
      %s77 = sshll.u32 [#allocation11], 4
      %s78 = int_to_ptr.vmem [resolvable:$true] %s77
      %83 = dma.hbm_to_vmem [thread:$0]  %s76, 3072, %s78, [#allocation10], 192, 192, 12
    $region25: #{tpu_custom_call.1} parent=1 // pred_fallthru
      _
    // Predicated region
    $region26: #{tpu_custom_call.1} parent=1 // pred_check
      _
    $region27: #{tpu_custom_call.1} parent=1 // pred_check_branch
      %85 = sbr.rel (0) target = $region29
    $region28: #{tpu_custom_call.1} parent=1 // pred_region
      %87 = vsyncadd [#allocation13], 0
      %s88 = sshll.u32 %s6, 4
      %s89 = int_to_ptr.hbm [resolvable:$true] %s88
      %s90 = sshll.u32 [#allocation12], 4
      %s91 = int_to_ptr.vmem [resolvable:$true] %s90
      %96 = dma.hbm_to_vmem [thread:$0]  %s89, 3072, %s91, [#allocation13], 192, 192, 12
    $region29: #{tpu_custom_call.1} parent=1 // pred_fallthru
      _
    // Predicated region
    $region30: #{tpu_custom_call.1} parent=1 // pred_check
      _
    $region31: #{tpu_custom_call.1} parent=1 // pred_check_branch
      %98 = sbr.rel (0) target = $region33
    $region32: #{tpu_custom_call.1} parent=1 // pred_region
      _
    $region33: #{tpu_custom_call.1} parent=1 // pred_fallthru
      _
    // Predicated region
    $region34: #{tpu_custom_call.1} parent=1 // pred_check
      _
    $region35: #{tpu_custom_call.1} parent=1 // pred_check_branch
      %100 = sbr.rel (0) target = $region37
    $region36: #{tpu_custom_call.1} parent=1 // pred_region
      _
    $region37: #{tpu_custom_call.1} parent=1 // pred_fallthru
      _
    // Predicated region
    $region38: #{tpu_custom_call.1} parent=1 // pred_check
      _
    $region39: #{tpu_custom_call.1} parent=1 // pred_check_branch
      %102 = sbr.rel (0) target = $region41
    $region40: #{tpu_custom_call.1} parent=1 // pred_region
      %104 = dma.done [#allocation4], 576
    $region41: #{tpu_custom_call.1} parent=1 // pred_fallthru
      _
    // Predicated region
    $region42: #{tpu_custom_call.1} parent=1 // pred_check
      _
    $region43: #{tpu_custom_call.1} parent=1 // pred_check_branch
      %106 = sbr.rel (0) target = $region45
    $region44: #{tpu_custom_call.1} parent=1 // pred_region
      %108 = dma.done [#allocation7], 3072
    $region45: #{tpu_custom_call.1} parent=1 // pred_fallthru
      _
    // Predicated region
    $region46: #{tpu_custom_call.1} parent=1 // pred_check
      _
    $region47: #{tpu_custom_call.1} parent=1 // pred_check_branch
      %110 = sbr.rel (0) target = $region49
    $region48: #{tpu_custom_call.1} parent=1 // pred_region
      %112 = dma.done [#allocation7], 3072
    $region49: #{tpu_custom_call.1} parent=1 // pred_fallthru
      _
    // Predicated region
    $region50: #{tpu_custom_call.1} parent=1 // pred_check
      _
    $region51: #{tpu_custom_call.1} parent=1 // pred_check_branch
      %114 = sbr.rel (0) target = $region53
    $region52: #{tpu_custom_call.1} parent=1 // pred_region
      %116 = dma.done [#allocation10], 48
    $region53: #{tpu_custom_call.1} parent=1 // pred_fallthru
      _
    // Predicated region
    $region54: #{tpu_custom_call.1} parent=1 // pred_check
      _
    $region55: #{tpu_custom_call.1} parent=1 // pred_check_branch
      %118 = sbr.rel (0) target = $region57
    $region56: #{tpu_custom_call.1} parent=1 // pred_region
      %120 = dma.done [#allocation10], 3072
    $region57: #{tpu_custom_call.1} parent=1 // pred_fallthru
      _
    // Predicated region
    $region58: #{tpu_custom_call.1} parent=1 // pred_check
      _
    $region59: #{tpu_custom_call.1} parent=1 // pred_check_branch
      %122 = sbr.rel (0) target = $region61
    $region60: #{tpu_custom_call.1} parent=1 // pred_region
      %124 = dma.done [#allocation13], 3072
    $region61: #{tpu_custom_call.1} parent=1 // pred_fallthru
      _
    %v126 = vld [vmem:[#allocation3] sm:$0xf]
    %v127 = vld [vmem:[#allocation3 + $0x4] sm:$0xf]
    %v128 = vld [vmem:[#allocation3 + $0x8] sm:$0xf]
    %v129 = vld [vmem:[#allocation3 + $0xc] sm:$0xf]
    %v130 = vld [vmem:[#allocation3 + $0x10] sm:$0xf]
    %v131 = vld [vmem:[#allocation3 + $0x14] sm:$0xf]
    %v132 = vld [vmem:[#allocation3 + $0x18] sm:$0xf]
    %v133 = vld [vmem:[#allocation3 + $0x1c] sm:$0xf]
    %v134 = vld [vmem:[#allocation3 + $0x20] sm:$0xf]
    %v135 = vld [vmem:[#allocation6] sm:$0xff]
    %v136 = vld [vmem:[#allocation6 + $0x8] sm:$0xf]
    %v137 = vld [vmem:[#allocation6 + $0xc] sm:$0xff]
    %v138 = vld [vmem:[#allocation6 + $0x14] sm:$0xf]
    %v139 = vld [vmem:[#allocation6 + $0x18] sm:$0xff]
    %v140 = vld [vmem:[#allocation6 + $0x20] sm:$0xf]
    %v141 = vld [vmem:[#allocation6 + $0x24] sm:$0xff]
    %v142 = vld [vmem:[#allocation6 + $0x2c] sm:$0xf]
    %v143 = vld [vmem:[#allocation6 + $0x30] sm:$0xff]
    %v144 = vld [vmem:[#allocation6 + $0x38] sm:$0xf]
    %v145 = vld [vmem:[#allocation6 + $0x3c] sm:$0xff]
    %v146 = vld [vmem:[#allocation6 + $0x44] sm:$0xf]
    %v147 = vld [vmem:[#allocation6 + $0x48] sm:$0xff]
    %v148 = vld [vmem:[#allocation6 + $0x50] sm:$0xf]
    %v149 = vld [vmem:[#allocation6 + $0x54] sm:$0xff]
    %v150 = vld [vmem:[#allocation6 + $0x5c] sm:$0xf]
    %v151 = vld [vmem:[#allocation6 + $0x60] sm:$0xff]
    %v152 = vld [vmem:[#allocation6 + $0x68] sm:$0xf]
    %v153 = vld [vmem:[#allocation6 + $0x6c] sm:$0xff]
    %v154 = vld [vmem:[#allocation6 + $0x74] sm:$0xf]
    %v155 = vld [vmem:[#allocation6 + $0x78] sm:$0xff]
    %v156 = vld [vmem:[#allocation6 + $0x80] sm:$0xf]
    %v157 = vld [vmem:[#allocation6 + $0x84] sm:$0xff]
    %v158 = vld [vmem:[#allocation6 + $0x8c] sm:$0xf]
    %v159 = vld [vmem:[#allocation6 + $0x90] sm:$0xff]
    %v160 = vld [vmem:[#allocation6 + $0x98] sm:$0xf]
    %v161 = vld [vmem:[#allocation6 + $0x9c] sm:$0xff]
    %v162 = vld [vmem:[#allocation6 + $0xa4] sm:$0xf]
    %v163 = vld [vmem:[#allocation6 + $0xa8] sm:$0xff]
    %v164 = vld [vmem:[#allocation6 + $0xb0] sm:$0xf]
    %v165 = vld [vmem:[#allocation6 + $0xb4] sm:$0xff]
    %v166 = vld [vmem:[#allocation6 + $0xbc] sm:$0xf]
    %v167 = vld [vmem:[#allocation9] sm:$0x7]
    %v169 = vperm.slane %v167, 0
    %v170 = vperm.slane %v167, 1
    %v171 = vperm.slane %v167, 2
    %v184 = vunpack.c.l.b16 %v126
    %v185 = vunpack.c.l.b16 %v127
    %v186 = vunpack.c.l.b16 %v128
    %v187 = vunpack.c.l.b16 %v129
    %v188 = vunpack.c.l.b16 %v130
    %v189 = vunpack.c.l.b16 %v131
    %v190 = vunpack.c.l.b16 %v132
    %v191 = vunpack.c.l.b16 %v133
    %v192 = vunpack.c.l.b16 %v134
    %v193 = vpack.c.b16 %v185, %v184
    %v194 = vpack.c.b16 %v187, %v186
    %v195 = vpack.c.b16 %v189, %v188
    %v196 = vpack.c.b16 %v191, %v190
    %v197 = vpack.c.b16 %v192, %v192
    %v235 = vunpack.c.l.b16 %v135
    %v236 = vunpack.c.h.b16 %v135
    %v237 = vunpack.c.l.b16 %v136
    %v238 = vunpack.c.l.b16 %v137
    %v239 = vunpack.c.h.b16 %v137
    %v240 = vunpack.c.l.b16 %v138
    %v241 = vunpack.c.l.b16 %v139
    %v242 = vunpack.c.h.b16 %v139
    %v243 = vunpack.c.l.b16 %v140
    %v244 = vunpack.c.l.b16 %v141
    %v245 = vunpack.c.h.b16 %v141
    %v246 = vunpack.c.l.b16 %v142
    %v247 = vunpack.c.l.b16 %v143
    %v248 = vunpack.c.h.b16 %v143
    %v249 = vunpack.c.l.b16 %v144
    %v250 = vunpack.c.l.b16 %v145
    %v251 = vunpack.c.h.b16 %v145
    %v252 = vunpack.c.l.b16 %v146
    %v253 = vunpack.c.l.b16 %v147
    %v254 = vunpack.c.h.b16 %v147
    %v255 = vunpack.c.l.b16 %v148
    %v256 = vunpack.c.l.b16 %v149
    %v257 = vunpack.c.h.b16 %v149
    %v258 = vunpack.c.l.b16 %v150
    %v259 = vunpack.c.l.b16 %v151
    %v260 = vunpack.c.h.b16 %v151
    %v261 = vunpack.c.l.b16 %v152
    %v262 = vunpack.c.l.b16 %v153
    %v263 = vunpack.c.h.b16 %v153
    %v264 = vunpack.c.l.b16 %v154
    %v265 = vunpack.c.l.b16 %v155
    %v266 = vunpack.c.h.b16 %v155
    %v267 = vunpack.c.l.b16 %v156
    %v268 = vunpack.c.l.b16 %v157
    %v269 = vunpack.c.h.b16 %v157
    %v270 = vunpack.c.l.b16 %v158
    %v271 = vunpack.c.l.b16 %v159
    %v272 = vunpack.c.h.b16 %v159
    %v273 = vunpack.c.l.b16 %v160
    %v274 = vunpack.c.l.b16 %v161
    %v275 = vunpack.c.h.b16 %v161
    %v276 = vunpack.c.l.b16 %v162
    %v277 = vunpack.c.l.b16 %v163
    %v278 = vunpack.c.h.b16 %v163
    %v279 = vunpack.c.l.b16 %v164
    %v280 = vunpack.c.l.b16 %v165
    %v281 = vunpack.c.h.b16 %v165
    %v282 = vunpack.c.l.b16 %v166
    %v283 = vpack.c.b16 %v238, %v235
    %v284 = vpack.c.b16 %v239, %v236
    %v285 = vpack.c.b16 %v240, %v237
    %v286 = vpack.c.b16 %v244, %v241
    %v287 = vpack.c.b16 %v245, %v242
    %v288 = vpack.c.b16 %v246, %v243
    %v289 = vpack.c.b16 %v250, %v247
    %v290 = vpack.c.b16 %v251, %v248
    %v291 = vpack.c.b16 %v252, %v249
    %v292 = vpack.c.b16 %v256, %v253
    %v293 = vpack.c.b16 %v257, %v254
    %v294 = vpack.c.b16 %v258, %v255
    %v295 = vpack.c.b16 %v262, %v259
    %v296 = vpack.c.b16 %v263, %v260
    %v297 = vpack.c.b16 %v264, %v261
    %v298 = vpack.c.b16 %v268, %v265
    %v299 = vpack.c.b16 %v269, %v266
    %v300 = vpack.c.b16 %v270, %v267
    %v301 = vpack.c.b16 %v274, %v271
    %v302 = vpack.c.b16 %v275, %v272
    %v303 = vpack.c.b16 %v276, %v273
    %v304 = vpack.c.b16 %v280, %v277
    %v305 = vpack.c.b16 %v281, %v278
    %v306 = vpack.c.b16 %v282, %v279
    %331 = vmatpush.bf16.msra.mxu0 %v304
    %332 = vmatpush.bf16.msra.mxu0 %v301
    %333 = vmatpush.bf16.msra.mxu0 %v298
    %334 = vmatpush.bf16.msra.mxu0 %v295
    %335 = vmatpush.bf16.msra.mxu0 %v292
    %336 = vmatpush.bf16.msra.mxu0 %v289
    %337 = vmatpush.bf16.msra.mxu0 %v286
    %338 = vmatpush.bf16.msra.mxu0 %v283
    %339 = vmatmul.bf16.gmra.mxu0 %v193
    %v340 = vpop.f32.mrf.mxu0
    %v341 = vadd.f32 %v169, %v340
    %v342 = vpop.f32.mrf.mxu0
    %v343 = vadd.f32 %v169, %v342
    %344 = vmatmul.bf16.gmra.mxu0 %v194
    %v345 = vpop.f32.mrf.mxu0
    %v346 = vadd.f32 %v169, %v345
    %v347 = vpop.f32.mrf.mxu0
    %v348 = vadd.f32 %v169, %v347
    %349 = vmatmul.bf16.gmra.mxu0 %v195
    %v350 = vpop.f32.mrf.mxu0
    %v351 = vadd.f32 %v169, %v350
    %v352 = vpop.f32.mrf.mxu0
    %v353 = vadd.f32 %v169, %v352
    %354 = vmatmul.bf16.gmra.mxu0 %v196
    %v355 = vpop.f32.mrf.mxu0
    %v356 = vadd.f32 %v169, %v355
    %v357 = vpop.f32.mrf.mxu0
    %v358 = vadd.f32 %v169, %v357
    %359 = vmatmul.bf16.gmra.mxu0 %v197
    %v360 = vpop.f32.mrf.mxu0
    %v361 = vadd.f32 %v169, %v360
    %v362 = vpop.f32.mrf.mxu0
    %363 = vdwg.mxu0
    %364 = vmatpush.bf16.msra.mxu0 %v305
    %365 = vmatpush.bf16.msra.mxu0 %v302
    %366 = vmatpush.bf16.msra.mxu0 %v299
    %367 = vmatpush.bf16.msra.mxu0 %v296
    %368 = vmatpush.bf16.msra.mxu0 %v293
    %369 = vmatpush.bf16.msra.mxu0 %v290
    %370 = vmatpush.bf16.msra.mxu0 %v287
    %371 = vmatpush.bf16.msra.mxu0 %v284
    %372 = vmatmul.bf16.gmra.mxu0 %v193
    %v373 = vpop.f32.mrf.mxu0
    %v374 = vadd.f32 %v170, %v373
    %v375 = vpop.f32.mrf.mxu0
    %v376 = vadd.f32 %v170, %v375
    %377 = vmatmul.bf16.gmra.mxu0 %v194
    %v378 = vpop.f32.mrf.mxu0
    %v379 = vadd.f32 %v170, %v378
    %v380 = vpop.f32.mrf.mxu0
    %v381 = vadd.f32 %v170, %v380
    %382 = vmatmul.bf16.gmra.mxu0 %v195
    %v383 = vpop.f32.mrf.mxu0
    %v384 = vadd.f32 %v170, %v383
    %v385 = vpop.f32.mrf.mxu0
    %v386 = vadd.f32 %v170, %v385
    %387 = vmatmul.bf16.gmra.mxu0 %v196
    %v388 = vpop.f32.mrf.mxu0
    %v389 = vadd.f32 %v170, %v388
    %v390 = vpop.f32.mrf.mxu0
    %v391 = vadd.f32 %v170, %v390
    %392 = vmatmul.bf16.gmra.mxu0 %v197
    %v393 = vpop.f32.mrf.mxu0
    %v394 = vadd.f32 %v170, %v393
    %v395 = vpop.f32.mrf.mxu0
    %396 = vdwg.mxu0
    %397 = vmatpush.bf16.msra.mxu0 %v306
    %398 = vmatpush.bf16.msra.mxu0 %v303
    %399 = vmatpush.bf16.msra.mxu0 %v300
    %400 = vmatpush.bf16.msra.mxu0 %v297
    %401 = vmatpush.bf16.msra.mxu0 %v294
    %402 = vmatpush.bf16.msra.mxu0 %v291
    %403 = vmatpush.bf16.msra.mxu0 %v288
    %404 = vmatpush.bf16.msra.mxu0 %v285
    %405 = vmatmul.bf16.gmra.mxu0 %v193
    %v406 = vpop.f32.mrf.mxu0
    %v407 = vadd.f32 %v171, %v406
    %v408 = vpop.f32.mrf.mxu0
    %v409 = vadd.f32 %v171, %v408
    %410 = vmatmul.bf16.gmra.mxu0 %v194
    %v411 = vpop.f32.mrf.mxu0
    %v412 = vadd.f32 %v171, %v411
    %v413 = vpop.f32.mrf.mxu0
    %v414 = vadd.f32 %v171, %v413
    %415 = vmatmul.bf16.gmra.mxu0 %v195
    %v416 = vpop.f32.mrf.mxu0
    %v417 = vadd.f32 %v171, %v416
    %v418 = vpop.f32.mrf.mxu0
    %v419 = vadd.f32 %v171, %v418
    %420 = vmatmul.bf16.gmra.mxu0 %v196
    %v421 = vpop.f32.mrf.mxu0
    %v422 = vadd.f32 %v171, %v421
    %v423 = vpop.f32.mrf.mxu0
    %v424 = vadd.f32 %v171, %v423
    %425 = vmatmul.bf16.gmra.mxu0 %v197
    %v426 = vpop.f32.mrf.mxu0
    %v427 = vadd.f32 %v171, %v426
    %v428 = vpop.f32.mrf.mxu0
    %429 = vdwg.mxu0
    %430 = vst [vmem:[#allocation2] sm:$0xff] %v341
    %431 = vst [vmem:[#allocation2 + $0x8] sm:$0xff] %v374
    %432 = vst [vmem:[#allocation2 + $0x10] sm:$0xff] %v407
    %433 = vst [vmem:[#allocation2 + $0x18] sm:$0xff] %v343
    %434 = vst [vmem:[#allocation2 + $0x20] sm:$0xff] %v376
    %435 = vst [vmem:[#allocation2 + $0x28] sm:$0xff] %v409
    %436 = vst [vmem:[#allocation2 + $0x30] sm:$0xff] %v346
    %437 = vst [vmem:[#allocation2 + $0x38] sm:$0xff] %v379
    %438 = vst [vmem:[#allocation2 + $0x40] sm:$0xff] %v412
    %439 = vst [vmem:[#allocation2 + $0x48] sm:$0xff] %v348
    %440 = vst [vmem:[#allocation2 + $0x50] sm:$0xff] %v381
    %441 = vst [vmem:[#allocation2 + $0x58] sm:$0xff] %v414
    %442 = vst [vmem:[#allocation2 + $0x60] sm:$0xff] %v351
    %443 = vst [vmem:[#allocation2 + $0x68] sm:$0xff] %v384
    %444 = vst [vmem:[#allocation2 + $0x70] sm:$0xff] %v417
    %445 = vst [vmem:[#allocation2 + $0x78] sm:$0xff] %v353
    %446 = vst [vmem:[#allocation2 + $0x80] sm:$0xff] %v386
    %447 = vst [vmem:[#allocation2 + $0x88] sm:$0xff] %v419
    %448 = vst [vmem:[#allocation2 + $0x90] sm:$0xff] %v356
    %449 = vst [vmem:[#allocation2 + $0x98] sm:$0xff] %v389
    %450 = vst [vmem:[#allocation2 + $0xa0] sm:$0xff] %v422
    %451 = vst [vmem:[#allocation2 + $0xa8] sm:$0xff] %v358
    %452 = vst [vmem:[#allocation2 + $0xb0] sm:$0xff] %v391
    %453 = vst [vmem:[#allocation2 + $0xb8] sm:$0xff] %v424
    %454 = vst [vmem:[#allocation2 + $0xc0] sm:$0xff] %v361
    %455 = vst [vmem:[#allocation2 + $0xc8] sm:$0xff] %v394
    %456 = vst [vmem:[#allocation2 + $0xd0] sm:$0xff] %v427
    %v457 = vld [vmem:[%s4] sm:$0x1]
    %v459 = vperm.slane %v457, 0
    %v461 = vld [vmem:[%s7] sm:$0x7]
    %v463 = vperm.slane %v461, 0
    %v464 = vperm.slane %v461, 1
    %v465 = vperm.slane %v461, 2
    %v469 = vld [vmem:[%s8] sm:$0x1]
    %v471 = vperm.slane %v469, 0
    %v473 = vld [vmem:[#allocation2] sm:$0xff]
    %v474 = vld [vmem:[#allocation2 + $0x8] sm:$0xff]
    %v475 = vld [vmem:[#allocation2 + $0x10] sm:$0xff]
    %v476 = vld [vmem:[#allocation8] sm:$0xff]
    %v477 = vld [vmem:[#allocation8 + $0x8] sm:$0xf]
    %v478 = vld [vmem:[#allocation8 + $0xc] sm:$0xff]
    %v479 = vld [vmem:[#allocation8 + $0x14] sm:$0xf]
    %v480 = vld [vmem:[#allocation8 + $0x18] sm:$0xff]
    %v481 = vld [vmem:[#allocation8 + $0x20] sm:$0xf]
    %v482 = vld [vmem:[#allocation8 + $0x24] sm:$0xff]
    %v483 = vld [vmem:[#allocation8 + $0x2c] sm:$0xf]
    %v484 = vld [vmem:[#allocation8 + $0x30] sm:$0xff]
    %v485 = vld [vmem:[#allocation8 + $0x38] sm:$0xf]
    %v486 = vld [vmem:[#allocation8 + $0x3c] sm:$0xff]
    %v487 = vld [vmem:[#allocation8 + $0x44] sm:$0xf]
    %v488 = vld [vmem:[#allocation8 + $0x48] sm:$0xff]
    %v489 = vld [vmem:[#allocation8 + $0x50] sm:$0xf]
    %v490 = vld [vmem:[#allocation8 + $0x54] sm:$0xff]
    %v491 = vld [vmem:[#allocation8 + $0x5c] sm:$0xf]
    %v492 = vld [vmem:[#allocation8 + $0x60] sm:$0xff]
    %v493 = vld [vmem:[#allocation8 + $0x68] sm:$0xf]
    %v494 = vld [vmem:[#allocation8 + $0x6c] sm:$0xff]
    %v495 = vld [vmem:[#allocation8 + $0x74] sm:$0xf]
    %v496 = vld [vmem:[#allocation8 + $0x78] sm:$0xff]
    %v497 = vld [vmem:[#allocation8 + $0x80] sm:$0xf]
    %v498 = vld [vmem:[#allocation8 + $0x84] sm:$0xff]
    %v499 = vld [vmem:[#allocation8 + $0x8c] sm:$0xf]
    %v500 = vld [vmem:[#allocation8 + $0x90] sm:$0xff]
    %v501 = vld [vmem:[#allocation8 + $0x98] sm:$0xf]
    %v502 = vld [vmem:[#allocation8 + $0x9c] sm:$0xff]
    %v503 = vld [vmem:[#allocation8 + $0xa4] sm:$0xf]
    %v504 = vld [vmem:[#allocation8 + $0xa8] sm:$0xff]
    %v505 = vld [vmem:[#allocation8 + $0xb0] sm:$0xf]
    %v506 = vld [vmem:[#allocation8 + $0xb4] sm:$0xff]
    %v507 = vld [vmem:[#allocation8 + $0xbc] sm:$0xf]
    %v540 = vunpack.c.l.b16 %v476
    %v541 = vunpack.c.h.b16 %v476
    %v542 = vunpack.c.l.b16 %v477
    %v543 = vunpack.c.l.b16 %v478
    %v544 = vunpack.c.h.b16 %v478
    %v545 = vunpack.c.l.b16 %v479
    %v546 = vunpack.c.l.b16 %v480
    %v547 = vunpack.c.h.b16 %v480
    %v548 = vunpack.c.l.b16 %v481
    %v549 = vunpack.c.l.b16 %v482
    %v550 = vunpack.c.h.b16 %v482
    %v551 = vunpack.c.l.b16 %v483
    %v552 = vunpack.c.l.b16 %v484
    %v553 = vunpack.c.h.b16 %v484
    %v554 = vunpack.c.l.b16 %v485
    %v555 = vunpack.c.l.b16 %v486
    %v556 = vunpack.c.h.b16 %v486
    %v557 = vunpack.c.l.b16 %v487
    %v558 = vunpack.c.l.b16 %v488
    %v559 = vunpack.c.h.b16 %v488
    %v560 = vunpack.c.l.b16 %v489
    %v561 = vunpack.c.l.b16 %v490
    %v562 = vunpack.c.h.b16 %v490
    %v563 = vunpack.c.l.b16 %v491
    %v564 = vunpack.c.l.b16 %v492
    %v565 = vunpack.c.h.b16 %v492
    %v566 = vunpack.c.l.b16 %v493
    %v567 = vunpack.c.l.b16 %v494
    %v568 = vunpack.c.h.b16 %v494
    %v569 = vunpack.c.l.b16 %v495
    %v570 = vunpack.c.l.b16 %v496
    %v571 = vunpack.c.h.b16 %v496
    %v572 = vunpack.c.l.b16 %v497
    %v573 = vunpack.c.l.b16 %v498
    %v574 = vunpack.c.h.b16 %v498
    %v575 = vunpack.c.l.b16 %v499
    %v576 = vunpack.c.l.b16 %v500
    %v577 = vunpack.c.h.b16 %v500
    %v578 = vunpack.c.l.b16 %v501
    %v579 = vunpack.c.l.b16 %v502
    %v580 = vunpack.c.h.b16 %v502
    %v581 = vunpack.c.l.b16 %v503
    %v582 = vunpack.c.l.b16 %v504
    %v583 = vunpack.c.h.b16 %v504
    %v584 = vunpack.c.l.b16 %v505
    %v585 = vunpack.c.l.b16 %v506
    %v586 = vunpack.c.h.b16 %v506
    %v587 = vunpack.c.l.b16 %v507
    %v588 = vpack.c.b16 %v543, %v540
    %v589 = vpack.c.b16 %v544, %v541
    %v590 = vpack.c.b16 %v545, %v542
    %v591 = vpack.c.b16 %v549, %v546
    %v592 = vpack.c.b16 %v550, %v547
    %v593 = vpack.c.b16 %v551, %v548
    %v594 = vpack.c.b16 %v555, %v552
    %v595 = vpack.c.b16 %v556, %v553
    %v596 = vpack.c.b16 %v557, %v554
    %v597 = vpack.c.b16 %v561, %v558
    %v598 = vpack.c.b16 %v562, %v559
    %v599 = vpack.c.b16 %v563, %v560
    %v600 = vpack.c.b16 %v567, %v564
    %v601 = vpack.c.b16 %v568, %v565
    %v602 = vpack.c.b16 %v569, %v566
    %v603 = vpack.c.b16 %v573, %v570
    %v604 = vpack.c.b16 %v574, %v571
    %v605 = vpack.c.b16 %v575, %v572
    %v606 = vpack.c.b16 %v579, %v576
    %v607 = vpack.c.b16 %v580, %v577
    %v608 = vpack.c.b16 %v581, %v578
    %v609 = vpack.c.b16 %v585, %v582
    %v610 = vpack.c.b16 %v586, %v583
    %v611 = vpack.c.b16 %v587, %v584
    %636 = vmatpush.bf16.msra.mxu0 %v609
    %637 = vmatpush.bf16.msra.mxu0 %v606
    %638 = vmatpush.bf16.msra.mxu0 %v603
    %639 = vmatpush.bf16.msra.mxu0 %v600
    %640 = vmatpush.bf16.msra.mxu0 %v597
    %641 = vmatpush.bf16.msra.mxu0 %v594
    %642 = vmatpush.bf16.msra.mxu0 %v591
    %643 = vmatpush.bf16.msra.mxu0 %v588
    %644 = vmatmul.bf16.gmra.mxu0 0
    %v645 = vpop.f32.mrf.mxu0
    %v646 = vadd.f32 0.0, %v645
    %v647 = vpop.f32.mrf.mxu0
    %648 = vdwg.mxu0
    %649 = vmatpush.bf16.msra.mxu0 %v610
    %650 = vmatpush.bf16.msra.mxu0 %v607
    %651 = vmatpush.bf16.msra.mxu0 %v604
    %652 = vmatpush.bf16.msra.mxu0 %v601
    %653 = vmatpush.bf16.msra.mxu0 %v598
    %654 = vmatpush.bf16.msra.mxu0 %v595
    %655 = vmatpush.bf16.msra.mxu0 %v592
    %656 = vmatpush.bf16.msra.mxu0 %v589
    %657 = vmatmul.bf16.gmra.mxu0 0
    %v658 = vpop.f32.mrf.mxu0
    %v659 = vadd.f32 0.0, %v658
    %v660 = vpop.f32.mrf.mxu0
    %661 = vdwg.mxu0
    %662 = vmatpush.bf16.msra.mxu0 %v611
    %663 = vmatpush.bf16.msra.mxu0 %v608
    %664 = vmatpush.bf16.msra.mxu0 %v605
    %665 = vmatpush.bf16.msra.mxu0 %v602
    %666 = vmatpush.bf16.msra.mxu0 %v599
    %667 = vmatpush.bf16.msra.mxu0 %v596
    %668 = vmatpush.bf16.msra.mxu0 %v593
    %669 = vmatpush.bf16.msra.mxu0 %v590
    %670 = vmatmul.bf16.gmra.mxu0 0
    %v671 = vpop.f32.mrf.mxu0
    %v672 = vadd.f32 0.0, %v671
    %v673 = vpop.f32.mrf.mxu0
    %674 = vdwg.mxu0
    %v675 = vadd.f32 %v473, %v646
    %v676 = vxor.u32 %v675, 2147483648
    %v677 = vmul.f32 %v676, 1.442695
    %v678 = vpow.pop %v677
    %v679 = vadd.f32 %v678, 1.0
    %v680 = vrcp.pop %v679
    %v681 = vmul.f32 %v679, %v680
    %v682 = vsub.f32 1.0, %v681
    %v683 = vmul.f32 %v680, %v682
    %v684 = vadd.f32 %v680, %v683
    %vm685 = vweird.f32 %v679
    %vm686 = vweird.f32 %v680
    %vm687 = vmor %vm685, %vm686
    %v688 = vsel %vm687, %v680, %v684
    %v689 = vand.u32 2147483647, %v679
    %vm690 = vcmp.eq.f32.partialorder %v689, 8.507059e+37
    %v691 = vand.u32 %v679, 2147483648
    %v692 = vor.u32 1.1754944e-38, %v691
    %v693 = vsel %vm690, %v692, %v688
    %v694 = vmul.f32 1.0, %v693
    %v695 = vadd.f32 %v474, %v659
    %v696 = vxor.u32 %v695, 2147483648
    %v697 = vmul.f32 %v696, 1.442695
    %v698 = vpow.pop %v697
    %v699 = vadd.f32 %v698, 1.0
    %v700 = vrcp.pop %v699
    %v701 = vmul.f32 %v699, %v700
    %v702 = vsub.f32 1.0, %v701
    %v703 = vmul.f32 %v700, %v702
    %v704 = vadd.f32 %v700, %v703
    %vm705 = vweird.f32 %v699
    %vm706 = vweird.f32 %v700
    %vm707 = vmor %vm705, %vm706
    %v708 = vsel %vm707, %v700, %v704
    %v709 = vand.u32 2147483647, %v699
    %vm710 = vcmp.eq.f32.partialorder %v709, 8.507059e+37
    %v711 = vand.u32 %v699, 2147483648
    %v712 = vor.u32 1.1754944e-38, %v711
    %v713 = vsel %vm710, %v712, %v708
    %v714 = vmul.f32 1.0, %v713
    %v715 = vadd.f32 %v672, %v459
    %v716 = vmul.f32 %v694, %v715
    %v717 = vadd.f32 %v475, %v716
    %v718 = vtanh.pop %v717
    %v719 = vsub.f32 0.0, %v718
    %v720 = vmul.f32 %v714, %v719
    %v721 = vadd.f32 %v718, %v720
    %v722 = vpack.c.bf16 %v721, %v721
    %s723 = scalar_lea.vmem [#allocation2], 24
    %v724 = vld [vmem:[%s723] sm:$0xff]
    %v725 = vld [vmem:[%s723 + $0x8] sm:$0xff]
    %v726 = vld [vmem:[%s723 + $0x10] sm:$0xff]
    %727 = vmatpush.bf16.msra.mxu0 %v609
    %728 = vmatpush.bf16.msra.mxu0 %v606
    %729 = vmatpush.bf16.msra.mxu0 %v603
    %730 = vmatpush.bf16.msra.mxu0 %v600
    %731 = vmatpush.bf16.msra.mxu0 %v597
    %732 = vmatpush.bf16.msra.mxu0 %v594
    %733 = vmatpush.bf16.msra.mxu0 %v591
    %734 = vmatpush.bf16.msra.mxu0 %v588
    %735 = vmatmul.bf16.gmra.mxu0 %v722
    %v736 = vpop.f32.mrf.mxu0
    %v737 = vadd.f32 0.0, %v736
    %v738 = vpop.f32.mrf.mxu0
    %739 = vdwg.mxu0
    %740 = vmatpush.bf16.msra.mxu0 %v610
    %741 = vmatpush.bf16.msra.mxu0 %v607
    %742 = vmatpush.bf16.msra.mxu0 %v604
    %743 = vmatpush.bf16.msra.mxu0 %v601
    %744 = vmatpush.bf16.msra.mxu0 %v598
    %745 = vmatpush.bf16.msra.mxu0 %v595
    %746 = vmatpush.bf16.msra.mxu0 %v592
    %747 = vmatpush.bf16.msra.mxu0 %v589
    %748 = vmatmul.bf16.gmra.mxu0 %v722
    %v749 = vpop.f32.mrf.mxu0
    %v750 = vadd.f32 0.0, %v749
    %v751 = vpop.f32.mrf.mxu0
    %752 = vdwg.mxu0
    %753 = vmatpush.bf16.msra.mxu0 %v611
    %754 = vmatpush.bf16.msra.mxu0 %v608
    %755 = vmatpush.bf16.msra.mxu0 %v605
    %756 = vmatpush.bf16.msra.mxu0 %v602
    %757 = vmatpush.bf16.msra.mxu0 %v599
    %758 = vmatpush.bf16.msra.mxu0 %v596
    %759 = vmatpush.bf16.msra.mxu0 %v593
    %760 = vmatpush.bf16.msra.mxu0 %v590
    %761 = vmatmul.bf16.gmra.mxu0 %v722
    %v762 = vpop.f32.mrf.mxu0
    %v763 = vadd.f32 0.0, %v762
    %v764 = vpop.f32.mrf.mxu0
    %765 = vdwg.mxu0
    %v766 = vadd.f32 %v724, %v737
    %v767 = vxor.u32 %v766, 2147483648
    %v768 = vmul.f32 %v767, 1.442695
    %v769 = vpow.pop %v768
    %v770 = vadd.f32 %v769, 1.0
    %v771 = vrcp.pop %v770
    %v772 = vmul.f32 %v770, %v771
    %v773 = vsub.f32 1.0, %v772
    %v774 = vmul.f32 %v771, %v773
    %v775 = vadd.f32 %v771, %v774
    %vm776 = vweird.f32 %v770
    %vm777 = vweird.f32 %v771
    %vm778 = vmor %vm776, %vm777
    %v779 = vsel %vm778, %v771, %v775
    %v780 = vand.u32 2147483647, %v770
    %vm781 = vcmp.eq.f32.partialorder %v780, 8.507059e+37
    %v782 = vand.u32 %v770, 2147483648
    %v783 = vor.u32 1.1754944e-38, %v782
    %v784 = vsel %vm781, %v783, %v779
    %v785 = vmul.f32 1.0, %v784
    %v786 = vadd.f32 %v725, %v750
    %v787 = vxor.u32 %v786, 2147483648
    %v788 = vmul.f32 %v787, 1.442695
    %v789 = vpow.pop %v788
    %v790 = vadd.f32 %v789, 1.0
    %v791 = vrcp.pop %v790
    %v792 = vmul.f32 %v790, %v791
    %v793 = vsub.f32 1.0, %v792
    %v794 = vmul.f32 %v791, %v793
    %v795 = vadd.f32 %v791, %v794
    %vm796 = vweird.f32 %v790
    %vm797 = vweird.f32 %v791
    %vm798 = vmor %vm796, %vm797
    %v799 = vsel %vm798, %v791, %v795
    %v800 = vand.u32 2147483647, %v790
    %vm801 = vcmp.eq.f32.partialorder %v800, 8.507059e+37
    %v802 = vand.u32 %v790, 2147483648
    %v803 = vor.u32 1.1754944e-38, %v802
    %v804 = vsel %vm801, %v803, %v799
    %v805 = vmul.f32 1.0, %v804
    %v806 = vadd.f32 %v763, %v459
    %v807 = vmul.f32 %v785, %v806
    %v808 = vadd.f32 %v726, %v807
    %v809 = vtanh.pop %v808
    %v810 = vsub.f32 %v721, %v809
    %v811 = vmul.f32 %v805, %v810
    %v812 = vadd.f32 %v809, %v811
    %v813 = vpack.c.bf16 %v812, %v812
    %v814 = vld [vmem:[#allocation11] sm:$0xff]
    %v815 = vld [vmem:[#allocation11 + $0x8] sm:$0xf]
    %v816 = vld [vmem:[#allocation11 + $0xc] sm:$0xff]
    %v817 = vld [vmem:[#allocation11 + $0x14] sm:$0xf]
    %v818 = vld [vmem:[#allocation11 + $0x18] sm:$0xff]
    %v819 = vld [vmem:[#allocation11 + $0x20] sm:$0xf]
    %v820 = vld [vmem:[#allocation11 + $0x24] sm:$0xff]
    %v821 = vld [vmem:[#allocation11 + $0x2c] sm:$0xf]
    %v822 = vld [vmem:[#allocation11 + $0x30] sm:$0xff]
    %v823 = vld [vmem:[#allocation11 + $0x38] sm:$0xf]
    %v824 = vld [vmem:[#allocation11 + $0x3c] sm:$0xff]
    %v825 = vld [vmem:[#allocation11 + $0x44] sm:$0xf]
    %v826 = vld [vmem:[#allocation11 + $0x48] sm:$0xff]
    %v827 = vld [vmem:[#allocation11 + $0x50] sm:$0xf]
    %v828 = vld [vmem:[#allocation11 + $0x54] sm:$0xff]
    %v829 = vld [vmem:[#allocation11 + $0x5c] sm:$0xf]
    %v830 = vld [vmem:[#allocation11 + $0x60] sm:$0xff]
    %v831 = vld [vmem:[#allocation11 + $0x68] sm:$0xf]
    %v832 = vld [vmem:[#allocation11 + $0x6c] sm:$0xff]
    %v833 = vld [vmem:[#allocation11 + $0x74] sm:$0xf]
    %v834 = vld [vmem:[#allocation11 + $0x78] sm:$0xff]
    %v835 = vld [vmem:[#allocation11 + $0x80] sm:$0xf]
    %v836 = vld [vmem:[#allocation11 + $0x84] sm:$0xff]
    %v837 = vld [vmem:[#allocation11 + $0x8c] sm:$0xf]
    %v838 = vld [vmem:[#allocation11 + $0x90] sm:$0xff]
    %v839 = vld [vmem:[#allocation11 + $0x98] sm:$0xf]
    %v840 = vld [vmem:[#allocation11 + $0x9c] sm:$0xff]
    %v841 = vld [vmem:[#allocation11 + $0xa4] sm:$0xf]
    %v842 = vld [vmem:[#allocation11 + $0xa8] sm:$0xff]
    %v843 = vld [vmem:[#allocation11 + $0xb0] sm:$0xf]
    %v844 = vld [vmem:[#allocation11 + $0xb4] sm:$0xff]
    %v845 = vld [vmem:[#allocation11 + $0xbc] sm:$0xf]
    %v878 = vunpack.c.l.b16 %v814
    %v879 = vunpack.c.h.b16 %v814
    %v880 = vunpack.c.l.b16 %v815
    %v881 = vunpack.c.l.b16 %v816
    %v882 = vunpack.c.h.b16 %v816
    %v883 = vunpack.c.l.b16 %v817
    %v884 = vunpack.c.l.b16 %v818
    %v885 = vunpack.c.h.b16 %v818
    %v886 = vunpack.c.l.b16 %v819
    %v887 = vunpack.c.l.b16 %v820
    %v888 = vunpack.c.h.b16 %v820
    %v889 = vunpack.c.l.b16 %v821
    %v890 = vunpack.c.l.b16 %v822
    %v891 = vunpack.c.h.b16 %v822
    %v892 = vunpack.c.l.b16 %v823
    %v893 = vunpack.c.l.b16 %v824
    %v894 = vunpack.c.h.b16 %v824
    %v895 = vunpack.c.l.b16 %v825
    %v896 = vunpack.c.l.b16 %v826
    %v897 = vunpack.c.h.b16 %v826
    %v898 = vunpack.c.l.b16 %v827
    %v899 = vunpack.c.l.b16 %v828
    %v900 = vunpack.c.h.b16 %v828
    %v901 = vunpack.c.l.b16 %v829
    %v902 = vunpack.c.l.b16 %v830
    %v903 = vunpack.c.h.b16 %v830
    %v904 = vunpack.c.l.b16 %v831
    %v905 = vunpack.c.l.b16 %v832
    %v906 = vunpack.c.h.b16 %v832
    %v907 = vunpack.c.l.b16 %v833
    %v908 = vunpack.c.l.b16 %v834
    %v909 = vunpack.c.h.b16 %v834
    %v910 = vunpack.c.l.b16 %v835
    %v911 = vunpack.c.l.b16 %v836
    %v912 = vunpack.c.h.b16 %v836
    %v913 = vunpack.c.l.b16 %v837
    %v914 = vunpack.c.l.b16 %v838
    %v915 = vunpack.c.h.b16 %v838
    %v916 = vunpack.c.l.b16 %v839
    %v917 = vunpack.c.l.b16 %v840
    %v918 = vunpack.c.h.b16 %v840
    %v919 = vunpack.c.l.b16 %v841
    %v920 = vunpack.c.l.b16 %v842
    %v921 = vunpack.c.h.b16 %v842
    %v922 = vunpack.c.l.b16 %v843
    %v923 = vunpack.c.l.b16 %v844
    %v924 = vunpack.c.h.b16 %v844
    %v925 = vunpack.c.l.b16 %v845
    %v926 = vpack.c.b16 %v881, %v878
    %v927 = vpack.c.b16 %v882, %v879
    %v928 = vpack.c.b16 %v883, %v880
    %v929 = vpack.c.b16 %v887, %v884
    %v930 = vpack.c.b16 %v888, %v885
    %v931 = vpack.c.b16 %v889, %v886
    %v932 = vpack.c.b16 %v893, %v890
    %v933 = vpack.c.b16 %v894, %v891
    %v934 = vpack.c.b16 %v895, %v892
    %v935 = vpack.c.b16 %v899, %v896
    %v936 = vpack.c.b16 %v900, %v897
    %v937 = vpack.c.b16 %v901, %v898
    %v938 = vpack.c.b16 %v905, %v902
    %v939 = vpack.c.b16 %v906, %v903
    %v940 = vpack.c.b16 %v907, %v904
    %v941 = vpack.c.b16 %v911, %v908
    %v942 = vpack.c.b16 %v912, %v909
    %v943 = vpack.c.b16 %v913, %v910
    %v944 = vpack.c.b16 %v917, %v914
    %v945 = vpack.c.b16 %v918, %v915
    %v946 = vpack.c.b16 %v919, %v916
    %v947 = vpack.c.b16 %v923, %v920
    %v948 = vpack.c.b16 %v924, %v921
    %v949 = vpack.c.b16 %v925, %v922
    %974 = vmatpush.bf16.msra.mxu0 %v947
    %975 = vmatpush.bf16.msra.mxu0 %v944
    %976 = vmatpush.bf16.msra.mxu0 %v941
    %977 = vmatpush.bf16.msra.mxu0 %v938
    %978 = vmatpush.bf16.msra.mxu0 %v935
    %979 = vmatpush.bf16.msra.mxu0 %v932
    %980 = vmatpush.bf16.msra.mxu0 %v929
    %981 = vmatpush.bf16.msra.mxu0 %v926
    %982 = vmatmul.bf16.gmra.mxu0 %v722
    %v983 = vpop.f32.mrf.mxu0
    %v984 = vadd.f32 %v463, %v983
    %v985 = vpop.f32.mrf.mxu0
    %986 = vdwg.mxu0
    %987 = vmatpush.bf16.msra.mxu0 %v948
    %988 = vmatpush.bf16.msra.mxu0 %v945
    %989 = vmatpush.bf16.msra.mxu0 %v942
    %990 = vmatpush.bf16.msra.mxu0 %v939
    %991 = vmatpush.bf16.msra.mxu0 %v936
    %992 = vmatpush.bf16.msra.mxu0 %v933
    %993 = vmatpush.bf16.msra.mxu0 %v930
    %994 = vmatpush.bf16.msra.mxu0 %v927
    %995 = vmatmul.bf16.gmra.mxu0 %v722
    %v996 = vpop.f32.mrf.mxu0
    %v997 = vadd.f32 %v464, %v996
    %v998 = vpop.f32.mrf.mxu0
    %999 = vdwg.mxu0
    %1000 = vmatpush.bf16.msra.mxu0 %v949
    %1001 = vmatpush.bf16.msra.mxu0 %v946
    %1002 = vmatpush.bf16.msra.mxu0 %v943
    %1003 = vmatpush.bf16.msra.mxu0 %v940
    %1004 = vmatpush.bf16.msra.mxu0 %v937
    %1005 = vmatpush.bf16.msra.mxu0 %v934
    %1006 = vmatpush.bf16.msra.mxu0 %v931
    %1007 = vmatpush.bf16.msra.mxu0 %v928
    %1008 = vmatmul.bf16.gmra.mxu0 %v722
    %v1009 = vpop.f32.mrf.mxu0
    %v1010 = vadd.f32 %v465, %v1009
    %v1011 = vpop.f32.mrf.mxu0
    %1012 = vdwg.mxu0
    %v1013 = vld [vmem:[#allocation12] sm:$0xff]
    %v1014 = vld [vmem:[#allocation12 + $0x8] sm:$0xf]
    %v1015 = vld [vmem:[#allocation12 + $0xc] sm:$0xff]
    %v1016 = vld [vmem:[#allocation12 + $0x14] sm:$0xf]
    %v1017 = vld [vmem:[#allocation12 + $0x18] sm:$0xff]
    %v1018 = vld [vmem:[#allocation12 + $0x20] sm:$0xf]
    %v1019 = vld [vmem:[#allocation12 + $0x24] sm:$0xff]
    %v1020 = vld [vmem:[#allocation12 + $0x2c] sm:$0xf]
    %v1021 = vld [vmem:[#allocation12 + $0x30] sm:$0xff]
    %v1022 = vld [vmem:[#allocation12 + $0x38] sm:$0xf]
    %v1023 = vld [vmem:[#allocation12 + $0x3c] sm:$0xff]
    %v1024 = vld [vmem:[#allocation12 + $0x44] sm:$0xf]
    %v1025 = vld [vmem:[#allocation12 + $0x48] sm:$0xff]
    %v1026 = vld [vmem:[#allocation12 + $0x50] sm:$0xf]
    %v1027 = vld [vmem:[#allocation12 + $0x54] sm:$0xff]
    %v1028 = vld [vmem:[#allocation12 + $0x5c] sm:$0xf]
    %v1029 = vld [vmem:[#allocation12 + $0x60] sm:$0xff]
    %v1030 = vld [vmem:[#allocation12 + $0x68] sm:$0xf]
    %v1031 = vld [vmem:[#allocation12 + $0x6c] sm:$0xff]
    %v1032 = vld [vmem:[#allocation12 + $0x74] sm:$0xf]
    %v1033 = vld [vmem:[#allocation12 + $0x78] sm:$0xff]
    %v1034 = vld [vmem:[#allocation12 + $0x80] sm:$0xf]
    %v1035 = vld [vmem:[#allocation12 + $0x84] sm:$0xff]
    %v1036 = vld [vmem:[#allocation12 + $0x8c] sm:$0xf]
    %v1037 = vld [vmem:[#allocation12 + $0x90] sm:$0xff]
    %v1038 = vld [vmem:[#allocation12 + $0x98] sm:$0xf]
    %v1039 = vld [vmem:[#allocation12 + $0x9c] sm:$0xff]
    %v1040 = vld [vmem:[#allocation12 + $0xa4] sm:$0xf]
    %v1041 = vld [vmem:[#allocation12 + $0xa8] sm:$0xff]
    %v1042 = vld [vmem:[#allocation12 + $0xb0] sm:$0xf]
    %v1043 = vld [vmem:[#allocation12 + $0xb4] sm:$0xff]
    %v1044 = vld [vmem:[#allocation12 + $0xbc] sm:$0xf]
    %v1077 = vunpack.c.l.b16 %v1013
    %v1078 = vunpack.c.h.b16 %v1013
    %v1079 = vunpack.c.l.b16 %v1014
    %v1080 = vunpack.c.l.b16 %v1015
    %v1081 = vunpack.c.h.b16 %v1015
    %v1082 = vunpack.c.l.b16 %v1016
    %v1083 = vunpack.c.l.b16 %v1017
    %v1084 = vunpack.c.h.b16 %v1017
    %v1085 = vunpack.c.l.b16 %v1018
    %v1086 = vunpack.c.l.b16 %v1019
    %v1087 = vunpack.c.h.b16 %v1019
    %v1088 = vunpack.c.l.b16 %v1020
    %v1089 = vunpack.c.l.b16 %v1021
    %v1090 = vunpack.c.h.b16 %v1021
    %v1091 = vunpack.c.l.b16 %v1022
    %v1092 = vunpack.c.l.b16 %v1023
    %v1093 = vunpack.c.h.b16 %v1023
    %v1094 = vunpack.c.l.b16 %v1024
    %v1095 = vunpack.c.l.b16 %v1025
    %v1096 = vunpack.c.h.b16 %v1025
    %v1097 = vunpack.c.l.b16 %v1026
    %v1098 = vunpack.c.l.b16 %v1027
    %v1099 = vunpack.c.h.b16 %v1027
    %v1100 = vunpack.c.l.b16 %v1028
    %v1101 = vunpack.c.l.b16 %v1029
    %v1102 = vunpack.c.h.b16 %v1029
    %v1103 = vunpack.c.l.b16 %v1030
    %v1104 = vunpack.c.l.b16 %v1031
    %v1105 = vunpack.c.h.b16 %v1031
    %v1106 = vunpack.c.l.b16 %v1032
    %v1107 = vunpack.c.l.b16 %v1033
    %v1108 = vunpack.c.h.b16 %v1033
    %v1109 = vunpack.c.l.b16 %v1034
    %v1110 = vunpack.c.l.b16 %v1035
    %v1111 = vunpack.c.h.b16 %v1035
    %v1112 = vunpack.c.l.b16 %v1036
    %v1113 = vunpack.c.l.b16 %v1037
    %v1114 = vunpack.c.h.b16 %v1037
    %v1115 = vunpack.c.l.b16 %v1038
    %v1116 = vunpack.c.l.b16 %v1039
    %v1117 = vunpack.c.h.b16 %v1039
    %v1118 = vunpack.c.l.b16 %v1040
    %v1119 = vunpack.c.l.b16 %v1041
    %v1120 = vunpack.c.h.b16 %v1041
    %v1121 = vunpack.c.l.b16 %v1042
    %v1122 = vunpack.c.l.b16 %v1043
    %v1123 = vunpack.c.h.b16 %v1043
    %v1124 = vunpack.c.l.b16 %v1044
    %v1125 = vpack.c.b16 %v1080, %v1077
    %v1126 = vpack.c.b16 %v1081, %v1078
    %v1127 = vpack.c.b16 %v1082, %v1079
    %v1128 = vpack.c.b16 %v1086, %v1083
    %v1129 = vpack.c.b16 %v1087, %v1084
    %v1130 = vpack.c.b16 %v1088, %v1085
    %v1131 = vpack.c.b16 %v1092, %v1089
    %v1132 = vpack.c.b16 %v1093, %v1090
    %v1133 = vpack.c.b16 %v1094, %v1091
    %v1134 = vpack.c.b16 %v1098, %v1095
    %v1135 = vpack.c.b16 %v1099, %v1096
    %v1136 = vpack.c.b16 %v1100, %v1097
    %v1137 = vpack.c.b16 %v1104, %v1101
    %v1138 = vpack.c.b16 %v1105, %v1102
    %v1139 = vpack.c.b16 %v1106, %v1103
    %v1140 = vpack.c.b16 %v1110, %v1107
    %v1141 = vpack.c.b16 %v1111, %v1108
    %v1142 = vpack.c.b16 %v1112, %v1109
    %v1143 = vpack.c.b16 %v1116, %v1113
    %v1144 = vpack.c.b16 %v1117, %v1114
    %v1145 = vpack.c.b16 %v1118, %v1115
    %v1146 = vpack.c.b16 %v1122, %v1119
    %v1147 = vpack.c.b16 %v1123, %v1120
    %v1148 = vpack.c.b16 %v1124, %v1121
    %1173 = vmatpush.bf16.msra.mxu0 %v1146
    %1174 = vmatpush.bf16.msra.mxu0 %v1143
    %1175 = vmatpush.bf16.msra.mxu0 %v1140
    %1176 = vmatpush.bf16.msra.mxu0 %v1137
    %1177 = vmatpush.bf16.msra.mxu0 %v1134
    %1178 = vmatpush.bf16.msra.mxu0 %v1131
    %1179 = vmatpush.bf16.msra.mxu0 %v1128
    %1180 = vmatpush.bf16.msra.mxu0 %v1125
    %1181 = vmatmul.bf16.gmra.mxu0 0
    %v1182 = vpop.f32.mrf.mxu0
    %v1183 = vadd.f32 0.0, %v1182
    %v1184 = vpop.f32.mrf.mxu0
    %1185 = vdwg.mxu0
    %1186 = vmatpush.bf16.msra.mxu0 %v1147
    %1187 = vmatpush.bf16.msra.mxu0 %v1144
    %1188 = vmatpush.bf16.msra.mxu0 %v1141
    %1189 = vmatpush.bf16.msra.mxu0 %v1138
    %1190 = vmatpush.bf16.msra.mxu0 %v1135
    %1191 = vmatpush.bf16.msra.mxu0 %v1132
    %1192 = vmatpush.bf16.msra.mxu0 %v1129
    %1193 = vmatpush.bf16.msra.mxu0 %v1126
    %1194 = vmatmul.bf16.gmra.mxu0 0
    %v1195 = vpop.f32.mrf.mxu0
    %v1196 = vadd.f32 0.0, %v1195
    %v1197 = vpop.f32.mrf.mxu0
    %1198 = vdwg.mxu0
    %1199 = vmatpush.bf16.msra.mxu0 %v1148
    %1200 = vmatpush.bf16.msra.mxu0 %v1145
    %1201 = vmatpush.bf16.msra.mxu0 %v1142
    %1202 = vmatpush.bf16.msra.mxu0 %v1139
    %1203 = vmatpush.bf16.msra.mxu0 %v1136
    %1204 = vmatpush.bf16.msra.mxu0 %v1133
    %1205 = vmatpush.bf16.msra.mxu0 %v1130
    %1206 = vmatpush.bf16.msra.mxu0 %v1127
    %1207 = vmatmul.bf16.gmra.mxu0 0
    %v1208 = vpop.f32.mrf.mxu0
    %v1209 = vadd.f32 0.0, %v1208
    %v1210 = vpop.f32.mrf.mxu0
    %1211 = vdwg.mxu0
    %v1212 = vadd.f32 %v984, %v1183
    %v1213 = vxor.u32 %v1212, 2147483648
    %v1214 = vmul.f32 %v1213, 1.442695
    %v1215 = vpow.pop %v1214
    %v1216 = vadd.f32 %v1215, 1.0
    %v1217 = vrcp.pop %v1216
    %v1218 = vmul.f32 %v1216, %v1217
    %v1219 = vsub.f32 1.0, %v1218
    %v1220 = vmul.f32 %v1217, %v1219
    %v1221 = vadd.f32 %v1217, %v1220
    %vm1222 = vweird.f32 %v1216
    %vm1223 = vweird.f32 %v1217
    %vm1224 = vmor %vm1222, %vm1223
    %v1225 = vsel %vm1224, %v1217, %v1221
    %v1226 = vand.u32 2147483647, %v1216
    %vm1227 = vcmp.eq.f32.partialorder %v1226, 8.507059e+37
    %v1228 = vand.u32 %v1216, 2147483648
    %v1229 = vor.u32 1.1754944e-38, %v1228
    %v1230 = vsel %vm1227, %v1229, %v1225
    %v1231 = vmul.f32 1.0, %v1230
    %v1232 = vadd.f32 %v997, %v1196
    %v1233 = vxor.u32 %v1232, 2147483648
    %v1234 = vmul.f32 %v1233, 1.442695
    %v1235 = vpow.pop %v1234
    %v1236 = vadd.f32 %v1235, 1.0
    %v1237 = vrcp.pop %v1236
    %v1238 = vmul.f32 %v1236, %v1237
    %v1239 = vsub.f32 1.0, %v1238
    %v1240 = vmul.f32 %v1237, %v1239
    %v1241 = vadd.f32 %v1237, %v1240
    %vm1242 = vweird.f32 %v1236
    %vm1243 = vweird.f32 %v1237
    %vm1244 = vmor %vm1242, %vm1243
    %v1245 = vsel %vm1244, %v1237, %v1241
    %v1246 = vand.u32 2147483647, %v1236
    %vm1247 = vcmp.eq.f32.partialorder %v1246, 8.507059e+37
    %v1248 = vand.u32 %v1236, 2147483648
    %v1249 = vor.u32 1.1754944e-38, %v1248
    %v1250 = vsel %vm1247, %v1249, %v1245
    %v1251 = vmul.f32 1.0, %v1250
    %v1252 = vadd.f32 %v1209, %v471
    %v1253 = vmul.f32 %v1231, %v1252
    %v1254 = vadd.f32 %v1010, %v1253
    %v1255 = vtanh.pop %v1254
    %v1256 = vsub.f32 0.0, %v1255
    %v1257 = vmul.f32 %v1251, %v1256
    %v1258 = vadd.f32 %v1255, %v1257
    %v1259 = vpack.c.bf16 %v1258, %v1258
    %1260 = vst [vmem:[#allocation14] sm:$0xff] %v1258
    %s1261 = scalar_lea.vmem [#allocation2], 48
    %v1262 = vld [vmem:[%s1261] sm:$0xff]
    %v1263 = vld [vmem:[%s1261 + $0x8] sm:$0xff]
    %v1264 = vld [vmem:[%s1261 + $0x10] sm:$0xff]
    %v1265 = vld [vmem:[#allocation8] sm:$0xff]
    %v1266 = vld [vmem:[#allocation8 + $0x8] sm:$0xf]
    %v1267 = vld [vmem:[#allocation8 + $0xc] sm:$0xff]
    %v1268 = vld [vmem:[#allocation8 + $0x14] sm:$0xf]
    %v1269 = vld [vmem:[#allocation8 + $0x18] sm:$0xff]
    %v1270 = vld [vmem:[#allocation8 + $0x20] sm:$0xf]
    %v1271 = vld [vmem:[#allocation8 + $0x24] sm:$0xff]
    %v1272 = vld [vmem:[#allocation8 + $0x2c] sm:$0xf]
    %v1273 = vld [vmem:[#allocation8 + $0x30] sm:$0xff]
    %v1274 = vld [vmem:[#allocation8 + $0x38] sm:$0xf]
    %v1275 = vld [vmem:[#allocation8 + $0x3c] sm:$0xff]
    %v1276 = vld [vmem:[#allocation8 + $0x44] sm:$0xf]
    %v1277 = vld [vmem:[#allocation8 + $0x48] sm:$0xff]
    %v1278 = vld [vmem:[#allocation8 + $0x50] sm:$0xf]
    %v1279 = vld [vmem:[#allocation8 + $0x54] sm:$0xff]
    %v1280 = vld [vmem:[#allocation8 + $0x5c] sm:$0xf]
    %v1281 = vld [vmem:[#allocation8 + $0x60] sm:$0xff]
    %v1282 = vld [vmem:[#allocation8 + $0x68] sm:$0xf]
    %v1283 = vld [vmem:[#allocation8 + $0x6c] sm:$0xff]
    %v1284 = vld [vmem:[#allocation8 + $0x74] sm:$0xf]
    %v1285 = vld [vmem:[#allocation8 + $0x78] sm:$0xff]
    %v1286 = vld [vmem:[#allocation8 + $0x80] sm:$0xf]
    %v1287 = vld [vmem:[#allocation8 + $0x84] sm:$0xff]
    %v1288 = vld [vmem:[#allocation8 + $0x8c] sm:$0xf]
    %v1289 = vld [vmem:[#allocation8 + $0x90] sm:$0xff]
    %v1290 = vld [vmem:[#allocation8 + $0x98] sm:$0xf]
    %v1291 = vld [vmem:[#allocation8 + $0x9c] sm:$0xff]
    %v1292 = vld [vmem:[#allocation8 + $0xa4] sm:$0xf]
    %v1293 = vld [vmem:[#allocation8 + $0xa8] sm:$0xff]
    %v1294 = vld [vmem:[#allocation8 + $0xb0] sm:$0xf]
    %v1295 = vld [vmem:[#allocation8 + $0xb4] sm:$0xff]
    %v1296 = vld [vmem:[#allocation8 + $0xbc] sm:$0xf]
    %v1329 = vunpack.c.l.b16 %v1265
    %v1330 = vunpack.c.h.b16 %v1265
    %v1331 = vunpack.c.l.b16 %v1266
    %v1332 = vunpack.c.l.b16 %v1267
    %v1333 = vunpack.c.h.b16 %v1267
    %v1334 = vunpack.c.l.b16 %v1268
    %v1335 = vunpack.c.l.b16 %v1269
    %v1336 = vunpack.c.h.b16 %v1269
    %v1337 = vunpack.c.l.b16 %v1270
    %v1338 = vunpack.c.l.b16 %v1271
    %v1339 = vunpack.c.h.b16 %v1271
    %v1340 = vunpack.c.l.b16 %v1272
    %v1341 = vunpack.c.l.b16 %v1273
    %v1342 = vunpack.c.h.b16 %v1273
    %v1343 = vunpack.c.l.b16 %v1274
    %v1344 = vunpack.c.l.b16 %v1275
    %v1345 = vunpack.c.h.b16 %v1275
    %v1346 = vunpack.c.l.b16 %v1276
    %v1347 = vunpack.c.l.b16 %v1277
    %v1348 = vunpack.c.h.b16 %v1277
    %v1349 = vunpack.c.l.b16 %v1278
    %v1350 = vunpack.c.l.b16 %v1279
    %v1351 = vunpack.c.h.b16 %v1279
    %v1352 = vunpack.c.l.b16 %v1280
    %v1353 = vunpack.c.l.b16 %v1281
    %v1354 = vunpack.c.h.b16 %v1281
    %v1355 = vunpack.c.l.b16 %v1282
    %v1356 = vunpack.c.l.b16 %v1283
    %v1357 = vunpack.c.h.b16 %v1283
    %v1358 = vunpack.c.l.b16 %v1284
    %v1359 = vunpack.c.l.b16 %v1285
    %v1360 = vunpack.c.h.b16 %v1285
    %v1361 = vunpack.c.l.b16 %v1286
    %v1362 = vunpack.c.l.b16 %v1287
    %v1363 = vunpack.c.h.b16 %v1287
    %v1364 = vunpack.c.l.b16 %v1288
    %v1365 = vunpack.c.l.b16 %v1289
    %v1366 = vunpack.c.h.b16 %v1289
    %v1367 = vunpack.c.l.b16 %v1290
    %v1368 = vunpack.c.l.b16 %v1291
    %v1369 = vunpack.c.h.b16 %v1291
    %v1370 = vunpack.c.l.b16 %v1292
    %v1371 = vunpack.c.l.b16 %v1293
    %v1372 = vunpack.c.h.b16 %v1293
    %v1373 = vunpack.c.l.b16 %v1294
    %v1374 = vunpack.c.l.b16 %v1295
    %v1375 = vunpack.c.h.b16 %v1295
    %v1376 = vunpack.c.l.b16 %v1296
    %v1377 = vpack.c.b16 %v1332, %v1329
    %v1378 = vpack.c.b16 %v1333, %v1330
    %v1379 = vpack.c.b16 %v1334, %v1331
    %v1380 = vpack.c.b16 %v1338, %v1335
    %v1381 = vpack.c.b16 %v1339, %v1336
    %v1382 = vpack.c.b16 %v1340, %v1337
    %v1383 = vpack.c.b16 %v1344, %v1341
    %v1384 = vpack.c.b16 %v1345, %v1342
    %v1385 = vpack.c.b16 %v1346, %v1343
    %v1386 = vpack.c.b16 %v1350, %v1347
    %v1387 = vpack.c.b16 %v1351, %v1348
    %v1388 = vpack.c.b16 %v1352, %v1349
    %v1389 = vpack.c.b16 %v1356, %v1353
    %v1390 = vpack.c.b16 %v1357, %v1354
    %v1391 = vpack.c.b16 %v1358, %v1355
    %v1392 = vpack.c.b16 %v1362, %v1359
    %v1393 = vpack.c.b16 %v1363, %v1360
    %v1394 = vpack.c.b16 %v1364, %v1361
    %v1395 = vpack.c.b16 %v1368, %v1365
    %v1396 = vpack.c.b16 %v1369, %v1366
    %v1397 = vpack.c.b16 %v1370, %v1367
    %v1398 = vpack.c.b16 %v1374, %v1371
    %v1399 = vpack.c.b16 %v1375, %v1372
    %v1400 = vpack.c.b16 %v1376, %v1373
    %1425 = vmatpush.bf16.msra.mxu0 %v1398
    %1426 = vmatpush.bf16.msra.mxu0 %v1395
    %1427 = vmatpush.bf16.msra.mxu0 %v1392
    %1428 = vmatpush.bf16.msra.mxu0 %v1389
    %1429 = vmatpush.bf16.msra.mxu0 %v1386
    %1430 = vmatpush.bf16.msra.mxu0 %v1383
    %1431 = vmatpush.bf16.msra.mxu0 %v1380
    %1432 = vmatpush.bf16.msra.mxu0 %v1377
    %1433 = vmatmul.bf16.gmra.mxu0 %v813
    %v1434 = vpop.f32.mrf.mxu0
    %v1435 = vadd.f32 0.0, %v1434
    %v1436 = vpop.f32.mrf.mxu0
    %1437 = vdwg.mxu0
    %1438 = vmatpush.bf16.msra.mxu0 %v1399
    %1439 = vmatpush.bf16.msra.mxu0 %v1396
    %1440 = vmatpush.bf16.msra.mxu0 %v1393
    %1441 = vmatpush.bf16.msra.mxu0 %v1390
    %1442 = vmatpush.bf16.msra.mxu0 %v1387
    %1443 = vmatpush.bf16.msra.mxu0 %v1384
    %1444 = vmatpush.bf16.msra.mxu0 %v1381
    %1445 = vmatpush.bf16.msra.mxu0 %v1378
    %1446 = vmatmul.bf16.gmra.mxu0 %v813
    %v1447 = vpop.f32.mrf.mxu0
    %v1448 = vadd.f32 0.0, %v1447
    %v1449 = vpop.f32.mrf.mxu0
    %1450 = vdwg.mxu0
    %1451 = vmatpush.bf16.msra.mxu0 %v1400
    %1452 = vmatpush.bf16.msra.mxu0 %v1397
    %1453 = vmatpush.bf16.msra.mxu0 %v1394
    %1454 = vmatpush.bf16.msra.mxu0 %v1391
    %1455 = vmatpush.bf16.msra.mxu0 %v1388
    %1456 = vmatpush.bf16.msra.mxu0 %v1385
    %1457 = vmatpush.bf16.msra.mxu0 %v1382
    %1458 = vmatpush.bf16.msra.mxu0 %v1379
    %1459 = vmatmul.bf16.gmra.mxu0 %v813
    %v1460 = vpop.f32.mrf.mxu0
    %v1461 = vadd.f32 0.0, %v1460
    %v1462 = vpop.f32.mrf.mxu0
    %1463 = vdwg.mxu0
    %v1464 = vadd.f32 %v1262, %v1435
    %v1465 = vxor.u32 %v1464, 2147483648
    %v1466 = vmul.f32 %v1465, 1.442695
    %v1467 = vpow.pop %v1466
    %v1468 = vadd.f32 %v1467, 1.0
    %v1469 = vrcp.pop %v1468
    %v1470 = vmul.f32 %v1468, %v1469
    %v1471 = vsub.f32 1.0, %v1470
    %v1472 = vmul.f32 %v1469, %v1471
    %v1473 = vadd.f32 %v1469, %v1472
    %vm1474 = vweird.f32 %v1468
    %vm1475 = vweird.f32 %v1469
    %vm1476 = vmor %vm1474, %vm1475
    %v1477 = vsel %vm1476, %v1469, %v1473
    %v1478 = vand.u32 2147483647, %v1468
    %vm1479 = vcmp.eq.f32.partialorder %v1478, 8.507059e+37
    %v1480 = vand.u32 %v1468, 2147483648
    %v1481 = vor.u32 1.1754944e-38, %v1480
    %v1482 = vsel %vm1479, %v1481, %v1477
    %v1483 = vmul.f32 1.0, %v1482
    %v1484 = vadd.f32 %v1263, %v1448
    %v1485 = vxor.u32 %v1484, 2147483648
    %v1486 = vmul.f32 %v1485, 1.442695
    %v1487 = vpow.pop %v1486
    %v1488 = vadd.f32 %v1487, 1.0
    %v1489 = vrcp.pop %v1488
    %v1490 = vmul.f32 %v1488, %v1489
    %v1491 = vsub.f32 1.0, %v1490
    %v1492 = vmul.f32 %v1489, %v1491
    %v1493 = vadd.f32 %v1489, %v1492
    %vm1494 = vweird.f32 %v1488
    %vm1495 = vweird.f32 %v1489
    %vm1496 = vmor %vm1494, %vm1495
    %v1497 = vsel %vm1496, %v1489, %v1493
    %v1498 = vand.u32 2147483647, %v1488
    %vm1499 = vcmp.eq.f32.partialorder %v1498, 8.507059e+37
    %v1500 = vand.u32 %v1488, 2147483648
    %v1501 = vor.u32 1.1754944e-38, %v1500
    %v1502 = vsel %vm1499, %v1501, %v1497
    %v1503 = vmul.f32 1.0, %v1502
    %v1504 = vadd.f32 %v1461, %v459
    %v1505 = vmul.f32 %v1483, %v1504
    %v1506 = vadd.f32 %v1264, %v1505
    %v1507 = vtanh.pop %v1506
    %v1508 = vsub.f32 %v812, %v1507
    %v1509 = vmul.f32 %v1503, %v1508
    %v1510 = vadd.f32 %v1507, %v1509
    %v1511 = vpack.c.bf16 %v1510, %v1510
    %v1512 = vld [vmem:[#allocation11] sm:$0xff]
    %v1513 = vld [vmem:[#allocation11 + $0x8] sm:$0xf]
    %v1514 = vld [vmem:[#allocation11 + $0xc] sm:$0xff]
    %v1515 = vld [vmem:[#allocation11 + $0x14] sm:$0xf]
    %v1516 = vld [vmem:[#allocation11 + $0x18] sm:$0xff]
    %v1517 = vld [vmem:[#allocation11 + $0x20] sm:$0xf]
    %v1518 = vld [vmem:[#allocation11 + $0x24] sm:$0xff]
    %v1519 = vld [vmem:[#allocation11 + $0x2c] sm:$0xf]
    %v1520 = vld [vmem:[#allocation11 + $0x30] sm:$0xff]
    %v1521 = vld [vmem:[#allocation11 + $0x38] sm:$0xf]
    %v1522 = vld [vmem:[#allocation11 + $0x3c] sm:$0xff]
    %v1523 = vld [vmem:[#allocation11 + $0x44] sm:$0xf]
    %v1524 = vld [vmem:[#allocation11 + $0x48] sm:$0xff]
    %v1525 = vld [vmem:[#allocation11 + $0x50] sm:$0xf]
    %v1526 = vld [vmem:[#allocation11 + $0x54] sm:$0xff]
    %v1527 = vld [vmem:[#allocation11 + $0x5c] sm:$0xf]
    %v1528 = vld [vmem:[#allocation11 + $0x60] sm:$0xff]
    %v1529 = vld [vmem:[#allocation11 + $0x68] sm:$0xf]
    %v1530 = vld [vmem:[#allocation11 + $0x6c] sm:$0xff]
    %v1531 = vld [vmem:[#allocation11 + $0x74] sm:$0xf]
    %v1532 = vld [vmem:[#allocation11 + $0x78] sm:$0xff]
    %v1533 = vld [vmem:[#allocation11 + $0x80] sm:$0xf]
    %v1534 = vld [vmem:[#allocation11 + $0x84] sm:$0xff]
    %v1535 = vld [vmem:[#allocation11 + $0x8c] sm:$0xf]
    %v1536 = vld [vmem:[#allocation11 + $0x90] sm:$0xff]
    %v1537 = vld [vmem:[#allocation11 + $0x98] sm:$0xf]
    %v1538 = vld [vmem:[#allocation11 + $0x9c] sm:$0xff]
    %v1539 = vld [vmem:[#allocation11 + $0xa4] sm:$0xf]
    %v1540 = vld [vmem:[#allocation11 + $0xa8] sm:$0xff]
    %v1541 = vld [vmem:[#allocation11 + $0xb0] sm:$0xf]
    %v1542 = vld [vmem:[#allocation11 + $0xb4] sm:$0xff]
    %v1543 = vld [vmem:[#allocation11 + $0xbc] sm:$0xf]
    %v1576 = vunpack.c.l.b16 %v1512
    %v1577 = vunpack.c.h.b16 %v1512
    %v1578 = vunpack.c.l.b16 %v1513
    %v1579 = vunpack.c.l.b16 %v1514
    %v1580 = vunpack.c.h.b16 %v1514
    %v1581 = vunpack.c.l.b16 %v1515
    %v1582 = vunpack.c.l.b16 %v1516
    %v1583 = vunpack.c.h.b16 %v1516
    %v1584 = vunpack.c.l.b16 %v1517
    %v1585 = vunpack.c.l.b16 %v1518
    %v1586 = vunpack.c.h.b16 %v1518
    %v1587 = vunpack.c.l.b16 %v1519
    %v1588 = vunpack.c.l.b16 %v1520
    %v1589 = vunpack.c.h.b16 %v1520
    %v1590 = vunpack.c.l.b16 %v1521
    %v1591 = vunpack.c.l.b16 %v1522
    %v1592 = vunpack.c.h.b16 %v1522
    %v1593 = vunpack.c.l.b16 %v1523
    %v1594 = vunpack.c.l.b16 %v1524
    %v1595 = vunpack.c.h.b16 %v1524
    %v1596 = vunpack.c.l.b16 %v1525
    %v1597 = vunpack.c.l.b16 %v1526
    %v1598 = vunpack.c.h.b16 %v1526
    %v1599 = vunpack.c.l.b16 %v1527
    %v1600 = vunpack.c.l.b16 %v1528
    %v1601 = vunpack.c.h.b16 %v1528
    %v1602 = vunpack.c.l.b16 %v1529
    %v1603 = vunpack.c.l.b16 %v1530
    %v1604 = vunpack.c.h.b16 %v1530
    %v1605 = vunpack.c.l.b16 %v1531
    %v1606 = vunpack.c.l.b16 %v1532
    %v1607 = vunpack.c.h.b16 %v1532
    %v1608 = vunpack.c.l.b16 %v1533
    %v1609 = vunpack.c.l.b16 %v1534
    %v1610 = vunpack.c.h.b16 %v1534
    %v1611 = vunpack.c.l.b16 %v1535
    %v1612 = vunpack.c.l.b16 %v1536
    %v1613 = vunpack.c.h.b16 %v1536
    %v1614 = vunpack.c.l.b16 %v1537
    %v1615 = vunpack.c.l.b16 %v1538
    %v1616 = vunpack.c.h.b16 %v1538
    %v1617 = vunpack.c.l.b16 %v1539
    %v1618 = vunpack.c.l.b16 %v1540
    %v1619 = vunpack.c.h.b16 %v1540
    %v1620 = vunpack.c.l.b16 %v1541
    %v1621 = vunpack.c.l.b16 %v1542
    %v1622 = vunpack.c.h.b16 %v1542
    %v1623 = vunpack.c.l.b16 %v1543
    %v1624 = vpack.c.b16 %v1579, %v1576
    %v1625 = vpack.c.b16 %v1580, %v1577
    %v1626 = vpack.c.b16 %v1581, %v1578
    %v1627 = vpack.c.b16 %v1585, %v1582
    %v1628 = vpack.c.b16 %v1586, %v1583
    %v1629 = vpack.c.b16 %v1587, %v1584
    %v1630 = vpack.c.b16 %v1591, %v1588
    %v1631 = vpack.c.b16 %v1592, %v1589
    %v1632 = vpack.c.b16 %v1593, %v1590
    %v1633 = vpack.c.b16 %v1597, %v1594
    %v1634 = vpack.c.b16 %v1598, %v1595
    %v1635 = vpack.c.b16 %v1599, %v1596
    %v1636 = vpack.c.b16 %v1603, %v1600
    %v1637 = vpack.c.b16 %v1604, %v1601
    %v1638 = vpack.c.b16 %v1605, %v1602
    %v1639 = vpack.c.b16 %v1609, %v1606
    %v1640 = vpack.c.b16 %v1610, %v1607
    %v1641 = vpack.c.b16 %v1611, %v1608
    %v1642 = vpack.c.b16 %v1615, %v1612
    %v1643 = vpack.c.b16 %v1616, %v1613
    %v1644 = vpack.c.b16 %v1617, %v1614
    %v1645 = vpack.c.b16 %v1621, %v1618
    %v1646 = vpack.c.b16 %v1622, %v1619
    %v1647 = vpack.c.b16 %v1623, %v1620
    %1672 = vmatpush.bf16.msra.mxu0 %v1645
    %1673 = vmatpush.bf16.msra.mxu0 %v1642
    %1674 = vmatpush.bf16.msra.mxu0 %v1639
    %1675 = vmatpush.bf16.msra.mxu0 %v1636
    %1676 = vmatpush.bf16.msra.mxu0 %v1633
    %1677 = vmatpush.bf16.msra.mxu0 %v1630
    %1678 = vmatpush.bf16.msra.mxu0 %v1627
    %1679 = vmatpush.bf16.msra.mxu0 %v1624
    %1680 = vmatmul.bf16.gmra.mxu0 %v813
    %v1681 = vpop.f32.mrf.mxu0
    %v1682 = vadd.f32 %v463, %v1681
    %v1683 = vpop.f32.mrf.mxu0
    %1684 = vdwg.mxu0
    %1685 = vmatpush.bf16.msra.mxu0 %v1646
    %1686 = vmatpush.bf16.msra.mxu0 %v1643
    %1687 = vmatpush.bf16.msra.mxu0 %v1640
    %1688 = vmatpush.bf16.msra.mxu0 %v1637
    %1689 = vmatpush.bf16.msra.mxu0 %v1634
    %1690 = vmatpush.bf16.msra.mxu0 %v1631
    %1691 = vmatpush.bf16.msra.mxu0 %v1628
    %1692 = vmatpush.bf16.msra.mxu0 %v1625
    %1693 = vmatmul.bf16.gmra.mxu0 %v813
    %v1694 = vpop.f32.mrf.mxu0
    %v1695 = vadd.f32 %v464, %v1694
    %v1696 = vpop.f32.mrf.mxu0
    %1697 = vdwg.mxu0
    %1698 = vmatpush.bf16.msra.mxu0 %v1647
    %1699 = vmatpush.bf16.msra.mxu0 %v1644
    %1700 = vmatpush.bf16.msra.mxu0 %v1641
    %1701 = vmatpush.bf16.msra.mxu0 %v1638
    %1702 = vmatpush.bf16.msra.mxu0 %v1635
    %1703 = vmatpush.bf16.msra.mxu0 %v1632
    %1704 = vmatpush.bf16.msra.mxu0 %v1629
    %1705 = vmatpush.bf16.msra.mxu0 %v1626
    %1706 = vmatmul.bf16.gmra.mxu0 %v813
    %v1707 = vpop.f32.mrf.mxu0
    %v1708 = vadd.f32 %v465, %v1707
    %v1709 = vpop.f32.mrf.mxu0
    %1710 = vdwg.mxu0
    %v1711 = vld [vmem:[#allocation12] sm:$0xff]
    %v1712 = vld [vmem:[#allocation12 + $0x8] sm:$0xf]
    %v1713 = vld [vmem:[#allocation12 + $0xc] sm:$0xff]
    %v1714 = vld [vmem:[#allocation12 + $0x14] sm:$0xf]
    %v1715 = vld [vmem:[#allocation12 + $0x18] sm:$0xff]
    %v1716 = vld [vmem:[#allocation12 + $0x20] sm:$0xf]
    %v1717 = vld [vmem:[#allocation12 + $0x24] sm:$0xff]
    %v1718 = vld [vmem:[#allocation12 + $0x2c] sm:$0xf]
    %v1719 = vld [vmem:[#allocation12 + $0x30] sm:$0xff]
    %v1720 = vld [vmem:[#allocation12 + $0x38] sm:$0xf]
    %v1721 = vld [vmem:[#allocation12 + $0x3c] sm:$0xff]
    %v1722 = vld [vmem:[#allocation12 + $0x44] sm:$0xf]
    %v1723 = vld [vmem:[#allocation12 + $0x48] sm:$0xff]
    %v1724 = vld [vmem:[#allocation12 + $0x50] sm:$0xf]
    %v1725 = vld [vmem:[#allocation12 + $0x54] sm:$0xff]
    %v1726 = vld [vmem:[#allocation12 + $0x5c] sm:$0xf]
    %v1727 = vld [vmem:[#allocation12 + $0x60] sm:$0xff]
    %v1728 = vld [vmem:[#allocation12 + $0x68] sm:$0xf]
    %v1729 = vld [vmem:[#allocation12 + $0x6c] sm:$0xff]
    %v1730 = vld [vmem:[#allocation12 + $0x74] sm:$0xf]
    %v1731 = vld [vmem:[#allocation12 + $0x78] sm:$0xff]
    %v1732 = vld [vmem:[#allocation12 + $0x80] sm:$0xf]
    %v1733 = vld [vmem:[#allocation12 + $0x84] sm:$0xff]
    %v1734 = vld [vmem:[#allocation12 + $0x8c] sm:$0xf]
    %v1735 = vld [vmem:[#allocation12 + $0x90] sm:$0xff]
    %v1736 = vld [vmem:[#allocation12 + $0x98] sm:$0xf]
    %v1737 = vld [vmem:[#allocation12 + $0x9c] sm:$0xff]
    %v1738 = vld [vmem:[#allocation12 + $0xa4] sm:$0xf]
    %v1739 = vld [vmem:[#allocation12 + $0xa8] sm:$0xff]
    %v1740 = vld [vmem:[#allocation12 + $0xb0] sm:$0xf]
    %v1741 = vld [vmem:[#allocation12 + $0xb4] sm:$0xff]
    %v1742 = vld [vmem:[#allocation12 + $0xbc] sm:$0xf]
    %v1775 = vunpack.c.l.b16 %v1711
    %v1776 = vunpack.c.h.b16 %v1711
    %v1777 = vunpack.c.l.b16 %v1712
    %v1778 = vunpack.c.l.b16 %v1713
    %v1779 = vunpack.c.h.b16 %v1713
    %v1780 = vunpack.c.l.b16 %v1714
    %v1781 = vunpack.c.l.b16 %v1715
    %v1782 = vunpack.c.h.b16 %v1715
    %v1783 = vunpack.c.l.b16 %v1716
    %v1784 = vunpack.c.l.b16 %v1717
    %v1785 = vunpack.c.h.b16 %v1717
    %v1786 = vunpack.c.l.b16 %v1718
    %v1787 = vunpack.c.l.b16 %v1719
    %v1788 = vunpack.c.h.b16 %v1719
    %v1789 = vunpack.c.l.b16 %v1720
    %v1790 = vunpack.c.l.b16 %v1721
    %v1791 = vunpack.c.h.b16 %v1721
    %v1792 = vunpack.c.l.b16 %v1722
    %v1793 = vunpack.c.l.b16 %v1723
    %v1794 = vunpack.c.h.b16 %v1723
    %v1795 = vunpack.c.l.b16 %v1724
    %v1796 = vunpack.c.l.b16 %v1725
    %v1797 = vunpack.c.h.b16 %v1725
    %v1798 = vunpack.c.l.b16 %v1726
    %v1799 = vunpack.c.l.b16 %v1727
    %v1800 = vunpack.c.h.b16 %v1727
    %v1801 = vunpack.c.l.b16 %v1728
    %v1802 = vunpack.c.l.b16 %v1729
    %v1803 = vunpack.c.h.b16 %v1729
    %v1804 = vunpack.c.l.b16 %v1730
    %v1805 = vunpack.c.l.b16 %v1731
    %v1806 = vunpack.c.h.b16 %v1731
    %v1807 = vunpack.c.l.b16 %v1732
    %v1808 = vunpack.c.l.b16 %v1733
    %v1809 = vunpack.c.h.b16 %v1733
    %v1810 = vunpack.c.l.b16 %v1734
    %v1811 = vunpack.c.l.b16 %v1735
    %v1812 = vunpack.c.h.b16 %v1735
    %v1813 = vunpack.c.l.b16 %v1736
    %v1814 = vunpack.c.l.b16 %v1737
    %v1815 = vunpack.c.h.b16 %v1737
    %v1816 = vunpack.c.l.b16 %v1738
    %v1817 = vunpack.c.l.b16 %v1739
    %v1818 = vunpack.c.h.b16 %v1739
    %v1819 = vunpack.c.l.b16 %v1740
    %v1820 = vunpack.c.l.b16 %v1741
    %v1821 = vunpack.c.h.b16 %v1741
    %v1822 = vunpack.c.l.b16 %v1742
    %v1823 = vpack.c.b16 %v1778, %v1775
    %v1824 = vpack.c.b16 %v1779, %v1776
    %v1825 = vpack.c.b16 %v1780, %v1777
    %v1826 = vpack.c.b16 %v1784, %v1781
    %v1827 = vpack.c.b16 %v1785, %v1782
    %v1828 = vpack.c.b16 %v1786, %v1783
    %v1829 = vpack.c.b16 %v1790, %v1787
    %v1830 = vpack.c.b16 %v1791, %v1788
    %v1831 = vpack.c.b16 %v1792, %v1789
    %v1832 = vpack.c.b16 %v1796, %v1793
    %v1833 = vpack.c.b16 %v1797, %v1794
    %v1834 = vpack.c.b16 %v1798, %v1795
    %v1835 = vpack.c.b16 %v1802, %v1799
    %v1836 = vpack.c.b16 %v1803, %v1800
    %v1837 = vpack.c.b16 %v1804, %v1801
    %v1838 = vpack.c.b16 %v1808, %v1805
    %v1839 = vpack.c.b16 %v1809, %v1806
    %v1840 = vpack.c.b16 %v1810, %v1807
    %v1841 = vpack.c.b16 %v1814, %v1811
    %v1842 = vpack.c.b16 %v1815, %v1812
    %v1843 = vpack.c.b16 %v1816, %v1813
    %v1844 = vpack.c.b16 %v1820, %v1817
    %v1845 = vpack.c.b16 %v1821, %v1818
    %v1846 = vpack.c.b16 %v1822, %v1819
    %1871 = vmatpush.bf16.msra.mxu0 %v1844
    %1872 = vmatpush.bf16.msra.mxu0 %v1841
    %1873 = vmatpush.bf16.msra.mxu0 %v1838
    %1874 = vmatpush.bf16.msra.mxu0 %v1835
    %1875 = vmatpush.bf16.msra.mxu0 %v1832
    %1876 = vmatpush.bf16.msra.mxu0 %v1829
    %1877 = vmatpush.bf16.msra.mxu0 %v1826
    %1878 = vmatpush.bf16.msra.mxu0 %v1823
    %1879 = vmatmul.bf16.gmra.mxu0 %v1259
    %v1880 = vpop.f32.mrf.mxu0
    %v1881 = vadd.f32 0.0, %v1880
    %v1882 = vpop.f32.mrf.mxu0
    %1883 = vdwg.mxu0
    %1884 = vmatpush.bf16.msra.mxu0 %v1845
    %1885 = vmatpush.bf16.msra.mxu0 %v1842
    %1886 = vmatpush.bf16.msra.mxu0 %v1839
    %1887 = vmatpush.bf16.msra.mxu0 %v1836
    %1888 = vmatpush.bf16.msra.mxu0 %v1833
    %1889 = vmatpush.bf16.msra.mxu0 %v1830
    %1890 = vmatpush.bf16.msra.mxu0 %v1827
    %1891 = vmatpush.bf16.msra.mxu0 %v1824
    %1892 = vmatmul.bf16.gmra.mxu0 %v1259
    %v1893 = vpop.f32.mrf.mxu0
    %v1894 = vadd.f32 0.0, %v1893
    %v1895 = vpop.f32.mrf.mxu0
    %1896 = vdwg.mxu0
    %1897 = vmatpush.bf16.msra.mxu0 %v1846
    %1898 = vmatpush.bf16.msra.mxu0 %v1843
    %1899 = vmatpush.bf16.msra.mxu0 %v1840
    %1900 = vmatpush.bf16.msra.mxu0 %v1837
    %1901 = vmatpush.bf16.msra.mxu0 %v1834
    %1902 = vmatpush.bf16.msra.mxu0 %v1831
    %1903 = vmatpush.bf16.msra.mxu0 %v1828
    %1904 = vmatpush.bf16.msra.mxu0 %v1825
    %1905 = vmatmul.bf16.gmra.mxu0 %v1259
    %v1906 = vpop.f32.mrf.mxu0
    %v1907 = vadd.f32 0.0, %v1906
    %v1908 = vpop.f32.mrf.mxu0
    %1909 = vdwg.mxu0
    %v1910 = vadd.f32 %v1682, %v1881
    %v1911 = vxor.u32 %v1910, 2147483648
    %v1912 = vmul.f32 %v1911, 1.442695
    %v1913 = vpow.pop %v1912
    %v1914 = vadd.f32 %v1913, 1.0
    %v1915 = vrcp.pop %v1914
    %v1916 = vmul.f32 %v1914, %v1915
    %v1917 = vsub.f32 1.0, %v1916
    %v1918 = vmul.f32 %v1915, %v1917
    %v1919 = vadd.f32 %v1915, %v1918
    %vm1920 = vweird.f32 %v1914
    %vm1921 = vweird.f32 %v1915
    %vm1922 = vmor %vm1920, %vm1921
    %v1923 = vsel %vm1922, %v1915, %v1919
    %v1924 = vand.u32 2147483647, %v1914
    %vm1925 = vcmp.eq.f32.partialorder %v1924, 8.507059e+37
    %v1926 = vand.u32 %v1914, 2147483648
    %v1927 = vor.u32 1.1754944e-38, %v1926
    %v1928 = vsel %vm1925, %v1927, %v1923
    %v1929 = vmul.f32 1.0, %v1928
    %v1930 = vadd.f32 %v1695, %v1894
    %v1931 = vxor.u32 %v1930, 2147483648
    %v1932 = vmul.f32 %v1931, 1.442695
    %v1933 = vpow.pop %v1932
    %v1934 = vadd.f32 %v1933, 1.0
    %v1935 = vrcp.pop %v1934
    %v1936 = vmul.f32 %v1934, %v1935
    %v1937 = vsub.f32 1.0, %v1936
    %v1938 = vmul.f32 %v1935, %v1937
    %v1939 = vadd.f32 %v1935, %v1938
    %vm1940 = vweird.f32 %v1934
    %vm1941 = vweird.f32 %v1935
    %vm1942 = vmor %vm1940, %vm1941
    %v1943 = vsel %vm1942, %v1935, %v1939
    %v1944 = vand.u32 2147483647, %v1934
    %vm1945 = vcmp.eq.f32.partialorder %v1944, 8.507059e+37
    %v1946 = vand.u32 %v1934, 2147483648
    %v1947 = vor.u32 1.1754944e-38, %v1946
    %v1948 = vsel %vm1945, %v1947, %v1943
    %v1949 = vmul.f32 1.0, %v1948
    %v1950 = vadd.f32 %v1907, %v471
    %v1951 = vmul.f32 %v1929, %v1950
    %v1952 = vadd.f32 %v1708, %v1951
    %v1953 = vtanh.pop %v1952
    %v1954 = vsub.f32 %v1258, %v1953
    %v1955 = vmul.f32 %v1949, %v1954
    %v1956 = vadd.f32 %v1953, %v1955
    %v1957 = vpack.c.bf16 %v1956, %v1956
    %s1958 = scalar_lea.vmem [#allocation14], 8
    %1959 = vst [vmem:[%s1958] sm:$0xff] %v1956
    %s1960 = scalar_lea.vmem [#allocation2], 72
    %v1961 = vld [vmem:[%s1960] sm:$0xff]
    %v1962 = vld [vmem:[%s1960 + $0x8] sm:$0xff]
    %v1963 = vld [vmem:[%s1960 + $0x10] sm:$0xff]
    %v1964 = vld [vmem:[#allocation8] sm:$0xff]
    %v1965 = vld [vmem:[#allocation8 + $0x8] sm:$0xf]
    %v1966 = vld [vmem:[#allocation8 + $0xc] sm:$0xff]
    %v1967 = vld [vmem:[#allocation8 + $0x14] sm:$0xf]
    %v1968 = vld [vmem:[#allocation8 + $0x18] sm:$0xff]
    %v1969 = vld [vmem:[#allocation8 + $0x20] sm:$0xf]
    %v1970 = vld [vmem:[#allocation8 + $0x24] sm:$0xff]
    %v1971 = vld [vmem:[#allocation8 + $0x2c] sm:$0xf]
    %v1972 = vld [vmem:[#allocation8 + $0x30] sm:$0xff]
    %v1973 = vld [vmem:[#allocation8 + $0x38] sm:$0xf]
    %v1974 = vld [vmem:[#allocation8 + $0x3c] sm:$0xff]
    %v1975 = vld [vmem:[#allocation8 + $0x44] sm:$0xf]
    %v1976 = vld [vmem:[#allocation8 + $0x48] sm:$0xff]
    %v1977 = vld [vmem:[#allocation8 + $0x50] sm:$0xf]
    %v1978 = vld [vmem:[#allocation8 + $0x54] sm:$0xff]
    %v1979 = vld [vmem:[#allocation8 + $0x5c] sm:$0xf]
    %v1980 = vld [vmem:[#allocation8 + $0x60] sm:$0xff]
    %v1981 = vld [vmem:[#allocation8 + $0x68] sm:$0xf]
    %v1982 = vld [vmem:[#allocation8 + $0x6c] sm:$0xff]
    %v1983 = vld [vmem:[#allocation8 + $0x74] sm:$0xf]
    %v1984 = vld [vmem:[#allocation8 + $0x78] sm:$0xff]
    %v1985 = vld [vmem:[#allocation8 + $0x80] sm:$0xf]
    %v1986 = vld [vmem:[#allocation8 + $0x84] sm:$0xff]
    %v1987 = vld [vmem:[#allocation8 + $0x8c] sm:$0xf]
    %v1988 = vld [vmem:[#allocation8 + $0x90] sm:$0xff]
    %v1989 = vld [vmem:[#allocation8 + $0x98] sm:$0xf]
    %v1990 = vld [vmem:[#allocation8 + $0x9c] sm:$0xff]
    %v1991 = vld [vmem:[#allocation8 + $0xa4] sm:$0xf]
    %v1992 = vld [vmem:[#allocation8 + $0xa8] sm:$0xff]
    %v1993 = vld [vmem:[#allocation8 + $0xb0] sm:$0xf]
    %v1994 = vld [vmem:[#allocation8 + $0xb4] sm:$0xff]
    %v1995 = vld [vmem:[#allocation8 + $0xbc] sm:$0xf]
    %v2028 = vunpack.c.l.b16 %v1964
    %v2029 = vunpack.c.h.b16 %v1964
    %v2030 = vunpack.c.l.b16 %v1965
    %v2031 = vunpack.c.l.b16 %v1966
    %v2032 = vunpack.c.h.b16 %v1966
    %v2033 = vunpack.c.l.b16 %v1967
    %v2034 = vunpack.c.l.b16 %v1968
    %v2035 = vunpack.c.h.b16 %v1968
    %v2036 = vunpack.c.l.b16 %v1969
    %v2037 = vunpack.c.l.b16 %v1970
    %v2038 = vunpack.c.h.b16 %v1970
    %v2039 = vunpack.c.l.b16 %v1971
    %v2040 = vunpack.c.l.b16 %v1972
    %v2041 = vunpack.c.h.b16 %v1972
    %v2042 = vunpack.c.l.b16 %v1973
    %v2043 = vunpack.c.l.b16 %v1974
    %v2044 = vunpack.c.h.b16 %v1974
    %v2045 = vunpack.c.l.b16 %v1975
    %v2046 = vunpack.c.l.b16 %v1976
    %v2047 = vunpack.c.h.b16 %v1976
    %v2048 = vunpack.c.l.b16 %v1977
    %v2049 = vunpack.c.l.b16 %v1978
    %v2050 = vunpack.c.h.b16 %v1978
    %v2051 = vunpack.c.l.b16 %v1979
    %v2052 = vunpack.c.l.b16 %v1980
    %v2053 = vunpack.c.h.b16 %v1980
    %v2054 = vunpack.c.l.b16 %v1981
    %v2055 = vunpack.c.l.b16 %v1982
    %v2056 = vunpack.c.h.b16 %v1982
    %v2057 = vunpack.c.l.b16 %v1983
    %v2058 = vunpack.c.l.b16 %v1984
    %v2059 = vunpack.c.h.b16 %v1984
    %v2060 = vunpack.c.l.b16 %v1985
    %v2061 = vunpack.c.l.b16 %v1986
    %v2062 = vunpack.c.h.b16 %v1986
    %v2063 = vunpack.c.l.b16 %v1987
    %v2064 = vunpack.c.l.b16 %v1988
    %v2065 = vunpack.c.h.b16 %v1988
    %v2066 = vunpack.c.l.b16 %v1989
    %v2067 = vunpack.c.l.b16 %v1990
    %v2068 = vunpack.c.h.b16 %v1990
    %v2069 = vunpack.c.l.b16 %v1991
    %v2070 = vunpack.c.l.b16 %v1992
    %v2071 = vunpack.c.h.b16 %v1992
    %v2072 = vunpack.c.l.b16 %v1993
    %v2073 = vunpack.c.l.b16 %v1994
    %v2074 = vunpack.c.h.b16 %v1994
    %v2075 = vunpack.c.l.b16 %v1995
    %v2076 = vpack.c.b16 %v2031, %v2028
    %v2077 = vpack.c.b16 %v2032, %v2029
    %v2078 = vpack.c.b16 %v2033, %v2030
    %v2079 = vpack.c.b16 %v2037, %v2034
    %v2080 = vpack.c.b16 %v2038, %v2035
    %v2081 = vpack.c.b16 %v2039, %v2036
    %v2082 = vpack.c.b16 %v2043, %v2040
    %v2083 = vpack.c.b16 %v2044, %v2041
    %v2084 = vpack.c.b16 %v2045, %v2042
    %v2085 = vpack.c.b16 %v2049, %v2046
    %v2086 = vpack.c.b16 %v2050, %v2047
    %v2087 = vpack.c.b16 %v2051, %v2048
    %v2088 = vpack.c.b16 %v2055, %v2052
    %v2089 = vpack.c.b16 %v2056, %v2053
    %v2090 = vpack.c.b16 %v2057, %v2054
    %v2091 = vpack.c.b16 %v2061, %v2058
    %v2092 = vpack.c.b16 %v2062, %v2059
    %v2093 = vpack.c.b16 %v2063, %v2060
    %v2094 = vpack.c.b16 %v2067, %v2064
    %v2095 = vpack.c.b16 %v2068, %v2065
    %v2096 = vpack.c.b16 %v2069, %v2066
    %v2097 = vpack.c.b16 %v2073, %v2070
    %v2098 = vpack.c.b16 %v2074, %v2071
    %v2099 = vpack.c.b16 %v2075, %v2072
    %2124 = vmatpush.bf16.msra.mxu0 %v2097
    %2125 = vmatpush.bf16.msra.mxu0 %v2094
    %2126 = vmatpush.bf16.msra.mxu0 %v2091
    %2127 = vmatpush.bf16.msra.mxu0 %v2088
    %2128 = vmatpush.bf16.msra.mxu0 %v2085
    %2129 = vmatpush.bf16.msra.mxu0 %v2082
    %2130 = vmatpush.bf16.msra.mxu0 %v2079
    %2131 = vmatpush.bf16.msra.mxu0 %v2076
    %2132 = vmatmul.bf16.gmra.mxu0 %v1511
    %v2133 = vpop.f32.mrf.mxu0
    %v2134 = vadd.f32 0.0, %v2133
    %v2135 = vpop.f32.mrf.mxu0
    %2136 = vdwg.mxu0
    %2137 = vmatpush.bf16.msra.mxu0 %v2098
    %2138 = vmatpush.bf16.msra.mxu0 %v2095
    %2139 = vmatpush.bf16.msra.mxu0 %v2092
    %2140 = vmatpush.bf16.msra.mxu0 %v2089
    %2141 = vmatpush.bf16.msra.mxu0 %v2086
    %2142 = vmatpush.bf16.msra.mxu0 %v2083
    %2143 = vmatpush.bf16.msra.mxu0 %v2080
    %2144 = vmatpush.bf16.msra.mxu0 %v2077
    %2145 = vmatmul.bf16.gmra.mxu0 %v1511
    %v2146 = vpop.f32.mrf.mxu0
    %v2147 = vadd.f32 0.0, %v2146
    %v2148 = vpop.f32.mrf.mxu0
    %2149 = vdwg.mxu0
    %2150 = vmatpush.bf16.msra.mxu0 %v2099
    %2151 = vmatpush.bf16.msra.mxu0 %v2096
    %2152 = vmatpush.bf16.msra.mxu0 %v2093
    %2153 = vmatpush.bf16.msra.mxu0 %v2090
    %2154 = vmatpush.bf16.msra.mxu0 %v2087
    %2155 = vmatpush.bf16.msra.mxu0 %v2084
    %2156 = vmatpush.bf16.msra.mxu0 %v2081
    %2157 = vmatpush.bf16.msra.mxu0 %v2078
    %2158 = vmatmul.bf16.gmra.mxu0 %v1511
    %v2159 = vpop.f32.mrf.mxu0
    %v2160 = vadd.f32 0.0, %v2159
    %v2161 = vpop.f32.mrf.mxu0
    %2162 = vdwg.mxu0
    %v2163 = vadd.f32 %v1961, %v2134
    %v2164 = vxor.u32 %v2163, 2147483648
    %v2165 = vmul.f32 %v2164, 1.442695
    %v2166 = vpow.pop %v2165
    %v2167 = vadd.f32 %v2166, 1.0
    %v2168 = vrcp.pop %v2167
    %v2169 = vmul.f32 %v2167, %v2168
    %v2170 = vsub.f32 1.0, %v2169
    %v2171 = vmul.f32 %v2168, %v2170
    %v2172 = vadd.f32 %v2168, %v2171
    %vm2173 = vweird.f32 %v2167
    %vm2174 = vweird.f32 %v2168
    %vm2175 = vmor %vm2173, %vm2174
    %v2176 = vsel %vm2175, %v2168, %v2172
    %v2177 = vand.u32 2147483647, %v2167
    %vm2178 = vcmp.eq.f32.partialorder %v2177, 8.507059e+37
    %v2179 = vand.u32 %v2167, 2147483648
    %v2180 = vor.u32 1.1754944e-38, %v2179
    %v2181 = vsel %vm2178, %v2180, %v2176
    %v2182 = vmul.f32 1.0, %v2181
    %v2183 = vadd.f32 %v1962, %v2147
    %v2184 = vxor.u32 %v2183, 2147483648
    %v2185 = vmul.f32 %v2184, 1.442695
    %v2186 = vpow.pop %v2185
    %v2187 = vadd.f32 %v2186, 1.0
    %v2188 = vrcp.pop %v2187
    %v2189 = vmul.f32 %v2187, %v2188
    %v2190 = vsub.f32 1.0, %v2189
    %v2191 = vmul.f32 %v2188, %v2190
    %v2192 = vadd.f32 %v2188, %v2191
    %vm2193 = vweird.f32 %v2187
    %vm2194 = vweird.f32 %v2188
    %vm2195 = vmor %vm2193, %vm2194
    %v2196 = vsel %vm2195, %v2188, %v2192
    %v2197 = vand.u32 2147483647, %v2187
    %vm2198 = vcmp.eq.f32.partialorder %v2197, 8.507059e+37
    %v2199 = vand.u32 %v2187, 2147483648
    %v2200 = vor.u32 1.1754944e-38, %v2199
    %v2201 = vsel %vm2198, %v2200, %v2196
    %v2202 = vmul.f32 1.0, %v2201
    %v2203 = vadd.f32 %v2160, %v459
    %v2204 = vmul.f32 %v2182, %v2203
    %v2205 = vadd.f32 %v1963, %v2204
    %v2206 = vtanh.pop %v2205
    %v2207 = vsub.f32 %v1510, %v2206
    %v2208 = vmul.f32 %v2202, %v2207
    %v2209 = vadd.f32 %v2206, %v2208
    %v2210 = vpack.c.bf16 %v2209, %v2209
    %v2211 = vld [vmem:[#allocation11] sm:$0xff]
    %v2212 = vld [vmem:[#allocation11 + $0x8] sm:$0xf]
    %v2213 = vld [vmem:[#allocation11 + $0xc] sm:$0xff]
    %v2214 = vld [vmem:[#allocation11 + $0x14] sm:$0xf]
    %v2215 = vld [vmem:[#allocation11 + $0x18] sm:$0xff]
    %v2216 = vld [vmem:[#allocation11 + $0x20] sm:$0xf]
    %v2217 = vld [vmem:[#allocation11 + $0x24] sm:$0xff]
    %v2218 = vld [vmem:[#allocation11 + $0x2c] sm:$0xf]
    %v2219 = vld [vmem:[#allocation11 + $0x30] sm:$0xff]
    %v2220 = vld [vmem:[#allocation11 + $0x38] sm:$0xf]
    %v2221 = vld [vmem:[#allocation11 + $0x3c] sm:$0xff]
    %v2222 = vld [vmem:[#allocation11 + $0x44] sm:$0xf]
    %v2223 = vld [vmem:[#allocation11 + $0x48] sm:$0xff]
    %v2224 = vld [vmem:[#allocation11 + $0x50] sm:$0xf]
    %v2225 = vld [vmem:[#allocation11 + $0x54] sm:$0xff]
    %v2226 = vld [vmem:[#allocation11 + $0x5c] sm:$0xf]
    %v2227 = vld [vmem:[#allocation11 + $0x60] sm:$0xff]
    %v2228 = vld [vmem:[#allocation11 + $0x68] sm:$0xf]
    %v2229 = vld [vmem:[#allocation11 + $0x6c] sm:$0xff]
    %v2230 = vld [vmem:[#allocation11 + $0x74] sm:$0xf]
    %v2231 = vld [vmem:[#allocation11 + $0x78] sm:$0xff]
    %v2232 = vld [vmem:[#allocation11 + $0x80] sm:$0xf]
    %v2233 = vld [vmem:[#allocation11 + $0x84] sm:$0xff]
    %v2234 = vld [vmem:[#allocation11 + $0x8c] sm:$0xf]
    %v2235 = vld [vmem:[#allocation11 + $0x90] sm:$0xff]
    %v2236 = vld [vmem:[#allocation11 + $0x98] sm:$0xf]
    %v2237 = vld [vmem:[#allocation11 + $0x9c] sm:$0xff]
    %v2238 = vld [vmem:[#allocation11 + $0xa4] sm:$0xf]
    %v2239 = vld [vmem:[#allocation11 + $0xa8] sm:$0xff]
    %v2240 = vld [vmem:[#allocation11 + $0xb0] sm:$0xf]
    %v2241 = vld [vmem:[#allocation11 + $0xb4] sm:$0xff]
    %v2242 = vld [vmem:[#allocation11 + $0xbc] sm:$0xf]
    %v2275 = vunpack.c.l.b16 %v2211
    %v2276 = vunpack.c.h.b16 %v2211
    %v2277 = vunpack.c.l.b16 %v2212
    %v2278 = vunpack.c.l.b16 %v2213
    %v2279 = vunpack.c.h.b16 %v2213
    %v2280 = vunpack.c.l.b16 %v2214
    %v2281 = vunpack.c.l.b16 %v2215
    %v2282 = vunpack.c.h.b16 %v2215
    %v2283 = vunpack.c.l.b16 %v2216
    %v2284 = vunpack.c.l.b16 %v2217
    %v2285 = vunpack.c.h.b16 %v2217
    %v2286 = vunpack.c.l.b16 %v2218
    %v2287 = vunpack.c.l.b16 %v2219
    %v2288 = vunpack.c.h.b16 %v2219
    %v2289 = vunpack.c.l.b16 %v2220
    %v2290 = vunpack.c.l.b16 %v2221
    %v2291 = vunpack.c.h.b16 %v2221
    %v2292 = vunpack.c.l.b16 %v2222
    %v2293 = vunpack.c.l.b16 %v2223
    %v2294 = vunpack.c.h.b16 %v2223
    %v2295 = vunpack.c.l.b16 %v2224
    %v2296 = vunpack.c.l.b16 %v2225
    %v2297 = vunpack.c.h.b16 %v2225
    %v2298 = vunpack.c.l.b16 %v2226
    %v2299 = vunpack.c.l.b16 %v2227
    %v2300 = vunpack.c.h.b16 %v2227
    %v2301 = vunpack.c.l.b16 %v2228
    %v2302 = vunpack.c.l.b16 %v2229
    %v2303 = vunpack.c.h.b16 %v2229
    %v2304 = vunpack.c.l.b16 %v2230
    %v2305 = vunpack.c.l.b16 %v2231
    %v2306 = vunpack.c.h.b16 %v2231
    %v2307 = vunpack.c.l.b16 %v2232
    %v2308 = vunpack.c.l.b16 %v2233
    %v2309 = vunpack.c.h.b16 %v2233
    %v2310 = vunpack.c.l.b16 %v2234
    %v2311 = vunpack.c.l.b16 %v2235
    %v2312 = vunpack.c.h.b16 %v2235
    %v2313 = vunpack.c.l.b16 %v2236
    %v2314 = vunpack.c.l.b16 %v2237
    %v2315 = vunpack.c.h.b16 %v2237
    %v2316 = vunpack.c.l.b16 %v2238
    %v2317 = vunpack.c.l.b16 %v2239
    %v2318 = vunpack.c.h.b16 %v2239
    %v2319 = vunpack.c.l.b16 %v2240
    %v2320 = vunpack.c.l.b16 %v2241
    %v2321 = vunpack.c.h.b16 %v2241
    %v2322 = vunpack.c.l.b16 %v2242
    %v2323 = vpack.c.b16 %v2278, %v2275
    %v2324 = vpack.c.b16 %v2279, %v2276
    %v2325 = vpack.c.b16 %v2280, %v2277
    %v2326 = vpack.c.b16 %v2284, %v2281
    %v2327 = vpack.c.b16 %v2285, %v2282
    %v2328 = vpack.c.b16 %v2286, %v2283
    %v2329 = vpack.c.b16 %v2290, %v2287
    %v2330 = vpack.c.b16 %v2291, %v2288
    %v2331 = vpack.c.b16 %v2292, %v2289
    %v2332 = vpack.c.b16 %v2296, %v2293
    %v2333 = vpack.c.b16 %v2297, %v2294
    %v2334 = vpack.c.b16 %v2298, %v2295
    %v2335 = vpack.c.b16 %v2302, %v2299
    %v2336 = vpack.c.b16 %v2303, %v2300
    %v2337 = vpack.c.b16 %v2304, %v2301
    %v2338 = vpack.c.b16 %v2308, %v2305
    %v2339 = vpack.c.b16 %v2309, %v2306
    %v2340 = vpack.c.b16 %v2310, %v2307
    %v2341 = vpack.c.b16 %v2314, %v2311
    %v2342 = vpack.c.b16 %v2315, %v2312
    %v2343 = vpack.c.b16 %v2316, %v2313
    %v2344 = vpack.c.b16 %v2320, %v2317
    %v2345 = vpack.c.b16 %v2321, %v2318
    %v2346 = vpack.c.b16 %v2322, %v2319
    %2371 = vmatpush.bf16.msra.mxu0 %v2344
    %2372 = vmatpush.bf16.msra.mxu0 %v2341
    %2373 = vmatpush.bf16.msra.mxu0 %v2338
    %2374 = vmatpush.bf16.msra.mxu0 %v2335
    %2375 = vmatpush.bf16.msra.mxu0 %v2332
    %2376 = vmatpush.bf16.msra.mxu0 %v2329
    %2377 = vmatpush.bf16.msra.mxu0 %v2326
    %2378 = vmatpush.bf16.msra.mxu0 %v2323
    %2379 = vmatmul.bf16.gmra.mxu0 %v1511
    %v2380 = vpop.f32.mrf.mxu0
    %v2381 = vadd.f32 %v463, %v2380
    %v2382 = vpop.f32.mrf.mxu0
    %2383 = vdwg.mxu0
    %2384 = vmatpush.bf16.msra.mxu0 %v2345
    %2385 = vmatpush.bf16.msra.mxu0 %v2342
    %2386 = vmatpush.bf16.msra.mxu0 %v2339
    %2387 = vmatpush.bf16.msra.mxu0 %v2336
    %2388 = vmatpush.bf16.msra.mxu0 %v2333
    %2389 = vmatpush.bf16.msra.mxu0 %v2330
    %2390 = vmatpush.bf16.msra.mxu0 %v2327
    %2391 = vmatpush.bf16.msra.mxu0 %v2324
    %2392 = vmatmul.bf16.gmra.mxu0 %v1511
    %v2393 = vpop.f32.mrf.mxu0
    %v2394 = vadd.f32 %v464, %v2393
    %v2395 = vpop.f32.mrf.mxu0
    %2396 = vdwg.mxu0
    %2397 = vmatpush.bf16.msra.mxu0 %v2346
    %2398 = vmatpush.bf16.msra.mxu0 %v2343
    %2399 = vmatpush.bf16.msra.mxu0 %v2340
    %2400 = vmatpush.bf16.msra.mxu0 %v2337
    %2401 = vmatpush.bf16.msra.mxu0 %v2334
    %2402 = vmatpush.bf16.msra.mxu0 %v2331
    %2403 = vmatpush.bf16.msra.mxu0 %v2328
    %2404 = vmatpush.bf16.msra.mxu0 %v2325
    %2405 = vmatmul.bf16.gmra.mxu0 %v1511
    %v2406 = vpop.f32.mrf.mxu0
    %v2407 = vadd.f32 %v465, %v2406
    %v2408 = vpop.f32.mrf.mxu0
    %2409 = vdwg.mxu0
    %v2410 = vld [vmem:[#allocation12] sm:$0xff]
    %v2411 = vld [vmem:[#allocation12 + $0x8] sm:$0xf]
    %v2412 = vld [vmem:[#allocation12 + $0xc] sm:$0xff]
    %v2413 = vld [vmem:[#allocation12 + $0x14] sm:$0xf]
    %v2414 = vld [vmem:[#allocation12 + $0x18] sm:$0xff]
    %v2415 = vld [vmem:[#allocation12 + $0x20] sm:$0xf]
    %v2416 = vld [vmem:[#allocation12 + $0x24] sm:$0xff]
    %v2417 = vld [vmem:[#allocation12 + $0x2c] sm:$0xf]
    %v2418 = vld [vmem:[#allocation12 + $0x30] sm:$0xff]
    %v2419 = vld [vmem:[#allocation12 + $0x38] sm:$0xf]
    %v2420 = vld [vmem:[#allocation12 + $0x3c] sm:$0xff]
    %v2421 = vld [vmem:[#allocation12 + $0x44] sm:$0xf]
    %v2422 = vld [vmem:[#allocation12 + $0x48] sm:$0xff]
    %v2423 = vld [vmem:[#allocation12 + $0x50] sm:$0xf]
    %v2424 = vld [vmem:[#allocation12 + $0x54] sm:$0xff]
    %v2425 = vld [vmem:[#allocation12 + $0x5c] sm:$0xf]
    %v2426 = vld [vmem:[#allocation12 + $0x60] sm:$0xff]
    %v2427 = vld [vmem:[#allocation12 + $0x68] sm:$0xf]
    %v2428 = vld [vmem:[#allocation12 + $0x6c] sm:$0xff]
    %v2429 = vld [vmem:[#allocation12 + $0x74] sm:$0xf]
    %v2430 = vld [vmem:[#allocation12 + $0x78] sm:$0xff]
    %v2431 = vld [vmem:[#allocation12 + $0x80] sm:$0xf]
    %v2432 = vld [vmem:[#allocation12 + $0x84] sm:$0xff]
    %v2433 = vld [vmem:[#allocation12 + $0x8c] sm:$0xf]
    %v2434 = vld [vmem:[#allocation12 + $0x90] sm:$0xff]
    %v2435 = vld [vmem:[#allocation12 + $0x98] sm:$0xf]
    %v2436 = vld [vmem:[#allocation12 + $0x9c] sm:$0xff]
    %v2437 = vld [vmem:[#allocation12 + $0xa4] sm:$0xf]
    %v2438 = vld [vmem:[#allocation12 + $0xa8] sm:$0xff]
    %v2439 = vld [vmem:[#allocation12 + $0xb0] sm:$0xf]
    %v2440 = vld [vmem:[#allocation12 + $0xb4] sm:$0xff]
    %v2441 = vld [vmem:[#allocation12 + $0xbc] sm:$0xf]
    %v2474 = vunpack.c.l.b16 %v2410
    %v2475 = vunpack.c.h.b16 %v2410
    %v2476 = vunpack.c.l.b16 %v2411
    %v2477 = vunpack.c.l.b16 %v2412
    %v2478 = vunpack.c.h.b16 %v2412
    %v2479 = vunpack.c.l.b16 %v2413
    %v2480 = vunpack.c.l.b16 %v2414
    %v2481 = vunpack.c.h.b16 %v2414
    %v2482 = vunpack.c.l.b16 %v2415
    %v2483 = vunpack.c.l.b16 %v2416
    %v2484 = vunpack.c.h.b16 %v2416
    %v2485 = vunpack.c.l.b16 %v2417
    %v2486 = vunpack.c.l.b16 %v2418
    %v2487 = vunpack.c.h.b16 %v2418
    %v2488 = vunpack.c.l.b16 %v2419
    %v2489 = vunpack.c.l.b16 %v2420
    %v2490 = vunpack.c.h.b16 %v2420
    %v2491 = vunpack.c.l.b16 %v2421
    %v2492 = vunpack.c.l.b16 %v2422
    %v2493 = vunpack.c.h.b16 %v2422
    %v2494 = vunpack.c.l.b16 %v2423
    %v2495 = vunpack.c.l.b16 %v2424
    %v2496 = vunpack.c.h.b16 %v2424
    %v2497 = vunpack.c.l.b16 %v2425
    %v2498 = vunpack.c.l.b16 %v2426
    %v2499 = vunpack.c.h.b16 %v2426
    %v2500 = vunpack.c.l.b16 %v2427
    %v2501 = vunpack.c.l.b16 %v2428
    %v2502 = vunpack.c.h.b16 %v2428
    %v2503 = vunpack.c.l.b16 %v2429
    %v2504 = vunpack.c.l.b16 %v2430
    %v2505 = vunpack.c.h.b16 %v2430
    %v2506 = vunpack.c.l.b16 %v2431
    %v2507 = vunpack.c.l.b16 %v2432
    %v2508 = vunpack.c.h.b16 %v2432
    %v2509 = vunpack.c.l.b16 %v2433
    %v2510 = vunpack.c.l.b16 %v2434
    %v2511 = vunpack.c.h.b16 %v2434
    %v2512 = vunpack.c.l.b16 %v2435
    %v2513 = vunpack.c.l.b16 %v2436
    %v2514 = vunpack.c.h.b16 %v2436
    %v2515 = vunpack.c.l.b16 %v2437
    %v2516 = vunpack.c.l.b16 %v2438
    %v2517 = vunpack.c.h.b16 %v2438
    %v2518 = vunpack.c.l.b16 %v2439
    %v2519 = vunpack.c.l.b16 %v2440
    %v2520 = vunpack.c.h.b16 %v2440
    %v2521 = vunpack.c.l.b16 %v2441
    %v2522 = vpack.c.b16 %v2477, %v2474
    %v2523 = vpack.c.b16 %v2478, %v2475
    %v2524 = vpack.c.b16 %v2479, %v2476
    %v2525 = vpack.c.b16 %v2483, %v2480
    %v2526 = vpack.c.b16 %v2484, %v2481
    %v2527 = vpack.c.b16 %v2485, %v2482
    %v2528 = vpack.c.b16 %v2489, %v2486
    %v2529 = vpack.c.b16 %v2490, %v2487
    %v2530 = vpack.c.b16 %v2491, %v2488
    %v2531 = vpack.c.b16 %v2495, %v2492
    %v2532 = vpack.c.b16 %v2496, %v2493
    %v2533 = vpack.c.b16 %v2497, %v2494
    %v2534 = vpack.c.b16 %v2501, %v2498
    %v2535 = vpack.c.b16 %v2502, %v2499
    %v2536 = vpack.c.b16 %v2503, %v2500
    %v2537 = vpack.c.b16 %v2507, %v2504
    %v2538 = vpack.c.b16 %v2508, %v2505
    %v2539 = vpack.c.b16 %v2509, %v2506
    %v2540 = vpack.c.b16 %v2513, %v2510
    %v2541 = vpack.c.b16 %v2514, %v2511
    %v2542 = vpack.c.b16 %v2515, %v2512
    %v2543 = vpack.c.b16 %v2519, %v2516
    %v2544 = vpack.c.b16 %v2520, %v2517
    %v2545 = vpack.c.b16 %v2521, %v2518
    %2570 = vmatpush.bf16.msra.mxu0 %v2543
    %2571 = vmatpush.bf16.msra.mxu0 %v2540
    %2572 = vmatpush.bf16.msra.mxu0 %v2537
    %2573 = vmatpush.bf16.msra.mxu0 %v2534
    %2574 = vmatpush.bf16.msra.mxu0 %v2531
    %2575 = vmatpush.bf16.msra.mxu0 %v2528
    %2576 = vmatpush.bf16.msra.mxu0 %v2525
    %2577 = vmatpush.bf16.msra.mxu0 %v2522
    %2578 = vmatmul.bf16.gmra.mxu0 %v1957
    %v2579 = vpop.f32.mrf.mxu0
    %v2580 = vadd.f32 0.0, %v2579
    %v2581 = vpop.f32.mrf.mxu0
    %2582 = vdwg.mxu0
    %2583 = vmatpush.bf16.msra.mxu0 %v2544
    %2584 = vmatpush.bf16.msra.mxu0 %v2541
    %2585 = vmatpush.bf16.msra.mxu0 %v2538
    %2586 = vmatpush.bf16.msra.mxu0 %v2535
    %2587 = vmatpush.bf16.msra.mxu0 %v2532
    %2588 = vmatpush.bf16.msra.mxu0 %v2529
    %2589 = vmatpush.bf16.msra.mxu0 %v2526
    %2590 = vmatpush.bf16.msra.mxu0 %v2523
    %2591 = vmatmul.bf16.gmra.mxu0 %v1957
    %v2592 = vpop.f32.mrf.mxu0
    %v2593 = vadd.f32 0.0, %v2592
    %v2594 = vpop.f32.mrf.mxu0
    %2595 = vdwg.mxu0
    %2596 = vmatpush.bf16.msra.mxu0 %v2545
    %2597 = vmatpush.bf16.msra.mxu0 %v2542
    %2598 = vmatpush.bf16.msra.mxu0 %v2539
    %2599 = vmatpush.bf16.msra.mxu0 %v2536
    %2600 = vmatpush.bf16.msra.mxu0 %v2533
    %2601 = vmatpush.bf16.msra.mxu0 %v2530
    %2602 = vmatpush.bf16.msra.mxu0 %v2527
    %2603 = vmatpush.bf16.msra.mxu0 %v2524
    %2604 = vmatmul.bf16.gmra.mxu0 %v1957
    %v2605 = vpop.f32.mrf.mxu0
    %v2606 = vadd.f32 0.0, %v2605
    %v2607 = vpop.f32.mrf.mxu0
    %2608 = vdwg.mxu0
    %v2609 = vadd.f32 %v2381, %v2580
    %v2610 = vxor.u32 %v2609, 2147483648
    %v2611 = vmul.f32 %v2610, 1.442695
    %v2612 = vpow.pop %v2611
    %v2613 = vadd.f32 %v2612, 1.0
    %v2614 = vrcp.pop %v2613
    %v2615 = vmul.f32 %v2613, %v2614
    %v2616 = vsub.f32 1.0, %v2615
    %v2617 = vmul.f32 %v2614, %v2616
    %v2618 = vadd.f32 %v2614, %v2617
    %vm2619 = vweird.f32 %v2613
    %vm2620 = vweird.f32 %v2614
    %vm2621 = vmor %vm2619, %vm2620
    %v2622 = vsel %vm2621, %v2614, %v2618
    %v2623 = vand.u32 2147483647, %v2613
    %vm2624 = vcmp.eq.f32.partialorder %v2623, 8.507059e+37
    %v2625 = vand.u32 %v2613, 2147483648
    %v2626 = vor.u32 1.1754944e-38, %v2625
    %v2627 = vsel %vm2624, %v2626, %v2622
    %v2628 = vmul.f32 1.0, %v2627
    %v2629 = vadd.f32 %v2394, %v2593
    %v2630 = vxor.u32 %v2629, 2147483648
    %v2631 = vmul.f32 %v2630, 1.442695
    %v2632 = vpow.pop %v2631
    %v2633 = vadd.f32 %v2632, 1.0
    %v2634 = vrcp.pop %v2633
    %v2635 = vmul.f32 %v2633, %v2634
    %v2636 = vsub.f32 1.0, %v2635
    %v2637 = vmul.f32 %v2634, %v2636
    %v2638 = vadd.f32 %v2634, %v2637
    %vm2639 = vweird.f32 %v2633
    %vm2640 = vweird.f32 %v2634
    %vm2641 = vmor %vm2639, %vm2640
    %v2642 = vsel %vm2641, %v2634, %v2638
    %v2643 = vand.u32 2147483647, %v2633
    %vm2644 = vcmp.eq.f32.partialorder %v2643, 8.507059e+37
    %v2645 = vand.u32 %v2633, 2147483648
    %v2646 = vor.u32 1.1754944e-38, %v2645
    %v2647 = vsel %vm2644, %v2646, %v2642
    %v2648 = vmul.f32 1.0, %v2647
    %v2649 = vadd.f32 %v2606, %v471
    %v2650 = vmul.f32 %v2628, %v2649
    %v2651 = vadd.f32 %v2407, %v2650
    %v2652 = vtanh.pop %v2651
    %v2653 = vsub.f32 %v1956, %v2652
    %v2654 = vmul.f32 %v2648, %v2653
    %v2655 = vadd.f32 %v2652, %v2654
    %v2656 = vpack.c.bf16 %v2655, %v2655
    %s2657 = scalar_lea.vmem [#allocation14], 16
    %2658 = vst [vmem:[%s2657] sm:$0xff] %v2655
    %s2659 = scalar_lea.vmem [#allocation2], 96
    %v2660 = vld [vmem:[%s2659] sm:$0xff]
    %v2661 = vld [vmem:[%s2659 + $0x8] sm:$0xff]
    %v2662 = vld [vmem:[%s2659 + $0x10] sm:$0xff]
    %v2663 = vld [vmem:[#allocation8] sm:$0xff]
    %v2664 = vld [vmem:[#allocation8 + $0x8] sm:$0xf]
    %v2665 = vld [vmem:[#allocation8 + $0xc] sm:$0xff]
    %v2666 = vld [vmem:[#allocation8 + $0x14] sm:$0xf]
    %v2667 = vld [vmem:[#allocation8 + $0x18] sm:$0xff]
    %v2668 = vld [vmem:[#allocation8 + $0x20] sm:$0xf]
    %v2669 = vld [vmem:[#allocation8 + $0x24] sm:$0xff]
    %v2670 = vld [vmem:[#allocation8 + $0x2c] sm:$0xf]
    %v2671 = vld [vmem:[#allocation8 + $0x30] sm:$0xff]
    %v2672 = vld [vmem:[#allocation8 + $0x38] sm:$0xf]
    %v2673 = vld [vmem:[#allocation8 + $0x3c] sm:$0xff]
    %v2674 = vld [vmem:[#allocation8 + $0x44] sm:$0xf]
    %v2675 = vld [vmem:[#allocation8 + $0x48] sm:$0xff]
    %v2676 = vld [vmem:[#allocation8 + $0x50] sm:$0xf]
    %v2677 = vld [vmem:[#allocation8 + $0x54] sm:$0xff]
    %v2678 = vld [vmem:[#allocation8 + $0x5c] sm:$0xf]
    %v2679 = vld [vmem:[#allocation8 + $0x60] sm:$0xff]
    %v2680 = vld [vmem:[#allocation8 + $0x68] sm:$0xf]
    %v2681 = vld [vmem:[#allocation8 + $0x6c] sm:$0xff]
    %v2682 = vld [vmem:[#allocation8 + $0x74] sm:$0xf]
    %v2683 = vld [vmem:[#allocation8 + $0x78] sm:$0xff]
    %v2684 = vld [vmem:[#allocation8 + $0x80] sm:$0xf]
    %v2685 = vld [vmem:[#allocation8 + $0x84] sm:$0xff]
    %v2686 = vld [vmem:[#allocation8 + $0x8c] sm:$0xf]
    %v2687 = vld [vmem:[#allocation8 + $0x90] sm:$0xff]
    %v2688 = vld [vmem:[#allocation8 + $0x98] sm:$0xf]
    %v2689 = vld [vmem:[#allocation8 + $0x9c] sm:$0xff]
    %v2690 = vld [vmem:[#allocation8 + $0xa4] sm:$0xf]
    %v2691 = vld [vmem:[#allocation8 + $0xa8] sm:$0xff]
    %v2692 = vld [vmem:[#allocation8 + $0xb0] sm:$0xf]
    %v2693 = vld [vmem:[#allocation8 + $0xb4] sm:$0xff]
    %v2694 = vld [vmem:[#allocation8 + $0xbc] sm:$0xf]
    %v2727 = vunpack.c.l.b16 %v2663
    %v2728 = vunpack.c.h.b16 %v2663
    %v2729 = vunpack.c.l.b16 %v2664
    %v2730 = vunpack.c.l.b16 %v2665
    %v2731 = vunpack.c.h.b16 %v2665
    %v2732 = vunpack.c.l.b16 %v2666
    %v2733 = vunpack.c.l.b16 %v2667
    %v2734 = vunpack.c.h.b16 %v2667
    %v2735 = vunpack.c.l.b16 %v2668
    %v2736 = vunpack.c.l.b16 %v2669
    %v2737 = vunpack.c.h.b16 %v2669
    %v2738 = vunpack.c.l.b16 %v2670
    %v2739 = vunpack.c.l.b16 %v2671
    %v2740 = vunpack.c.h.b16 %v2671
    %v2741 = vunpack.c.l.b16 %v2672
    %v2742 = vunpack.c.l.b16 %v2673
    %v2743 = vunpack.c.h.b16 %v2673
    %v2744 = vunpack.c.l.b16 %v2674
    %v2745 = vunpack.c.l.b16 %v2675
    %v2746 = vunpack.c.h.b16 %v2675
    %v2747 = vunpack.c.l.b16 %v2676
    %v2748 = vunpack.c.l.b16 %v2677
    %v2749 = vunpack.c.h.b16 %v2677
    %v2750 = vunpack.c.l.b16 %v2678
    %v2751 = vunpack.c.l.b16 %v2679
    %v2752 = vunpack.c.h.b16 %v2679
    %v2753 = vunpack.c.l.b16 %v2680
    %v2754 = vunpack.c.l.b16 %v2681
    %v2755 = vunpack.c.h.b16 %v2681
    %v2756 = vunpack.c.l.b16 %v2682
    %v2757 = vunpack.c.l.b16 %v2683
    %v2758 = vunpack.c.h.b16 %v2683
    %v2759 = vunpack.c.l.b16 %v2684
    %v2760 = vunpack.c.l.b16 %v2685
    %v2761 = vunpack.c.h.b16 %v2685
    %v2762 = vunpack.c.l.b16 %v2686
    %v2763 = vunpack.c.l.b16 %v2687
    %v2764 = vunpack.c.h.b16 %v2687
    %v2765 = vunpack.c.l.b16 %v2688
    %v2766 = vunpack.c.l.b16 %v2689
    %v2767 = vunpack.c.h.b16 %v2689
    %v2768 = vunpack.c.l.b16 %v2690
    %v2769 = vunpack.c.l.b16 %v2691
    %v2770 = vunpack.c.h.b16 %v2691
    %v2771 = vunpack.c.l.b16 %v2692
    %v2772 = vunpack.c.l.b16 %v2693
    %v2773 = vunpack.c.h.b16 %v2693
    %v2774 = vunpack.c.l.b16 %v2694
    %v2775 = vpack.c.b16 %v2730, %v2727
    %v2776 = vpack.c.b16 %v2731, %v2728
    %v2777 = vpack.c.b16 %v2732, %v2729
    %v2778 = vpack.c.b16 %v2736, %v2733
    %v2779 = vpack.c.b16 %v2737, %v2734
    %v2780 = vpack.c.b16 %v2738, %v2735
    %v2781 = vpack.c.b16 %v2742, %v2739
    %v2782 = vpack.c.b16 %v2743, %v2740
    %v2783 = vpack.c.b16 %v2744, %v2741
    %v2784 = vpack.c.b16 %v2748, %v2745
    %v2785 = vpack.c.b16 %v2749, %v2746
    %v2786 = vpack.c.b16 %v2750, %v2747
    %v2787 = vpack.c.b16 %v2754, %v2751
    %v2788 = vpack.c.b16 %v2755, %v2752
    %v2789 = vpack.c.b16 %v2756, %v2753
    %v2790 = vpack.c.b16 %v2760, %v2757
    %v2791 = vpack.c.b16 %v2761, %v2758
    %v2792 = vpack.c.b16 %v2762, %v2759
    %v2793 = vpack.c.b16 %v2766, %v2763
    %v2794 = vpack.c.b16 %v2767, %v2764
    %v2795 = vpack.c.b16 %v2768, %v2765
    %v2796 = vpack.c.b16 %v2772, %v2769
    %v2797 = vpack.c.b16 %v2773, %v2770
    %v2798 = vpack.c.b16 %v2774, %v2771
    %2823 = vmatpush.bf16.msra.mxu0 %v2796
    %2824 = vmatpush.bf16.msra.mxu0 %v2793
    %2825 = vmatpush.bf16.msra.mxu0 %v2790
    %2826 = vmatpush.bf16.msra.mxu0 %v2787
    %2827 = vmatpush.bf16.msra.mxu0 %v2784
    %2828 = vmatpush.bf16.msra.mxu0 %v2781
    %2829 = vmatpush.bf16.msra.mxu0 %v2778
    %2830 = vmatpush.bf16.msra.mxu0 %v2775
    %2831 = vmatmul.bf16.gmra.mxu0 %v2210
    %v2832 = vpop.f32.mrf.mxu0
    %v2833 = vadd.f32 0.0, %v2832
    %v2834 = vpop.f32.mrf.mxu0
    %2835 = vdwg.mxu0
    %2836 = vmatpush.bf16.msra.mxu0 %v2797
    %2837 = vmatpush.bf16.msra.mxu0 %v2794
    %2838 = vmatpush.bf16.msra.mxu0 %v2791
    %2839 = vmatpush.bf16.msra.mxu0 %v2788
    %2840 = vmatpush.bf16.msra.mxu0 %v2785
    %2841 = vmatpush.bf16.msra.mxu0 %v2782
    %2842 = vmatpush.bf16.msra.mxu0 %v2779
    %2843 = vmatpush.bf16.msra.mxu0 %v2776
    %2844 = vmatmul.bf16.gmra.mxu0 %v2210
    %v2845 = vpop.f32.mrf.mxu0
    %v2846 = vadd.f32 0.0, %v2845
    %v2847 = vpop.f32.mrf.mxu0
    %2848 = vdwg.mxu0
    %2849 = vmatpush.bf16.msra.mxu0 %v2798
    %2850 = vmatpush.bf16.msra.mxu0 %v2795
    %2851 = vmatpush.bf16.msra.mxu0 %v2792
    %2852 = vmatpush.bf16.msra.mxu0 %v2789
    %2853 = vmatpush.bf16.msra.mxu0 %v2786
    %2854 = vmatpush.bf16.msra.mxu0 %v2783
    %2855 = vmatpush.bf16.msra.mxu0 %v2780
    %2856 = vmatpush.bf16.msra.mxu0 %v2777
    %2857 = vmatmul.bf16.gmra.mxu0 %v2210
    %v2858 = vpop.f32.mrf.mxu0
    %v2859 = vadd.f32 0.0, %v2858
    %v2860 = vpop.f32.mrf.mxu0
    %2861 = vdwg.mxu0
    %v2862 = vadd.f32 %v2660, %v2833
    %v2863 = vxor.u32 %v2862, 2147483648
    %v2864 = vmul.f32 %v2863, 1.442695
    %v2865 = vpow.pop %v2864
    %v2866 = vadd.f32 %v2865, 1.0
    %v2867 = vrcp.pop %v2866
    %v2868 = vmul.f32 %v2866, %v2867
    %v2869 = vsub.f32 1.0, %v2868
    %v2870 = vmul.f32 %v2867, %v2869
    %v2871 = vadd.f32 %v2867, %v2870
    %vm2872 = vweird.f32 %v2866
    %vm2873 = vweird.f32 %v2867
    %vm2874 = vmor %vm2872, %vm2873
    %v2875 = vsel %vm2874, %v2867, %v2871
    %v2876 = vand.u32 2147483647, %v2866
    %vm2877 = vcmp.eq.f32.partialorder %v2876, 8.507059e+37
    %v2878 = vand.u32 %v2866, 2147483648
    %v2879 = vor.u32 1.1754944e-38, %v2878
    %v2880 = vsel %vm2877, %v2879, %v2875
    %v2881 = vmul.f32 1.0, %v2880
    %v2882 = vadd.f32 %v2661, %v2846
    %v2883 = vxor.u32 %v2882, 2147483648
    %v2884 = vmul.f32 %v2883, 1.442695
    %v2885 = vpow.pop %v2884
    %v2886 = vadd.f32 %v2885, 1.0
    %v2887 = vrcp.pop %v2886
    %v2888 = vmul.f32 %v2886, %v2887
    %v2889 = vsub.f32 1.0, %v2888
    %v2890 = vmul.f32 %v2887, %v2889
    %v2891 = vadd.f32 %v2887, %v2890
    %vm2892 = vweird.f32 %v2886
    %vm2893 = vweird.f32 %v2887
    %vm2894 = vmor %vm2892, %vm2893
    %v2895 = vsel %vm2894, %v2887, %v2891
    %v2896 = vand.u32 2147483647, %v2886
    %vm2897 = vcmp.eq.f32.partialorder %v2896, 8.507059e+37
    %v2898 = vand.u32 %v2886, 2147483648
    %v2899 = vor.u32 1.1754944e-38, %v2898
    %v2900 = vsel %vm2897, %v2899, %v2895
    %v2901 = vmul.f32 1.0, %v2900
    %v2902 = vadd.f32 %v2859, %v459
    %v2903 = vmul.f32 %v2881, %v2902
    %v2904 = vadd.f32 %v2662, %v2903
    %v2905 = vtanh.pop %v2904
    %v2906 = vsub.f32 %v2209, %v2905
    %v2907 = vmul.f32 %v2901, %v2906
    %v2908 = vadd.f32 %v2905, %v2907
    %v2909 = vpack.c.bf16 %v2908, %v2908
    %v2910 = vld [vmem:[#allocation11] sm:$0xff]
    %v2911 = vld [vmem:[#allocation11 + $0x8] sm:$0xf]
    %v2912 = vld [vmem:[#allocation11 + $0xc] sm:$0xff]
    %v2913 = vld [vmem:[#allocation11 + $0x14] sm:$0xf]
    %v2914 = vld [vmem:[#allocation11 + $0x18] sm:$0xff]
    %v2915 = vld [vmem:[#allocation11 + $0x20] sm:$0xf]
    %v2916 = vld [vmem:[#allocation11 + $0x24] sm:$0xff]
    %v2917 = vld [vmem:[#allocation11 + $0x2c] sm:$0xf]
    %v2918 = vld [vmem:[#allocation11 + $0x30] sm:$0xff]
    %v2919 = vld [vmem:[#allocation11 + $0x38] sm:$0xf]
    %v2920 = vld [vmem:[#allocation11 + $0x3c] sm:$0xff]
    %v2921 = vld [vmem:[#allocation11 + $0x44] sm:$0xf]
    %v2922 = vld [vmem:[#allocation11 + $0x48] sm:$0xff]
    %v2923 = vld [vmem:[#allocation11 + $0x50] sm:$0xf]
    %v2924 = vld [vmem:[#allocation11 + $0x54] sm:$0xff]
    %v2925 = vld [vmem:[#allocation11 + $0x5c] sm:$0xf]
    %v2926 = vld [vmem:[#allocation11 + $0x60] sm:$0xff]
    %v2927 = vld [vmem:[#allocation11 + $0x68] sm:$0xf]
    %v2928 = vld [vmem:[#allocation11 + $0x6c] sm:$0xff]
    %v2929 = vld [vmem:[#allocation11 + $0x74] sm:$0xf]
    %v2930 = vld [vmem:[#allocation11 + $0x78] sm:$0xff]
    %v2931 = vld [vmem:[#allocation11 + $0x80] sm:$0xf]
    %v2932 = vld [vmem:[#allocation11 + $0x84] sm:$0xff]
    %v2933 = vld [vmem:[#allocation11 + $0x8c] sm:$0xf]
    %v2934 = vld [vmem:[#allocation11 + $0x90] sm:$0xff]
    %v2935 = vld [vmem:[#allocation11 + $0x98] sm:$0xf]
    %v2936 = vld [vmem:[#allocation11 + $0x9c] sm:$0xff]
    %v2937 = vld [vmem:[#allocation11 + $0xa4] sm:$0xf]
    %v2938 = vld [vmem:[#allocation11 + $0xa8] sm:$0xff]
    %v2939 = vld [vmem:[#allocation11 + $0xb0] sm:$0xf]
    %v2940 = vld [vmem:[#allocation11 + $0xb4] sm:$0xff]
    %v2941 = vld [vmem:[#allocation11 + $0xbc] sm:$0xf]
    %v2974 = vunpack.c.l.b16 %v2910
    %v2975 = vunpack.c.h.b16 %v2910
    %v2976 = vunpack.c.l.b16 %v2911
    %v2977 = vunpack.c.l.b16 %v2912
    %v2978 = vunpack.c.h.b16 %v2912
    %v2979 = vunpack.c.l.b16 %v2913
    %v2980 = vunpack.c.l.b16 %v2914
    %v2981 = vunpack.c.h.b16 %v2914
    %v2982 = vunpack.c.l.b16 %v2915
    %v2983 = vunpack.c.l.b16 %v2916
    %v2984 = vunpack.c.h.b16 %v2916
    %v2985 = vunpack.c.l.b16 %v2917
    %v2986 = vunpack.c.l.b16 %v2918
    %v2987 = vunpack.c.h.b16 %v2918
    %v2988 = vunpack.c.l.b16 %v2919
    %v2989 = vunpack.c.l.b16 %v2920
    %v2990 = vunpack.c.h.b16 %v2920
    %v2991 = vunpack.c.l.b16 %v2921
    %v2992 = vunpack.c.l.b16 %v2922
    %v2993 = vunpack.c.h.b16 %v2922
    %v2994 = vunpack.c.l.b16 %v2923
    %v2995 = vunpack.c.l.b16 %v2924
    %v2996 = vunpack.c.h.b16 %v2924
    %v2997 = vunpack.c.l.b16 %v2925
    %v2998 = vunpack.c.l.b16 %v2926
    %v2999 = vunpack.c.h.b16 %v2926
    %v3000 = vunpack.c.l.b16 %v2927
    %v3001 = vunpack.c.l.b16 %v2928
    %v3002 = vunpack.c.h.b16 %v2928
    %v3003 = vunpack.c.l.b16 %v2929
    %v3004 = vunpack.c.l.b16 %v2930
    %v3005 = vunpack.c.h.b16 %v2930
    %v3006 = vunpack.c.l.b16 %v2931
    %v3007 = vunpack.c.l.b16 %v2932
    %v3008 = vunpack.c.h.b16 %v2932
    %v3009 = vunpack.c.l.b16 %v2933
    %v3010 = vunpack.c.l.b16 %v2934
    %v3011 = vunpack.c.h.b16 %v2934
    %v3012 = vunpack.c.l.b16 %v2935
    %v3013 = vunpack.c.l.b16 %v2936
    %v3014 = vunpack.c.h.b16 %v2936
    %v3015 = vunpack.c.l.b16 %v2937
    %v3016 = vunpack.c.l.b16 %v2938
    %v3017 = vunpack.c.h.b16 %v2938
    %v3018 = vunpack.c.l.b16 %v2939
    %v3019 = vunpack.c.l.b16 %v2940
    %v3020 = vunpack.c.h.b16 %v2940
    %v3021 = vunpack.c.l.b16 %v2941
    %v3022 = vpack.c.b16 %v2977, %v2974
    %v3023 = vpack.c.b16 %v2978, %v2975
    %v3024 = vpack.c.b16 %v2979, %v2976
    %v3025 = vpack.c.b16 %v2983, %v2980
    %v3026 = vpack.c.b16 %v2984, %v2981
    %v3027 = vpack.c.b16 %v2985, %v2982
    %v3028 = vpack.c.b16 %v2989, %v2986
    %v3029 = vpack.c.b16 %v2990, %v2987
    %v3030 = vpack.c.b16 %v2991, %v2988
    %v3031 = vpack.c.b16 %v2995, %v2992
    %v3032 = vpack.c.b16 %v2996, %v2993
    %v3033 = vpack.c.b16 %v2997, %v2994
    %v3034 = vpack.c.b16 %v3001, %v2998
    %v3035 = vpack.c.b16 %v3002, %v2999
    %v3036 = vpack.c.b16 %v3003, %v3000
    %v3037 = vpack.c.b16 %v3007, %v3004
    %v3038 = vpack.c.b16 %v3008, %v3005
    %v3039 = vpack.c.b16 %v3009, %v3006
    %v3040 = vpack.c.b16 %v3013, %v3010
    %v3041 = vpack.c.b16 %v3014, %v3011
    %v3042 = vpack.c.b16 %v3015, %v3012
    %v3043 = vpack.c.b16 %v3019, %v3016
    %v3044 = vpack.c.b16 %v3020, %v3017
    %v3045 = vpack.c.b16 %v3021, %v3018
    %3070 = vmatpush.bf16.msra.mxu0 %v3043
    %3071 = vmatpush.bf16.msra.mxu0 %v3040
    %3072 = vmatpush.bf16.msra.mxu0 %v3037
    %3073 = vmatpush.bf16.msra.mxu0 %v3034
    %3074 = vmatpush.bf16.msra.mxu0 %v3031
    %3075 = vmatpush.bf16.msra.mxu0 %v3028
    %3076 = vmatpush.bf16.msra.mxu0 %v3025
    %3077 = vmatpush.bf16.msra.mxu0 %v3022
    %3078 = vmatmul.bf16.gmra.mxu0 %v2210
    %v3079 = vpop.f32.mrf.mxu0
    %v3080 = vadd.f32 %v463, %v3079
    %v3081 = vpop.f32.mrf.mxu0
    %3082 = vdwg.mxu0
    %3083 = vmatpush.bf16.msra.mxu0 %v3044
    %3084 = vmatpush.bf16.msra.mxu0 %v3041
    %3085 = vmatpush.bf16.msra.mxu0 %v3038
    %3086 = vmatpush.bf16.msra.mxu0 %v3035
    %3087 = vmatpush.bf16.msra.mxu0 %v3032
    %3088 = vmatpush.bf16.msra.mxu0 %v3029
    %3089 = vmatpush.bf16.msra.mxu0 %v3026
    %3090 = vmatpush.bf16.msra.mxu0 %v3023
    %3091 = vmatmul.bf16.gmra.mxu0 %v2210
    %v3092 = vpop.f32.mrf.mxu0
    %v3093 = vadd.f32 %v464, %v3092
    %v3094 = vpop.f32.mrf.mxu0
    %3095 = vdwg.mxu0
    %3096 = vmatpush.bf16.msra.mxu0 %v3045
    %3097 = vmatpush.bf16.msra.mxu0 %v3042
    %3098 = vmatpush.bf16.msra.mxu0 %v3039
    %3099 = vmatpush.bf16.msra.mxu0 %v3036
    %3100 = vmatpush.bf16.msra.mxu0 %v3033
    %3101 = vmatpush.bf16.msra.mxu0 %v3030
    %3102 = vmatpush.bf16.msra.mxu0 %v3027
    %3103 = vmatpush.bf16.msra.mxu0 %v3024
    %3104 = vmatmul.bf16.gmra.mxu0 %v2210
    %v3105 = vpop.f32.mrf.mxu0
    %v3106 = vadd.f32 %v465, %v3105
    %v3107 = vpop.f32.mrf.mxu0
    %3108 = vdwg.mxu0
    %v3109 = vld [vmem:[#allocation12] sm:$0xff]
    %v3110 = vld [vmem:[#allocation12 + $0x8] sm:$0xf]
    %v3111 = vld [vmem:[#allocation12 + $0xc] sm:$0xff]
    %v3112 = vld [vmem:[#allocation12 + $0x14] sm:$0xf]
    %v3113 = vld [vmem:[#allocation12 + $0x18] sm:$0xff]
    %v3114 = vld [vmem:[#allocation12 + $0x20] sm:$0xf]
    %v3115 = vld [vmem:[#allocation12 + $0x24] sm:$0xff]
    %v3116 = vld [vmem:[#allocation12 + $0x2c] sm:$0xf]
    %v3117 = vld [vmem:[#allocation12 + $0x30] sm:$0xff]
    %v3118 = vld [vmem:[#allocation12 + $0x38] sm:$0xf]
    %v3119 = vld [vmem:[#allocation12 + $0x3c] sm:$0xff]
    %v3120 = vld [vmem:[#allocation12 + $0x44] sm:$0xf]
    %v3121 = vld [vmem:[#allocation12 + $0x48] sm:$0xff]
    %v3122 = vld [vmem:[#allocation12 + $0x50] sm:$0xf]
    %v3123 = vld [vmem:[#allocation12 + $0x54] sm:$0xff]
    %v3124 = vld [vmem:[#allocation12 + $0x5c] sm:$0xf]
    %v3125 = vld [vmem:[#allocation12 + $0x60] sm:$0xff]
    %v3126 = vld [vmem:[#allocation12 + $0x68] sm:$0xf]
    %v3127 = vld [vmem:[#allocation12 + $0x6c] sm:$0xff]
    %v3128 = vld [vmem:[#allocation12 + $0x74] sm:$0xf]
    %v3129 = vld [vmem:[#allocation12 + $0x78] sm:$0xff]
    %v3130 = vld [vmem:[#allocation12 + $0x80] sm:$0xf]
    %v3131 = vld [vmem:[#allocation12 + $0x84] sm:$0xff]
    %v3132 = vld [vmem:[#allocation12 + $0x8c] sm:$0xf]
    %v3133 = vld [vmem:[#allocation12 + $0x90] sm:$0xff]
    %v3134 = vld [vmem:[#allocation12 + $0x98] sm:$0xf]
    %v3135 = vld [vmem:[#allocation12 + $0x9c] sm:$0xff]
    %v3136 = vld [vmem:[#allocation12 + $0xa4] sm:$0xf]
    %v3137 = vld [vmem:[#allocation12 + $0xa8] sm:$0xff]
    %v3138 = vld [vmem:[#allocation12 + $0xb0] sm:$0xf]
    %v3139 = vld [vmem:[#allocation12 + $0xb4] sm:$0xff]
    %v3140 = vld [vmem:[#allocation12 + $0xbc] sm:$0xf]
    %v3173 = vunpack.c.l.b16 %v3109
    %v3174 = vunpack.c.h.b16 %v3109
    %v3175 = vunpack.c.l.b16 %v3110
    %v3176 = vunpack.c.l.b16 %v3111
    %v3177 = vunpack.c.h.b16 %v3111
    %v3178 = vunpack.c.l.b16 %v3112
    %v3179 = vunpack.c.l.b16 %v3113
    %v3180 = vunpack.c.h.b16 %v3113
    %v3181 = vunpack.c.l.b16 %v3114
    %v3182 = vunpack.c.l.b16 %v3115
    %v3183 = vunpack.c.h.b16 %v3115
    %v3184 = vunpack.c.l.b16 %v3116
    %v3185 = vunpack.c.l.b16 %v3117
    %v3186 = vunpack.c.h.b16 %v3117
    %v3187 = vunpack.c.l.b16 %v3118
    %v3188 = vunpack.c.l.b16 %v3119
    %v3189 = vunpack.c.h.b16 %v3119
    %v3190 = vunpack.c.l.b16 %v3120
    %v3191 = vunpack.c.l.b16 %v3121
    %v3192 = vunpack.c.h.b16 %v3121
    %v3193 = vunpack.c.l.b16 %v3122
    %v3194 = vunpack.c.l.b16 %v3123
    %v3195 = vunpack.c.h.b16 %v3123
    %v3196 = vunpack.c.l.b16 %v3124
    %v3197 = vunpack.c.l.b16 %v3125
    %v3198 = vunpack.c.h.b16 %v3125
    %v3199 = vunpack.c.l.b16 %v3126
    %v3200 = vunpack.c.l.b16 %v3127
    %v3201 = vunpack.c.h.b16 %v3127
    %v3202 = vunpack.c.l.b16 %v3128
    %v3203 = vunpack.c.l.b16 %v3129
    %v3204 = vunpack.c.h.b16 %v3129
    %v3205 = vunpack.c.l.b16 %v3130
    %v3206 = vunpack.c.l.b16 %v3131
    %v3207 = vunpack.c.h.b16 %v3131
    %v3208 = vunpack.c.l.b16 %v3132
    %v3209 = vunpack.c.l.b16 %v3133
    %v3210 = vunpack.c.h.b16 %v3133
    %v3211 = vunpack.c.l.b16 %v3134
    %v3212 = vunpack.c.l.b16 %v3135
    %v3213 = vunpack.c.h.b16 %v3135
    %v3214 = vunpack.c.l.b16 %v3136
    %v3215 = vunpack.c.l.b16 %v3137
    %v3216 = vunpack.c.h.b16 %v3137
    %v3217 = vunpack.c.l.b16 %v3138
    %v3218 = vunpack.c.l.b16 %v3139
    %v3219 = vunpack.c.h.b16 %v3139
    %v3220 = vunpack.c.l.b16 %v3140
    %v3221 = vpack.c.b16 %v3176, %v3173
    %v3222 = vpack.c.b16 %v3177, %v3174
    %v3223 = vpack.c.b16 %v3178, %v3175
    %v3224 = vpack.c.b16 %v3182, %v3179
    %v3225 = vpack.c.b16 %v3183, %v3180
    %v3226 = vpack.c.b16 %v3184, %v3181
    %v3227 = vpack.c.b16 %v3188, %v3185
    %v3228 = vpack.c.b16 %v3189, %v3186
    %v3229 = vpack.c.b16 %v3190, %v3187
    %v3230 = vpack.c.b16 %v3194, %v3191
    %v3231 = vpack.c.b16 %v3195, %v3192
    %v3232 = vpack.c.b16 %v3196, %v3193
    %v3233 = vpack.c.b16 %v3200, %v3197
    %v3234 = vpack.c.b16 %v3201, %v3198
    %v3235 = vpack.c.b16 %v3202, %v3199
    %v3236 = vpack.c.b16 %v3206, %v3203
    %v3237 = vpack.c.b16 %v3207, %v3204
    %v3238 = vpack.c.b16 %v3208, %v3205
    %v3239 = vpack.c.b16 %v3212, %v3209
    %v3240 = vpack.c.b16 %v3213, %v3210
    %v3241 = vpack.c.b16 %v3214, %v3211
    %v3242 = vpack.c.b16 %v3218, %v3215
    %v3243 = vpack.c.b16 %v3219, %v3216
    %v3244 = vpack.c.b16 %v3220, %v3217
    %3269 = vmatpush.bf16.msra.mxu0 %v3242
    %3270 = vmatpush.bf16.msra.mxu0 %v3239
    %3271 = vmatpush.bf16.msra.mxu0 %v3236
    %3272 = vmatpush.bf16.msra.mxu0 %v3233
    %3273 = vmatpush.bf16.msra.mxu0 %v3230
    %3274 = vmatpush.bf16.msra.mxu0 %v3227
    %3275 = vmatpush.bf16.msra.mxu0 %v3224
    %3276 = vmatpush.bf16.msra.mxu0 %v3221
    %3277 = vmatmul.bf16.gmra.mxu0 %v2656
    %v3278 = vpop.f32.mrf.mxu0
    %v3279 = vadd.f32 0.0, %v3278
    %v3280 = vpop.f32.mrf.mxu0
    %3281 = vdwg.mxu0
    %3282 = vmatpush.bf16.msra.mxu0 %v3243
    %3283 = vmatpush.bf16.msra.mxu0 %v3240
    %3284 = vmatpush.bf16.msra.mxu0 %v3237
    %3285 = vmatpush.bf16.msra.mxu0 %v3234
    %3286 = vmatpush.bf16.msra.mxu0 %v3231
    %3287 = vmatpush.bf16.msra.mxu0 %v3228
    %3288 = vmatpush.bf16.msra.mxu0 %v3225
    %3289 = vmatpush.bf16.msra.mxu0 %v3222
    %3290 = vmatmul.bf16.gmra.mxu0 %v2656
    %v3291 = vpop.f32.mrf.mxu0
    %v3292 = vadd.f32 0.0, %v3291
    %v3293 = vpop.f32.mrf.mxu0
    %3294 = vdwg.mxu0
    %3295 = vmatpush.bf16.msra.mxu0 %v3244
    %3296 = vmatpush.bf16.msra.mxu0 %v3241
    %3297 = vmatpush.bf16.msra.mxu0 %v3238
    %3298 = vmatpush.bf16.msra.mxu0 %v3235
    %3299 = vmatpush.bf16.msra.mxu0 %v3232
    %3300 = vmatpush.bf16.msra.mxu0 %v3229
    %3301 = vmatpush.bf16.msra.mxu0 %v3226
    %3302 = vmatpush.bf16.msra.mxu0 %v3223
    %3303 = vmatmul.bf16.gmra.mxu0 %v2656
    %v3304 = vpop.f32.mrf.mxu0
    %v3305 = vadd.f32 0.0, %v3304
    %v3306 = vpop.f32.mrf.mxu0
    %3307 = vdwg.mxu0
    %v3308 = vadd.f32 %v3080, %v3279
    %v3309 = vxor.u32 %v3308, 2147483648
    %v3310 = vmul.f32 %v3309, 1.442695
    %v3311 = vpow.pop %v3310
    %v3312 = vadd.f32 %v3311, 1.0
    %v3313 = vrcp.pop %v3312
    %v3314 = vmul.f32 %v3312, %v3313
    %v3315 = vsub.f32 1.0, %v3314
    %v3316 = vmul.f32 %v3313, %v3315
    %v3317 = vadd.f32 %v3313, %v3316
    %vm3318 = vweird.f32 %v3312
    %vm3319 = vweird.f32 %v3313
    %vm3320 = vmor %vm3318, %vm3319
    %v3321 = vsel %vm3320, %v3313, %v3317
    %v3322 = vand.u32 2147483647, %v3312
    %vm3323 = vcmp.eq.f32.partialorder %v3322, 8.507059e+37
    %v3324 = vand.u32 %v3312, 2147483648
    %v3325 = vor.u32 1.1754944e-38, %v3324
    %v3326 = vsel %vm3323, %v3325, %v3321
    %v3327 = vmul.f32 1.0, %v3326
    %v3328 = vadd.f32 %v3093, %v3292
    %v3329 = vxor.u32 %v3328, 2147483648
    %v3330 = vmul.f32 %v3329, 1.442695
    %v3331 = vpow.pop %v3330
    %v3332 = vadd.f32 %v3331, 1.0
    %v3333 = vrcp.pop %v3332
    %v3334 = vmul.f32 %v3332, %v3333
    %v3335 = vsub.f32 1.0, %v3334
    %v3336 = vmul.f32 %v3333, %v3335
    %v3337 = vadd.f32 %v3333, %v3336
    %vm3338 = vweird.f32 %v3332
    %vm3339 = vweird.f32 %v3333
    %vm3340 = vmor %vm3338, %vm3339
    %v3341 = vsel %vm3340, %v3333, %v3337
    %v3342 = vand.u32 2147483647, %v3332
    %vm3343 = vcmp.eq.f32.partialorder %v3342, 8.507059e+37
    %v3344 = vand.u32 %v3332, 2147483648
    %v3345 = vor.u32 1.1754944e-38, %v3344
    %v3346 = vsel %vm3343, %v3345, %v3341
    %v3347 = vmul.f32 1.0, %v3346
    %v3348 = vadd.f32 %v3305, %v471
    %v3349 = vmul.f32 %v3327, %v3348
    %v3350 = vadd.f32 %v3106, %v3349
    %v3351 = vtanh.pop %v3350
    %v3352 = vsub.f32 %v2655, %v3351
    %v3353 = vmul.f32 %v3347, %v3352
    %v3354 = vadd.f32 %v3351, %v3353
    %v3355 = vpack.c.bf16 %v3354, %v3354
    %s3356 = scalar_lea.vmem [#allocation14], 24
    %3357 = vst [vmem:[%s3356] sm:$0xff] %v3354
    %s3358 = scalar_lea.vmem [#allocation2], 120
    %v3359 = vld [vmem:[%s3358] sm:$0xff]
    %v3360 = vld [vmem:[%s3358 + $0x8] sm:$0xff]
    %v3361 = vld [vmem:[%s3358 + $0x10] sm:$0xff]
    %v3362 = vld [vmem:[#allocation8] sm:$0xff]
    %v3363 = vld [vmem:[#allocation8 + $0x8] sm:$0xf]
    %v3364 = vld [vmem:[#allocation8 + $0xc] sm:$0xff]
    %v3365 = vld [vmem:[#allocation8 + $0x14] sm:$0xf]
    %v3366 = vld [vmem:[#allocation8 + $0x18] sm:$0xff]
    %v3367 = vld [vmem:[#allocation8 + $0x20] sm:$0xf]
    %v3368 = vld [vmem:[#allocation8 + $0x24] sm:$0xff]
    %v3369 = vld [vmem:[#allocation8 + $0x2c] sm:$0xf]
    %v3370 = vld [vmem:[#allocation8 + $0x30] sm:$0xff]
    %v3371 = vld [vmem:[#allocation8 + $0x38] sm:$0xf]
    %v3372 = vld [vmem:[#allocation8 + $0x3c] sm:$0xff]
    %v3373 = vld [vmem:[#allocation8 + $0x44] sm:$0xf]
    %v3374 = vld [vmem:[#allocation8 + $0x48] sm:$0xff]
    %v3375 = vld [vmem:[#allocation8 + $0x50] sm:$0xf]
    %v3376 = vld [vmem:[#allocation8 + $0x54] sm:$0xff]
    %v3377 = vld [vmem:[#allocation8 + $0x5c] sm:$0xf]
    %v3378 = vld [vmem:[#allocation8 + $0x60] sm:$0xff]
    %v3379 = vld [vmem:[#allocation8 + $0x68] sm:$0xf]
    %v3380 = vld [vmem:[#allocation8 + $0x6c] sm:$0xff]
    %v3381 = vld [vmem:[#allocation8 + $0x74] sm:$0xf]
    %v3382 = vld [vmem:[#allocation8 + $0x78] sm:$0xff]
    %v3383 = vld [vmem:[#allocation8 + $0x80] sm:$0xf]
    %v3384 = vld [vmem:[#allocation8 + $0x84] sm:$0xff]
    %v3385 = vld [vmem:[#allocation8 + $0x8c] sm:$0xf]
    %v3386 = vld [vmem:[#allocation8 + $0x90] sm:$0xff]
    %v3387 = vld [vmem:[#allocation8 + $0x98] sm:$0xf]
    %v3388 = vld [vmem:[#allocation8 + $0x9c] sm:$0xff]
    %v3389 = vld [vmem:[#allocation8 + $0xa4] sm:$0xf]
    %v3390 = vld [vmem:[#allocation8 + $0xa8] sm:$0xff]
    %v3391 = vld [vmem:[#allocation8 + $0xb0] sm:$0xf]
    %v3392 = vld [vmem:[#allocation8 + $0xb4] sm:$0xff]
    %v3393 = vld [vmem:[#allocation8 + $0xbc] sm:$0xf]
    %v3426 = vunpack.c.l.b16 %v3362
    %v3427 = vunpack.c.h.b16 %v3362
    %v3428 = vunpack.c.l.b16 %v3363
    %v3429 = vunpack.c.l.b16 %v3364
    %v3430 = vunpack.c.h.b16 %v3364
    %v3431 = vunpack.c.l.b16 %v3365
    %v3432 = vunpack.c.l.b16 %v3366
    %v3433 = vunpack.c.h.b16 %v3366
    %v3434 = vunpack.c.l.b16 %v3367
    %v3435 = vunpack.c.l.b16 %v3368
    %v3436 = vunpack.c.h.b16 %v3368
    %v3437 = vunpack.c.l.b16 %v3369
    %v3438 = vunpack.c.l.b16 %v3370
    %v3439 = vunpack.c.h.b16 %v3370
    %v3440 = vunpack.c.l.b16 %v3371
    %v3441 = vunpack.c.l.b16 %v3372
    %v3442 = vunpack.c.h.b16 %v3372
    %v3443 = vunpack.c.l.b16 %v3373
    %v3444 = vunpack.c.l.b16 %v3374
    %v3445 = vunpack.c.h.b16 %v3374
    %v3446 = vunpack.c.l.b16 %v3375
    %v3447 = vunpack.c.l.b16 %v3376
    %v3448 = vunpack.c.h.b16 %v3376
    %v3449 = vunpack.c.l.b16 %v3377
    %v3450 = vunpack.c.l.b16 %v3378
    %v3451 = vunpack.c.h.b16 %v3378
    %v3452 = vunpack.c.l.b16 %v3379
    %v3453 = vunpack.c.l.b16 %v3380
    %v3454 = vunpack.c.h.b16 %v3380
    %v3455 = vunpack.c.l.b16 %v3381
    %v3456 = vunpack.c.l.b16 %v3382
    %v3457 = vunpack.c.h.b16 %v3382
    %v3458 = vunpack.c.l.b16 %v3383
    %v3459 = vunpack.c.l.b16 %v3384
    %v3460 = vunpack.c.h.b16 %v3384
    %v3461 = vunpack.c.l.b16 %v3385
    %v3462 = vunpack.c.l.b16 %v3386
    %v3463 = vunpack.c.h.b16 %v3386
    %v3464 = vunpack.c.l.b16 %v3387
    %v3465 = vunpack.c.l.b16 %v3388
    %v3466 = vunpack.c.h.b16 %v3388
    %v3467 = vunpack.c.l.b16 %v3389
    %v3468 = vunpack.c.l.b16 %v3390
    %v3469 = vunpack.c.h.b16 %v3390
    %v3470 = vunpack.c.l.b16 %v3391
    %v3471 = vunpack.c.l.b16 %v3392
    %v3472 = vunpack.c.h.b16 %v3392
    %v3473 = vunpack.c.l.b16 %v3393
    %v3474 = vpack.c.b16 %v3429, %v3426
    %v3475 = vpack.c.b16 %v3430, %v3427
    %v3476 = vpack.c.b16 %v3431, %v3428
    %v3477 = vpack.c.b16 %v3435, %v3432
    %v3478 = vpack.c.b16 %v3436, %v3433
    %v3479 = vpack.c.b16 %v3437, %v3434
    %v3480 = vpack.c.b16 %v3441, %v3438
    %v3481 = vpack.c.b16 %v3442, %v3439
    %v3482 = vpack.c.b16 %v3443, %v3440
    %v3483 = vpack.c.b16 %v3447, %v3444
    %v3484 = vpack.c.b16 %v3448, %v3445
    %v3485 = vpack.c.b16 %v3449, %v3446
    %v3486 = vpack.c.b16 %v3453, %v3450
    %v3487 = vpack.c.b16 %v3454, %v3451
    %v3488 = vpack.c.b16 %v3455, %v3452
    %v3489 = vpack.c.b16 %v3459, %v3456
    %v3490 = vpack.c.b16 %v3460, %v3457
    %v3491 = vpack.c.b16 %v3461, %v3458
    %v3492 = vpack.c.b16 %v3465, %v3462
    %v3493 = vpack.c.b16 %v3466, %v3463
    %v3494 = vpack.c.b16 %v3467, %v3464
    %v3495 = vpack.c.b16 %v3471, %v3468
    %v3496 = vpack.c.b16 %v3472, %v3469
    %v3497 = vpack.c.b16 %v3473, %v3470
    %3522 = vmatpush.bf16.msra.mxu0 %v3495
    %3523 = vmatpush.bf16.msra.mxu0 %v3492
    %3524 = vmatpush.bf16.msra.mxu0 %v3489
    %3525 = vmatpush.bf16.msra.mxu0 %v3486
    %3526 = vmatpush.bf16.msra.mxu0 %v3483
    %3527 = vmatpush.bf16.msra.mxu0 %v3480
    %3528 = vmatpush.bf16.msra.mxu0 %v3477
    %3529 = vmatpush.bf16.msra.mxu0 %v3474
    %3530 = vmatmul.bf16.gmra.mxu0 %v2909
    %v3531 = vpop.f32.mrf.mxu0
    %v3532 = vadd.f32 0.0, %v3531
    %v3533 = vpop.f32.mrf.mxu0
    %3534 = vdwg.mxu0
    %3535 = vmatpush.bf16.msra.mxu0 %v3496
    %3536 = vmatpush.bf16.msra.mxu0 %v3493
    %3537 = vmatpush.bf16.msra.mxu0 %v3490
    %3538 = vmatpush.bf16.msra.mxu0 %v3487
    %3539 = vmatpush.bf16.msra.mxu0 %v3484
    %3540 = vmatpush.bf16.msra.mxu0 %v3481
    %3541 = vmatpush.bf16.msra.mxu0 %v3478
    %3542 = vmatpush.bf16.msra.mxu0 %v3475
    %3543 = vmatmul.bf16.gmra.mxu0 %v2909
    %v3544 = vpop.f32.mrf.mxu0
    %v3545 = vadd.f32 0.0, %v3544
    %v3546 = vpop.f32.mrf.mxu0
    %3547 = vdwg.mxu0
    %3548 = vmatpush.bf16.msra.mxu0 %v3497
    %3549 = vmatpush.bf16.msra.mxu0 %v3494
    %3550 = vmatpush.bf16.msra.mxu0 %v3491
    %3551 = vmatpush.bf16.msra.mxu0 %v3488
    %3552 = vmatpush.bf16.msra.mxu0 %v3485
    %3553 = vmatpush.bf16.msra.mxu0 %v3482
    %3554 = vmatpush.bf16.msra.mxu0 %v3479
    %3555 = vmatpush.bf16.msra.mxu0 %v3476
    %3556 = vmatmul.bf16.gmra.mxu0 %v2909
    %v3557 = vpop.f32.mrf.mxu0
    %v3558 = vadd.f32 0.0, %v3557
    %v3559 = vpop.f32.mrf.mxu0
    %3560 = vdwg.mxu0
    %v3561 = vadd.f32 %v3359, %v3532
    %v3562 = vxor.u32 %v3561, 2147483648
    %v3563 = vmul.f32 %v3562, 1.442695
    %v3564 = vpow.pop %v3563
    %v3565 = vadd.f32 %v3564, 1.0
    %v3566 = vrcp.pop %v3565
    %v3567 = vmul.f32 %v3565, %v3566
    %v3568 = vsub.f32 1.0, %v3567
    %v3569 = vmul.f32 %v3566, %v3568
    %v3570 = vadd.f32 %v3566, %v3569
    %vm3571 = vweird.f32 %v3565
    %vm3572 = vweird.f32 %v3566
    %vm3573 = vmor %vm3571, %vm3572
    %v3574 = vsel %vm3573, %v3566, %v3570
    %v3575 = vand.u32 2147483647, %v3565
    %vm3576 = vcmp.eq.f32.partialorder %v3575, 8.507059e+37
    %v3577 = vand.u32 %v3565, 2147483648
    %v3578 = vor.u32 1.1754944e-38, %v3577
    %v3579 = vsel %vm3576, %v3578, %v3574
    %v3580 = vmul.f32 1.0, %v3579
    %v3581 = vadd.f32 %v3360, %v3545
    %v3582 = vxor.u32 %v3581, 2147483648
    %v3583 = vmul.f32 %v3582, 1.442695
    %v3584 = vpow.pop %v3583
    %v3585 = vadd.f32 %v3584, 1.0
    %v3586 = vrcp.pop %v3585
    %v3587 = vmul.f32 %v3585, %v3586
    %v3588 = vsub.f32 1.0, %v3587
    %v3589 = vmul.f32 %v3586, %v3588
    %v3590 = vadd.f32 %v3586, %v3589
    %vm3591 = vweird.f32 %v3585
    %vm3592 = vweird.f32 %v3586
    %vm3593 = vmor %vm3591, %vm3592
    %v3594 = vsel %vm3593, %v3586, %v3590
    %v3595 = vand.u32 2147483647, %v3585
    %vm3596 = vcmp.eq.f32.partialorder %v3595, 8.507059e+37
    %v3597 = vand.u32 %v3585, 2147483648
    %v3598 = vor.u32 1.1754944e-38, %v3597
    %v3599 = vsel %vm3596, %v3598, %v3594
    %v3600 = vmul.f32 1.0, %v3599
    %v3601 = vadd.f32 %v3558, %v459
    %v3602 = vmul.f32 %v3580, %v3601
    %v3603 = vadd.f32 %v3361, %v3602
    %v3604 = vtanh.pop %v3603
    %v3605 = vsub.f32 %v2908, %v3604
    %v3606 = vmul.f32 %v3600, %v3605
    %v3607 = vadd.f32 %v3604, %v3606
    %v3608 = vpack.c.bf16 %v3607, %v3607
    %v3609 = vld [vmem:[#allocation11] sm:$0xff]
    %v3610 = vld [vmem:[#allocation11 + $0x8] sm:$0xf]
    %v3611 = vld [vmem:[#allocation11 + $0xc] sm:$0xff]
    %v3612 = vld [vmem:[#allocation11 + $0x14] sm:$0xf]
    %v3613 = vld [vmem:[#allocation11 + $0x18] sm:$0xff]
    %v3614 = vld [vmem:[#allocation11 + $0x20] sm:$0xf]
    %v3615 = vld [vmem:[#allocation11 + $0x24] sm:$0xff]
    %v3616 = vld [vmem:[#allocation11 + $0x2c] sm:$0xf]
    %v3617 = vld [vmem:[#allocation11 + $0x30] sm:$0xff]
    %v3618 = vld [vmem:[#allocation11 + $0x38] sm:$0xf]
    %v3619 = vld [vmem:[#allocation11 + $0x3c] sm:$0xff]
    %v3620 = vld [vmem:[#allocation11 + $0x44] sm:$0xf]
    %v3621 = vld [vmem:[#allocation11 + $0x48] sm:$0xff]
    %v3622 = vld [vmem:[#allocation11 + $0x50] sm:$0xf]
    %v3623 = vld [vmem:[#allocation11 + $0x54] sm:$0xff]
    %v3624 = vld [vmem:[#allocation11 + $0x5c] sm:$0xf]
    %v3625 = vld [vmem:[#allocation11 + $0x60] sm:$0xff]
    %v3626 = vld [vmem:[#allocation11 + $0x68] sm:$0xf]
    %v3627 = vld [vmem:[#allocation11 + $0x6c] sm:$0xff]
    %v3628 = vld [vmem:[#allocation11 + $0x74] sm:$0xf]
    %v3629 = vld [vmem:[#allocation11 + $0x78] sm:$0xff]
    %v3630 = vld [vmem:[#allocation11 + $0x80] sm:$0xf]
    %v3631 = vld [vmem:[#allocation11 + $0x84] sm:$0xff]
    %v3632 = vld [vmem:[#allocation11 + $0x8c] sm:$0xf]
    %v3633 = vld [vmem:[#allocation11 + $0x90] sm:$0xff]
    %v3634 = vld [vmem:[#allocation11 + $0x98] sm:$0xf]
    %v3635 = vld [vmem:[#allocation11 + $0x9c] sm:$0xff]
    %v3636 = vld [vmem:[#allocation11 + $0xa4] sm:$0xf]
    %v3637 = vld [vmem:[#allocation11 + $0xa8] sm:$0xff]
    %v3638 = vld [vmem:[#allocation11 + $0xb0] sm:$0xf]
    %v3639 = vld [vmem:[#allocation11 + $0xb4] sm:$0xff]
    %v3640 = vld [vmem:[#allocation11 + $0xbc] sm:$0xf]
    %v3673 = vunpack.c.l.b16 %v3609
    %v3674 = vunpack.c.h.b16 %v3609
    %v3675 = vunpack.c.l.b16 %v3610
    %v3676 = vunpack.c.l.b16 %v3611
    %v3677 = vunpack.c.h.b16 %v3611
    %v3678 = vunpack.c.l.b16 %v3612
    %v3679 = vunpack.c.l.b16 %v3613
    %v3680 = vunpack.c.h.b16 %v3613
    %v3681 = vunpack.c.l.b16 %v3614
    %v3682 = vunpack.c.l.b16 %v3615
    %v3683 = vunpack.c.h.b16 %v3615
    %v3684 = vunpack.c.l.b16 %v3616
    %v3685 = vunpack.c.l.b16 %v3617
    %v3686 = vunpack.c.h.b16 %v3617
    %v3687 = vunpack.c.l.b16 %v3618
    %v3688 = vunpack.c.l.b16 %v3619
    %v3689 = vunpack.c.h.b16 %v3619
    %v3690 = vunpack.c.l.b16 %v3620
    %v3691 = vunpack.c.l.b16 %v3621
    %v3692 = vunpack.c.h.b16 %v3621
    %v3693 = vunpack.c.l.b16 %v3622
    %v3694 = vunpack.c.l.b16 %v3623
    %v3695 = vunpack.c.h.b16 %v3623
    %v3696 = vunpack.c.l.b16 %v3624
    %v3697 = vunpack.c.l.b16 %v3625
    %v3698 = vunpack.c.h.b16 %v3625
    %v3699 = vunpack.c.l.b16 %v3626
    %v3700 = vunpack.c.l.b16 %v3627
    %v3701 = vunpack.c.h.b16 %v3627
    %v3702 = vunpack.c.l.b16 %v3628
    %v3703 = vunpack.c.l.b16 %v3629
    %v3704 = vunpack.c.h.b16 %v3629
    %v3705 = vunpack.c.l.b16 %v3630
    %v3706 = vunpack.c.l.b16 %v3631
    %v3707 = vunpack.c.h.b16 %v3631
    %v3708 = vunpack.c.l.b16 %v3632
    %v3709 = vunpack.c.l.b16 %v3633
    %v3710 = vunpack.c.h.b16 %v3633
    %v3711 = vunpack.c.l.b16 %v3634
    %v3712 = vunpack.c.l.b16 %v3635
    %v3713 = vunpack.c.h.b16 %v3635
    %v3714 = vunpack.c.l.b16 %v3636
    %v3715 = vunpack.c.l.b16 %v3637
    %v3716 = vunpack.c.h.b16 %v3637
    %v3717 = vunpack.c.l.b16 %v3638
    %v3718 = vunpack.c.l.b16 %v3639
    %v3719 = vunpack.c.h.b16 %v3639
    %v3720 = vunpack.c.l.b16 %v3640
    %v3721 = vpack.c.b16 %v3676, %v3673
    %v3722 = vpack.c.b16 %v3677, %v3674
    %v3723 = vpack.c.b16 %v3678, %v3675
    %v3724 = vpack.c.b16 %v3682, %v3679
    %v3725 = vpack.c.b16 %v3683, %v3680
    %v3726 = vpack.c.b16 %v3684, %v3681
    %v3727 = vpack.c.b16 %v3688, %v3685
    %v3728 = vpack.c.b16 %v3689, %v3686
    %v3729 = vpack.c.b16 %v3690, %v3687
    %v3730 = vpack.c.b16 %v3694, %v3691
    %v3731 = vpack.c.b16 %v3695, %v3692
    %v3732 = vpack.c.b16 %v3696, %v3693
    %v3733 = vpack.c.b16 %v3700, %v3697
    %v3734 = vpack.c.b16 %v3701, %v3698
    %v3735 = vpack.c.b16 %v3702, %v3699
    %v3736 = vpack.c.b16 %v3706, %v3703
    %v3737 = vpack.c.b16 %v3707, %v3704
    %v3738 = vpack.c.b16 %v3708, %v3705
    %v3739 = vpack.c.b16 %v3712, %v3709
    %v3740 = vpack.c.b16 %v3713, %v3710
    %v3741 = vpack.c.b16 %v3714, %v3711
    %v3742 = vpack.c.b16 %v3718, %v3715
    %v3743 = vpack.c.b16 %v3719, %v3716
    %v3744 = vpack.c.b16 %v3720, %v3717
    %3769 = vmatpush.bf16.msra.mxu0 %v3742
    %3770 = vmatpush.bf16.msra.mxu0 %v3739
    %3771 = vmatpush.bf16.msra.mxu0 %v3736
    %3772 = vmatpush.bf16.msra.mxu0 %v3733
    %3773 = vmatpush.bf16.msra.mxu0 %v3730
    %3774 = vmatpush.bf16.msra.mxu0 %v3727
    %3775 = vmatpush.bf16.msra.mxu0 %v3724
    %3776 = vmatpush.bf16.msra.mxu0 %v3721
    %3777 = vmatmul.bf16.gmra.mxu0 %v2909
    %v3778 = vpop.f32.mrf.mxu0
    %v3779 = vadd.f32 %v463, %v3778
    %v3780 = vpop.f32.mrf.mxu0
    %3781 = vdwg.mxu0
    %3782 = vmatpush.bf16.msra.mxu0 %v3743
    %3783 = vmatpush.bf16.msra.mxu0 %v3740
    %3784 = vmatpush.bf16.msra.mxu0 %v3737
    %3785 = vmatpush.bf16.msra.mxu0 %v3734
    %3786 = vmatpush.bf16.msra.mxu0 %v3731
    %3787 = vmatpush.bf16.msra.mxu0 %v3728
    %3788 = vmatpush.bf16.msra.mxu0 %v3725
    %3789 = vmatpush.bf16.msra.mxu0 %v3722
    %3790 = vmatmul.bf16.gmra.mxu0 %v2909
    %v3791 = vpop.f32.mrf.mxu0
    %v3792 = vadd.f32 %v464, %v3791
    %v3793 = vpop.f32.mrf.mxu0
    %3794 = vdwg.mxu0
    %3795 = vmatpush.bf16.msra.mxu0 %v3744
    %3796 = vmatpush.bf16.msra.mxu0 %v3741
    %3797 = vmatpush.bf16.msra.mxu0 %v3738
    %3798 = vmatpush.bf16.msra.mxu0 %v3735
    %3799 = vmatpush.bf16.msra.mxu0 %v3732
    %3800 = vmatpush.bf16.msra.mxu0 %v3729
    %3801 = vmatpush.bf16.msra.mxu0 %v3726
    %3802 = vmatpush.bf16.msra.mxu0 %v3723
    %3803 = vmatmul.bf16.gmra.mxu0 %v2909
    %v3804 = vpop.f32.mrf.mxu0
    %v3805 = vadd.f32 %v465, %v3804
    %v3806 = vpop.f32.mrf.mxu0
    %3807 = vdwg.mxu0
    %v3808 = vld [vmem:[#allocation12] sm:$0xff]
    %v3809 = vld [vmem:[#allocation12 + $0x8] sm:$0xf]
    %v3810 = vld [vmem:[#allocation12 + $0xc] sm:$0xff]
    %v3811 = vld [vmem:[#allocation12 + $0x14] sm:$0xf]
    %v3812 = vld [vmem:[#allocation12 + $0x18] sm:$0xff]
    %v3813 = vld [vmem:[#allocation12 + $0x20] sm:$0xf]
    %v3814 = vld [vmem:[#allocation12 + $0x24] sm:$0xff]
    %v3815 = vld [vmem:[#allocation12 + $0x2c] sm:$0xf]
    %v3816 = vld [vmem:[#allocation12 + $0x30] sm:$0xff]
    %v3817 = vld [vmem:[#allocation12 + $0x38] sm:$0xf]
    %v3818 = vld [vmem:[#allocation12 + $0x3c] sm:$0xff]
    %v3819 = vld [vmem:[#allocation12 + $0x44] sm:$0xf]
    %v3820 = vld [vmem:[#allocation12 + $0x48] sm:$0xff]
    %v3821 = vld [vmem:[#allocation12 + $0x50] sm:$0xf]
    %v3822 = vld [vmem:[#allocation12 + $0x54] sm:$0xff]
    %v3823 = vld [vmem:[#allocation12 + $0x5c] sm:$0xf]
    %v3824 = vld [vmem:[#allocation12 + $0x60] sm:$0xff]
    %v3825 = vld [vmem:[#allocation12 + $0x68] sm:$0xf]
    %v3826 = vld [vmem:[#allocation12 + $0x6c] sm:$0xff]
    %v3827 = vld [vmem:[#allocation12 + $0x74] sm:$0xf]
    %v3828 = vld [vmem:[#allocation12 + $0x78] sm:$0xff]
    %v3829 = vld [vmem:[#allocation12 + $0x80] sm:$0xf]
    %v3830 = vld [vmem:[#allocation12 + $0x84] sm:$0xff]
    %v3831 = vld [vmem:[#allocation12 + $0x8c] sm:$0xf]
    %v3832 = vld [vmem:[#allocation12 + $0x90] sm:$0xff]
    %v3833 = vld [vmem:[#allocation12 + $0x98] sm:$0xf]
    %v3834 = vld [vmem:[#allocation12 + $0x9c] sm:$0xff]
    %v3835 = vld [vmem:[#allocation12 + $0xa4] sm:$0xf]
    %v3836 = vld [vmem:[#allocation12 + $0xa8] sm:$0xff]
    %v3837 = vld [vmem:[#allocation12 + $0xb0] sm:$0xf]
    %v3838 = vld [vmem:[#allocation12 + $0xb4] sm:$0xff]
    %v3839 = vld [vmem:[#allocation12 + $0xbc] sm:$0xf]
    %v3872 = vunpack.c.l.b16 %v3808
    %v3873 = vunpack.c.h.b16 %v3808
    %v3874 = vunpack.c.l.b16 %v3809
    %v3875 = vunpack.c.l.b16 %v3810
    %v3876 = vunpack.c.h.b16 %v3810
    %v3877 = vunpack.c.l.b16 %v3811
    %v3878 = vunpack.c.l.b16 %v3812
    %v3879 = vunpack.c.h.b16 %v3812
    %v3880 = vunpack.c.l.b16 %v3813
    %v3881 = vunpack.c.l.b16 %v3814
    %v3882 = vunpack.c.h.b16 %v3814
    %v3883 = vunpack.c.l.b16 %v3815
    %v3884 = vunpack.c.l.b16 %v3816
    %v3885 = vunpack.c.h.b16 %v3816
    %v3886 = vunpack.c.l.b16 %v3817
    %v3887 = vunpack.c.l.b16 %v3818
    %v3888 = vunpack.c.h.b16 %v3818
    %v3889 = vunpack.c.l.b16 %v3819
    %v3890 = vunpack.c.l.b16 %v3820
    %v3891 = vunpack.c.h.b16 %v3820
    %v3892 = vunpack.c.l.b16 %v3821
    %v3893 = vunpack.c.l.b16 %v3822
    %v3894 = vunpack.c.h.b16 %v3822
    %v3895 = vunpack.c.l.b16 %v3823
    %v3896 = vunpack.c.l.b16 %v3824
    %v3897 = vunpack.c.h.b16 %v3824
    %v3898 = vunpack.c.l.b16 %v3825
    %v3899 = vunpack.c.l.b16 %v3826
    %v3900 = vunpack.c.h.b16 %v3826
    %v3901 = vunpack.c.l.b16 %v3827
    %v3902 = vunpack.c.l.b16 %v3828
    %v3903 = vunpack.c.h.b16 %v3828
    %v3904 = vunpack.c.l.b16 %v3829
    %v3905 = vunpack.c.l.b16 %v3830
    %v3906 = vunpack.c.h.b16 %v3830
    %v3907 = vunpack.c.l.b16 %v3831
    %v3908 = vunpack.c.l.b16 %v3832
    %v3909 = vunpack.c.h.b16 %v3832
    %v3910 = vunpack.c.l.b16 %v3833
    %v3911 = vunpack.c.l.b16 %v3834
    %v3912 = vunpack.c.h.b16 %v3834
    %v3913 = vunpack.c.l.b16 %v3835
    %v3914 = vunpack.c.l.b16 %v3836
    %v3915 = vunpack.c.h.b16 %v3836
    %v3916 = vunpack.c.l.b16 %v3837
    %v3917 = vunpack.c.l.b16 %v3838
    %v3918 = vunpack.c.h.b16 %v3838
    %v3919 = vunpack.c.l.b16 %v3839
    %v3920 = vpack.c.b16 %v3875, %v3872
    %v3921 = vpack.c.b16 %v3876, %v3873
    %v3922 = vpack.c.b16 %v3877, %v3874
    %v3923 = vpack.c.b16 %v3881, %v3878
    %v3924 = vpack.c.b16 %v3882, %v3879
    %v3925 = vpack.c.b16 %v3883, %v3880
    %v3926 = vpack.c.b16 %v3887, %v3884
    %v3927 = vpack.c.b16 %v3888, %v3885
    %v3928 = vpack.c.b16 %v3889, %v3886
    %v3929 = vpack.c.b16 %v3893, %v3890
    %v3930 = vpack.c.b16 %v3894, %v3891
    %v3931 = vpack.c.b16 %v3895, %v3892
    %v3932 = vpack.c.b16 %v3899, %v3896
    %v3933 = vpack.c.b16 %v3900, %v3897
    %v3934 = vpack.c.b16 %v3901, %v3898
    %v3935 = vpack.c.b16 %v3905, %v3902
    %v3936 = vpack.c.b16 %v3906, %v3903
    %v3937 = vpack.c.b16 %v3907, %v3904
    %v3938 = vpack.c.b16 %v3911, %v3908
    %v3939 = vpack.c.b16 %v3912, %v3909
    %v3940 = vpack.c.b16 %v3913, %v3910
    %v3941 = vpack.c.b16 %v3917, %v3914
    %v3942 = vpack.c.b16 %v3918, %v3915
    %v3943 = vpack.c.b16 %v3919, %v3916
    %3968 = vmatpush.bf16.msra.mxu0 %v3941
    %3969 = vmatpush.bf16.msra.mxu0 %v3938
    %3970 = vmatpush.bf16.msra.mxu0 %v3935
    %3971 = vmatpush.bf16.msra.mxu0 %v3932
    %3972 = vmatpush.bf16.msra.mxu0 %v3929
    %3973 = vmatpush.bf16.msra.mxu0 %v3926
    %3974 = vmatpush.bf16.msra.mxu0 %v3923
    %3975 = vmatpush.bf16.msra.mxu0 %v3920
    %3976 = vmatmul.bf16.gmra.mxu0 %v3355
    %v3977 = vpop.f32.mrf.mxu0
    %v3978 = vadd.f32 0.0, %v3977
    %v3979 = vpop.f32.mrf.mxu0
    %3980 = vdwg.mxu0
    %3981 = vmatpush.bf16.msra.mxu0 %v3942
    %3982 = vmatpush.bf16.msra.mxu0 %v3939
    %3983 = vmatpush.bf16.msra.mxu0 %v3936
    %3984 = vmatpush.bf16.msra.mxu0 %v3933
    %3985 = vmatpush.bf16.msra.mxu0 %v3930
    %3986 = vmatpush.bf16.msra.mxu0 %v3927
    %3987 = vmatpush.bf16.msra.mxu0 %v3924
    %3988 = vmatpush.bf16.msra.mxu0 %v3921
    %3989 = vmatmul.bf16.gmra.mxu0 %v3355
    %v3990 = vpop.f32.mrf.mxu0
    %v3991 = vadd.f32 0.0, %v3990
    %v3992 = vpop.f32.mrf.mxu0
    %3993 = vdwg.mxu0
    %3994 = vmatpush.bf16.msra.mxu0 %v3943
    %3995 = vmatpush.bf16.msra.mxu0 %v3940
    %3996 = vmatpush.bf16.msra.mxu0 %v3937
    %3997 = vmatpush.bf16.msra.mxu0 %v3934
    %3998 = vmatpush.bf16.msra.mxu0 %v3931
    %3999 = vmatpush.bf16.msra.mxu0 %v3928
    %4000 = vmatpush.bf16.msra.mxu0 %v3925
    %4001 = vmatpush.bf16.msra.mxu0 %v3922
    %4002 = vmatmul.bf16.gmra.mxu0 %v3355
    %v4003 = vpop.f32.mrf.mxu0
    %v4004 = vadd.f32 0.0, %v4003
    %v4005 = vpop.f32.mrf.mxu0
    %4006 = vdwg.mxu0
    %v4007 = vadd.f32 %v3779, %v3978
    %v4008 = vxor.u32 %v4007, 2147483648
    %v4009 = vmul.f32 %v4008, 1.442695
    %v4010 = vpow.pop %v4009
    %v4011 = vadd.f32 %v4010, 1.0
    %v4012 = vrcp.pop %v4011
    %v4013 = vmul.f32 %v4011, %v4012
    %v4014 = vsub.f32 1.0, %v4013
    %v4015 = vmul.f32 %v4012, %v4014
    %v4016 = vadd.f32 %v4012, %v4015
    %vm4017 = vweird.f32 %v4011
    %vm4018 = vweird.f32 %v4012
    %vm4019 = vmor %vm4017, %vm4018
    %v4020 = vsel %vm4019, %v4012, %v4016
    %v4021 = vand.u32 2147483647, %v4011
    %vm4022 = vcmp.eq.f32.partialorder %v4021, 8.507059e+37
    %v4023 = vand.u32 %v4011, 2147483648
    %v4024 = vor.u32 1.1754944e-38, %v4023
    %v4025 = vsel %vm4022, %v4024, %v4020
    %v4026 = vmul.f32 1.0, %v4025
    %v4027 = vadd.f32 %v3792, %v3991
    %v4028 = vxor.u32 %v4027, 2147483648
    %v4029 = vmul.f32 %v4028, 1.442695
    %v4030 = vpow.pop %v4029
    %v4031 = vadd.f32 %v4030, 1.0
    %v4032 = vrcp.pop %v4031
    %v4033 = vmul.f32 %v4031, %v4032
    %v4034 = vsub.f32 1.0, %v4033
    %v4035 = vmul.f32 %v4032, %v4034
    %v4036 = vadd.f32 %v4032, %v4035
    %vm4037 = vweird.f32 %v4031
    %vm4038 = vweird.f32 %v4032
    %vm4039 = vmor %vm4037, %vm4038
    %v4040 = vsel %vm4039, %v4032, %v4036
    %v4041 = vand.u32 2147483647, %v4031
    %vm4042 = vcmp.eq.f32.partialorder %v4041, 8.507059e+37
    %v4043 = vand.u32 %v4031, 2147483648
    %v4044 = vor.u32 1.1754944e-38, %v4043
    %v4045 = vsel %vm4042, %v4044, %v4040
    %v4046 = vmul.f32 1.0, %v4045
    %v4047 = vadd.f32 %v4004, %v471
    %v4048 = vmul.f32 %v4026, %v4047
    %v4049 = vadd.f32 %v3805, %v4048
    %v4050 = vtanh.pop %v4049
    %v4051 = vsub.f32 %v3354, %v4050
    %v4052 = vmul.f32 %v4046, %v4051
    %v4053 = vadd.f32 %v4050, %v4052
    %v4054 = vpack.c.bf16 %v4053, %v4053
    %s4055 = scalar_lea.vmem [#allocation14], 32
    %4056 = vst [vmem:[%s4055] sm:$0xff] %v4053
    %s4057 = scalar_lea.vmem [#allocation2], 144
    %v4058 = vld [vmem:[%s4057] sm:$0xff]
    %v4059 = vld [vmem:[%s4057 + $0x8] sm:$0xff]
    %v4060 = vld [vmem:[%s4057 + $0x10] sm:$0xff]
    %v4061 = vld [vmem:[#allocation8] sm:$0xff]
    %v4062 = vld [vmem:[#allocation8 + $0x8] sm:$0xf]
    %v4063 = vld [vmem:[#allocation8 + $0xc] sm:$0xff]
    %v4064 = vld [vmem:[#allocation8 + $0x14] sm:$0xf]
    %v4065 = vld [vmem:[#allocation8 + $0x18] sm:$0xff]
    %v4066 = vld [vmem:[#allocation8 + $0x20] sm:$0xf]
    %v4067 = vld [vmem:[#allocation8 + $0x24] sm:$0xff]
    %v4068 = vld [vmem:[#allocation8 + $0x2c] sm:$0xf]
    %v4069 = vld [vmem:[#allocation8 + $0x30] sm:$0xff]
    %v4070 = vld [vmem:[#allocation8 + $0x38] sm:$0xf]
    %v4071 = vld [vmem:[#allocation8 + $0x3c] sm:$0xff]
    %v4072 = vld [vmem:[#allocation8 + $0x44] sm:$0xf]
    %v4073 = vld [vmem:[#allocation8 + $0x48] sm:$0xff]
    %v4074 = vld [vmem:[#allocation8 + $0x50] sm:$0xf]
    %v4075 = vld [vmem:[#allocation8 + $0x54] sm:$0xff]
    %v4076 = vld [vmem:[#allocation8 + $0x5c] sm:$0xf]
    %v4077 = vld [vmem:[#allocation8 + $0x60] sm:$0xff]
    %v4078 = vld [vmem:[#allocation8 + $0x68] sm:$0xf]
    %v4079 = vld [vmem:[#allocation8 + $0x6c] sm:$0xff]
    %v4080 = vld [vmem:[#allocation8 + $0x74] sm:$0xf]
    %v4081 = vld [vmem:[#allocation8 + $0x78] sm:$0xff]
    %v4082 = vld [vmem:[#allocation8 + $0x80] sm:$0xf]
    %v4083 = vld [vmem:[#allocation8 + $0x84] sm:$0xff]
    %v4084 = vld [vmem:[#allocation8 + $0x8c] sm:$0xf]
    %v4085 = vld [vmem:[#allocation8 + $0x90] sm:$0xff]
    %v4086 = vld [vmem:[#allocation8 + $0x98] sm:$0xf]
    %v4087 = vld [vmem:[#allocation8 + $0x9c] sm:$0xff]
    %v4088 = vld [vmem:[#allocation8 + $0xa4] sm:$0xf]
    %v4089 = vld [vmem:[#allocation8 + $0xa8] sm:$0xff]
    %v4090 = vld [vmem:[#allocation8 + $0xb0] sm:$0xf]
    %v4091 = vld [vmem:[#allocation8 + $0xb4] sm:$0xff]
    %v4092 = vld [vmem:[#allocation8 + $0xbc] sm:$0xf]
    %v4125 = vunpack.c.l.b16 %v4061
    %v4126 = vunpack.c.h.b16 %v4061
    %v4127 = vunpack.c.l.b16 %v4062
    %v4128 = vunpack.c.l.b16 %v4063
    %v4129 = vunpack.c.h.b16 %v4063
    %v4130 = vunpack.c.l.b16 %v4064
    %v4131 = vunpack.c.l.b16 %v4065
    %v4132 = vunpack.c.h.b16 %v4065
    %v4133 = vunpack.c.l.b16 %v4066
    %v4134 = vunpack.c.l.b16 %v4067
    %v4135 = vunpack.c.h.b16 %v4067
    %v4136 = vunpack.c.l.b16 %v4068
    %v4137 = vunpack.c.l.b16 %v4069
    %v4138 = vunpack.c.h.b16 %v4069
    %v4139 = vunpack.c.l.b16 %v4070
    %v4140 = vunpack.c.l.b16 %v4071
    %v4141 = vunpack.c.h.b16 %v4071
    %v4142 = vunpack.c.l.b16 %v4072
    %v4143 = vunpack.c.l.b16 %v4073
    %v4144 = vunpack.c.h.b16 %v4073
    %v4145 = vunpack.c.l.b16 %v4074
    %v4146 = vunpack.c.l.b16 %v4075
    %v4147 = vunpack.c.h.b16 %v4075
    %v4148 = vunpack.c.l.b16 %v4076
    %v4149 = vunpack.c.l.b16 %v4077
    %v4150 = vunpack.c.h.b16 %v4077
    %v4151 = vunpack.c.l.b16 %v4078
    %v4152 = vunpack.c.l.b16 %v4079
    %v4153 = vunpack.c.h.b16 %v4079
    %v4154 = vunpack.c.l.b16 %v4080
    %v4155 = vunpack.c.l.b16 %v4081
    %v4156 = vunpack.c.h.b16 %v4081
    %v4157 = vunpack.c.l.b16 %v4082
    %v4158 = vunpack.c.l.b16 %v4083
    %v4159 = vunpack.c.h.b16 %v4083
    %v4160 = vunpack.c.l.b16 %v4084
    %v4161 = vunpack.c.l.b16 %v4085
    %v4162 = vunpack.c.h.b16 %v4085
    %v4163 = vunpack.c.l.b16 %v4086
    %v4164 = vunpack.c.l.b16 %v4087
    %v4165 = vunpack.c.h.b16 %v4087
    %v4166 = vunpack.c.l.b16 %v4088
    %v4167 = vunpack.c.l.b16 %v4089
    %v4168 = vunpack.c.h.b16 %v4089
    %v4169 = vunpack.c.l.b16 %v4090
    %v4170 = vunpack.c.l.b16 %v4091
    %v4171 = vunpack.c.h.b16 %v4091
    %v4172 = vunpack.c.l.b16 %v4092
    %v4173 = vpack.c.b16 %v4128, %v4125
    %v4174 = vpack.c.b16 %v4129, %v4126
    %v4175 = vpack.c.b16 %v4130, %v4127
    %v4176 = vpack.c.b16 %v4134, %v4131
    %v4177 = vpack.c.b16 %v4135, %v4132
    %v4178 = vpack.c.b16 %v4136, %v4133
    %v4179 = vpack.c.b16 %v4140, %v4137
    %v4180 = vpack.c.b16 %v4141, %v4138
    %v4181 = vpack.c.b16 %v4142, %v4139
    %v4182 = vpack.c.b16 %v4146, %v4143
    %v4183 = vpack.c.b16 %v4147, %v4144
    %v4184 = vpack.c.b16 %v4148, %v4145
    %v4185 = vpack.c.b16 %v4152, %v4149
    %v4186 = vpack.c.b16 %v4153, %v4150
    %v4187 = vpack.c.b16 %v4154, %v4151
    %v4188 = vpack.c.b16 %v4158, %v4155
    %v4189 = vpack.c.b16 %v4159, %v4156
    %v4190 = vpack.c.b16 %v4160, %v4157
    %v4191 = vpack.c.b16 %v4164, %v4161
    %v4192 = vpack.c.b16 %v4165, %v4162
    %v4193 = vpack.c.b16 %v4166, %v4163
    %v4194 = vpack.c.b16 %v4170, %v4167
    %v4195 = vpack.c.b16 %v4171, %v4168
    %v4196 = vpack.c.b16 %v4172, %v4169
    %4221 = vmatpush.bf16.msra.mxu0 %v4194
    %4222 = vmatpush.bf16.msra.mxu0 %v4191
    %4223 = vmatpush.bf16.msra.mxu0 %v4188
    %4224 = vmatpush.bf16.msra.mxu0 %v4185
    %4225 = vmatpush.bf16.msra.mxu0 %v4182
    %4226 = vmatpush.bf16.msra.mxu0 %v4179
    %4227 = vmatpush.bf16.msra.mxu0 %v4176
    %4228 = vmatpush.bf16.msra.mxu0 %v4173
    %4229 = vmatmul.bf16.gmra.mxu0 %v3608
    %v4230 = vpop.f32.mrf.mxu0
    %v4231 = vadd.f32 0.0, %v4230
    %v4232 = vpop.f32.mrf.mxu0
    %4233 = vdwg.mxu0
    %4234 = vmatpush.bf16.msra.mxu0 %v4195
    %4235 = vmatpush.bf16.msra.mxu0 %v4192
    %4236 = vmatpush.bf16.msra.mxu0 %v4189
    %4237 = vmatpush.bf16.msra.mxu0 %v4186
    %4238 = vmatpush.bf16.msra.mxu0 %v4183
    %4239 = vmatpush.bf16.msra.mxu0 %v4180
    %4240 = vmatpush.bf16.msra.mxu0 %v4177
    %4241 = vmatpush.bf16.msra.mxu0 %v4174
    %4242 = vmatmul.bf16.gmra.mxu0 %v3608
    %v4243 = vpop.f32.mrf.mxu0
    %v4244 = vadd.f32 0.0, %v4243
    %v4245 = vpop.f32.mrf.mxu0
    %4246 = vdwg.mxu0
    %4247 = vmatpush.bf16.msra.mxu0 %v4196
    %4248 = vmatpush.bf16.msra.mxu0 %v4193
    %4249 = vmatpush.bf16.msra.mxu0 %v4190
    %4250 = vmatpush.bf16.msra.mxu0 %v4187
    %4251 = vmatpush.bf16.msra.mxu0 %v4184
    %4252 = vmatpush.bf16.msra.mxu0 %v4181
    %4253 = vmatpush.bf16.msra.mxu0 %v4178
    %4254 = vmatpush.bf16.msra.mxu0 %v4175
    %4255 = vmatmul.bf16.gmra.mxu0 %v3608
    %v4256 = vpop.f32.mrf.mxu0
    %v4257 = vadd.f32 0.0, %v4256
    %v4258 = vpop.f32.mrf.mxu0
    %4259 = vdwg.mxu0
    %v4260 = vadd.f32 %v4058, %v4231
    %v4261 = vxor.u32 %v4260, 2147483648
    %v4262 = vmul.f32 %v4261, 1.442695
    %v4263 = vpow.pop %v4262
    %v4264 = vadd.f32 %v4263, 1.0
    %v4265 = vrcp.pop %v4264
    %v4266 = vmul.f32 %v4264, %v4265
    %v4267 = vsub.f32 1.0, %v4266
    %v4268 = vmul.f32 %v4265, %v4267
    %v4269 = vadd.f32 %v4265, %v4268
    %vm4270 = vweird.f32 %v4264
    %vm4271 = vweird.f32 %v4265
    %vm4272 = vmor %vm4270, %vm4271
    %v4273 = vsel %vm4272, %v4265, %v4269
    %v4274 = vand.u32 2147483647, %v4264
    %vm4275 = vcmp.eq.f32.partialorder %v4274, 8.507059e+37
    %v4276 = vand.u32 %v4264, 2147483648
    %v4277 = vor.u32 1.1754944e-38, %v4276
    %v4278 = vsel %vm4275, %v4277, %v4273
    %v4279 = vmul.f32 1.0, %v4278
    %v4280 = vadd.f32 %v4059, %v4244
    %v4281 = vxor.u32 %v4280, 2147483648
    %v4282 = vmul.f32 %v4281, 1.442695
    %v4283 = vpow.pop %v4282
    %v4284 = vadd.f32 %v4283, 1.0
    %v4285 = vrcp.pop %v4284
    %v4286 = vmul.f32 %v4284, %v4285
    %v4287 = vsub.f32 1.0, %v4286
    %v4288 = vmul.f32 %v4285, %v4287
    %v4289 = vadd.f32 %v4285, %v4288
    %vm4290 = vweird.f32 %v4284
    %vm4291 = vweird.f32 %v4285
    %vm4292 = vmor %vm4290, %vm4291
    %v4293 = vsel %vm4292, %v4285, %v4289
    %v4294 = vand.u32 2147483647, %v4284
    %vm4295 = vcmp.eq.f32.partialorder %v4294, 8.507059e+37
    %v4296 = vand.u32 %v4284, 2147483648
    %v4297 = vor.u32 1.1754944e-38, %v4296
    %v4298 = vsel %vm4295, %v4297, %v4293
    %v4299 = vmul.f32 1.0, %v4298
    %v4300 = vadd.f32 %v4257, %v459
    %v4301 = vmul.f32 %v4279, %v4300
    %v4302 = vadd.f32 %v4060, %v4301
    %v4303 = vtanh.pop %v4302
    %v4304 = vsub.f32 %v3607, %v4303
    %v4305 = vmul.f32 %v4299, %v4304
    %v4306 = vadd.f32 %v4303, %v4305
    %v4307 = vpack.c.bf16 %v4306, %v4306
    %v4308 = vld [vmem:[#allocation11] sm:$0xff]
    %v4309 = vld [vmem:[#allocation11 + $0x8] sm:$0xf]
    %v4310 = vld [vmem:[#allocation11 + $0xc] sm:$0xff]
    %v4311 = vld [vmem:[#allocation11 + $0x14] sm:$0xf]
    %v4312 = vld [vmem:[#allocation11 + $0x18] sm:$0xff]
    %v4313 = vld [vmem:[#allocation11 + $0x20] sm:$0xf]
    %v4314 = vld [vmem:[#allocation11 + $0x24] sm:$0xff]
    %v4315 = vld [vmem:[#allocation11 + $0x2c] sm:$0xf]
    %v4316 = vld [vmem:[#allocation11 + $0x30] sm:$0xff]
    %v4317 = vld [vmem:[#allocation11 + $0x38] sm:$0xf]
    %v4318 = vld [vmem:[#allocation11 + $0x3c] sm:$0xff]
    %v4319 = vld [vmem:[#allocation11 + $0x44] sm:$0xf]
    %v4320 = vld [vmem:[#allocation11 + $0x48] sm:$0xff]
    %v4321 = vld [vmem:[#allocation11 + $0x50] sm:$0xf]
    %v4322 = vld [vmem:[#allocation11 + $0x54] sm:$0xff]
    %v4323 = vld [vmem:[#allocation11 + $0x5c] sm:$0xf]
    %v4324 = vld [vmem:[#allocation11 + $0x60] sm:$0xff]
    %v4325 = vld [vmem:[#allocation11 + $0x68] sm:$0xf]
    %v4326 = vld [vmem:[#allocation11 + $0x6c] sm:$0xff]
    %v4327 = vld [vmem:[#allocation11 + $0x74] sm:$0xf]
    %v4328 = vld [vmem:[#allocation11 + $0x78] sm:$0xff]
    %v4329 = vld [vmem:[#allocation11 + $0x80] sm:$0xf]
    %v4330 = vld [vmem:[#allocation11 + $0x84] sm:$0xff]
    %v4331 = vld [vmem:[#allocation11 + $0x8c] sm:$0xf]
    %v4332 = vld [vmem:[#allocation11 + $0x90] sm:$0xff]
    %v4333 = vld [vmem:[#allocation11 + $0x98] sm:$0xf]
    %v4334 = vld [vmem:[#allocation11 + $0x9c] sm:$0xff]
    %v4335 = vld [vmem:[#allocation11 + $0xa4] sm:$0xf]
    %v4336 = vld [vmem:[#allocation11 + $0xa8] sm:$0xff]
    %v4337 = vld [vmem:[#allocation11 + $0xb0] sm:$0xf]
    %v4338 = vld [vmem:[#allocation11 + $0xb4] sm:$0xff]
    %v4339 = vld [vmem:[#allocation11 + $0xbc] sm:$0xf]
    %v4372 = vunpack.c.l.b16 %v4308
    %v4373 = vunpack.c.h.b16 %v4308
    %v4374 = vunpack.c.l.b16 %v4309
    %v4375 = vunpack.c.l.b16 %v4310
    %v4376 = vunpack.c.h.b16 %v4310
    %v4377 = vunpack.c.l.b16 %v4311
    %v4378 = vunpack.c.l.b16 %v4312
    %v4379 = vunpack.c.h.b16 %v4312
    %v4380 = vunpack.c.l.b16 %v4313
    %v4381 = vunpack.c.l.b16 %v4314
    %v4382 = vunpack.c.h.b16 %v4314
    %v4383 = vunpack.c.l.b16 %v4315
    %v4384 = vunpack.c.l.b16 %v4316
    %v4385 = vunpack.c.h.b16 %v4316
    %v4386 = vunpack.c.l.b16 %v4317
    %v4387 = vunpack.c.l.b16 %v4318
    %v4388 = vunpack.c.h.b16 %v4318
    %v4389 = vunpack.c.l.b16 %v4319
    %v4390 = vunpack.c.l.b16 %v4320
    %v4391 = vunpack.c.h.b16 %v4320
    %v4392 = vunpack.c.l.b16 %v4321
    %v4393 = vunpack.c.l.b16 %v4322
    %v4394 = vunpack.c.h.b16 %v4322
    %v4395 = vunpack.c.l.b16 %v4323
    %v4396 = vunpack.c.l.b16 %v4324
    %v4397 = vunpack.c.h.b16 %v4324
    %v4398 = vunpack.c.l.b16 %v4325
    %v4399 = vunpack.c.l.b16 %v4326
    %v4400 = vunpack.c.h.b16 %v4326
    %v4401 = vunpack.c.l.b16 %v4327
    %v4402 = vunpack.c.l.b16 %v4328
    %v4403 = vunpack.c.h.b16 %v4328
    %v4404 = vunpack.c.l.b16 %v4329
    %v4405 = vunpack.c.l.b16 %v4330
    %v4406 = vunpack.c.h.b16 %v4330
    %v4407 = vunpack.c.l.b16 %v4331
    %v4408 = vunpack.c.l.b16 %v4332
    %v4409 = vunpack.c.h.b16 %v4332
    %v4410 = vunpack.c.l.b16 %v4333
    %v4411 = vunpack.c.l.b16 %v4334
    %v4412 = vunpack.c.h.b16 %v4334
    %v4413 = vunpack.c.l.b16 %v4335
    %v4414 = vunpack.c.l.b16 %v4336
    %v4415 = vunpack.c.h.b16 %v4336
    %v4416 = vunpack.c.l.b16 %v4337
    %v4417 = vunpack.c.l.b16 %v4338
    %v4418 = vunpack.c.h.b16 %v4338
    %v4419 = vunpack.c.l.b16 %v4339
    %v4420 = vpack.c.b16 %v4375, %v4372
    %v4421 = vpack.c.b16 %v4376, %v4373
    %v4422 = vpack.c.b16 %v4377, %v4374
    %v4423 = vpack.c.b16 %v4381, %v4378
    %v4424 = vpack.c.b16 %v4382, %v4379
    %v4425 = vpack.c.b16 %v4383, %v4380
    %v4426 = vpack.c.b16 %v4387, %v4384
    %v4427 = vpack.c.b16 %v4388, %v4385
    %v4428 = vpack.c.b16 %v4389, %v4386
    %v4429 = vpack.c.b16 %v4393, %v4390
    %v4430 = vpack.c.b16 %v4394, %v4391
    %v4431 = vpack.c.b16 %v4395, %v4392
    %v4432 = vpack.c.b16 %v4399, %v4396
    %v4433 = vpack.c.b16 %v4400, %v4397
    %v4434 = vpack.c.b16 %v4401, %v4398
    %v4435 = vpack.c.b16 %v4405, %v4402
    %v4436 = vpack.c.b16 %v4406, %v4403
    %v4437 = vpack.c.b16 %v4407, %v4404
    %v4438 = vpack.c.b16 %v4411, %v4408
    %v4439 = vpack.c.b16 %v4412, %v4409
    %v4440 = vpack.c.b16 %v4413, %v4410
    %v4441 = vpack.c.b16 %v4417, %v4414
    %v4442 = vpack.c.b16 %v4418, %v4415
    %v4443 = vpack.c.b16 %v4419, %v4416
    %4468 = vmatpush.bf16.msra.mxu0 %v4441
    %4469 = vmatpush.bf16.msra.mxu0 %v4438
    %4470 = vmatpush.bf16.msra.mxu0 %v4435
    %4471 = vmatpush.bf16.msra.mxu0 %v4432
    %4472 = vmatpush.bf16.msra.mxu0 %v4429
    %4473 = vmatpush.bf16.msra.mxu0 %v4426
    %4474 = vmatpush.bf16.msra.mxu0 %v4423
    %4475 = vmatpush.bf16.msra.mxu0 %v4420
    %4476 = vmatmul.bf16.gmra.mxu0 %v3608
    %v4477 = vpop.f32.mrf.mxu0
    %v4478 = vadd.f32 %v463, %v4477
    %v4479 = vpop.f32.mrf.mxu0
    %4480 = vdwg.mxu0
    %4481 = vmatpush.bf16.msra.mxu0 %v4442
    %4482 = vmatpush.bf16.msra.mxu0 %v4439
    %4483 = vmatpush.bf16.msra.mxu0 %v4436
    %4484 = vmatpush.bf16.msra.mxu0 %v4433
    %4485 = vmatpush.bf16.msra.mxu0 %v4430
    %4486 = vmatpush.bf16.msra.mxu0 %v4427
    %4487 = vmatpush.bf16.msra.mxu0 %v4424
    %4488 = vmatpush.bf16.msra.mxu0 %v4421
    %4489 = vmatmul.bf16.gmra.mxu0 %v3608
    %v4490 = vpop.f32.mrf.mxu0
    %v4491 = vadd.f32 %v464, %v4490
    %v4492 = vpop.f32.mrf.mxu0
    %4493 = vdwg.mxu0
    %4494 = vmatpush.bf16.msra.mxu0 %v4443
    %4495 = vmatpush.bf16.msra.mxu0 %v4440
    %4496 = vmatpush.bf16.msra.mxu0 %v4437
    %4497 = vmatpush.bf16.msra.mxu0 %v4434
    %4498 = vmatpush.bf16.msra.mxu0 %v4431
    %4499 = vmatpush.bf16.msra.mxu0 %v4428
    %4500 = vmatpush.bf16.msra.mxu0 %v4425
    %4501 = vmatpush.bf16.msra.mxu0 %v4422
    %4502 = vmatmul.bf16.gmra.mxu0 %v3608
    %v4503 = vpop.f32.mrf.mxu0
    %v4504 = vadd.f32 %v465, %v4503
    %v4505 = vpop.f32.mrf.mxu0
    %4506 = vdwg.mxu0
    %v4507 = vld [vmem:[#allocation12] sm:$0xff]
    %v4508 = vld [vmem:[#allocation12 + $0x8] sm:$0xf]
    %v4509 = vld [vmem:[#allocation12 + $0xc] sm:$0xff]
    %v4510 = vld [vmem:[#allocation12 + $0x14] sm:$0xf]
    %v4511 = vld [vmem:[#allocation12 + $0x18] sm:$0xff]
    %v4512 = vld [vmem:[#allocation12 + $0x20] sm:$0xf]
    %v4513 = vld [vmem:[#allocation12 + $0x24] sm:$0xff]
    %v4514 = vld [vmem:[#allocation12 + $0x2c] sm:$0xf]
    %v4515 = vld [vmem:[#allocation12 + $0x30] sm:$0xff]
    %v4516 = vld [vmem:[#allocation12 + $0x38] sm:$0xf]
    %v4517 = vld [vmem:[#allocation12 + $0x3c] sm:$0xff]
    %v4518 = vld [vmem:[#allocation12 + $0x44] sm:$0xf]
    %v4519 = vld [vmem:[#allocation12 + $0x48] sm:$0xff]
    %v4520 = vld [vmem:[#allocation12 + $0x50] sm:$0xf]
    %v4521 = vld [vmem:[#allocation12 + $0x54] sm:$0xff]
    %v4522 = vld [vmem:[#allocation12 + $0x5c] sm:$0xf]
    %v4523 = vld [vmem:[#allocation12 + $0x60] sm:$0xff]
    %v4524 = vld [vmem:[#allocation12 + $0x68] sm:$0xf]
    %v4525 = vld [vmem:[#allocation12 + $0x6c] sm:$0xff]
    %v4526 = vld [vmem:[#allocation12 + $0x74] sm:$0xf]
    %v4527 = vld [vmem:[#allocation12 + $0x78] sm:$0xff]
    %v4528 = vld [vmem:[#allocation12 + $0x80] sm:$0xf]
    %v4529 = vld [vmem:[#allocation12 + $0x84] sm:$0xff]
    %v4530 = vld [vmem:[#allocation12 + $0x8c] sm:$0xf]
    %v4531 = vld [vmem:[#allocation12 + $0x90] sm:$0xff]
    %v4532 = vld [vmem:[#allocation12 + $0x98] sm:$0xf]
    %v4533 = vld [vmem:[#allocation12 + $0x9c] sm:$0xff]
    %v4534 = vld [vmem:[#allocation12 + $0xa4] sm:$0xf]
    %v4535 = vld [vmem:[#allocation12 + $0xa8] sm:$0xff]
    %v4536 = vld [vmem:[#allocation12 + $0xb0] sm:$0xf]
    %v4537 = vld [vmem:[#allocation12 + $0xb4] sm:$0xff]
    %v4538 = vld [vmem:[#allocation12 + $0xbc] sm:$0xf]
    %v4571 = vunpack.c.l.b16 %v4507
    %v4572 = vunpack.c.h.b16 %v4507
    %v4573 = vunpack.c.l.b16 %v4508
    %v4574 = vunpack.c.l.b16 %v4509
    %v4575 = vunpack.c.h.b16 %v4509
    %v4576 = vunpack.c.l.b16 %v4510
    %v4577 = vunpack.c.l.b16 %v4511
    %v4578 = vunpack.c.h.b16 %v4511
    %v4579 = vunpack.c.l.b16 %v4512
    %v4580 = vunpack.c.l.b16 %v4513
    %v4581 = vunpack.c.h.b16 %v4513
    %v4582 = vunpack.c.l.b16 %v4514
    %v4583 = vunpack.c.l.b16 %v4515
    %v4584 = vunpack.c.h.b16 %v4515
    %v4585 = vunpack.c.l.b16 %v4516
    %v4586 = vunpack.c.l.b16 %v4517
    %v4587 = vunpack.c.h.b16 %v4517
    %v4588 = vunpack.c.l.b16 %v4518
    %v4589 = vunpack.c.l.b16 %v4519
    %v4590 = vunpack.c.h.b16 %v4519
    %v4591 = vunpack.c.l.b16 %v4520
    %v4592 = vunpack.c.l.b16 %v4521
    %v4593 = vunpack.c.h.b16 %v4521
    %v4594 = vunpack.c.l.b16 %v4522
    %v4595 = vunpack.c.l.b16 %v4523
    %v4596 = vunpack.c.h.b16 %v4523
    %v4597 = vunpack.c.l.b16 %v4524
    %v4598 = vunpack.c.l.b16 %v4525
    %v4599 = vunpack.c.h.b16 %v4525
    %v4600 = vunpack.c.l.b16 %v4526
    %v4601 = vunpack.c.l.b16 %v4527
    %v4602 = vunpack.c.h.b16 %v4527
    %v4603 = vunpack.c.l.b16 %v4528
    %v4604 = vunpack.c.l.b16 %v4529
    %v4605 = vunpack.c.h.b16 %v4529
    %v4606 = vunpack.c.l.b16 %v4530
    %v4607 = vunpack.c.l.b16 %v4531
    %v4608 = vunpack.c.h.b16 %v4531
    %v4609 = vunpack.c.l.b16 %v4532
    %v4610 = vunpack.c.l.b16 %v4533
    %v4611 = vunpack.c.h.b16 %v4533
    %v4612 = vunpack.c.l.b16 %v4534
    %v4613 = vunpack.c.l.b16 %v4535
    %v4614 = vunpack.c.h.b16 %v4535
    %v4615 = vunpack.c.l.b16 %v4536
    %v4616 = vunpack.c.l.b16 %v4537
    %v4617 = vunpack.c.h.b16 %v4537
    %v4618 = vunpack.c.l.b16 %v4538
    %v4619 = vpack.c.b16 %v4574, %v4571
    %v4620 = vpack.c.b16 %v4575, %v4572
    %v4621 = vpack.c.b16 %v4576, %v4573
    %v4622 = vpack.c.b16 %v4580, %v4577
    %v4623 = vpack.c.b16 %v4581, %v4578
    %v4624 = vpack.c.b16 %v4582, %v4579
    %v4625 = vpack.c.b16 %v4586, %v4583
    %v4626 = vpack.c.b16 %v4587, %v4584
    %v4627 = vpack.c.b16 %v4588, %v4585
    %v4628 = vpack.c.b16 %v4592, %v4589
    %v4629 = vpack.c.b16 %v4593, %v4590
    %v4630 = vpack.c.b16 %v4594, %v4591
    %v4631 = vpack.c.b16 %v4598, %v4595
    %v4632 = vpack.c.b16 %v4599, %v4596
    %v4633 = vpack.c.b16 %v4600, %v4597
    %v4634 = vpack.c.b16 %v4604, %v4601
    %v4635 = vpack.c.b16 %v4605, %v4602
    %v4636 = vpack.c.b16 %v4606, %v4603
    %v4637 = vpack.c.b16 %v4610, %v4607
    %v4638 = vpack.c.b16 %v4611, %v4608
    %v4639 = vpack.c.b16 %v4612, %v4609
    %v4640 = vpack.c.b16 %v4616, %v4613
    %v4641 = vpack.c.b16 %v4617, %v4614
    %v4642 = vpack.c.b16 %v4618, %v4615
    %4667 = vmatpush.bf16.msra.mxu0 %v4640
    %4668 = vmatpush.bf16.msra.mxu0 %v4637
    %4669 = vmatpush.bf16.msra.mxu0 %v4634
    %4670 = vmatpush.bf16.msra.mxu0 %v4631
    %4671 = vmatpush.bf16.msra.mxu0 %v4628
    %4672 = vmatpush.bf16.msra.mxu0 %v4625
    %4673 = vmatpush.bf16.msra.mxu0 %v4622
    %4674 = vmatpush.bf16.msra.mxu0 %v4619
    %4675 = vmatmul.bf16.gmra.mxu0 %v4054
    %v4676 = vpop.f32.mrf.mxu0
    %v4677 = vadd.f32 0.0, %v4676
    %v4678 = vpop.f32.mrf.mxu0
    %4679 = vdwg.mxu0
    %4680 = vmatpush.bf16.msra.mxu0 %v4641
    %4681 = vmatpush.bf16.msra.mxu0 %v4638
    %4682 = vmatpush.bf16.msra.mxu0 %v4635
    %4683 = vmatpush.bf16.msra.mxu0 %v4632
    %4684 = vmatpush.bf16.msra.mxu0 %v4629
    %4685 = vmatpush.bf16.msra.mxu0 %v4626
    %4686 = vmatpush.bf16.msra.mxu0 %v4623
    %4687 = vmatpush.bf16.msra.mxu0 %v4620
    %4688 = vmatmul.bf16.gmra.mxu0 %v4054
    %v4689 = vpop.f32.mrf.mxu0
    %v4690 = vadd.f32 0.0, %v4689
    %v4691 = vpop.f32.mrf.mxu0
    %4692 = vdwg.mxu0
    %4693 = vmatpush.bf16.msra.mxu0 %v4642
    %4694 = vmatpush.bf16.msra.mxu0 %v4639
    %4695 = vmatpush.bf16.msra.mxu0 %v4636
    %4696 = vmatpush.bf16.msra.mxu0 %v4633
    %4697 = vmatpush.bf16.msra.mxu0 %v4630
    %4698 = vmatpush.bf16.msra.mxu0 %v4627
    %4699 = vmatpush.bf16.msra.mxu0 %v4624
    %4700 = vmatpush.bf16.msra.mxu0 %v4621
    %4701 = vmatmul.bf16.gmra.mxu0 %v4054
    %v4702 = vpop.f32.mrf.mxu0
    %v4703 = vadd.f32 0.0, %v4702
    %v4704 = vpop.f32.mrf.mxu0
    %4705 = vdwg.mxu0
    %v4706 = vadd.f32 %v4478, %v4677
    %v4707 = vxor.u32 %v4706, 2147483648
    %v4708 = vmul.f32 %v4707, 1.442695
    %v4709 = vpow.pop %v4708
    %v4710 = vadd.f32 %v4709, 1.0
    %v4711 = vrcp.pop %v4710
    %v4712 = vmul.f32 %v4710, %v4711
    %v4713 = vsub.f32 1.0, %v4712
    %v4714 = vmul.f32 %v4711, %v4713
    %v4715 = vadd.f32 %v4711, %v4714
    %vm4716 = vweird.f32 %v4710
    %vm4717 = vweird.f32 %v4711
    %vm4718 = vmor %vm4716, %vm4717
    %v4719 = vsel %vm4718, %v4711, %v4715
    %v4720 = vand.u32 2147483647, %v4710
    %vm4721 = vcmp.eq.f32.partialorder %v4720, 8.507059e+37
    %v4722 = vand.u32 %v4710, 2147483648
    %v4723 = vor.u32 1.1754944e-38, %v4722
    %v4724 = vsel %vm4721, %v4723, %v4719
    %v4725 = vmul.f32 1.0, %v4724
    %v4726 = vadd.f32 %v4491, %v4690
    %v4727 = vxor.u32 %v4726, 2147483648
    %v4728 = vmul.f32 %v4727, 1.442695
    %v4729 = vpow.pop %v4728
    %v4730 = vadd.f32 %v4729, 1.0
    %v4731 = vrcp.pop %v4730
    %v4732 = vmul.f32 %v4730, %v4731
    %v4733 = vsub.f32 1.0, %v4732
    %v4734 = vmul.f32 %v4731, %v4733
    %v4735 = vadd.f32 %v4731, %v4734
    %vm4736 = vweird.f32 %v4730
    %vm4737 = vweird.f32 %v4731
    %vm4738 = vmor %vm4736, %vm4737
    %v4739 = vsel %vm4738, %v4731, %v4735
    %v4740 = vand.u32 2147483647, %v4730
    %vm4741 = vcmp.eq.f32.partialorder %v4740, 8.507059e+37
    %v4742 = vand.u32 %v4730, 2147483648
    %v4743 = vor.u32 1.1754944e-38, %v4742
    %v4744 = vsel %vm4741, %v4743, %v4739
    %v4745 = vmul.f32 1.0, %v4744
    %v4746 = vadd.f32 %v4703, %v471
    %v4747 = vmul.f32 %v4725, %v4746
    %v4748 = vadd.f32 %v4504, %v4747
    %v4749 = vtanh.pop %v4748
    %v4750 = vsub.f32 %v4053, %v4749
    %v4751 = vmul.f32 %v4745, %v4750
    %v4752 = vadd.f32 %v4749, %v4751
    %v4753 = vpack.c.bf16 %v4752, %v4752
    %s4754 = scalar_lea.vmem [#allocation14], 40
    %4755 = vst [vmem:[%s4754] sm:$0xff] %v4752
    %s4756 = scalar_lea.vmem [#allocation2], 168
    %v4757 = vld [vmem:[%s4756] sm:$0xff]
    %v4758 = vld [vmem:[%s4756 + $0x8] sm:$0xff]
    %v4759 = vld [vmem:[%s4756 + $0x10] sm:$0xff]
    %v4760 = vld [vmem:[#allocation8] sm:$0xff]
    %v4761 = vld [vmem:[#allocation8 + $0x8] sm:$0xf]
    %v4762 = vld [vmem:[#allocation8 + $0xc] sm:$0xff]
    %v4763 = vld [vmem:[#allocation8 + $0x14] sm:$0xf]
    %v4764 = vld [vmem:[#allocation8 + $0x18] sm:$0xff]
    %v4765 = vld [vmem:[#allocation8 + $0x20] sm:$0xf]
    %v4766 = vld [vmem:[#allocation8 + $0x24] sm:$0xff]
    %v4767 = vld [vmem:[#allocation8 + $0x2c] sm:$0xf]
    %v4768 = vld [vmem:[#allocation8 + $0x30] sm:$0xff]
    %v4769 = vld [vmem:[#allocation8 + $0x38] sm:$0xf]
    %v4770 = vld [vmem:[#allocation8 + $0x3c] sm:$0xff]
    %v4771 = vld [vmem:[#allocation8 + $0x44] sm:$0xf]
    %v4772 = vld [vmem:[#allocation8 + $0x48] sm:$0xff]
    %v4773 = vld [vmem:[#allocation8 + $0x50] sm:$0xf]
    %v4774 = vld [vmem:[#allocation8 + $0x54] sm:$0xff]
    %v4775 = vld [vmem:[#allocation8 + $0x5c] sm:$0xf]
    %v4776 = vld [vmem:[#allocation8 + $0x60] sm:$0xff]
    %v4777 = vld [vmem:[#allocation8 + $0x68] sm:$0xf]
    %v4778 = vld [vmem:[#allocation8 + $0x6c] sm:$0xff]
    %v4779 = vld [vmem:[#allocation8 + $0x74] sm:$0xf]
    %v4780 = vld [vmem:[#allocation8 + $0x78] sm:$0xff]
    %v4781 = vld [vmem:[#allocation8 + $0x80] sm:$0xf]
    %v4782 = vld [vmem:[#allocation8 + $0x84] sm:$0xff]
    %v4783 = vld [vmem:[#allocation8 + $0x8c] sm:$0xf]
    %v4784 = vld [vmem:[#allocation8 + $0x90] sm:$0xff]
    %v4785 = vld [vmem:[#allocation8 + $0x98] sm:$0xf]
    %v4786 = vld [vmem:[#allocation8 + $0x9c] sm:$0xff]
    %v4787 = vld [vmem:[#allocation8 + $0xa4] sm:$0xf]
    %v4788 = vld [vmem:[#allocation8 + $0xa8] sm:$0xff]
    %v4789 = vld [vmem:[#allocation8 + $0xb0] sm:$0xf]
    %v4790 = vld [vmem:[#allocation8 + $0xb4] sm:$0xff]
    %v4791 = vld [vmem:[#allocation8 + $0xbc] sm:$0xf]
    %v4824 = vunpack.c.l.b16 %v4760
    %v4825 = vunpack.c.h.b16 %v4760
    %v4826 = vunpack.c.l.b16 %v4761
    %v4827 = vunpack.c.l.b16 %v4762
    %v4828 = vunpack.c.h.b16 %v4762
    %v4829 = vunpack.c.l.b16 %v4763
    %v4830 = vunpack.c.l.b16 %v4764
    %v4831 = vunpack.c.h.b16 %v4764
    %v4832 = vunpack.c.l.b16 %v4765
    %v4833 = vunpack.c.l.b16 %v4766
    %v4834 = vunpack.c.h.b16 %v4766
    %v4835 = vunpack.c.l.b16 %v4767
    %v4836 = vunpack.c.l.b16 %v4768
    %v4837 = vunpack.c.h.b16 %v4768
    %v4838 = vunpack.c.l.b16 %v4769
    %v4839 = vunpack.c.l.b16 %v4770
    %v4840 = vunpack.c.h.b16 %v4770
    %v4841 = vunpack.c.l.b16 %v4771
    %v4842 = vunpack.c.l.b16 %v4772
    %v4843 = vunpack.c.h.b16 %v4772
    %v4844 = vunpack.c.l.b16 %v4773
    %v4845 = vunpack.c.l.b16 %v4774
    %v4846 = vunpack.c.h.b16 %v4774
    %v4847 = vunpack.c.l.b16 %v4775
    %v4848 = vunpack.c.l.b16 %v4776
    %v4849 = vunpack.c.h.b16 %v4776
    %v4850 = vunpack.c.l.b16 %v4777
    %v4851 = vunpack.c.l.b16 %v4778
    %v4852 = vunpack.c.h.b16 %v4778
    %v4853 = vunpack.c.l.b16 %v4779
    %v4854 = vunpack.c.l.b16 %v4780
    %v4855 = vunpack.c.h.b16 %v4780
    %v4856 = vunpack.c.l.b16 %v4781
    %v4857 = vunpack.c.l.b16 %v4782
    %v4858 = vunpack.c.h.b16 %v4782
    %v4859 = vunpack.c.l.b16 %v4783
    %v4860 = vunpack.c.l.b16 %v4784
    %v4861 = vunpack.c.h.b16 %v4784
    %v4862 = vunpack.c.l.b16 %v4785
    %v4863 = vunpack.c.l.b16 %v4786
    %v4864 = vunpack.c.h.b16 %v4786
    %v4865 = vunpack.c.l.b16 %v4787
    %v4866 = vunpack.c.l.b16 %v4788
    %v4867 = vunpack.c.h.b16 %v4788
    %v4868 = vunpack.c.l.b16 %v4789
    %v4869 = vunpack.c.l.b16 %v4790
    %v4870 = vunpack.c.h.b16 %v4790
    %v4871 = vunpack.c.l.b16 %v4791
    %v4872 = vpack.c.b16 %v4827, %v4824
    %v4873 = vpack.c.b16 %v4828, %v4825
    %v4874 = vpack.c.b16 %v4829, %v4826
    %v4875 = vpack.c.b16 %v4833, %v4830
    %v4876 = vpack.c.b16 %v4834, %v4831
    %v4877 = vpack.c.b16 %v4835, %v4832
    %v4878 = vpack.c.b16 %v4839, %v4836
    %v4879 = vpack.c.b16 %v4840, %v4837
    %v4880 = vpack.c.b16 %v4841, %v4838
    %v4881 = vpack.c.b16 %v4845, %v4842
    %v4882 = vpack.c.b16 %v4846, %v4843
    %v4883 = vpack.c.b16 %v4847, %v4844
    %v4884 = vpack.c.b16 %v4851, %v4848
    %v4885 = vpack.c.b16 %v4852, %v4849
    %v4886 = vpack.c.b16 %v4853, %v4850
    %v4887 = vpack.c.b16 %v4857, %v4854
    %v4888 = vpack.c.b16 %v4858, %v4855
    %v4889 = vpack.c.b16 %v4859, %v4856
    %v4890 = vpack.c.b16 %v4863, %v4860
    %v4891 = vpack.c.b16 %v4864, %v4861
    %v4892 = vpack.c.b16 %v4865, %v4862
    %v4893 = vpack.c.b16 %v4869, %v4866
    %v4894 = vpack.c.b16 %v4870, %v4867
    %v4895 = vpack.c.b16 %v4871, %v4868
    %4920 = vmatpush.bf16.msra.mxu0 %v4893
    %4921 = vmatpush.bf16.msra.mxu0 %v4890
    %4922 = vmatpush.bf16.msra.mxu0 %v4887
    %4923 = vmatpush.bf16.msra.mxu0 %v4884
    %4924 = vmatpush.bf16.msra.mxu0 %v4881
    %4925 = vmatpush.bf16.msra.mxu0 %v4878
    %4926 = vmatpush.bf16.msra.mxu0 %v4875
    %4927 = vmatpush.bf16.msra.mxu0 %v4872
    %4928 = vmatmul.bf16.gmra.mxu0 %v4307
    %v4929 = vpop.f32.mrf.mxu0
    %v4930 = vadd.f32 0.0, %v4929
    %v4931 = vpop.f32.mrf.mxu0
    %4932 = vdwg.mxu0
    %4933 = vmatpush.bf16.msra.mxu0 %v4894
    %4934 = vmatpush.bf16.msra.mxu0 %v4891
    %4935 = vmatpush.bf16.msra.mxu0 %v4888
    %4936 = vmatpush.bf16.msra.mxu0 %v4885
    %4937 = vmatpush.bf16.msra.mxu0 %v4882
    %4938 = vmatpush.bf16.msra.mxu0 %v4879
    %4939 = vmatpush.bf16.msra.mxu0 %v4876
    %4940 = vmatpush.bf16.msra.mxu0 %v4873
    %4941 = vmatmul.bf16.gmra.mxu0 %v4307
    %v4942 = vpop.f32.mrf.mxu0
    %v4943 = vadd.f32 0.0, %v4942
    %v4944 = vpop.f32.mrf.mxu0
    %4945 = vdwg.mxu0
    %4946 = vmatpush.bf16.msra.mxu0 %v4895
    %4947 = vmatpush.bf16.msra.mxu0 %v4892
    %4948 = vmatpush.bf16.msra.mxu0 %v4889
    %4949 = vmatpush.bf16.msra.mxu0 %v4886
    %4950 = vmatpush.bf16.msra.mxu0 %v4883
    %4951 = vmatpush.bf16.msra.mxu0 %v4880
    %4952 = vmatpush.bf16.msra.mxu0 %v4877
    %4953 = vmatpush.bf16.msra.mxu0 %v4874
    %4954 = vmatmul.bf16.gmra.mxu0 %v4307
    %v4955 = vpop.f32.mrf.mxu0
    %v4956 = vadd.f32 0.0, %v4955
    %v4957 = vpop.f32.mrf.mxu0
    %4958 = vdwg.mxu0
    %v4959 = vadd.f32 %v4757, %v4930
    %v4960 = vxor.u32 %v4959, 2147483648
    %v4961 = vmul.f32 %v4960, 1.442695
    %v4962 = vpow.pop %v4961
    %v4963 = vadd.f32 %v4962, 1.0
    %v4964 = vrcp.pop %v4963
    %v4965 = vmul.f32 %v4963, %v4964
    %v4966 = vsub.f32 1.0, %v4965
    %v4967 = vmul.f32 %v4964, %v4966
    %v4968 = vadd.f32 %v4964, %v4967
    %vm4969 = vweird.f32 %v4963
    %vm4970 = vweird.f32 %v4964
    %vm4971 = vmor %vm4969, %vm4970
    %v4972 = vsel %vm4971, %v4964, %v4968
    %v4973 = vand.u32 2147483647, %v4963
    %vm4974 = vcmp.eq.f32.partialorder %v4973, 8.507059e+37
    %v4975 = vand.u32 %v4963, 2147483648
    %v4976 = vor.u32 1.1754944e-38, %v4975
    %v4977 = vsel %vm4974, %v4976, %v4972
    %v4978 = vmul.f32 1.0, %v4977
    %v4979 = vadd.f32 %v4758, %v4943
    %v4980 = vxor.u32 %v4979, 2147483648
    %v4981 = vmul.f32 %v4980, 1.442695
    %v4982 = vpow.pop %v4981
    %v4983 = vadd.f32 %v4982, 1.0
    %v4984 = vrcp.pop %v4983
    %v4985 = vmul.f32 %v4983, %v4984
    %v4986 = vsub.f32 1.0, %v4985
    %v4987 = vmul.f32 %v4984, %v4986
    %v4988 = vadd.f32 %v4984, %v4987
    %vm4989 = vweird.f32 %v4983
    %vm4990 = vweird.f32 %v4984
    %vm4991 = vmor %vm4989, %vm4990
    %v4992 = vsel %vm4991, %v4984, %v4988
    %v4993 = vand.u32 2147483647, %v4983
    %vm4994 = vcmp.eq.f32.partialorder %v4993, 8.507059e+37
    %v4995 = vand.u32 %v4983, 2147483648
    %v4996 = vor.u32 1.1754944e-38, %v4995
    %v4997 = vsel %vm4994, %v4996, %v4992
    %v4998 = vmul.f32 1.0, %v4997
    %v4999 = vadd.f32 %v4956, %v459
    %v5000 = vmul.f32 %v4978, %v4999
    %v5001 = vadd.f32 %v4759, %v5000
    %v5002 = vtanh.pop %v5001
    %v5003 = vsub.f32 %v4306, %v5002
    %v5004 = vmul.f32 %v4998, %v5003
    %v5005 = vadd.f32 %v5002, %v5004
    %v5006 = vpack.c.bf16 %v5005, %v5005
    %v5007 = vld [vmem:[#allocation11] sm:$0xff]
    %v5008 = vld [vmem:[#allocation11 + $0x8] sm:$0xf]
    %v5009 = vld [vmem:[#allocation11 + $0xc] sm:$0xff]
    %v5010 = vld [vmem:[#allocation11 + $0x14] sm:$0xf]
    %v5011 = vld [vmem:[#allocation11 + $0x18] sm:$0xff]
    %v5012 = vld [vmem:[#allocation11 + $0x20] sm:$0xf]
    %v5013 = vld [vmem:[#allocation11 + $0x24] sm:$0xff]
    %v5014 = vld [vmem:[#allocation11 + $0x2c] sm:$0xf]
    %v5015 = vld [vmem:[#allocation11 + $0x30] sm:$0xff]
    %v5016 = vld [vmem:[#allocation11 + $0x38] sm:$0xf]
    %v5017 = vld [vmem:[#allocation11 + $0x3c] sm:$0xff]
    %v5018 = vld [vmem:[#allocation11 + $0x44] sm:$0xf]
    %v5019 = vld [vmem:[#allocation11 + $0x48] sm:$0xff]
    %v5020 = vld [vmem:[#allocation11 + $0x50] sm:$0xf]
    %v5021 = vld [vmem:[#allocation11 + $0x54] sm:$0xff]
    %v5022 = vld [vmem:[#allocation11 + $0x5c] sm:$0xf]
    %v5023 = vld [vmem:[#allocation11 + $0x60] sm:$0xff]
    %v5024 = vld [vmem:[#allocation11 + $0x68] sm:$0xf]
    %v5025 = vld [vmem:[#allocation11 + $0x6c] sm:$0xff]
    %v5026 = vld [vmem:[#allocation11 + $0x74] sm:$0xf]
    %v5027 = vld [vmem:[#allocation11 + $0x78] sm:$0xff]
    %v5028 = vld [vmem:[#allocation11 + $0x80] sm:$0xf]
    %v5029 = vld [vmem:[#allocation11 + $0x84] sm:$0xff]
    %v5030 = vld [vmem:[#allocation11 + $0x8c] sm:$0xf]
    %v5031 = vld [vmem:[#allocation11 + $0x90] sm:$0xff]
    %v5032 = vld [vmem:[#allocation11 + $0x98] sm:$0xf]
    %v5033 = vld [vmem:[#allocation11 + $0x9c] sm:$0xff]
    %v5034 = vld [vmem:[#allocation11 + $0xa4] sm:$0xf]
    %v5035 = vld [vmem:[#allocation11 + $0xa8] sm:$0xff]
    %v5036 = vld [vmem:[#allocation11 + $0xb0] sm:$0xf]
    %v5037 = vld [vmem:[#allocation11 + $0xb4] sm:$0xff]
    %v5038 = vld [vmem:[#allocation11 + $0xbc] sm:$0xf]
    %v5071 = vunpack.c.l.b16 %v5007
    %v5072 = vunpack.c.h.b16 %v5007
    %v5073 = vunpack.c.l.b16 %v5008
    %v5074 = vunpack.c.l.b16 %v5009
    %v5075 = vunpack.c.h.b16 %v5009
    %v5076 = vunpack.c.l.b16 %v5010
    %v5077 = vunpack.c.l.b16 %v5011
    %v5078 = vunpack.c.h.b16 %v5011
    %v5079 = vunpack.c.l.b16 %v5012
    %v5080 = vunpack.c.l.b16 %v5013
    %v5081 = vunpack.c.h.b16 %v5013
    %v5082 = vunpack.c.l.b16 %v5014
    %v5083 = vunpack.c.l.b16 %v5015
    %v5084 = vunpack.c.h.b16 %v5015
    %v5085 = vunpack.c.l.b16 %v5016
    %v5086 = vunpack.c.l.b16 %v5017
    %v5087 = vunpack.c.h.b16 %v5017
    %v5088 = vunpack.c.l.b16 %v5018
    %v5089 = vunpack.c.l.b16 %v5019
    %v5090 = vunpack.c.h.b16 %v5019
    %v5091 = vunpack.c.l.b16 %v5020
    %v5092 = vunpack.c.l.b16 %v5021
    %v5093 = vunpack.c.h.b16 %v5021
    %v5094 = vunpack.c.l.b16 %v5022
    %v5095 = vunpack.c.l.b16 %v5023
    %v5096 = vunpack.c.h.b16 %v5023
    %v5097 = vunpack.c.l.b16 %v5024
    %v5098 = vunpack.c.l.b16 %v5025
    %v5099 = vunpack.c.h.b16 %v5025
    %v5100 = vunpack.c.l.b16 %v5026
    %v5101 = vunpack.c.l.b16 %v5027
    %v5102 = vunpack.c.h.b16 %v5027
    %v5103 = vunpack.c.l.b16 %v5028
    %v5104 = vunpack.c.l.b16 %v5029
    %v5105 = vunpack.c.h.b16 %v5029
    %v5106 = vunpack.c.l.b16 %v5030
    %v5107 = vunpack.c.l.b16 %v5031
    %v5108 = vunpack.c.h.b16 %v5031
    %v5109 = vunpack.c.l.b16 %v5032
    %v5110 = vunpack.c.l.b16 %v5033
    %v5111 = vunpack.c.h.b16 %v5033
    %v5112 = vunpack.c.l.b16 %v5034
    %v5113 = vunpack.c.l.b16 %v5035
    %v5114 = vunpack.c.h.b16 %v5035
    %v5115 = vunpack.c.l.b16 %v5036
    %v5116 = vunpack.c.l.b16 %v5037
    %v5117 = vunpack.c.h.b16 %v5037
    %v5118 = vunpack.c.l.b16 %v5038
    %v5119 = vpack.c.b16 %v5074, %v5071
    %v5120 = vpack.c.b16 %v5075, %v5072
    %v5121 = vpack.c.b16 %v5076, %v5073
    %v5122 = vpack.c.b16 %v5080, %v5077
    %v5123 = vpack.c.b16 %v5081, %v5078
    %v5124 = vpack.c.b16 %v5082, %v5079
    %v5125 = vpack.c.b16 %v5086, %v5083
    %v5126 = vpack.c.b16 %v5087, %v5084
    %v5127 = vpack.c.b16 %v5088, %v5085
    %v5128 = vpack.c.b16 %v5092, %v5089
    %v5129 = vpack.c.b16 %v5093, %v5090
    %v5130 = vpack.c.b16 %v5094, %v5091
    %v5131 = vpack.c.b16 %v5098, %v5095
    %v5132 = vpack.c.b16 %v5099, %v5096
    %v5133 = vpack.c.b16 %v5100, %v5097
    %v5134 = vpack.c.b16 %v5104, %v5101
    %v5135 = vpack.c.b16 %v5105, %v5102
    %v5136 = vpack.c.b16 %v5106, %v5103
    %v5137 = vpack.c.b16 %v5110, %v5107
    %v5138 = vpack.c.b16 %v5111, %v5108
    %v5139 = vpack.c.b16 %v5112, %v5109
    %v5140 = vpack.c.b16 %v5116, %v5113
    %v5141 = vpack.c.b16 %v5117, %v5114
    %v5142 = vpack.c.b16 %v5118, %v5115
    %5167 = vmatpush.bf16.msra.mxu0 %v5140
    %5168 = vmatpush.bf16.msra.mxu0 %v5137
    %5169 = vmatpush.bf16.msra.mxu0 %v5134
    %5170 = vmatpush.bf16.msra.mxu0 %v5131
    %5171 = vmatpush.bf16.msra.mxu0 %v5128
    %5172 = vmatpush.bf16.msra.mxu0 %v5125
    %5173 = vmatpush.bf16.msra.mxu0 %v5122
    %5174 = vmatpush.bf16.msra.mxu0 %v5119
    %5175 = vmatmul.bf16.gmra.mxu0 %v4307
    %v5176 = vpop.f32.mrf.mxu0
    %v5177 = vadd.f32 %v463, %v5176
    %v5178 = vpop.f32.mrf.mxu0
    %5179 = vdwg.mxu0
    %5180 = vmatpush.bf16.msra.mxu0 %v5141
    %5181 = vmatpush.bf16.msra.mxu0 %v5138
    %5182 = vmatpush.bf16.msra.mxu0 %v5135
    %5183 = vmatpush.bf16.msra.mxu0 %v5132
    %5184 = vmatpush.bf16.msra.mxu0 %v5129
    %5185 = vmatpush.bf16.msra.mxu0 %v5126
    %5186 = vmatpush.bf16.msra.mxu0 %v5123
    %5187 = vmatpush.bf16.msra.mxu0 %v5120
    %5188 = vmatmul.bf16.gmra.mxu0 %v4307
    %v5189 = vpop.f32.mrf.mxu0
    %v5190 = vadd.f32 %v464, %v5189
    %v5191 = vpop.f32.mrf.mxu0
    %5192 = vdwg.mxu0
    %5193 = vmatpush.bf16.msra.mxu0 %v5142
    %5194 = vmatpush.bf16.msra.mxu0 %v5139
    %5195 = vmatpush.bf16.msra.mxu0 %v5136
    %5196 = vmatpush.bf16.msra.mxu0 %v5133
    %5197 = vmatpush.bf16.msra.mxu0 %v5130
    %5198 = vmatpush.bf16.msra.mxu0 %v5127
    %5199 = vmatpush.bf16.msra.mxu0 %v5124
    %5200 = vmatpush.bf16.msra.mxu0 %v5121
    %5201 = vmatmul.bf16.gmra.mxu0 %v4307
    %v5202 = vpop.f32.mrf.mxu0
    %v5203 = vadd.f32 %v465, %v5202
    %v5204 = vpop.f32.mrf.mxu0
    %5205 = vdwg.mxu0
    %v5206 = vld [vmem:[#allocation12] sm:$0xff]
    %v5207 = vld [vmem:[#allocation12 + $0x8] sm:$0xf]
    %v5208 = vld [vmem:[#allocation12 + $0xc] sm:$0xff]
    %v5209 = vld [vmem:[#allocation12 + $0x14] sm:$0xf]
    %v5210 = vld [vmem:[#allocation12 + $0x18] sm:$0xff]
    %v5211 = vld [vmem:[#allocation12 + $0x20] sm:$0xf]
    %v5212 = vld [vmem:[#allocation12 + $0x24] sm:$0xff]
    %v5213 = vld [vmem:[#allocation12 + $0x2c] sm:$0xf]
    %v5214 = vld [vmem:[#allocation12 + $0x30] sm:$0xff]
    %v5215 = vld [vmem:[#allocation12 + $0x38] sm:$0xf]
    %v5216 = vld [vmem:[#allocation12 + $0x3c] sm:$0xff]
    %v5217 = vld [vmem:[#allocation12 + $0x44] sm:$0xf]
    %v5218 = vld [vmem:[#allocation12 + $0x48] sm:$0xff]
    %v5219 = vld [vmem:[#allocation12 + $0x50] sm:$0xf]
    %v5220 = vld [vmem:[#allocation12 + $0x54] sm:$0xff]
    %v5221 = vld [vmem:[#allocation12 + $0x5c] sm:$0xf]
    %v5222 = vld [vmem:[#allocation12 + $0x60] sm:$0xff]
    %v5223 = vld [vmem:[#allocation12 + $0x68] sm:$0xf]
    %v5224 = vld [vmem:[#allocation12 + $0x6c] sm:$0xff]
    %v5225 = vld [vmem:[#allocation12 + $0x74] sm:$0xf]
    %v5226 = vld [vmem:[#allocation12 + $0x78] sm:$0xff]
    %v5227 = vld [vmem:[#allocation12 + $0x80] sm:$0xf]
    %v5228 = vld [vmem:[#allocation12 + $0x84] sm:$0xff]
    %v5229 = vld [vmem:[#allocation12 + $0x8c] sm:$0xf]
    %v5230 = vld [vmem:[#allocation12 + $0x90] sm:$0xff]
    %v5231 = vld [vmem:[#allocation12 + $0x98] sm:$0xf]
    %v5232 = vld [vmem:[#allocation12 + $0x9c] sm:$0xff]
    %v5233 = vld [vmem:[#allocation12 + $0xa4] sm:$0xf]
    %v5234 = vld [vmem:[#allocation12 + $0xa8] sm:$0xff]
    %v5235 = vld [vmem:[#allocation12 + $0xb0] sm:$0xf]
    %v5236 = vld [vmem:[#allocation12 + $0xb4] sm:$0xff]
    %v5237 = vld [vmem:[#allocation12 + $0xbc] sm:$0xf]
    %v5270 = vunpack.c.l.b16 %v5206
    %v5271 = vunpack.c.h.b16 %v5206
    %v5272 = vunpack.c.l.b16 %v5207
    %v5273 = vunpack.c.l.b16 %v5208
    %v5274 = vunpack.c.h.b16 %v5208
    %v5275 = vunpack.c.l.b16 %v5209
    %v5276 = vunpack.c.l.b16 %v5210
    %v5277 = vunpack.c.h.b16 %v5210
    %v5278 = vunpack.c.l.b16 %v5211
    %v5279 = vunpack.c.l.b16 %v5212
    %v5280 = vunpack.c.h.b16 %v5212
    %v5281 = vunpack.c.l.b16 %v5213
    %v5282 = vunpack.c.l.b16 %v5214
    %v5283 = vunpack.c.h.b16 %v5214
    %v5284 = vunpack.c.l.b16 %v5215
    %v5285 = vunpack.c.l.b16 %v5216
    %v5286 = vunpack.c.h.b16 %v5216
    %v5287 = vunpack.c.l.b16 %v5217
    %v5288 = vunpack.c.l.b16 %v5218
    %v5289 = vunpack.c.h.b16 %v5218
    %v5290 = vunpack.c.l.b16 %v5219
    %v5291 = vunpack.c.l.b16 %v5220
    %v5292 = vunpack.c.h.b16 %v5220
    %v5293 = vunpack.c.l.b16 %v5221
    %v5294 = vunpack.c.l.b16 %v5222
    %v5295 = vunpack.c.h.b16 %v5222
    %v5296 = vunpack.c.l.b16 %v5223
    %v5297 = vunpack.c.l.b16 %v5224
    %v5298 = vunpack.c.h.b16 %v5224
    %v5299 = vunpack.c.l.b16 %v5225
    %v5300 = vunpack.c.l.b16 %v5226
    %v5301 = vunpack.c.h.b16 %v5226
    %v5302 = vunpack.c.l.b16 %v5227
    %v5303 = vunpack.c.l.b16 %v5228
    %v5304 = vunpack.c.h.b16 %v5228
    %v5305 = vunpack.c.l.b16 %v5229
    %v5306 = vunpack.c.l.b16 %v5230
    %v5307 = vunpack.c.h.b16 %v5230
    %v5308 = vunpack.c.l.b16 %v5231
    %v5309 = vunpack.c.l.b16 %v5232
    %v5310 = vunpack.c.h.b16 %v5232
    %v5311 = vunpack.c.l.b16 %v5233
    %v5312 = vunpack.c.l.b16 %v5234
    %v5313 = vunpack.c.h.b16 %v5234
    %v5314 = vunpack.c.l.b16 %v5235
    %v5315 = vunpack.c.l.b16 %v5236
    %v5316 = vunpack.c.h.b16 %v5236
    %v5317 = vunpack.c.l.b16 %v5237
    %v5318 = vpack.c.b16 %v5273, %v5270
    %v5319 = vpack.c.b16 %v5274, %v5271
    %v5320 = vpack.c.b16 %v5275, %v5272
    %v5321 = vpack.c.b16 %v5279, %v5276
    %v5322 = vpack.c.b16 %v5280, %v5277
    %v5323 = vpack.c.b16 %v5281, %v5278
    %v5324 = vpack.c.b16 %v5285, %v5282
    %v5325 = vpack.c.b16 %v5286, %v5283
    %v5326 = vpack.c.b16 %v5287, %v5284
    %v5327 = vpack.c.b16 %v5291, %v5288
    %v5328 = vpack.c.b16 %v5292, %v5289
    %v5329 = vpack.c.b16 %v5293, %v5290
    %v5330 = vpack.c.b16 %v5297, %v5294
    %v5331 = vpack.c.b16 %v5298, %v5295
    %v5332 = vpack.c.b16 %v5299, %v5296
    %v5333 = vpack.c.b16 %v5303, %v5300
    %v5334 = vpack.c.b16 %v5304, %v5301
    %v5335 = vpack.c.b16 %v5305, %v5302
    %v5336 = vpack.c.b16 %v5309, %v5306
    %v5337 = vpack.c.b16 %v5310, %v5307
    %v5338 = vpack.c.b16 %v5311, %v5308
    %v5339 = vpack.c.b16 %v5315, %v5312
    %v5340 = vpack.c.b16 %v5316, %v5313
    %v5341 = vpack.c.b16 %v5317, %v5314
    %5366 = vmatpush.bf16.msra.mxu0 %v5339
    %5367 = vmatpush.bf16.msra.mxu0 %v5336
    %5368 = vmatpush.bf16.msra.mxu0 %v5333
    %5369 = vmatpush.bf16.msra.mxu0 %v5330
    %5370 = vmatpush.bf16.msra.mxu0 %v5327
    %5371 = vmatpush.bf16.msra.mxu0 %v5324
    %5372 = vmatpush.bf16.msra.mxu0 %v5321
    %5373 = vmatpush.bf16.msra.mxu0 %v5318
    %5374 = vmatmul.bf16.gmra.mxu0 %v4753
    %v5375 = vpop.f32.mrf.mxu0
    %v5376 = vadd.f32 0.0, %v5375
    %v5377 = vpop.f32.mrf.mxu0
    %5378 = vdwg.mxu0
    %5379 = vmatpush.bf16.msra.mxu0 %v5340
    %5380 = vmatpush.bf16.msra.mxu0 %v5337
    %5381 = vmatpush.bf16.msra.mxu0 %v5334
    %5382 = vmatpush.bf16.msra.mxu0 %v5331
    %5383 = vmatpush.bf16.msra.mxu0 %v5328
    %5384 = vmatpush.bf16.msra.mxu0 %v5325
    %5385 = vmatpush.bf16.msra.mxu0 %v5322
    %5386 = vmatpush.bf16.msra.mxu0 %v5319
    %5387 = vmatmul.bf16.gmra.mxu0 %v4753
    %v5388 = vpop.f32.mrf.mxu0
    %v5389 = vadd.f32 0.0, %v5388
    %v5390 = vpop.f32.mrf.mxu0
    %5391 = vdwg.mxu0
    %5392 = vmatpush.bf16.msra.mxu0 %v5341
    %5393 = vmatpush.bf16.msra.mxu0 %v5338
    %5394 = vmatpush.bf16.msra.mxu0 %v5335
    %5395 = vmatpush.bf16.msra.mxu0 %v5332
    %5396 = vmatpush.bf16.msra.mxu0 %v5329
    %5397 = vmatpush.bf16.msra.mxu0 %v5326
    %5398 = vmatpush.bf16.msra.mxu0 %v5323
    %5399 = vmatpush.bf16.msra.mxu0 %v5320
    %5400 = vmatmul.bf16.gmra.mxu0 %v4753
    %v5401 = vpop.f32.mrf.mxu0
    %v5402 = vadd.f32 0.0, %v5401
    %v5403 = vpop.f32.mrf.mxu0
    %5404 = vdwg.mxu0
    %v5405 = vadd.f32 %v5177, %v5376
    %v5406 = vxor.u32 %v5405, 2147483648
    %v5407 = vmul.f32 %v5406, 1.442695
    %v5408 = vpow.pop %v5407
    %v5409 = vadd.f32 %v5408, 1.0
    %v5410 = vrcp.pop %v5409
    %v5411 = vmul.f32 %v5409, %v5410
    %v5412 = vsub.f32 1.0, %v5411
    %v5413 = vmul.f32 %v5410, %v5412
    %v5414 = vadd.f32 %v5410, %v5413
    %vm5415 = vweird.f32 %v5409
    %vm5416 = vweird.f32 %v5410
    %vm5417 = vmor %vm5415, %vm5416
    %v5418 = vsel %vm5417, %v5410, %v5414
    %v5419 = vand.u32 2147483647, %v5409
    %vm5420 = vcmp.eq.f32.partialorder %v5419, 8.507059e+37
    %v5421 = vand.u32 %v5409, 2147483648
    %v5422 = vor.u32 1.1754944e-38, %v5421
    %v5423 = vsel %vm5420, %v5422, %v5418
    %v5424 = vmul.f32 1.0, %v5423
    %v5425 = vadd.f32 %v5190, %v5389
    %v5426 = vxor.u32 %v5425, 2147483648
    %v5427 = vmul.f32 %v5426, 1.442695
    %v5428 = vpow.pop %v5427
    %v5429 = vadd.f32 %v5428, 1.0
    %v5430 = vrcp.pop %v5429
    %v5431 = vmul.f32 %v5429, %v5430
    %v5432 = vsub.f32 1.0, %v5431
    %v5433 = vmul.f32 %v5430, %v5432
    %v5434 = vadd.f32 %v5430, %v5433
    %vm5435 = vweird.f32 %v5429
    %vm5436 = vweird.f32 %v5430
    %vm5437 = vmor %vm5435, %vm5436
    %v5438 = vsel %vm5437, %v5430, %v5434
    %v5439 = vand.u32 2147483647, %v5429
    %vm5440 = vcmp.eq.f32.partialorder %v5439, 8.507059e+37
    %v5441 = vand.u32 %v5429, 2147483648
    %v5442 = vor.u32 1.1754944e-38, %v5441
    %v5443 = vsel %vm5440, %v5442, %v5438
    %v5444 = vmul.f32 1.0, %v5443
    %v5445 = vadd.f32 %v5402, %v471
    %v5446 = vmul.f32 %v5424, %v5445
    %v5447 = vadd.f32 %v5203, %v5446
    %v5448 = vtanh.pop %v5447
    %v5449 = vsub.f32 %v4752, %v5448
    %v5450 = vmul.f32 %v5444, %v5449
    %v5451 = vadd.f32 %v5448, %v5450
    %v5452 = vpack.c.bf16 %v5451, %v5451
    %s5453 = scalar_lea.vmem [#allocation14], 48
    %5454 = vst [vmem:[%s5453] sm:$0xff] %v5451
    %s5455 = scalar_lea.vmem [#allocation2], 192
    %v5456 = vld [vmem:[%s5455] sm:$0xff]
    %v5457 = vld [vmem:[%s5455 + $0x8] sm:$0xff]
    %v5458 = vld [vmem:[%s5455 + $0x10] sm:$0xff]
    %v5459 = vld [vmem:[#allocation8] sm:$0xff]
    %v5460 = vld [vmem:[#allocation8 + $0x8] sm:$0xf]
    %v5461 = vld [vmem:[#allocation8 + $0xc] sm:$0xff]
    %v5462 = vld [vmem:[#allocation8 + $0x14] sm:$0xf]
    %v5463 = vld [vmem:[#allocation8 + $0x18] sm:$0xff]
    %v5464 = vld [vmem:[#allocation8 + $0x20] sm:$0xf]
    %v5465 = vld [vmem:[#allocation8 + $0x24] sm:$0xff]
    %v5466 = vld [vmem:[#allocation8 + $0x2c] sm:$0xf]
    %v5467 = vld [vmem:[#allocation8 + $0x30] sm:$0xff]
    %v5468 = vld [vmem:[#allocation8 + $0x38] sm:$0xf]
    %v5469 = vld [vmem:[#allocation8 + $0x3c] sm:$0xff]
    %v5470 = vld [vmem:[#allocation8 + $0x44] sm:$0xf]
    %v5471 = vld [vmem:[#allocation8 + $0x48] sm:$0xff]
    %v5472 = vld [vmem:[#allocation8 + $0x50] sm:$0xf]
    %v5473 = vld [vmem:[#allocation8 + $0x54] sm:$0xff]
    %v5474 = vld [vmem:[#allocation8 + $0x5c] sm:$0xf]
    %v5475 = vld [vmem:[#allocation8 + $0x60] sm:$0xff]
    %v5476 = vld [vmem:[#allocation8 + $0x68] sm:$0xf]
    %v5477 = vld [vmem:[#allocation8 + $0x6c] sm:$0xff]
    %v5478 = vld [vmem:[#allocation8 + $0x74] sm:$0xf]
    %v5479 = vld [vmem:[#allocation8 + $0x78] sm:$0xff]
    %v5480 = vld [vmem:[#allocation8 + $0x80] sm:$0xf]
    %v5481 = vld [vmem:[#allocation8 + $0x84] sm:$0xff]
    %v5482 = vld [vmem:[#allocation8 + $0x8c] sm:$0xf]
    %v5483 = vld [vmem:[#allocation8 + $0x90] sm:$0xff]
    %v5484 = vld [vmem:[#allocation8 + $0x98] sm:$0xf]
    %v5485 = vld [vmem:[#allocation8 + $0x9c] sm:$0xff]
    %v5486 = vld [vmem:[#allocation8 + $0xa4] sm:$0xf]
    %v5487 = vld [vmem:[#allocation8 + $0xa8] sm:$0xff]
    %v5488 = vld [vmem:[#allocation8 + $0xb0] sm:$0xf]
    %v5489 = vld [vmem:[#allocation8 + $0xb4] sm:$0xff]
    %v5490 = vld [vmem:[#allocation8 + $0xbc] sm:$0xf]
    %v5523 = vunpack.c.l.b16 %v5459
    %v5524 = vunpack.c.h.b16 %v5459
    %v5525 = vunpack.c.l.b16 %v5460
    %v5526 = vunpack.c.l.b16 %v5461
    %v5527 = vunpack.c.h.b16 %v5461
    %v5528 = vunpack.c.l.b16 %v5462
    %v5529 = vunpack.c.l.b16 %v5463
    %v5530 = vunpack.c.h.b16 %v5463
    %v5531 = vunpack.c.l.b16 %v5464
    %v5532 = vunpack.c.l.b16 %v5465
    %v5533 = vunpack.c.h.b16 %v5465
    %v5534 = vunpack.c.l.b16 %v5466
    %v5535 = vunpack.c.l.b16 %v5467
    %v5536 = vunpack.c.h.b16 %v5467
    %v5537 = vunpack.c.l.b16 %v5468
    %v5538 = vunpack.c.l.b16 %v5469
    %v5539 = vunpack.c.h.b16 %v5469
    %v5540 = vunpack.c.l.b16 %v5470
    %v5541 = vunpack.c.l.b16 %v5471
    %v5542 = vunpack.c.h.b16 %v5471
    %v5543 = vunpack.c.l.b16 %v5472
    %v5544 = vunpack.c.l.b16 %v5473
    %v5545 = vunpack.c.h.b16 %v5473
    %v5546 = vunpack.c.l.b16 %v5474
    %v5547 = vunpack.c.l.b16 %v5475
    %v5548 = vunpack.c.h.b16 %v5475
    %v5549 = vunpack.c.l.b16 %v5476
    %v5550 = vunpack.c.l.b16 %v5477
    %v5551 = vunpack.c.h.b16 %v5477
    %v5552 = vunpack.c.l.b16 %v5478
    %v5553 = vunpack.c.l.b16 %v5479
    %v5554 = vunpack.c.h.b16 %v5479
    %v5555 = vunpack.c.l.b16 %v5480
    %v5556 = vunpack.c.l.b16 %v5481
    %v5557 = vunpack.c.h.b16 %v5481
    %v5558 = vunpack.c.l.b16 %v5482
    %v5559 = vunpack.c.l.b16 %v5483
    %v5560 = vunpack.c.h.b16 %v5483
    %v5561 = vunpack.c.l.b16 %v5484
    %v5562 = vunpack.c.l.b16 %v5485
    %v5563 = vunpack.c.h.b16 %v5485
    %v5564 = vunpack.c.l.b16 %v5486
    %v5565 = vunpack.c.l.b16 %v5487
    %v5566 = vunpack.c.h.b16 %v5487
    %v5567 = vunpack.c.l.b16 %v5488
    %v5568 = vunpack.c.l.b16 %v5489
    %v5569 = vunpack.c.h.b16 %v5489
    %v5570 = vunpack.c.l.b16 %v5490
    %v5571 = vpack.c.b16 %v5526, %v5523
    %v5572 = vpack.c.b16 %v5527, %v5524
    %v5573 = vpack.c.b16 %v5528, %v5525
    %v5574 = vpack.c.b16 %v5532, %v5529
    %v5575 = vpack.c.b16 %v5533, %v5530
    %v5576 = vpack.c.b16 %v5534, %v5531
    %v5577 = vpack.c.b16 %v5538, %v5535
    %v5578 = vpack.c.b16 %v5539, %v5536
    %v5579 = vpack.c.b16 %v5540, %v5537
    %v5580 = vpack.c.b16 %v5544, %v5541
    %v5581 = vpack.c.b16 %v5545, %v5542
    %v5582 = vpack.c.b16 %v5546, %v5543
    %v5583 = vpack.c.b16 %v5550, %v5547
    %v5584 = vpack.c.b16 %v5551, %v5548
    %v5585 = vpack.c.b16 %v5552, %v5549
    %v5586 = vpack.c.b16 %v5556, %v5553
    %v5587 = vpack.c.b16 %v5557, %v5554
    %v5588 = vpack.c.b16 %v5558, %v5555
    %v5589 = vpack.c.b16 %v5562, %v5559
    %v5590 = vpack.c.b16 %v5563, %v5560
    %v5591 = vpack.c.b16 %v5564, %v5561
    %v5592 = vpack.c.b16 %v5568, %v5565
    %v5593 = vpack.c.b16 %v5569, %v5566
    %v5594 = vpack.c.b16 %v5570, %v5567
    %5619 = vmatpush.bf16.msra.mxu0 %v5592
    %5620 = vmatpush.bf16.msra.mxu0 %v5589
    %5621 = vmatpush.bf16.msra.mxu0 %v5586
    %5622 = vmatpush.bf16.msra.mxu0 %v5583
    %5623 = vmatpush.bf16.msra.mxu0 %v5580
    %5624 = vmatpush.bf16.msra.mxu0 %v5577
    %5625 = vmatpush.bf16.msra.mxu0 %v5574
    %5626 = vmatpush.bf16.msra.mxu0 %v5571
    %5627 = vmatmul.bf16.gmra.mxu0 %v5006
    %v5628 = vpop.f32.mrf.mxu0
    %v5629 = vadd.f32 0.0, %v5628
    %v5630 = vpop.f32.mrf.mxu0
    %5631 = vdwg.mxu0
    %5632 = vmatpush.bf16.msra.mxu0 %v5593
    %5633 = vmatpush.bf16.msra.mxu0 %v5590
    %5634 = vmatpush.bf16.msra.mxu0 %v5587
    %5635 = vmatpush.bf16.msra.mxu0 %v5584
    %5636 = vmatpush.bf16.msra.mxu0 %v5581
    %5637 = vmatpush.bf16.msra.mxu0 %v5578
    %5638 = vmatpush.bf16.msra.mxu0 %v5575
    %5639 = vmatpush.bf16.msra.mxu0 %v5572
    %5640 = vmatmul.bf16.gmra.mxu0 %v5006
    %v5641 = vpop.f32.mrf.mxu0
    %v5642 = vadd.f32 0.0, %v5641
    %v5643 = vpop.f32.mrf.mxu0
    %5644 = vdwg.mxu0
    %5645 = vmatpush.bf16.msra.mxu0 %v5594
    %5646 = vmatpush.bf16.msra.mxu0 %v5591
    %5647 = vmatpush.bf16.msra.mxu0 %v5588
    %5648 = vmatpush.bf16.msra.mxu0 %v5585
    %5649 = vmatpush.bf16.msra.mxu0 %v5582
    %5650 = vmatpush.bf16.msra.mxu0 %v5579
    %5651 = vmatpush.bf16.msra.mxu0 %v5576
    %5652 = vmatpush.bf16.msra.mxu0 %v5573
    %5653 = vmatmul.bf16.gmra.mxu0 %v5006
    %v5654 = vpop.f32.mrf.mxu0
    %v5655 = vadd.f32 0.0, %v5654
    %v5656 = vpop.f32.mrf.mxu0
    %5657 = vdwg.mxu0
    %v5658 = vadd.f32 %v5456, %v5629
    %v5659 = vxor.u32 %v5658, 2147483648
    %v5660 = vmul.f32 %v5659, 1.442695
    %v5661 = vpow.pop %v5660
    %v5662 = vadd.f32 %v5661, 1.0
    %v5663 = vrcp.pop %v5662
    %v5664 = vmul.f32 %v5662, %v5663
    %v5665 = vsub.f32 1.0, %v5664
    %v5666 = vmul.f32 %v5663, %v5665
    %v5667 = vadd.f32 %v5663, %v5666
    %vm5668 = vweird.f32 %v5662
    %vm5669 = vweird.f32 %v5663
    %vm5670 = vmor %vm5668, %vm5669
    %v5671 = vsel %vm5670, %v5663, %v5667
    %v5672 = vand.u32 2147483647, %v5662
    %vm5673 = vcmp.eq.f32.partialorder %v5672, 8.507059e+37
    %v5674 = vand.u32 %v5662, 2147483648
    %v5675 = vor.u32 1.1754944e-38, %v5674
    %v5676 = vsel %vm5673, %v5675, %v5671
    %v5677 = vmul.f32 1.0, %v5676
    %v5678 = vadd.f32 %v5457, %v5642
    %v5679 = vxor.u32 %v5678, 2147483648
    %v5680 = vmul.f32 %v5679, 1.442695
    %v5681 = vpow.pop %v5680
    %v5682 = vadd.f32 %v5681, 1.0
    %v5683 = vrcp.pop %v5682
    %v5684 = vmul.f32 %v5682, %v5683
    %v5685 = vsub.f32 1.0, %v5684
    %v5686 = vmul.f32 %v5683, %v5685
    %v5687 = vadd.f32 %v5683, %v5686
    %vm5688 = vweird.f32 %v5682
    %vm5689 = vweird.f32 %v5683
    %vm5690 = vmor %vm5688, %vm5689
    %v5691 = vsel %vm5690, %v5683, %v5687
    %v5692 = vand.u32 2147483647, %v5682
    %vm5693 = vcmp.eq.f32.partialorder %v5692, 8.507059e+37
    %v5694 = vand.u32 %v5682, 2147483648
    %v5695 = vor.u32 1.1754944e-38, %v5694
    %v5696 = vsel %vm5693, %v5695, %v5691
    %v5697 = vmul.f32 1.0, %v5696
    %v5698 = vadd.f32 %v5655, %v459
    %v5699 = vmul.f32 %v5677, %v5698
    %v5700 = vadd.f32 %v5458, %v5699
    %v5701 = vtanh.pop %v5700
    %v5702 = vsub.f32 %v5005, %v5701
    %v5703 = vmul.f32 %v5697, %v5702
    %v5704 = vadd.f32 %v5701, %v5703
    %v5705 = vpack.c.bf16 %v5704, %v5704
    %v5706 = vld [vmem:[#allocation11] sm:$0xff]
    %v5707 = vld [vmem:[#allocation11 + $0x8] sm:$0xf]
    %v5708 = vld [vmem:[#allocation11 + $0xc] sm:$0xff]
    %v5709 = vld [vmem:[#allocation11 + $0x14] sm:$0xf]
    %v5710 = vld [vmem:[#allocation11 + $0x18] sm:$0xff]
    %v5711 = vld [vmem:[#allocation11 + $0x20] sm:$0xf]
    %v5712 = vld [vmem:[#allocation11 + $0x24] sm:$0xff]
    %v5713 = vld [vmem:[#allocation11 + $0x2c] sm:$0xf]
    %v5714 = vld [vmem:[#allocation11 + $0x30] sm:$0xff]
    %v5715 = vld [vmem:[#allocation11 + $0x38] sm:$0xf]
    %v5716 = vld [vmem:[#allocation11 + $0x3c] sm:$0xff]
    %v5717 = vld [vmem:[#allocation11 + $0x44] sm:$0xf]
    %v5718 = vld [vmem:[#allocation11 + $0x48] sm:$0xff]
    %v5719 = vld [vmem:[#allocation11 + $0x50] sm:$0xf]
    %v5720 = vld [vmem:[#allocation11 + $0x54] sm:$0xff]
    %v5721 = vld [vmem:[#allocation11 + $0x5c] sm:$0xf]
    %v5722 = vld [vmem:[#allocation11 + $0x60] sm:$0xff]
    %v5723 = vld [vmem:[#allocation11 + $0x68] sm:$0xf]
    %v5724 = vld [vmem:[#allocation11 + $0x6c] sm:$0xff]
    %v5725 = vld [vmem:[#allocation11 + $0x74] sm:$0xf]
    %v5726 = vld [vmem:[#allocation11 + $0x78] sm:$0xff]
    %v5727 = vld [vmem:[#allocation11 + $0x80] sm:$0xf]
    %v5728 = vld [vmem:[#allocation11 + $0x84] sm:$0xff]
    %v5729 = vld [vmem:[#allocation11 + $0x8c] sm:$0xf]
    %v5730 = vld [vmem:[#allocation11 + $0x90] sm:$0xff]
    %v5731 = vld [vmem:[#allocation11 + $0x98] sm:$0xf]
    %v5732 = vld [vmem:[#allocation11 + $0x9c] sm:$0xff]
    %v5733 = vld [vmem:[#allocation11 + $0xa4] sm:$0xf]
    %v5734 = vld [vmem:[#allocation11 + $0xa8] sm:$0xff]
    %v5735 = vld [vmem:[#allocation11 + $0xb0] sm:$0xf]
    %v5736 = vld [vmem:[#allocation11 + $0xb4] sm:$0xff]
    %v5737 = vld [vmem:[#allocation11 + $0xbc] sm:$0xf]
    %v5770 = vunpack.c.l.b16 %v5706
    %v5771 = vunpack.c.h.b16 %v5706
    %v5772 = vunpack.c.l.b16 %v5707
    %v5773 = vunpack.c.l.b16 %v5708
    %v5774 = vunpack.c.h.b16 %v5708
    %v5775 = vunpack.c.l.b16 %v5709
    %v5776 = vunpack.c.l.b16 %v5710
    %v5777 = vunpack.c.h.b16 %v5710
    %v5778 = vunpack.c.l.b16 %v5711
    %v5779 = vunpack.c.l.b16 %v5712
    %v5780 = vunpack.c.h.b16 %v5712
    %v5781 = vunpack.c.l.b16 %v5713
    %v5782 = vunpack.c.l.b16 %v5714
    %v5783 = vunpack.c.h.b16 %v5714
    %v5784 = vunpack.c.l.b16 %v5715
    %v5785 = vunpack.c.l.b16 %v5716
    %v5786 = vunpack.c.h.b16 %v5716
    %v5787 = vunpack.c.l.b16 %v5717
    %v5788 = vunpack.c.l.b16 %v5718
    %v5789 = vunpack.c.h.b16 %v5718
    %v5790 = vunpack.c.l.b16 %v5719
    %v5791 = vunpack.c.l.b16 %v5720
    %v5792 = vunpack.c.h.b16 %v5720
    %v5793 = vunpack.c.l.b16 %v5721
    %v5794 = vunpack.c.l.b16 %v5722
    %v5795 = vunpack.c.h.b16 %v5722
    %v5796 = vunpack.c.l.b16 %v5723
    %v5797 = vunpack.c.l.b16 %v5724
    %v5798 = vunpack.c.h.b16 %v5724
    %v5799 = vunpack.c.l.b16 %v5725
    %v5800 = vunpack.c.l.b16 %v5726
    %v5801 = vunpack.c.h.b16 %v5726
    %v5802 = vunpack.c.l.b16 %v5727
    %v5803 = vunpack.c.l.b16 %v5728
    %v5804 = vunpack.c.h.b16 %v5728
    %v5805 = vunpack.c.l.b16 %v5729
    %v5806 = vunpack.c.l.b16 %v5730
    %v5807 = vunpack.c.h.b16 %v5730
    %v5808 = vunpack.c.l.b16 %v5731
    %v5809 = vunpack.c.l.b16 %v5732
    %v5810 = vunpack.c.h.b16 %v5732
    %v5811 = vunpack.c.l.b16 %v5733
    %v5812 = vunpack.c.l.b16 %v5734
    %v5813 = vunpack.c.h.b16 %v5734
    %v5814 = vunpack.c.l.b16 %v5735
    %v5815 = vunpack.c.l.b16 %v5736
    %v5816 = vunpack.c.h.b16 %v5736
    %v5817 = vunpack.c.l.b16 %v5737
    %v5818 = vpack.c.b16 %v5773, %v5770
    %v5819 = vpack.c.b16 %v5774, %v5771
    %v5820 = vpack.c.b16 %v5775, %v5772
    %v5821 = vpack.c.b16 %v5779, %v5776
    %v5822 = vpack.c.b16 %v5780, %v5777
    %v5823 = vpack.c.b16 %v5781, %v5778
    %v5824 = vpack.c.b16 %v5785, %v5782
    %v5825 = vpack.c.b16 %v5786, %v5783
    %v5826 = vpack.c.b16 %v5787, %v5784
    %v5827 = vpack.c.b16 %v5791, %v5788
    %v5828 = vpack.c.b16 %v5792, %v5789
    %v5829 = vpack.c.b16 %v5793, %v5790
    %v5830 = vpack.c.b16 %v5797, %v5794
    %v5831 = vpack.c.b16 %v5798, %v5795
    %v5832 = vpack.c.b16 %v5799, %v5796
    %v5833 = vpack.c.b16 %v5803, %v5800
    %v5834 = vpack.c.b16 %v5804, %v5801
    %v5835 = vpack.c.b16 %v5805, %v5802
    %v5836 = vpack.c.b16 %v5809, %v5806
    %v5837 = vpack.c.b16 %v5810, %v5807
    %v5838 = vpack.c.b16 %v5811, %v5808
    %v5839 = vpack.c.b16 %v5815, %v5812
    %v5840 = vpack.c.b16 %v5816, %v5813
    %v5841 = vpack.c.b16 %v5817, %v5814
    %5866 = vmatpush.bf16.msra.mxu0 %v5839
    %5867 = vmatpush.bf16.msra.mxu0 %v5836
    %5868 = vmatpush.bf16.msra.mxu0 %v5833
    %5869 = vmatpush.bf16.msra.mxu0 %v5830
    %5870 = vmatpush.bf16.msra.mxu0 %v5827
    %5871 = vmatpush.bf16.msra.mxu0 %v5824
    %5872 = vmatpush.bf16.msra.mxu0 %v5821
    %5873 = vmatpush.bf16.msra.mxu0 %v5818
    %5874 = vmatmul.bf16.gmra.mxu0 %v5006
    %v5875 = vpop.f32.mrf.mxu0
    %v5876 = vadd.f32 %v463, %v5875
    %v5877 = vpop.f32.mrf.mxu0
    %5878 = vdwg.mxu0
    %5879 = vmatpush.bf16.msra.mxu0 %v5840
    %5880 = vmatpush.bf16.msra.mxu0 %v5837
    %5881 = vmatpush.bf16.msra.mxu0 %v5834
    %5882 = vmatpush.bf16.msra.mxu0 %v5831
    %5883 = vmatpush.bf16.msra.mxu0 %v5828
    %5884 = vmatpush.bf16.msra.mxu0 %v5825
    %5885 = vmatpush.bf16.msra.mxu0 %v5822
    %5886 = vmatpush.bf16.msra.mxu0 %v5819
    %5887 = vmatmul.bf16.gmra.mxu0 %v5006
    %v5888 = vpop.f32.mrf.mxu0
    %v5889 = vadd.f32 %v464, %v5888
    %v5890 = vpop.f32.mrf.mxu0
    %5891 = vdwg.mxu0
    %5892 = vmatpush.bf16.msra.mxu0 %v5841
    %5893 = vmatpush.bf16.msra.mxu0 %v5838
    %5894 = vmatpush.bf16.msra.mxu0 %v5835
    %5895 = vmatpush.bf16.msra.mxu0 %v5832
    %5896 = vmatpush.bf16.msra.mxu0 %v5829
    %5897 = vmatpush.bf16.msra.mxu0 %v5826
    %5898 = vmatpush.bf16.msra.mxu0 %v5823
    %5899 = vmatpush.bf16.msra.mxu0 %v5820
    %5900 = vmatmul.bf16.gmra.mxu0 %v5006
    %v5901 = vpop.f32.mrf.mxu0
    %v5902 = vadd.f32 %v465, %v5901
    %v5903 = vpop.f32.mrf.mxu0
    %5904 = vdwg.mxu0
    %v5905 = vld [vmem:[#allocation12] sm:$0xff]
    %v5906 = vld [vmem:[#allocation12 + $0x8] sm:$0xf]
    %v5907 = vld [vmem:[#allocation12 + $0xc] sm:$0xff]
    %v5908 = vld [vmem:[#allocation12 + $0x14] sm:$0xf]
    %v5909 = vld [vmem:[#allocation12 + $0x18] sm:$0xff]
    %v5910 = vld [vmem:[#allocation12 + $0x20] sm:$0xf]
    %v5911 = vld [vmem:[#allocation12 + $0x24] sm:$0xff]
    %v5912 = vld [vmem:[#allocation12 + $0x2c] sm:$0xf]
    %v5913 = vld [vmem:[#allocation12 + $0x30] sm:$0xff]
    %v5914 = vld [vmem:[#allocation12 + $0x38] sm:$0xf]
    %v5915 = vld [vmem:[#allocation12 + $0x3c] sm:$0xff]
    %v5916 = vld [vmem:[#allocation12 + $0x44] sm:$0xf]
    %v5917 = vld [vmem:[#allocation12 + $0x48] sm:$0xff]
    %v5918 = vld [vmem:[#allocation12 + $0x50] sm:$0xf]
    %v5919 = vld [vmem:[#allocation12 + $0x54] sm:$0xff]
    %v5920 = vld [vmem:[#allocation12 + $0x5c] sm:$0xf]
    %v5921 = vld [vmem:[#allocation12 + $0x60] sm:$0xff]
    %v5922 = vld [vmem:[#allocation12 + $0x68] sm:$0xf]
    %v5923 = vld [vmem:[#allocation12 + $0x6c] sm:$0xff]
    %v5924 = vld [vmem:[#allocation12 + $0x74] sm:$0xf]
    %v5925 = vld [vmem:[#allocation12 + $0x78] sm:$0xff]
    %v5926 = vld [vmem:[#allocation12 + $0x80] sm:$0xf]
    %v5927 = vld [vmem:[#allocation12 + $0x84] sm:$0xff]
    %v5928 = vld [vmem:[#allocation12 + $0x8c] sm:$0xf]
    %v5929 = vld [vmem:[#allocation12 + $0x90] sm:$0xff]
    %v5930 = vld [vmem:[#allocation12 + $0x98] sm:$0xf]
    %v5931 = vld [vmem:[#allocation12 + $0x9c] sm:$0xff]
    %v5932 = vld [vmem:[#allocation12 + $0xa4] sm:$0xf]
    %v5933 = vld [vmem:[#allocation12 + $0xa8] sm:$0xff]
    %v5934 = vld [vmem:[#allocation12 + $0xb0] sm:$0xf]
    %v5935 = vld [vmem:[#allocation12 + $0xb4] sm:$0xff]
    %v5936 = vld [vmem:[#allocation12 + $0xbc] sm:$0xf]
    %v5969 = vunpack.c.l.b16 %v5905
    %v5970 = vunpack.c.h.b16 %v5905
    %v5971 = vunpack.c.l.b16 %v5906
    %v5972 = vunpack.c.l.b16 %v5907
    %v5973 = vunpack.c.h.b16 %v5907
    %v5974 = vunpack.c.l.b16 %v5908
    %v5975 = vunpack.c.l.b16 %v5909
    %v5976 = vunpack.c.h.b16 %v5909
    %v5977 = vunpack.c.l.b16 %v5910
    %v5978 = vunpack.c.l.b16 %v5911
    %v5979 = vunpack.c.h.b16 %v5911
    %v5980 = vunpack.c.l.b16 %v5912
    %v5981 = vunpack.c.l.b16 %v5913
    %v5982 = vunpack.c.h.b16 %v5913
    %v5983 = vunpack.c.l.b16 %v5914
    %v5984 = vunpack.c.l.b16 %v5915
    %v5985 = vunpack.c.h.b16 %v5915
    %v5986 = vunpack.c.l.b16 %v5916
    %v5987 = vunpack.c.l.b16 %v5917
    %v5988 = vunpack.c.h.b16 %v5917
    %v5989 = vunpack.c.l.b16 %v5918
    %v5990 = vunpack.c.l.b16 %v5919
    %v5991 = vunpack.c.h.b16 %v5919
    %v5992 = vunpack.c.l.b16 %v5920
    %v5993 = vunpack.c.l.b16 %v5921
    %v5994 = vunpack.c.h.b16 %v5921
    %v5995 = vunpack.c.l.b16 %v5922
    %v5996 = vunpack.c.l.b16 %v5923
    %v5997 = vunpack.c.h.b16 %v5923
    %v5998 = vunpack.c.l.b16 %v5924
    %v5999 = vunpack.c.l.b16 %v5925
    %v6000 = vunpack.c.h.b16 %v5925
    %v6001 = vunpack.c.l.b16 %v5926
    %v6002 = vunpack.c.l.b16 %v5927
    %v6003 = vunpack.c.h.b16 %v5927
    %v6004 = vunpack.c.l.b16 %v5928
    %v6005 = vunpack.c.l.b16 %v5929
    %v6006 = vunpack.c.h.b16 %v5929
    %v6007 = vunpack.c.l.b16 %v5930
    %v6008 = vunpack.c.l.b16 %v5931
    %v6009 = vunpack.c.h.b16 %v5931
    %v6010 = vunpack.c.l.b16 %v5932
    %v6011 = vunpack.c.l.b16 %v5933
    %v6012 = vunpack.c.h.b16 %v5933
    %v6013 = vunpack.c.l.b16 %v5934
    %v6014 = vunpack.c.l.b16 %v5935
    %v6015 = vunpack.c.h.b16 %v5935
    %v6016 = vunpack.c.l.b16 %v5936
    %v6017 = vpack.c.b16 %v5972, %v5969
    %v6018 = vpack.c.b16 %v5973, %v5970
    %v6019 = vpack.c.b16 %v5974, %v5971
    %v6020 = vpack.c.b16 %v5978, %v5975
    %v6021 = vpack.c.b16 %v5979, %v5976
    %v6022 = vpack.c.b16 %v5980, %v5977
    %v6023 = vpack.c.b16 %v5984, %v5981
    %v6024 = vpack.c.b16 %v5985, %v5982
    %v6025 = vpack.c.b16 %v5986, %v5983
    %v6026 = vpack.c.b16 %v5990, %v5987
    %v6027 = vpack.c.b16 %v5991, %v5988
    %v6028 = vpack.c.b16 %v5992, %v5989
    %v6029 = vpack.c.b16 %v5996, %v5993
    %v6030 = vpack.c.b16 %v5997, %v5994
    %v6031 = vpack.c.b16 %v5998, %v5995
    %v6032 = vpack.c.b16 %v6002, %v5999
    %v6033 = vpack.c.b16 %v6003, %v6000
    %v6034 = vpack.c.b16 %v6004, %v6001
    %v6035 = vpack.c.b16 %v6008, %v6005
    %v6036 = vpack.c.b16 %v6009, %v6006
    %v6037 = vpack.c.b16 %v6010, %v6007
    %v6038 = vpack.c.b16 %v6014, %v6011
    %v6039 = vpack.c.b16 %v6015, %v6012
    %v6040 = vpack.c.b16 %v6016, %v6013
    %6065 = vmatpush.bf16.msra.mxu0 %v6038
    %6066 = vmatpush.bf16.msra.mxu0 %v6035
    %6067 = vmatpush.bf16.msra.mxu0 %v6032
    %6068 = vmatpush.bf16.msra.mxu0 %v6029
    %6069 = vmatpush.bf16.msra.mxu0 %v6026
    %6070 = vmatpush.bf16.msra.mxu0 %v6023
    %6071 = vmatpush.bf16.msra.mxu0 %v6020
    %6072 = vmatpush.bf16.msra.mxu0 %v6017
    %6073 = vmatmul.bf16.gmra.mxu0 %v5452
    %v6074 = vpop.f32.mrf.mxu0
    %v6075 = vadd.f32 0.0, %v6074
    %v6076 = vpop.f32.mrf.mxu0
    %6077 = vdwg.mxu0
    %6078 = vmatpush.bf16.msra.mxu0 %v6039
    %6079 = vmatpush.bf16.msra.mxu0 %v6036
    %6080 = vmatpush.bf16.msra.mxu0 %v6033
    %6081 = vmatpush.bf16.msra.mxu0 %v6030
    %6082 = vmatpush.bf16.msra.mxu0 %v6027
    %6083 = vmatpush.bf16.msra.mxu0 %v6024
    %6084 = vmatpush.bf16.msra.mxu0 %v6021
    %6085 = vmatpush.bf16.msra.mxu0 %v6018
    %6086 = vmatmul.bf16.gmra.mxu0 %v5452
    %v6087 = vpop.f32.mrf.mxu0
    %v6088 = vadd.f32 0.0, %v6087
    %v6089 = vpop.f32.mrf.mxu0
    %6090 = vdwg.mxu0
    %6091 = vmatpush.bf16.msra.mxu0 %v6040
    %6092 = vmatpush.bf16.msra.mxu0 %v6037
    %6093 = vmatpush.bf16.msra.mxu0 %v6034
    %6094 = vmatpush.bf16.msra.mxu0 %v6031
    %6095 = vmatpush.bf16.msra.mxu0 %v6028
    %6096 = vmatpush.bf16.msra.mxu0 %v6025
    %6097 = vmatpush.bf16.msra.mxu0 %v6022
    %6098 = vmatpush.bf16.msra.mxu0 %v6019
    %6099 = vmatmul.bf16.gmra.mxu0 %v5452
    %v6100 = vpop.f32.mrf.mxu0
    %v6101 = vadd.f32 0.0, %v6100
    %v6102 = vpop.f32.mrf.mxu0
    %6103 = vdwg.mxu0
    %v6104 = vadd.f32 %v5876, %v6075
    %v6105 = vxor.u32 %v6104, 2147483648
    %v6106 = vmul.f32 %v6105, 1.442695
    %v6107 = vpow.pop %v6106
    %v6108 = vadd.f32 %v6107, 1.0
    %v6109 = vrcp.pop %v6108
    %v6110 = vmul.f32 %v6108, %v6109
    %v6111 = vsub.f32 1.0, %v6110
    %v6112 = vmul.f32 %v6109, %v6111
    %v6113 = vadd.f32 %v6109, %v6112
    %vm6114 = vweird.f32 %v6108
    %vm6115 = vweird.f32 %v6109
    %vm6116 = vmor %vm6114, %vm6115
    %v6117 = vsel %vm6116, %v6109, %v6113
    %v6118 = vand.u32 2147483647, %v6108
    %vm6119 = vcmp.eq.f32.partialorder %v6118, 8.507059e+37
    %v6120 = vand.u32 %v6108, 2147483648
    %v6121 = vor.u32 1.1754944e-38, %v6120
    %v6122 = vsel %vm6119, %v6121, %v6117
    %v6123 = vmul.f32 1.0, %v6122
    %v6124 = vadd.f32 %v5889, %v6088
    %v6125 = vxor.u32 %v6124, 2147483648
    %v6126 = vmul.f32 %v6125, 1.442695
    %v6127 = vpow.pop %v6126
    %v6128 = vadd.f32 %v6127, 1.0
    %v6129 = vrcp.pop %v6128
    %v6130 = vmul.f32 %v6128, %v6129
    %v6131 = vsub.f32 1.0, %v6130
    %v6132 = vmul.f32 %v6129, %v6131
    %v6133 = vadd.f32 %v6129, %v6132
    %vm6134 = vweird.f32 %v6128
    %vm6135 = vweird.f32 %v6129
    %vm6136 = vmor %vm6134, %vm6135
    %v6137 = vsel %vm6136, %v6129, %v6133
    %v6138 = vand.u32 2147483647, %v6128
    %vm6139 = vcmp.eq.f32.partialorder %v6138, 8.507059e+37
    %v6140 = vand.u32 %v6128, 2147483648
    %v6141 = vor.u32 1.1754944e-38, %v6140
    %v6142 = vsel %vm6139, %v6141, %v6137
    %v6143 = vmul.f32 1.0, %v6142
    %v6144 = vadd.f32 %v6101, %v471
    %v6145 = vmul.f32 %v6123, %v6144
    %v6146 = vadd.f32 %v5902, %v6145
    %v6147 = vtanh.pop %v6146
    %v6148 = vsub.f32 %v5451, %v6147
    %v6149 = vmul.f32 %v6143, %v6148
    %v6150 = vadd.f32 %v6147, %v6149
    %v6151 = vpack.c.bf16 %v6150, %v6150
    %s6152 = scalar_lea.vmem [#allocation14], 56
    %6153 = vst [vmem:[%s6152] sm:$0xff] %v6150
    %v6154 = vld [vmem:[#allocation11] sm:$0xff]
    %v6155 = vld [vmem:[#allocation11 + $0x8] sm:$0xf]
    %v6156 = vld [vmem:[#allocation11 + $0xc] sm:$0xff]
    %v6157 = vld [vmem:[#allocation11 + $0x14] sm:$0xf]
    %v6158 = vld [vmem:[#allocation11 + $0x18] sm:$0xff]
    %v6159 = vld [vmem:[#allocation11 + $0x20] sm:$0xf]
    %v6160 = vld [vmem:[#allocation11 + $0x24] sm:$0xff]
    %v6161 = vld [vmem:[#allocation11 + $0x2c] sm:$0xf]
    %v6162 = vld [vmem:[#allocation11 + $0x30] sm:$0xff]
    %v6163 = vld [vmem:[#allocation11 + $0x38] sm:$0xf]
    %v6164 = vld [vmem:[#allocation11 + $0x3c] sm:$0xff]
    %v6165 = vld [vmem:[#allocation11 + $0x44] sm:$0xf]
    %v6166 = vld [vmem:[#allocation11 + $0x48] sm:$0xff]
    %v6167 = vld [vmem:[#allocation11 + $0x50] sm:$0xf]
    %v6168 = vld [vmem:[#allocation11 + $0x54] sm:$0xff]
    %v6169 = vld [vmem:[#allocation11 + $0x5c] sm:$0xf]
    %v6170 = vld [vmem:[#allocation11 + $0x60] sm:$0xff]
    %v6171 = vld [vmem:[#allocation11 + $0x68] sm:$0xf]
    %v6172 = vld [vmem:[#allocation11 + $0x6c] sm:$0xff]
    %v6173 = vld [vmem:[#allocation11 + $0x74] sm:$0xf]
    %v6174 = vld [vmem:[#allocation11 + $0x78] sm:$0xff]
    %v6175 = vld [vmem:[#allocation11 + $0x80] sm:$0xf]
    %v6176 = vld [vmem:[#allocation11 + $0x84] sm:$0xff]
    %v6177 = vld [vmem:[#allocation11 + $0x8c] sm:$0xf]
    %v6178 = vld [vmem:[#allocation11 + $0x90] sm:$0xff]
    %v6179 = vld [vmem:[#allocation11 + $0x98] sm:$0xf]
    %v6180 = vld [vmem:[#allocation11 + $0x9c] sm:$0xff]
    %v6181 = vld [vmem:[#allocation11 + $0xa4] sm:$0xf]
    %v6182 = vld [vmem:[#allocation11 + $0xa8] sm:$0xff]
    %v6183 = vld [vmem:[#allocation11 + $0xb0] sm:$0xf]
    %v6184 = vld [vmem:[#allocation11 + $0xb4] sm:$0xff]
    %v6185 = vld [vmem:[#allocation11 + $0xbc] sm:$0xf]
    %v6218 = vunpack.c.l.b16 %v6154
    %v6219 = vunpack.c.h.b16 %v6154
    %v6220 = vunpack.c.l.b16 %v6155
    %v6221 = vunpack.c.l.b16 %v6156
    %v6222 = vunpack.c.h.b16 %v6156
    %v6223 = vunpack.c.l.b16 %v6157
    %v6224 = vunpack.c.l.b16 %v6158
    %v6225 = vunpack.c.h.b16 %v6158
    %v6226 = vunpack.c.l.b16 %v6159
    %v6227 = vunpack.c.l.b16 %v6160
    %v6228 = vunpack.c.h.b16 %v6160
    %v6229 = vunpack.c.l.b16 %v6161
    %v6230 = vunpack.c.l.b16 %v6162
    %v6231 = vunpack.c.h.b16 %v6162
    %v6232 = vunpack.c.l.b16 %v6163
    %v6233 = vunpack.c.l.b16 %v6164
    %v6234 = vunpack.c.h.b16 %v6164
    %v6235 = vunpack.c.l.b16 %v6165
    %v6236 = vunpack.c.l.b16 %v6166
    %v6237 = vunpack.c.h.b16 %v6166
    %v6238 = vunpack.c.l.b16 %v6167
    %v6239 = vunpack.c.l.b16 %v6168
    %v6240 = vunpack.c.h.b16 %v6168
    %v6241 = vunpack.c.l.b16 %v6169
    %v6242 = vunpack.c.l.b16 %v6170
    %v6243 = vunpack.c.h.b16 %v6170
    %v6244 = vunpack.c.l.b16 %v6171
    %v6245 = vunpack.c.l.b16 %v6172
    %v6246 = vunpack.c.h.b16 %v6172
    %v6247 = vunpack.c.l.b16 %v6173
    %v6248 = vunpack.c.l.b16 %v6174
    %v6249 = vunpack.c.h.b16 %v6174
    %v6250 = vunpack.c.l.b16 %v6175
    %v6251 = vunpack.c.l.b16 %v6176
    %v6252 = vunpack.c.h.b16 %v6176
    %v6253 = vunpack.c.l.b16 %v6177
    %v6254 = vunpack.c.l.b16 %v6178
    %v6255 = vunpack.c.h.b16 %v6178
    %v6256 = vunpack.c.l.b16 %v6179
    %v6257 = vunpack.c.l.b16 %v6180
    %v6258 = vunpack.c.h.b16 %v6180
    %v6259 = vunpack.c.l.b16 %v6181
    %v6260 = vunpack.c.l.b16 %v6182
    %v6261 = vunpack.c.h.b16 %v6182
    %v6262 = vunpack.c.l.b16 %v6183
    %v6263 = vunpack.c.l.b16 %v6184
    %v6264 = vunpack.c.h.b16 %v6184
    %v6265 = vunpack.c.l.b16 %v6185
    %v6266 = vpack.c.b16 %v6221, %v6218
    %v6267 = vpack.c.b16 %v6222, %v6219
    %v6268 = vpack.c.b16 %v6223, %v6220
    %v6269 = vpack.c.b16 %v6227, %v6224
    %v6270 = vpack.c.b16 %v6228, %v6225
    %v6271 = vpack.c.b16 %v6229, %v6226
    %v6272 = vpack.c.b16 %v6233, %v6230
    %v6273 = vpack.c.b16 %v6234, %v6231
    %v6274 = vpack.c.b16 %v6235, %v6232
    %v6275 = vpack.c.b16 %v6239, %v6236
    %v6276 = vpack.c.b16 %v6240, %v6237
    %v6277 = vpack.c.b16 %v6241, %v6238
    %v6278 = vpack.c.b16 %v6245, %v6242
    %v6279 = vpack.c.b16 %v6246, %v6243
    %v6280 = vpack.c.b16 %v6247, %v6244
    %v6281 = vpack.c.b16 %v6251, %v6248
    %v6282 = vpack.c.b16 %v6252, %v6249
    %v6283 = vpack.c.b16 %v6253, %v6250
    %v6284 = vpack.c.b16 %v6257, %v6254
    %v6285 = vpack.c.b16 %v6258, %v6255
    %v6286 = vpack.c.b16 %v6259, %v6256
    %v6287 = vpack.c.b16 %v6263, %v6260
    %v6288 = vpack.c.b16 %v6264, %v6261
    %v6289 = vpack.c.b16 %v6265, %v6262
    %6314 = vmatpush.bf16.msra.mxu0 %v6287
    %6315 = vmatpush.bf16.msra.mxu0 %v6284
    %6316 = vmatpush.bf16.msra.mxu0 %v6281
    %6317 = vmatpush.bf16.msra.mxu0 %v6278
    %6318 = vmatpush.bf16.msra.mxu0 %v6275
    %6319 = vmatpush.bf16.msra.mxu0 %v6272
    %6320 = vmatpush.bf16.msra.mxu0 %v6269
    %6321 = vmatpush.bf16.msra.mxu0 %v6266
    %6322 = vmatmul.bf16.gmra.mxu0 %v5705
    %v6323 = vpop.f32.mrf.mxu0
    %v6324 = vadd.f32 %v463, %v6323
    %v6325 = vpop.f32.mrf.mxu0
    %6326 = vdwg.mxu0
    %6327 = vmatpush.bf16.msra.mxu0 %v6288
    %6328 = vmatpush.bf16.msra.mxu0 %v6285
    %6329 = vmatpush.bf16.msra.mxu0 %v6282
    %6330 = vmatpush.bf16.msra.mxu0 %v6279
    %6331 = vmatpush.bf16.msra.mxu0 %v6276
    %6332 = vmatpush.bf16.msra.mxu0 %v6273
    %6333 = vmatpush.bf16.msra.mxu0 %v6270
    %6334 = vmatpush.bf16.msra.mxu0 %v6267
    %6335 = vmatmul.bf16.gmra.mxu0 %v5705
    %v6336 = vpop.f32.mrf.mxu0
    %v6337 = vadd.f32 %v464, %v6336
    %v6338 = vpop.f32.mrf.mxu0
    %6339 = vdwg.mxu0
    %6340 = vmatpush.bf16.msra.mxu0 %v6289
    %6341 = vmatpush.bf16.msra.mxu0 %v6286
    %6342 = vmatpush.bf16.msra.mxu0 %v6283
    %6343 = vmatpush.bf16.msra.mxu0 %v6280
    %6344 = vmatpush.bf16.msra.mxu0 %v6277
    %6345 = vmatpush.bf16.msra.mxu0 %v6274
    %6346 = vmatpush.bf16.msra.mxu0 %v6271
    %6347 = vmatpush.bf16.msra.mxu0 %v6268
    %6348 = vmatmul.bf16.gmra.mxu0 %v5705
    %v6349 = vpop.f32.mrf.mxu0
    %v6350 = vadd.f32 %v465, %v6349
    %v6351 = vpop.f32.mrf.mxu0
    %6352 = vdwg.mxu0
    %v6353 = vld [vmem:[#allocation12] sm:$0xff]
    %v6354 = vld [vmem:[#allocation12 + $0x8] sm:$0xf]
    %v6355 = vld [vmem:[#allocation12 + $0xc] sm:$0xff]
    %v6356 = vld [vmem:[#allocation12 + $0x14] sm:$0xf]
    %v6357 = vld [vmem:[#allocation12 + $0x18] sm:$0xff]
    %v6358 = vld [vmem:[#allocation12 + $0x20] sm:$0xf]
    %v6359 = vld [vmem:[#allocation12 + $0x24] sm:$0xff]
    %v6360 = vld [vmem:[#allocation12 + $0x2c] sm:$0xf]
    %v6361 = vld [vmem:[#allocation12 + $0x30] sm:$0xff]
    %v6362 = vld [vmem:[#allocation12 + $0x38] sm:$0xf]
    %v6363 = vld [vmem:[#allocation12 + $0x3c] sm:$0xff]
    %v6364 = vld [vmem:[#allocation12 + $0x44] sm:$0xf]
    %v6365 = vld [vmem:[#allocation12 + $0x48] sm:$0xff]
    %v6366 = vld [vmem:[#allocation12 + $0x50] sm:$0xf]
    %v6367 = vld [vmem:[#allocation12 + $0x54] sm:$0xff]
    %v6368 = vld [vmem:[#allocation12 + $0x5c] sm:$0xf]
    %v6369 = vld [vmem:[#allocation12 + $0x60] sm:$0xff]
    %v6370 = vld [vmem:[#allocation12 + $0x68] sm:$0xf]
    %v6371 = vld [vmem:[#allocation12 + $0x6c] sm:$0xff]
    %v6372 = vld [vmem:[#allocation12 + $0x74] sm:$0xf]
    %v6373 = vld [vmem:[#allocation12 + $0x78] sm:$0xff]
    %v6374 = vld [vmem:[#allocation12 + $0x80] sm:$0xf]
    %v6375 = vld [vmem:[#allocation12 + $0x84] sm:$0xff]
    %v6376 = vld [vmem:[#allocation12 + $0x8c] sm:$0xf]
    %v6377 = vld [vmem:[#allocation12 + $0x90] sm:$0xff]
    %v6378 = vld [vmem:[#allocation12 + $0x98] sm:$0xf]
    %v6379 = vld [vmem:[#allocation12 + $0x9c] sm:$0xff]
    %v6380 = vld [vmem:[#allocation12 + $0xa4] sm:$0xf]
    %v6381 = vld [vmem:[#allocation12 + $0xa8] sm:$0xff]
    %v6382 = vld [vmem:[#allocation12 + $0xb0] sm:$0xf]
    %v6383 = vld [vmem:[#allocation12 + $0xb4] sm:$0xff]
    %v6384 = vld [vmem:[#allocation12 + $0xbc] sm:$0xf]
    %v6417 = vunpack.c.l.b16 %v6353
    %v6418 = vunpack.c.h.b16 %v6353
    %v6419 = vunpack.c.l.b16 %v6354
    %v6420 = vunpack.c.l.b16 %v6355
    %v6421 = vunpack.c.h.b16 %v6355
    %v6422 = vunpack.c.l.b16 %v6356
    %v6423 = vunpack.c.l.b16 %v6357
    %v6424 = vunpack.c.h.b16 %v6357
    %v6425 = vunpack.c.l.b16 %v6358
    %v6426 = vunpack.c.l.b16 %v6359
    %v6427 = vunpack.c.h.b16 %v6359
    %v6428 = vunpack.c.l.b16 %v6360
    %v6429 = vunpack.c.l.b16 %v6361
    %v6430 = vunpack.c.h.b16 %v6361
    %v6431 = vunpack.c.l.b16 %v6362
    %v6432 = vunpack.c.l.b16 %v6363
    %v6433 = vunpack.c.h.b16 %v6363
    %v6434 = vunpack.c.l.b16 %v6364
    %v6435 = vunpack.c.l.b16 %v6365
    %v6436 = vunpack.c.h.b16 %v6365
    %v6437 = vunpack.c.l.b16 %v6366
    %v6438 = vunpack.c.l.b16 %v6367
    %v6439 = vunpack.c.h.b16 %v6367
    %v6440 = vunpack.c.l.b16 %v6368
    %v6441 = vunpack.c.l.b16 %v6369
    %v6442 = vunpack.c.h.b16 %v6369
    %v6443 = vunpack.c.l.b16 %v6370
    %v6444 = vunpack.c.l.b16 %v6371
    %v6445 = vunpack.c.h.b16 %v6371
    %v6446 = vunpack.c.l.b16 %v6372
    %v6447 = vunpack.c.l.b16 %v6373
    %v6448 = vunpack.c.h.b16 %v6373
    %v6449 = vunpack.c.l.b16 %v6374
    %v6450 = vunpack.c.l.b16 %v6375
    %v6451 = vunpack.c.h.b16 %v6375
    %v6452 = vunpack.c.l.b16 %v6376
    %v6453 = vunpack.c.l.b16 %v6377
    %v6454 = vunpack.c.h.b16 %v6377
    %v6455 = vunpack.c.l.b16 %v6378
    %v6456 = vunpack.c.l.b16 %v6379
    %v6457 = vunpack.c.h.b16 %v6379
    %v6458 = vunpack.c.l.b16 %v6380
    %v6459 = vunpack.c.l.b16 %v6381
    %v6460 = vunpack.c.h.b16 %v6381
    %v6461 = vunpack.c.l.b16 %v6382
    %v6462 = vunpack.c.l.b16 %v6383
    %v6463 = vunpack.c.h.b16 %v6383
    %v6464 = vunpack.c.l.b16 %v6384
    %v6465 = vpack.c.b16 %v6420, %v6417
    %v6466 = vpack.c.b16 %v6421, %v6418
    %v6467 = vpack.c.b16 %v6422, %v6419
    %v6468 = vpack.c.b16 %v6426, %v6423
    %v6469 = vpack.c.b16 %v6427, %v6424
    %v6470 = vpack.c.b16 %v6428, %v6425
    %v6471 = vpack.c.b16 %v6432, %v6429
    %v6472 = vpack.c.b16 %v6433, %v6430
    %v6473 = vpack.c.b16 %v6434, %v6431
    %v6474 = vpack.c.b16 %v6438, %v6435
    %v6475 = vpack.c.b16 %v6439, %v6436
    %v6476 = vpack.c.b16 %v6440, %v6437
    %v6477 = vpack.c.b16 %v6444, %v6441
    %v6478 = vpack.c.b16 %v6445, %v6442
    %v6479 = vpack.c.b16 %v6446, %v6443
    %v6480 = vpack.c.b16 %v6450, %v6447
    %v6481 = vpack.c.b16 %v6451, %v6448
    %v6482 = vpack.c.b16 %v6452, %v6449
    %v6483 = vpack.c.b16 %v6456, %v6453
    %v6484 = vpack.c.b16 %v6457, %v6454
    %v6485 = vpack.c.b16 %v6458, %v6455
    %v6486 = vpack.c.b16 %v6462, %v6459
    %v6487 = vpack.c.b16 %v6463, %v6460
    %v6488 = vpack.c.b16 %v6464, %v6461
    %6513 = vmatpush.bf16.msra.mxu0 %v6486
    %6514 = vmatpush.bf16.msra.mxu0 %v6483
    %6515 = vmatpush.bf16.msra.mxu0 %v6480
    %6516 = vmatpush.bf16.msra.mxu0 %v6477
    %6517 = vmatpush.bf16.msra.mxu0 %v6474
    %6518 = vmatpush.bf16.msra.mxu0 %v6471
    %6519 = vmatpush.bf16.msra.mxu0 %v6468
    %6520 = vmatpush.bf16.msra.mxu0 %v6465
    %6521 = vmatmul.bf16.gmra.mxu0 %v6151
    %v6522 = vpop.f32.mrf.mxu0
    %v6523 = vadd.f32 0.0, %v6522
    %v6524 = vpop.f32.mrf.mxu0
    %6525 = vdwg.mxu0
    %6526 = vmatpush.bf16.msra.mxu0 %v6487
    %6527 = vmatpush.bf16.msra.mxu0 %v6484
    %6528 = vmatpush.bf16.msra.mxu0 %v6481
    %6529 = vmatpush.bf16.msra.mxu0 %v6478
    %6530 = vmatpush.bf16.msra.mxu0 %v6475
    %6531 = vmatpush.bf16.msra.mxu0 %v6472
    %6532 = vmatpush.bf16.msra.mxu0 %v6469
    %6533 = vmatpush.bf16.msra.mxu0 %v6466
    %6534 = vmatmul.bf16.gmra.mxu0 %v6151
    %v6535 = vpop.f32.mrf.mxu0
    %v6536 = vadd.f32 0.0, %v6535
    %v6537 = vpop.f32.mrf.mxu0
    %6538 = vdwg.mxu0
    %6539 = vmatpush.bf16.msra.mxu0 %v6488
    %6540 = vmatpush.bf16.msra.mxu0 %v6485
    %6541 = vmatpush.bf16.msra.mxu0 %v6482
    %6542 = vmatpush.bf16.msra.mxu0 %v6479
    %6543 = vmatpush.bf16.msra.mxu0 %v6476
    %6544 = vmatpush.bf16.msra.mxu0 %v6473
    %6545 = vmatpush.bf16.msra.mxu0 %v6470
    %6546 = vmatpush.bf16.msra.mxu0 %v6467
    %6547 = vmatmul.bf16.gmra.mxu0 %v6151
    %v6548 = vpop.f32.mrf.mxu0
    %v6549 = vadd.f32 0.0, %v6548
    %v6550 = vpop.f32.mrf.mxu0
    %6551 = vdwg.mxu0
    %v6552 = vadd.f32 %v6324, %v6523
    %v6553 = vxor.u32 %v6552, 2147483648
    %v6554 = vmul.f32 %v6553, 1.442695
    %v6555 = vpow.pop %v6554
    %v6556 = vadd.f32 %v6555, 1.0
    %v6557 = vrcp.pop %v6556
    %v6558 = vmul.f32 %v6556, %v6557
    %v6559 = vsub.f32 1.0, %v6558
    %v6560 = vmul.f32 %v6557, %v6559
    %v6561 = vadd.f32 %v6557, %v6560
    %vm6562 = vweird.f32 %v6556
    %vm6563 = vweird.f32 %v6557
    %vm6564 = vmor %vm6562, %vm6563
    %v6565 = vsel %vm6564, %v6557, %v6561
    %v6566 = vand.u32 2147483647, %v6556
    %vm6567 = vcmp.eq.f32.partialorder %v6566, 8.507059e+37
    %v6568 = vand.u32 %v6556, 2147483648
    %v6569 = vor.u32 1.1754944e-38, %v6568
    %v6570 = vsel %vm6567, %v6569, %v6565
    %v6571 = vmul.f32 1.0, %v6570
    %v6572 = vadd.f32 %v6337, %v6536
    %v6573 = vxor.u32 %v6572, 2147483648
    %v6574 = vmul.f32 %v6573, 1.442695
    %v6575 = vpow.pop %v6574
    %v6576 = vadd.f32 %v6575, 1.0
    %v6577 = vrcp.pop %v6576
    %v6578 = vmul.f32 %v6576, %v6577
    %v6579 = vsub.f32 1.0, %v6578
    %v6580 = vmul.f32 %v6577, %v6579
    %v6581 = vadd.f32 %v6577, %v6580
    %vm6582 = vweird.f32 %v6576
    %vm6583 = vweird.f32 %v6577
    %vm6584 = vmor %vm6582, %vm6583
    %v6585 = vsel %vm6584, %v6577, %v6581
    %v6586 = vand.u32 2147483647, %v6576
    %vm6587 = vcmp.eq.f32.partialorder %v6586, 8.507059e+37
    %v6588 = vand.u32 %v6576, 2147483648
    %v6589 = vor.u32 1.1754944e-38, %v6588
    %v6590 = vsel %vm6587, %v6589, %v6585
    %v6591 = vmul.f32 1.0, %v6590
    %v6592 = vadd.f32 %v6549, %v471
    %v6593 = vmul.f32 %v6571, %v6592
    %v6594 = vadd.f32 %v6350, %v6593
    %v6595 = vtanh.pop %v6594
    %v6596 = vsub.f32 %v6150, %v6595
    %v6597 = vmul.f32 %v6591, %v6596
    %v6598 = vadd.f32 %v6595, %v6597
    %s6599 = scalar_lea.vmem [#allocation14], 64
    %6600 = vst [vmem:[%s6599] sm:$0xff] %v6598
    // Predicated region
    $region62: #{tpu_custom_call.1} parent=1 // pred_check
      _
    $region63: #{tpu_custom_call.1} parent=1 // pred_check_branch
      %6602 = sbr.rel (0) target = $region65
    $region64: #{tpu_custom_call.1} parent=1 // pred_region
      %6604 = vsyncadd [#allocation5], 0
      %s6605 = sshll.u32 [#allocation14], 4
      %s6606 = int_to_ptr.vmem [resolvable:$true] %s6605
      %s6607 = sshll.u32 %s9, 4
      %s6608 = int_to_ptr.hbm [resolvable:$true] %s6607
      %6613 = dma.vmem_to_hbm [thread:$0]  %s6606, 1152, %s6608, [#allocation5], 128, 128, 8
    $region65: #{tpu_custom_call.1} parent=1 // pred_fallthru
      _
    // Predicated region
    $region66: #{tpu_custom_call.1} parent=1 // pred_check
      _
    $region67: #{tpu_custom_call.1} parent=1 // pred_check_branch
      %6615 = sbr.rel (0) target = $region69
    $region68: #{tpu_custom_call.1} parent=1 // pred_region
      %6617 = dma.done [#allocation5], 1152
    $region69: #{tpu_custom_call.1} parent=1 // pred_fallthru
      _
    %6618 = vsyncpa [#allocation4], 1
    %6619 = vsyncpa [#allocation7], 1
    %6620 = vsyncpa [#allocation10], 1
    %6621 = vsyncpa [#allocation13], 1
    %6622 = vsyncpa [#allocation5], 1

</llo_original>
